<compile_context>
chip_gen: v7x
topology: tpu7x:2x2x1
jax: 0.10.0
libtpu: 0.0.40
codegen_flags: <defaults>
</compile_context>

<pallas_src>
import functools

import jax
import jax.numpy as jnp
import numpy as np
from jax.experimental import pallas as pl
from jax.experimental.pallas import tpu as pltpu

LANE = 128


# ------------------------------ Pallas kernels ------------------------------ #

def _dense_block_kernel(x_ref, scale_ref, shift_ref, w_ref, o_ref,
                        act_ref, col_ref, *, H, W, n_layers, stem_first):
    """One full dense block (optionally with the stem conv as layer 0).

    x_ref:       (1, H+2, W+2, 128) f32 input slab (zero halo, zero-padded chans)
    scale/shift: (L, 128) f32 folded BN params (zero on padded channels)
    w_ref:       (L, 9*128, 128) bf16 tap-major conv weights; layer l's output
                 channels are pre-placed at columns [cin_l, cin_l+growth).
    o_ref:       (1, H+2, W+2, 128) f32 output slab -- used as the resident
                 working slab for the whole block (never leaves VMEM).
    act_ref:     (H+2, W+2, 128) f32 scratch; halo stays zero -> true conv pad.
    col_ref:     (H*W, 9*128) bf16 im2col scratch (K=1152 per matmul).
    """
    o_ref[...] = x_ref[...]
    act_ref[...] = jnp.zeros_like(act_ref)

    for l in range(n_layers):
        interior = o_ref[0, 1:H + 1, 1:W + 1, :]              # (H, W, 128)
        if stem_first and l == 0:
            a = interior                      # stem: plain conv, no BN/ReLU
        else:
            a = jnp.maximum(interior * scale_ref[l] + shift_ref[l], 0.0)
        act_ref[1:H + 1, 1:W + 1, :] = a

        # Tap-packed im2col: nine shifted windows stacked along K.
        for t in range(9):
            kh, kw = t // 3, t % 3
            col_ref[:, t * LANE:(t + 1) * LANE] = (
                act_ref[kh:kh + H, kw:kw + W, :]
                .reshape(H * W, LANE).astype(jnp.bfloat16))

        y = jnp.dot(col_ref[...], w_ref[l],
                    preferred_element_type=jnp.float32).reshape(H, W, LANE)

        if stem_first and l == 0:
            # Stem output replaces the raw-image channels.
            o_ref[0, 1:H + 1, 1:W + 1, :] = y
        else:
            # New features live in their own (currently zero) channel slice,
            # so the dense concatenation is an in-place add on the slab.
            o_ref[0, 1:H + 1, 1:W + 1, :] = interior + y


def _transition_kernel(x_ref, scale_ref, shift_ref, pool_ref, w1_ref, o_ref,
                       *, H, W):
    """BN -> ReLU -> 2x2 avg pool -> 1x1 conv (pool & conv commute; pool 1st)."""
    Ho, Wo = H // 2, W // 2
    a = x_ref[0, 1:H + 1, 1:W + 1, :]                         # (H, W, 128)
    a = jnp.maximum(a * scale_ref[0] + shift_ref[0], 0.0)
    a = a.reshape(H * W, LANE).astype(jnp.bfloat16)
    pooled = jnp.dot(pool_ref[...], a, preferred_element_type=jnp.float32)
    y = jnp.dot(pooled.astype(jnp.bfloat16), w1_ref[...],
                preferred_element_type=jnp.float32)           # (Ho*Wo, 128)
    o_ref[...] = jnp.zeros_like(o_ref)                        # zero halo
    o_ref[0, 1:Ho + 1, 1:Wo + 1, :] = y.reshape(Ho, Wo, LANE)


def _head_kernel(x_ref, scale_ref, shift_ref, wfc_ref, bias_ref, o_ref, *, H, W):
    """BN -> ReLU -> global average pool -> FC."""
    a = x_ref[0, 1:H + 1, 1:W + 1, :]                         # (H, W, 128)
    a = jnp.maximum(a * scale_ref[0] + shift_ref[0], 0.0)
    m = jnp.sum(a.reshape(H * W, LANE), axis=0, keepdims=True) * (1.0 / (H * W))
    y = jnp.dot(m.astype(jnp.bfloat16), wfc_ref[...],
                preferred_element_type=jnp.float32)
    o_ref[0] = y + bias_ref[...]


# --------------------------- pallas_call wrappers ---------------------------- #

def dense_block(slab, scales, shifts, weights, *, stem_first):
    N, Hp2, Wp2, _ = slab.shape
    H, W = Hp2 - 2, Wp2 - 2
    L = weights.shape[0]
    kernel = functools.partial(_dense_block_kernel, H=H, W=W, n_layers=L,
                               stem_first=stem_first)
    return pl.pallas_call(
        kernel,
        out_shape=jax.ShapeDtypeStruct((N, Hp2, Wp2, LANE), jnp.float32),
        grid=(N,),
        in_specs=[
            pl.BlockSpec((1, Hp2, Wp2, LANE), lambda n: (n, 0, 0, 0)),
            pl.BlockSpec((L, LANE), lambda n: (0, 0)),
            pl.BlockSpec((L, LANE), lambda n: (0, 0)),
            pl.BlockSpec((L, 9 * LANE, LANE), lambda n: (0, 0, 0)),
        ],
        out_specs=pl.BlockSpec((1, Hp2, Wp2, LANE), lambda n: (n, 0, 0, 0)),
        scratch_shapes=[
            pltpu.VMEM((Hp2, Wp2, LANE), jnp.float32),
            pltpu.VMEM((H * W, 9 * LANE), jnp.bfloat16),
        ],
        compiler_params=pltpu.CompilerParams(
            dimension_semantics=("parallel",)),
    )(slab, scales, shifts, weights)


def transition(slab, scale, shift, pool_mat, w1):
    N, Hp2, Wp2, _ = slab.shape
    H, W = Hp2 - 2, Wp2 - 2
    Ho, Wo = H // 2, W // 2
    kernel = functools.partial(_transition_kernel, H=H, W=W)
    return pl.pallas_call(
        kernel,
        out_shape=jax.ShapeDtypeStruct((N, Ho + 2, Wo + 2, LANE), jnp.float32),
        grid=(N,),
        in_specs=[
            pl.BlockSpec((1, Hp2, Wp2, LANE), lambda n: (n, 0, 0, 0)),
            pl.BlockSpec((1, LANE), lambda n: (0, 0)),
            pl.BlockSpec((1, LANE), lambda n: (0, 0)),
            pl.BlockSpec((Ho * Wo, H * W), lambda n: (0, 0)),
            pl.BlockSpec((LANE, LANE), lambda n: (0, 0)),
        ],
        out_specs=pl.BlockSpec((1, Ho + 2, Wo + 2, LANE),
                               lambda n: (n, 0, 0, 0)),
        compiler_params=pltpu.CompilerParams(
            dimension_semantics=("parallel",)),
    )(slab, scale, shift, pool_mat, w1)


def head(slab, scale, shift, wfc, bias):
    N, Hp2, Wp2, _ = slab.shape
    H, W = Hp2 - 2, Wp2 - 2
    kernel = functools.partial(_head_kernel, H=H, W=W)
    out = pl.pallas_call(
        kernel,
        out_shape=jax.ShapeDtypeStruct((N, 1, LANE), jnp.float32),
        grid=(N,),
        in_specs=[
            pl.BlockSpec((1, Hp2, Wp2, LANE), lambda n: (n, 0, 0, 0)),
            pl.BlockSpec((1, LANE), lambda n: (0, 0)),
            pl.BlockSpec((1, LANE), lambda n: (0, 0)),
            pl.BlockSpec((LANE, LANE), lambda n: (0, 0)),
            pl.BlockSpec((1, LANE), lambda n: (0, 0)),
        ],
        out_specs=pl.BlockSpec((1, 1, LANE), lambda n: (n, 0, 0)),
        compiler_params=pltpu.CompilerParams(
            dimension_semantics=("parallel",)),
    )(slab, scale, shift, wfc, bias)
    return out.reshape(N, LANE)


# --------------------- one-time parameter preparation ------------------------ #

def _fold_bn(bn, eps=1e-5):
    scale = bn["gamma"] / jnp.sqrt(bn["var"] + eps)
    shift = bn["beta"] - bn["mean"] * scale
    c = scale.shape[0]
    return jnp.pad(scale, (0, LANE - c)), jnp.pad(shift, (0, LANE - c))


def _pack_w3(w, out_off):
    # torch (Cout, Cin, 3, 3) -> (9*128, 128) bf16, tap-major rows, output
    # channels pre-placed at columns [out_off, out_off+Cout).
    cout, cin = int(w.shape[0]), int(w.shape[1])
    wm = jnp.transpose(w, (2, 3, 1, 0)).reshape(9, cin, cout)
    wm = jnp.pad(wm, ((0, 0), (0, LANE - cin), (out_off, LANE - cout - out_off)))
    return wm.reshape(9 * LANE, LANE).astype(jnp.bfloat16)


def _pack_w1(w):
    # torch (Cout, Cin, 1, 1) -> (128, 128) bf16.
    cout, cin = int(w.shape[0]), int(w.shape[1])
    wm = jnp.transpose(w[:, :, 0, 0], (1, 0))
    return jnp.pad(wm, ((0, LANE - cin), (0, LANE - cout))).astype(jnp.bfloat16)


def _pool_matrix(H, W):
    # (Ho*Wo, H*W) averaging matrix for a 2x2/stride-2 average pool over the
    # row-major flattened spatial axis.  0.25 is exact in bf16.
    Ho, Wo = H // 2, W // 2
    m = np.zeros((Ho * Wo, H * W), np.float32)
    for ho in range(Ho):
        for wo in range(Wo):
            for dh in range(2):
                for dw in range(2):
                    m[ho * Wo + wo, (2 * ho + dh) * W + (2 * wo + dw)] = 0.25
    return jnp.asarray(m, jnp.bfloat16)


def prepare_densenet(params, height, width):
    """Fold BN, pack/pad/bf16-cast weights, build pool matrices -- ONCE."""
    growth = params["blocks"][0][0]["conv"].shape[0]
    channels = params["conv1"].shape[0]
    H, W = height, width
    blocks, transitions = [], []
    for b in range(3):
        layers = params["blocks"][b]
        scales, shifts, weights = [], [], []
        if b == 0:
            # Stem conv fused as (BN/ReLU-free) layer 0 of block 1.
            scales.append(jnp.zeros((LANE,), jnp.float32))
            shifts.append(jnp.zeros((LANE,), jnp.float32))
            weights.append(_pack_w3(params["conv1"], 0))
        for l, layer in enumerate(layers):
            cin_l = channels + l * growth
            s, sh = _fold_bn(layer["bn"])
            scales.append(s)
            shifts.append(sh)
            weights.append(_pack_w3(layer["conv"], cin_l))
        blocks.append({"scales": jnp.stack(scales),
                       "shifts": jnp.stack(shifts),
                       "weights": jnp.stack(weights)})
        channels += len(layers) * growth
        if b < 2:
            t = params["transitions"][b]
            s, sh = _fold_bn(t["bn"])
            transitions.append({
                "scale": s.reshape(1, LANE), "shift": sh.reshape(1, LANE),
                "pool": _pool_matrix(H, W), "w1": _pack_w1(t["conv"]),
            })
            H, W = H // 2, W // 2
    s, sh = _fold_bn(params["bn"])
    num_classes = params["fc"]["w"].shape[0]
    head_p = {
        "scale": s.reshape(1, LANE), "shift": sh.reshape(1, LANE),
        "wfc": jnp.pad(params["fc"]["w"].T,
                       ((0, LANE - channels),
                        (0, LANE - num_classes))).astype(jnp.bfloat16),
        "bias": jnp.pad(params["fc"]["b"],
                        (0, LANE - num_classes)).reshape(1, LANE),
    }
    return {"blocks": blocks, "transitions": transitions, "head": head_p}


# -------------------------------- forward ------------------------------------ #

@functools.partial(jax.jit, static_argnames=("num_classes",))
def densenet_forward(x_nchw, prepped, *, num_classes):
    # NCHW -> NHWC, pad channels to 128 lanes and spatial by a zero halo.
    x = jnp.transpose(x_nchw, (0, 2, 3, 1)).astype(jnp.float32)
    cin = x.shape[-1]
    slab = jnp.pad(x, ((0, 0), (1, 1), (1, 1), (0, LANE - cin)))
    for b, blk in enumerate(prepped["blocks"]):
        slab = dense_block(slab, blk["scales"], blk["shifts"], blk["weights"],
                           stem_first=(b == 0))
        if b < len(prepped["transitions"]):
            t = prepped["transitions"][b]
            slab = transition(slab, t["scale"], t["shift"], t["pool"], t["w1"])
    h = prepped["head"]
    logits = head(slab, h["scale"], h["shift"], h["wfc"], h["bias"])
    return logits[:, :num_classes]


# ------------------------- synthetic torch-style params ---------------------- #

def _bn_params(key, c):
    k1, k2, k3, k4 = jax.random.split(key, 4)
    return {
        "gamma": 1.0 + 0.1 * jax.random.normal(k1, (c,), jnp.float32),
        "beta": 0.1 * jax.random.normal(k2, (c,), jnp.float32),
        "mean": 0.1 * jax.random.normal(k3, (c,), jnp.float32),
        "var": jax.random.uniform(k4, (c,), jnp.float32, 0.5, 1.5),
    }


def _conv_w(key, cout, cin, k):
    return 0.1 * jax.random.normal(key, (cout, cin, k, k), jnp.float32)


def make_densenet_params(key, depth=7, first_output=8, growth_rate=4,
                         num_classes=10):
    assert (depth - 4) % 3 == 0, "depth must be 3n+4"
    n_layers = (depth - 4) // 3
    keys = iter(jax.random.split(key, 4 + 3 * n_layers * 2 + 2 * 2 + 2))

    params = {"conv1": _conv_w(next(keys), first_output, 3, 3)}
    channels = first_output
    blocks, transitions = [], []
    for b in range(3):
        layers = []
        for i in range(n_layers):
            cin = channels + i * growth_rate
            layers.append({"bn": _bn_params(next(keys), cin),
                           "conv": _conv_w(next(keys), growth_rate, cin, 3)})
        blocks.append(layers)
        channels += n_layers * growth_rate
        if b < 2:
            transitions.append({"bn": _bn_params(next(keys), channels),
                                "conv": _conv_w(next(keys), channels, channels, 1)})
    params["blocks"] = blocks
    params["transitions"] = transitions
    params["bn"] = _bn_params(next(keys), channels)
    kw, kb = jax.random.split(next(keys))
    params["fc"] = {
        "w": 0.1 * jax.random.normal(kw, (num_classes, channels), jnp.float32),
        "b": 0.1 * jax.random.normal(kb, (num_classes,), jnp.float32),
    }
    return params


# ----------------------- pure-JAX (XLA) f32 reference ------------------------ #

def densenet_reference(x_nchw, params):
    x = jnp.transpose(x_nchw, (0, 2, 3, 1)).astype(jnp.float32)

    def conv3(x, w):
        return jax.lax.conv_general_dilated(
            x, jnp.transpose(w, (2, 3, 1, 0)), (1, 1), "SAME",
            dimension_numbers=("NHWC", "HWIO", "NHWC"))

    def bn_relu(x, bn):
        s = bn["gamma"] / jnp.sqrt(bn["var"] + 1e-5)
        return jnp.maximum(x * s + (bn["beta"] - bn["mean"] * s), 0.0)

    y = conv3(x, params["conv1"])
    for b in range(3):
        for layer in params["blocks"][b]:
            out = conv3(bn_relu(y, layer["bn"]), layer["conv"])
            y = jnp.concatenate([y, out], axis=-1)
        if b < 2:
            t = params["transitions"][b]
            z = bn_relu(y, t["bn"])
            z = jnp.einsum("nhwc,kc->nhwk", z, t["conv"][:, :, 0, 0])
            N, H, W, C = z.shape
            y = z.reshape(N, H // 2, 2, W // 2, 2, C).mean(axis=(2, 4))
    y = bn_relu(y, params["bn"])
    feat = y.mean(axis=(1, 2))
    return feat @ params["fc"]["w"].T + params["fc"]["b"]


# ----------------------------------- main ------------------------------------ #

if __name__ == "__main__":
    key = jax.random.PRNGKey(0)
    k_in, k_par = jax.random.split(key)

    # Small DenseNet config: depth=7 -> 1 dense layer per block.
    params = make_densenet_params(k_par, depth=7, first_output=8,
                                  growth_rate=4, num_classes=10)
    prepped = prepare_densenet(params, height=16, width=16)

    # Input in PyTorch NCHW convention: (batch=2, channels=3, 16, 16).
    x = jax.random.normal(k_in, (2, 3, 16, 16), jnp.float32)

    logits = densenet_forward(x, prepped, num_classes=10)
    jax.block_until_ready(logits)
    assert logits.shape == (2, 10), logits.shape

    # bf16-MXU vs f32-XLA tolerance check (stated tolerance ~5e-2).
    ref = densenet_reference(x, params)
    err = float(jnp.max(jnp.abs(logits - ref)))
    tol = 5e-2 + 5e-2 * float(jnp.max(jnp.abs(ref)))
    assert err < tol, f"max |diff|={err:.4f} exceeds tol={tol:.4f}"

    print("KERNEL_OK")
</pallas_src>

<mosaic_0001>
module attributes {stable_mosaic.version = 11 : i64} {
  func.func @_transition_kernel(%arg0: i32, %arg1: memref<1x18x18x128xf32, #tpu.memory_space<vmem>>, %arg2: memref<1x128xf32, #tpu.memory_space<vmem>>, %arg3: memref<1x128xf32, #tpu.memory_space<vmem>>, %arg4: memref<64x256xbf16, #tpu.memory_space<vmem>>, %arg5: memref<128x128xbf16, #tpu.memory_space<vmem>>, %arg6: memref<1x10x10x128xf32, #tpu.memory_space<vmem>>) attributes {dimension_semantics = [#tpu.dimension_semantics<parallel>], iteration_bounds = array<i64: 2>, scalar_prefetch = 0 : i64, scratch_operands = 0 : i64, tpu.core_type = #tpu.core_type<tc>, window_params = [{transform_indices = @transform_0, window_bounds = array<i64: 1, 18, 18, 128>}, {pipeline_mode = #tpu.pipeline_mode<synchronous>, transform_indices = @transform_1, window_bounds = array<i64: 1, 128>}, {pipeline_mode = #tpu.pipeline_mode<synchronous>, transform_indices = @transform_2, window_bounds = array<i64: 1, 128>}, {pipeline_mode = #tpu.pipeline_mode<synchronous>, transform_indices = @transform_3, window_bounds = array<i64: 64, 256>}, {pipeline_mode = #tpu.pipeline_mode<synchronous>, transform_indices = @transform_4, window_bounds = array<i64: 128, 128>}, {transform_indices = @transform_5, window_bounds = array<i64: 1, 10, 10, 128>}]} {
    %c0 = arith.constant 0 : index
    %c1 = arith.constant 1 : index
    %c1_0 = arith.constant 1 : index
    %c0_1 = arith.constant 0 : index
    %0 = vector.load %arg1[%c0, %c1, %c1_0, %c0_1] : memref<1x18x18x128xf32, #tpu.memory_space<vmem>>, vector<1x16x16x128xf32>
    %1 = vector.shape_cast %0 : vector<1x16x16x128xf32> to vector<16x16x128xf32>
    %c0_2 = arith.constant 0 : index
    %c0_3 = arith.constant 0 : index
    %2 = vector.load %arg2[%c0_2, %c0_3] : memref<1x128xf32, #tpu.memory_space<vmem>>, vector<1x128xf32>
    %3 = vector.shape_cast %2 : vector<1x128xf32> to vector<128xf32>
    %4 = vector.shape_cast %3 : vector<128xf32> to vector<1x1x128xf32>
    %5 = vector.broadcast %4 : vector<1x1x128xf32> to vector<16x16x128xf32>
    %6 = arith.mulf %1, %5 : vector<16x16x128xf32>
    %c0_4 = arith.constant 0 : index
    %c0_5 = arith.constant 0 : index
    %7 = vector.load %arg3[%c0_4, %c0_5] : memref<1x128xf32, #tpu.memory_space<vmem>>, vector<1x128xf32>
    %8 = vector.shape_cast %7 : vector<1x128xf32> to vector<128xf32>
    %9 = vector.shape_cast %8 : vector<128xf32> to vector<1x1x128xf32>
    %10 = vector.broadcast %9 : vector<1x1x128xf32> to vector<16x16x128xf32>
    %11 = arith.addf %6, %10 : vector<16x16x128xf32>
    %cst = arith.constant 0.000000e+00 : f32
    %12 = vector.broadcast %cst : f32 to vector<16x16x128xf32>
    %13 = arith.maximumf %11, %12 : vector<16x16x128xf32>
    %14 = vector.shape_cast %13 : vector<16x16x128xf32> to vector<256x128xf32>
    %15 = arith.truncf %14 : vector<256x128xf32> to vector<256x128xbf16>
    %c0_6 = arith.constant 0 : index
    %c0_7 = arith.constant 0 : index
    %16 = vector.load %arg4[%c0_6, %c0_7] : memref<64x256xbf16, #tpu.memory_space<vmem>>, vector<64x256xbf16>
    %cst_8 = arith.constant dense<0.000000e+00> : vector<64x128xf32>
    %17 = tpu.matmul %16, %15, %cst_8 {dimension_numbers = #tpu.dot_dimension_numbers<[1], [0], [0], [1], [0, 0, 1, 1], [], []>} : vector<64x256xbf16>, vector<256x128xbf16>, vector<64x128xf32> -> vector<64x128xf32>
    %18 = arith.truncf %17 : vector<64x128xf32> to vector<64x128xbf16>
    %c0_9 = arith.constant 0 : index
    %c0_10 = arith.constant 0 : index
    %19 = vector.load %arg5[%c0_9, %c0_10] : memref<128x128xbf16, #tpu.memory_space<vmem>>, vector<128x128xbf16>
    %cst_11 = arith.constant dense<0.000000e+00> : vector<64x128xf32>
    %20 = tpu.matmul %18, %19, %cst_11 {dimension_numbers = #tpu.dot_dimension_numbers<[1], [0], [0], [1], [0, 0, 1, 1], [], []>} : vector<64x128xbf16>, vector<128x128xbf16>, vector<64x128xf32> -> vector<64x128xf32>
    %cst_12 = arith.constant 0.000000e+00 : f32
    %21 = vector.broadcast %cst_12 : f32 to vector<1x10x10x128xf32>
    %c0_13 = arith.constant 0 : index
    %c0_14 = arith.constant 0 : index
    %c0_15 = arith.constant 0 : index
    %c0_16 = arith.constant 0 : index
    %22 = vector.load %arg6[%c0_13, %c0_14, %c0_15, %c0_16] : memref<1x10x10x128xf32, #tpu.memory_space<vmem>>, vector<1x10x10x128xf32>
    tpu.vector_store %arg6[%c0_13, %c0_14, %c0_15, %c0_16], %21 {strides = array<i32>} : memref<1x10x10x128xf32, #tpu.memory_space<vmem>>, vector<1x10x10x128xf32>,
    %23 = vector.shape_cast %20 : vector<64x128xf32> to vector<8x8x128xf32>
    %c0_17 = arith.constant 0 : index
    %c1_18 = arith.constant 1 : index
    %c1_19 = arith.constant 1 : index
    %c0_20 = arith.constant 0 : index
    %24 = vector.load %arg6[%c0_17, %c1_18, %c1_19, %c0_20] : memref<1x10x10x128xf32, #tpu.memory_space<vmem>>, vector<1x8x8x128xf32>
    %25 = vector.shape_cast %24 : vector<1x8x8x128xf32> to vector<8x8x128xf32>
    %26 = vector.shape_cast %23 : vector<8x8x128xf32> to vector<1x8x8x128xf32>
    tpu.vector_store %arg6[%c0_17, %c1_18, %c1_19, %c0_20], %26 {strides = array<i32>} : memref<1x10x10x128xf32, #tpu.memory_space<vmem>>, vector<1x8x8x128xf32>,
    return
  }
  func.func @transform_0(%arg0: i32) -> (i32, i32, i32, i32) {
    %c0_i32 = arith.constant 0 : i32
    %c0_i32_0 = arith.constant 0 : i32
    %c0_i32_1 = arith.constant 0 : i32
    %c0_i32_2 = arith.constant 0 : i32
    return %arg0, %c0_i32, %c0_i32_0, %c0_i32_1 : i32, i32, i32, i32
  }
  func.func @transform_1(%arg0: i32) -> (i32, i32) {
    %c0_i32 = arith.constant 0 : i32
    %c0_i32_0 = arith.constant 0 : i32
    %c0_i32_1 = arith.constant 0 : i32
    return %c0_i32, %c0_i32_0 : i32, i32
  }
  func.func @transform_2(%arg0: i32) -> (i32, i32) {
    %c0_i32 = arith.constant 0 : i32
    %c0_i32_0 = arith.constant 0 : i32
    %c0_i32_1 = arith.constant 0 : i32
    return %c0_i32, %c0_i32_0 : i32, i32
  }
  func.func @transform_3(%arg0: i32) -> (i32, i32) {
    %c0_i32 = arith.constant 0 : i32
    %c0_i32_0 = arith.constant 0 : i32
    %c0_i32_1 = arith.constant 0 : i32
    return %c0_i32, %c0_i32_0 : i32, i32
  }
  func.func @transform_4(%arg0: i32) -> (i32, i32) {
    %c0_i32 = arith.constant 0 : i32
    %c0_i32_0 = arith.constant 0 : i32
    %c0_i32_1 = arith.constant 0 : i32
    return %c0_i32, %c0_i32_0 : i32, i32
  }
  func.func @transform_5(%arg0: i32) -> (i32, i32, i32, i32) {
    %c0_i32 = arith.constant 0 : i32
    %c0_i32_0 = arith.constant 0 : i32
    %c0_i32_1 = arith.constant 0 : i32
    %c0_i32_2 = arith.constant 0 : i32
    return %arg0, %c0_i32, %c0_i32_0, %c0_i32_1 : i32, i32, i32, i32
  }
}

module attributes {stable_mosaic.version = 11 : i64} {
  func.func @_dense_block_kernel(%arg0: i32, %arg1: memref<1x18x18x128xf32, #tpu.memory_space<vmem>>, %arg2: memref<2x128xf32, #tpu.memory_space<vmem>>, %arg3: memref<2x128xf32, #tpu.memory_space<vmem>>, %arg4: memref<2x1152x128xbf16, #tpu.memory_space<vmem>>, %arg5: memref<1x18x18x128xf32, #tpu.memory_space<vmem>>, %arg6: memref<18x18x128xf32, #tpu.memory_space<vmem>>, %arg7: memref<256x1152xbf16, #tpu.memory_space<vmem>>) attributes {dimension_semantics = [#tpu.dimension_semantics<parallel>], iteration_bounds = array<i64: 2>, scalar_prefetch = 0 : i64, scratch_operands = 2 : i64, tpu.core_type = #tpu.core_type<tc>, window_params = [{transform_indices = @transform_0, window_bounds = array<i64: 1, 18, 18, 128>}, {pipeline_mode = #tpu.pipeline_mode<synchronous>, transform_indices = @transform_1, window_bounds = array<i64: 2, 128>}, {pipeline_mode = #tpu.pipeline_mode<synchronous>, transform_indices = @transform_2, window_bounds = array<i64: 2, 128>}, {pipeline_mode = #tpu.pipeline_mode<synchronous>, transform_indices = @transform_3, window_bounds = array<i64: 2, 1152, 128>}, {transform_indices = @transform_4, window_bounds = array<i64: 1, 18, 18, 128>}]} {
    %c0 = arith.constant 0 : index
    %c0_0 = arith.constant 0 : index
    %c0_1 = arith.constant 0 : index
    %c0_2 = arith.constant 0 : index
    %0 = vector.load %arg1[%c0, %c0_0, %c0_1, %c0_2] : memref<1x18x18x128xf32, #tpu.memory_space<vmem>>, vector<1x18x18x128xf32>
    %c0_3 = arith.constant 0 : index
    %c0_4 = arith.constant 0 : index
    %c0_5 = arith.constant 0 : index
    %c0_6 = arith.constant 0 : index
    %1 = vector.load %arg5[%c0_3, %c0_4, %c0_5, %c0_6] : memref<1x18x18x128xf32, #tpu.memory_space<vmem>>, vector<1x18x18x128xf32>
    tpu.vector_store %arg5[%c0_3, %c0_4, %c0_5, %c0_6], %0 {strides = array<i32>} : memref<1x18x18x128xf32, #tpu.memory_space<vmem>>, vector<1x18x18x128xf32>,
    %cst = arith.constant 0.000000e+00 : f32
    %2 = vector.broadcast %cst : f32 to vector<18x18x128xf32>
    %c0_7 = arith.constant 0 : index
    %c0_8 = arith.constant 0 : index
    %c0_9 = arith.constant 0 : index
    %3 = vector.load %arg6[%c0_7, %c0_8, %c0_9] : memref<18x18x128xf32, #tpu.memory_space<vmem>>, vector<18x18x128xf32>
    tpu.vector_store %arg6[%c0_7, %c0_8, %c0_9], %2 {strides = array<i32>} : memref<18x18x128xf32, #tpu.memory_space<vmem>>, vector<18x18x128xf32>,
    %c0_10 = arith.constant 0 : index
    %c1 = arith.constant 1 : index
    %c1_11 = arith.constant 1 : index
    %c0_12 = arith.constant 0 : index
    %4 = vector.load %arg5[%c0_10, %c1, %c1_11, %c0_12] : memref<1x18x18x128xf32, #tpu.memory_space<vmem>>, vector<1x16x16x128xf32>
    %5 = vector.shape_cast %4 : vector<1x16x16x128xf32> to vector<16x16x128xf32>
    %c1_13 = arith.constant 1 : index
    %c1_14 = arith.constant 1 : index
    %c0_15 = arith.constant 0 : index
    %6 = vector.load %arg6[%c1_13, %c1_14, %c0_15] : memref<18x18x128xf32, #tpu.memory_space<vmem>>, vector<16x16x128xf32>
    tpu.vector_store %arg6[%c1_13, %c1_14, %c0_15], %5 {strides = array<i32>} : memref<18x18x128xf32, #tpu.memory_space<vmem>>, vector<16x16x128xf32>,
    %c0_16 = arith.constant 0 : index
    %c0_17 = arith.constant 0 : index
    %c0_18 = arith.constant 0 : index
    %7 = vector.load %arg6[%c0_16, %c0_17, %c0_18] : memref<18x18x128xf32, #tpu.memory_space<vmem>>, vector<16x16x128xf32>
    %8 = vector.shape_cast %7 : vector<16x16x128xf32> to vector<256x128xf32>
    %9 = arith.truncf %8 : vector<256x128xf32> to vector<256x128xbf16>
    %c0_19 = arith.constant 0 : index
    %c0_20 = arith.constant 0 : index
    %10 = vector.load %arg7[%c0_19, %c0_20] : memref<256x1152xbf16, #tpu.memory_space<vmem>>, vector<256x128xbf16>
    tpu.vector_store %arg7[%c0_19, %c0_20], %9 {strides = array<i32>} : memref<256x1152xbf16, #tpu.memory_space<vmem>>, vector<256x128xbf16>,
    %c0_21 = arith.constant 0 : index
    %c1_22 = arith.constant 1 : index
    %c0_23 = arith.constant 0 : index
    %11 = vector.load %arg6[%c0_21, %c1_22, %c0_23] : memref<18x18x128xf32, #tpu.memory_space<vmem>>, vector<16x16x128xf32>
    %12 = vector.shape_cast %11 : vector<16x16x128xf32> to vector<256x128xf32>
    %13 = arith.truncf %12 : vector<256x128xf32> to vector<256x128xbf16>
    %c0_24 = arith.constant 0 : index
    %c128 = arith.constant 128 : index
    %14 = vector.load %arg7[%c0_24, %c128] : memref<256x1152xbf16, #tpu.memory_space<vmem>>, vector<256x128xbf16>
    tpu.vector_store %arg7[%c0_24, %c128], %13 {strides = array<i32>} : memref<256x1152xbf16, #tpu.memory_space<vmem>>, vector<256x128xbf16>,
    %c0_25 = arith.constant 0 : index
    %c2 = arith.constant 2 : index
    %c0_26 = arith.constant 0 : index
    %15 = vector.load %arg6[%c0_25, %c2, %c0_26] : memref<18x18x128xf32, #tpu.memory_space<vmem>>, vector<16x16x128xf32>
    %16 = vector.shape_cast %15 : vector<16x16x128xf32> to vector<256x128xf32>
    %17 = arith.truncf %16 : vector<256x128xf32> to vector<256x128xbf16>
    %c0_27 = arith.constant 0 : index
    %c256 = arith.constant 256 : index
    %18 = vector.load %arg7[%c0_27, %c256] : memref<256x1152xbf16, #tpu.memory_space<vmem>>, vector<256x128xbf16>
    tpu.vector_store %arg7[%c0_27, %c256], %17 {strides = array<i32>} : memref<256x1152xbf16, #tpu.memory_space<vmem>>, vector<256x128xbf16>,
    %c1_28 = arith.constant 1 : index
    %c0_29 = arith.constant 0 : index
    %c0_30 = arith.constant 0 : index
    %19 = vector.load %arg6[%c1_28, %c0_29, %c0_30] : memref<18x18x128xf32, #tpu.memory_space<vmem>>, vector<16x16x128xf32>
    %20 = vector.shape_cast %19 : vector<16x16x128xf32> to vector<256x128xf32>
    %21 = arith.truncf %20 : vector<256x128xf32> to vector<256x128xbf16>
    %c0_31 = arith.constant 0 : index
    %c384 = arith.constant 384 : index
    %22 = vector.load %arg7[%c0_31, %c384] : memref<256x1152xbf16, #tpu.memory_space<vmem>>, vector<256x128xbf16>
    tpu.vector_store %arg7[%c0_31, %c384], %21 {strides = array<i32>} : memref<256x1152xbf16, #tpu.memory_space<vmem>>, vector<256x128xbf16>,
    %c1_32 = arith.constant 1 : index
    %c1_33 = arith.constant 1 : index
    %c0_34 = arith.constant 0 : index
    %23 = vector.load %arg6[%c1_32, %c1_33, %c0_34] : memref<18x18x128xf32, #tpu.memory_space<vmem>>, vector<16x16x128xf32>
    %24 = vector.shape_cast %23 : vector<16x16x128xf32> to vector<256x128xf32>
    %25 = arith.truncf %24 : vector<256x128xf32> to vector<256x128xbf16>
    %c0_35 = arith.constant 0 : index
    %c512 = arith.constant 512 : index
    %26 = vector.load %arg7[%c0_35, %c512] : memref<256x1152xbf16, #tpu.memory_space<vmem>>, vector<256x128xbf16>
    tpu.vector_store %arg7[%c0_35, %c512], %25 {strides = array<i32>} : memref<256x1152xbf16, #tpu.memory_space<vmem>>, vector<256x128xbf16>,
    %c1_36 = arith.constant 1 : index
    %c2_37 = arith.constant 2 : index
    %c0_38 = arith.constant 0 : index
    %27 = vector.load %arg6[%c1_36, %c2_37, %c0_38] : memref<18x18x128xf32, #tpu.memory_space<vmem>>, vector<16x16x128xf32>
    %28 = vector.shape_cast %27 : vector<16x16x128xf32> to vector<256x128xf32>
    %29 = arith.truncf %28 : vector<256x128xf32> to vector<256x128xbf16>
    %c0_39 = arith.constant 0 : index
    %c640 = arith.constant 640 : index
    %30 = vector.load %arg7[%c0_39, %c640] : memref<256x1152xbf16, #tpu.memory_space<vmem>>, vector<256x128xbf16>
    tpu.vector_store %arg7[%c0_39, %c640], %29 {strides = array<i32>} : memref<256x1152xbf16, #tpu.memory_space<vmem>>, vector<256x128xbf16>,
    %c2_40 = arith.constant 2 : index
    %c0_41 = arith.constant 0 : index
    %c0_42 = arith.constant 0 : index
    %31 = vector.load %arg6[%c2_40, %c0_41, %c0_42] : memref<18x18x128xf32, #tpu.memory_space<vmem>>, vector<16x16x128xf32>
    %32 = vector.shape_cast %31 : vector<16x16x128xf32> to vector<256x128xf32>
    %33 = arith.truncf %32 : vector<256x128xf32> to vector<256x128xbf16>
    %c0_43 = arith.constant 0 : index
    %c768 = arith.constant 768 : index
    %34 = vector.load %arg7[%c0_43, %c768] : memref<256x1152xbf16, #tpu.memory_space<vmem>>, vector<256x128xbf16>
    tpu.vector_store %arg7[%c0_43, %c768], %33 {strides = array<i32>} : memref<256x1152xbf16, #tpu.memory_space<vmem>>, vector<256x128xbf16>,
    %c2_44 = arith.constant 2 : index
    %c1_45 = arith.constant 1 : index
    %c0_46 = arith.constant 0 : index
    %35 = vector.load %arg6[%c2_44, %c1_45, %c0_46] : memref<18x18x128xf32, #tpu.memory_space<vmem>>, vector<16x16x128xf32>
    %36 = vector.shape_cast %35 : vector<16x16x128xf32> to vector<256x128xf32>
    %37 = arith.truncf %36 : vector<256x128xf32> to vector<256x128xbf16>
    %c0_47 = arith.constant 0 : index
    %c896 = arith.constant 896 : index
    %38 = vector.load %arg7[%c0_47, %c896] : memref<256x1152xbf16, #tpu.memory_space<vmem>>, vector<256x128xbf16>
    tpu.vector_store %arg7[%c0_47, %c896], %37 {strides = array<i32>} : memref<256x1152xbf16, #tpu.memory_space<vmem>>, vector<256x128xbf16>,
    %c2_48 = arith.constant 2 : index
    %c2_49 = arith.constant 2 : index
    %c0_50 = arith.constant 0 : index
    %39 = vector.load %arg6[%c2_48, %c2_49, %c0_50] : memref<18x18x128xf32, #tpu.memory_space<vmem>>, vector<16x16x128xf32>
    %40 = vector.shape_cast %39 : vector<16x16x128xf32> to vector<256x128xf32>
    %41 = arith.truncf %40 : vector<256x128xf32> to vector<256x128xbf16>
    %c0_51 = arith.constant 0 : index
    %c1024 = arith.constant 1024 : index
    %42 = vector.load %arg7[%c0_51, %c1024] : memref<256x1152xbf16, #tpu.memory_space<vmem>>, vector<256x128xbf16>
    tpu.vector_store %arg7[%c0_51, %c1024], %41 {strides = array<i32>} : memref<256x1152xbf16, #tpu.memory_space<vmem>>, vector<256x128xbf16>,
    %c0_52 = arith.constant 0 : index
    %c0_53 = arith.constant 0 : index
    %43 = vector.load %arg7[%c0_52, %c0_53] : memref<256x1152xbf16, #tpu.memory_space<vmem>>, vector<256x1152xbf16>
    %c0_54 = arith.constant 0 : index
    %c0_55 = arith.constant 0 : index
    %c0_56 = arith.constant 0 : index
    %44 = vector.load %arg4[%c0_54, %c0_55, %c0_56] : memref<2x1152x128xbf16, #tpu.memory_space<vmem>>, vector<1x1152x128xbf16>
    %45 = vector.shape_cast %44 : vector<1x1152x128xbf16> to vector<1152x128xbf16>
    %cst_57 = arith.constant dense<0.000000e+00> : vector<256x128xf32>
    %46 = tpu.matmul %43, %45, %cst_57 {dimension_numbers = #tpu.dot_dimension_numbers<[1], [0], [0], [1], [0, 0, 1, 1], [], []>} : vector<256x1152xbf16>, vector<1152x128xbf16>, vector<256x128xf32> -> vector<256x128xf32>
    %47 = vector.shape_cast %46 : vector<256x128xf32> to vector<16x16x128xf32>
    %c0_58 = arith.constant 0 : index
    %c1_59 = arith.constant 1 : index
    %c1_60 = arith.constant 1 : index
    %c0_61 = arith.constant 0 : index
    %48 = vector.load %arg5[%c0_58, %c1_59, %c1_60, %c0_61] : memref<1x18x18x128xf32, #tpu.memory_space<vmem>>, vector<1x16x16x128xf32>
    %49 = vector.shape_cast %48 : vector<1x16x16x128xf32> to vector<16x16x128xf32>
    %50 = vector.shape_cast %47 : vector<16x16x128xf32> to vector<1x16x16x128xf32>
    tpu.vector_store %arg5[%c0_58, %c1_59, %c1_60, %c0_61], %50 {strides = array<i32>} : memref<1x18x18x128xf32, #tpu.memory_space<vmem>>, vector<1x16x16x128xf32>,
    %c0_62 = arith.constant 0 : index
    %c1_63 = arith.constant 1 : index
    %c1_64 = arith.constant 1 : index
    %c0_65 = arith.constant 0 : index
    %51 = vector.load %arg5[%c0_62, %c1_63, %c1_64, %c0_65] : memref<1x18x18x128xf32, #tpu.memory_space<vmem>>, vector<1x16x16x128xf32>
    %52 = vector.shape_cast %51 : vector<1x16x16x128xf32> to vector<16x16x128xf32>
    %c1_66 = arith.constant 1 : index
    %c0_67 = arith.constant 0 : index
    %53 = vector.load %arg2[%c1_66, %c0_67] : memref<2x128xf32, #tpu.memory_space<vmem>>, vector<1x128xf32>
    %54 = vector.shape_cast %53 : vector<1x128xf32> to vector<128xf32>
    %55 = vector.shape_cast %54 : vector<128xf32> to vector<1x1x128xf32>
    %56 = vector.broadcast %55 : vector<1x1x128xf32> to vector<16x16x128xf32>
    %57 = arith.mulf %52, %56 : vector<16x16x128xf32>
    %c1_68 = arith.constant 1 : index
    %c0_69 = arith.constant 0 : index
    %58 = vector.load %arg3[%c1_68, %c0_69] : memref<2x128xf32, #tpu.memory_space<vmem>>, vector<1x128xf32>
    %59 = vector.shape_cast %58 : vector<1x128xf32> to vector<128xf32>
    %60 = vector.shape_cast %59 : vector<128xf32> to vector<1x1x128xf32>
    %61 = vector.broadcast %60 : vector<1x1x128xf32> to vector<16x16x128xf32>
    %62 = arith.addf %57, %61 : vector<16x16x128xf32>
    %cst_70 = arith.constant 0.000000e+00 : f32
    %63 = vector.broadcast %cst_70 : f32 to vector<16x16x128xf32>
    %64 = arith.maximumf %62, %63 : vector<16x16x128xf32>
    %c1_71 = arith.constant 1 : index
    %c1_72 = arith.constant 1 : index
    %c0_73 = arith.constant 0 : index
    %65 = vector.load %arg6[%c1_71, %c1_72, %c0_73] : memref<18x18x128xf32, #tpu.memory_space<vmem>>, vector<16x16x128xf32>
    tpu.vector_store %arg6[%c1_71, %c1_72, %c0_73], %64 {strides = array<i32>} : memref<18x18x128xf32, #tpu.memory_space<vmem>>, vector<16x16x128xf32>,
    %c0_74 = arith.constant 0 : index
    %c0_75 = arith.constant 0 : index
    %c0_76 = arith.constant 0 : index
    %66 = vector.load %arg6[%c0_74, %c0_75, %c0_76] : memref<18x18x128xf32, #tpu.memory_space<vmem>>, vector<16x16x128xf32>
    %67 = vector.shape_cast %66 : vector<16x16x128xf32> to vector<256x128xf32>
    %68 = arith.truncf %67 : vector<256x128xf32> to vector<256x128xbf16>
    %c0_77 = arith.constant 0 : index
    %c0_78 = arith.constant 0 : index
    %69 = vector.load %arg7[%c0_77, %c0_78] : memref<256x1152xbf16, #tpu.memory_space<vmem>>, vector<256x128xbf16>
    tpu.vector_store %arg7[%c0_77, %c0_78], %68 {strides = array<i32>} : memref<256x1152xbf16, #tpu.memory_space<vmem>>, vector<256x128xbf16>,
    %c0_79 = arith.constant 0 : index
    %c1_80 = arith.constant 1 : index
    %c0_81 = arith.constant 0 : index
    %70 = vector.load %arg6[%c0_79, %c1_80, %c0_81] : memref<18x18x128xf32, #tpu.memory_space<vmem>>, vector<16x16x128xf32>
    %71 = vector.shape_cast %70 : vector<16x16x128xf32> to vector<256x128xf32>
    %72 = arith.truncf %71 : vector<256x128xf32> to vector<256x128xbf16>
    %c0_82 = arith.constant 0 : index
    %c128_83 = arith.constant 128 : index
    %73 = vector.load %arg7[%c0_82, %c128_83] : memref<256x1152xbf16, #tpu.memory_space<vmem>>, vector<256x128xbf16>
    tpu.vector_store %arg7[%c0_82, %c128_83], %72 {strides = array<i32>} : memref<256x1152xbf16, #tpu.memory_space<vmem>>, vector<256x128xbf16>,
    %c0_84 = arith.constant 0 : index
    %c2_85 = arith.constant 2 : index
    %c0_86 = arith.constant 0 : index
    %74 = vector.load %arg6[%c0_84, %c2_85, %c0_86] : memref<18x18x128xf32, #tpu.memory_space<vmem>>, vector<16x16x128xf32>
    %75 = vector.shape_cast %74 : vector<16x16x128xf32> to vector<256x128xf32>
    %76 = arith.truncf %75 : vector<256x128xf32> to vector<256x128xbf16>
    %c0_87 = arith.constant 0 : index
    %c256_88 = arith.constant 256 : index
    %77 = vector.load %arg7[%c0_87, %c256_88] : memref<256x1152xbf16, #tpu.memory_space<vmem>>, vector<256x128xbf16>
    tpu.vector_store %arg7[%c0_87, %c256_88], %76 {strides = array<i32>} : memref<256x1152xbf16, #tpu.memory_space<vmem>>, vector<256x128xbf16>,
    %c1_89 = arith.constant 1 : index
    %c0_90 = arith.constant 0 : index
    %c0_91 = arith.constant 0 : index
    %78 = vector.load %arg6[%c1_89, %c0_90, %c0_91] : memref<18x18x128xf32, #tpu.memory_space<vmem>>, vector<16x16x128xf32>
    %79 = vector.shape_cast %78 : vector<16x16x128xf32> to vector<256x128xf32>
    %80 = arith.truncf %79 : vector<256x128xf32> to vector<256x128xbf16>
    %c0_92 = arith.constant 0 : index
    %c384_93 = arith.constant 384 : index
    %81 = vector.load %arg7[%c0_92, %c384_93] : memref<256x1152xbf16, #tpu.memory_space<vmem>>, vector<256x128xbf16>
    tpu.vector_store %arg7[%c0_92, %c384_93], %80 {strides = array<i32>} : memref<256x1152xbf16, #tpu.memory_space<vmem>>, vector<256x128xbf16>,
    %c1_94 = arith.constant 1 : index
    %c1_95 = arith.constant 1 : index
    %c0_96 = arith.constant 0 : index
    %82 = vector.load %arg6[%c1_94, %c1_95, %c0_96] : memref<18x18x128xf32, #tpu.memory_space<vmem>>, vector<16x16x128xf32>
    %83 = vector.shape_cast %82 : vector<16x16x128xf32> to vector<256x128xf32>
    %84 = arith.truncf %83 : vector<256x128xf32> to vector<256x128xbf16>
    %c0_97 = arith.constant 0 : index
    %c512_98 = arith.constant 512 : index
    %85 = vector.load %arg7[%c0_97, %c512_98] : memref<256x1152xbf16, #tpu.memory_space<vmem>>, vector<256x128xbf16>
    tpu.vector_store %arg7[%c0_97, %c512_98], %84 {strides = array<i32>} : memref<256x1152xbf16, #tpu.memory_space<vmem>>, vector<256x128xbf16>,
    %c1_99 = arith.constant 1 : index
    %c2_100 = arith.constant 2 : index
    %c0_101 = arith.constant 0 : index
    %86 = vector.load %arg6[%c1_99, %c2_100, %c0_101] : memref<18x18x128xf32, #tpu.memory_space<vmem>>, vector<16x16x128xf32>
    %87 = vector.shape_cast %86 : vector<16x16x128xf32> to vector<256x128xf32>
    %88 = arith.truncf %87 : vector<256x128xf32> to vector<256x128xbf16>
    %c0_102 = arith.constant 0 : index
    %c640_103 = arith.constant 640 : index
    %89 = vector.load %arg7[%c0_102, %c640_103] : memref<256x1152xbf16, #tpu.memory_space<vmem>>, vector<256x128xbf16>
    tpu.vector_store %arg7[%c0_102, %c640_103], %88 {strides = array<i32>} : memref<256x1152xbf16, #tpu.memory_space<vmem>>, vector<256x128xbf16>,
    %c2_104 = arith.constant 2 : index
    %c0_105 = arith.constant 0 : index
    %c0_106 = arith.constant 0 : index
    %90 = vector.load %arg6[%c2_104, %c0_105, %c0_106] : memref<18x18x128xf32, #tpu.memory_space<vmem>>, vector<16x16x128xf32>
    %91 = vector.shape_cast %90 : vector<16x16x128xf32> to vector<256x128xf32>
    %92 = arith.truncf %91 : vector<256x128xf32> to vector<256x128xbf16>
    %c0_107 = arith.constant 0 : index
    %c768_108 = arith.constant 768 : index
    %93 = vector.load %arg7[%c0_107, %c768_108] : memref<256x1152xbf16, #tpu.memory_space<vmem>>, vector<256x128xbf16>
    tpu.vector_store %arg7[%c0_107, %c768_108], %92 {strides = array<i32>} : memref<256x1152xbf16, #tpu.memory_space<vmem>>, vector<256x128xbf16>,
    %c2_109 = arith.constant 2 : index
    %c1_110 = arith.constant 1 : index
    %c0_111 = arith.constant 0 : index
    %94 = vector.load %arg6[%c2_109, %c1_110, %c0_111] : memref<18x18x128xf32, #tpu.memory_space<vmem>>, vector<16x16x128xf32>
    %95 = vector.shape_cast %94 : vector<16x16x128xf32> to vector<256x128xf32>
    %96 = arith.truncf %95 : vector<256x128xf32> to vector<256x128xbf16>
    %c0_112 = arith.constant 0 : index
    %c896_113 = arith.constant 896 : index
    %97 = vector.load %arg7[%c0_112, %c896_113] : memref<256x1152xbf16, #tpu.memory_space<vmem>>, vector<256x128xbf16>
    tpu.vector_store %arg7[%c0_112, %c896_113], %96 {strides = array<i32>} : memref<256x1152xbf16, #tpu.memory_space<vmem>>, vector<256x128xbf16>,
    %c2_114 = arith.constant 2 : index
    %c2_115 = arith.constant 2 : index
    %c0_116 = arith.constant 0 : index
    %98 = vector.load %arg6[%c2_114, %c2_115, %c0_116] : memref<18x18x128xf32, #tpu.memory_space<vmem>>, vector<16x16x128xf32>
    %99 = vector.shape_cast %98 : vector<16x16x128xf32> to vector<256x128xf32>
    %100 = arith.truncf %99 : vector<256x128xf32> to vector<256x128xbf16>
    %c0_117 = arith.constant 0 : index
    %c1024_118 = arith.constant 1024 : index
    %101 = vector.load %arg7[%c0_117, %c1024_118] : memref<256x1152xbf16, #tpu.memory_space<vmem>>, vector<256x128xbf16>
    tpu.vector_store %arg7[%c0_117, %c1024_118], %100 {strides = array<i32>} : memref<256x1152xbf16, #tpu.memory_space<vmem>>, vector<256x128xbf16>,
    %c0_119 = arith.constant 0 : index
    %c0_120 = arith.constant 0 : index
    %102 = vector.load %arg7[%c0_119, %c0_120] : memref<256x1152xbf16, #tpu.memory_space<vmem>>, vector<256x1152xbf16>
    %c1_121 = arith.constant 1 : index
    %c0_122 = arith.constant 0 : index
    %c0_123 = arith.constant 0 : index
    %103 = vector.load %arg4[%c1_121, %c0_122, %c0_123] : memref<2x1152x128xbf16, #tpu.memory_space<vmem>>, vector<1x1152x128xbf16>
    %104 = vector.shape_cast %103 : vector<1x1152x128xbf16> to vector<1152x128xbf16>
    %cst_124 = arith.constant dense<0.000000e+00> : vector<256x128xf32>
    %105 = tpu.matmul %102, %104, %cst_124 {dimension_numbers = #tpu.dot_dimension_numbers<[1], [0], [0], [1], [0, 0, 1, 1], [], []>} : vector<256x1152xbf16>, vector<1152x128xbf16>, vector<256x128xf32> -> vector<256x128xf32>
    %106 = vector.shape_cast %105 : vector<256x128xf32> to vector<16x16x128xf32>
    %107 = arith.addf %52, %106 : vector<16x16x128xf32>
    %c0_125 = arith.constant 0 : index
    %c1_126 = arith.constant 1 : index
    %c1_127 = arith.constant 1 : index
    %c0_128 = arith.constant 0 : index
    %108 = vector.load %arg5[%c0_125, %c1_126, %c1_127, %c0_128] : memref<1x18x18x128xf32, #tpu.memory_space<vmem>>, vector<1x16x16x128xf32>
    %109 = vector.shape_cast %108 : vector<1x16x16x128xf32> to vector<16x16x128xf32>
    %110 = vector.shape_cast %107 : vector<16x16x128xf32> to vector<1x16x16x128xf32>
    tpu.vector_store %arg5[%c0_125, %c1_126, %c1_127, %c0_128], %110 {strides = array<i32>} : memref<1x18x18x128xf32, #tpu.memory_space<vmem>>, vector<1x16x16x128xf32>,
    return
  }
  func.func @transform_0(%arg0: i32) -> (i32, i32, i32, i32) {
    %c0_i32 = arith.constant 0 : i32
    %c0_i32_0 = arith.constant 0 : i32
    %c0_i32_1 = arith.constant 0 : i32
    %c0_i32_2 = arith.constant 0 : i32
    return %arg0, %c0_i32, %c0_i32_0, %c0_i32_1 : i32, i32, i32, i32
  }
  func.func @transform_1(%arg0: i32) -> (i32, i32) {
    %c0_i32 = arith.constant 0 : i32
    %c0_i32_0 = arith.constant 0 : i32
    %c0_i32_1 = arith.constant 0 : i32
    return %c0_i32, %c0_i32_0 : i32, i32
  }
  func.func @transform_2(%arg0: i32) -> (i32, i32) {
    %c0_i32 = arith.constant 0 : i32
    %c0_i32_0 = arith.constant 0 : i32
    %c0_i32_1 = arith.constant 0 : i32
    return %c0_i32, %c0_i32_0 : i32, i32
  }
  func.func @transform_3(%arg0: i32) -> (i32, i32, i32) {
    %c0_i32 = arith.constant 0 : i32
    %c0_i32_0 = arith.constant 0 : i32
    %c0_i32_1 = arith.constant 0 : i32
    %c0_i32_2 = arith.constant 0 : i32
    return %c0_i32, %c0_i32_0, %c0_i32_1 : i32, i32, i32
  }
  func.func @transform_4(%arg0: i32) -> (i32, i32, i32, i32) {
    %c0_i32 = arith.constant 0 : i32
    %c0_i32_0 = arith.constant 0 : i32
    %c0_i32_1 = arith.constant 0 : i32
    %c0_i32_2 = arith.constant 0 : i32
    return %arg0, %c0_i32, %c0_i32_0, %c0_i32_1 : i32, i32, i32, i32
  }
}

module attributes {stable_mosaic.version = 11 : i64} {
  func.func @_dense_block_kernel(%arg0: i32, %arg1: memref<1x10x10x128xf32, #tpu.memory_space<vmem>>, %arg2: memref<1x128xf32, #tpu.memory_space<vmem>>, %arg3: memref<1x128xf32, #tpu.memory_space<vmem>>, %arg4: memref<1x1152x128xbf16, #tpu.memory_space<vmem>>, %arg5: memref<1x10x10x128xf32, #tpu.memory_space<vmem>>, %arg6: memref<10x10x128xf32, #tpu.memory_space<vmem>>, %arg7: memref<64x1152xbf16, #tpu.memory_space<vmem>>) attributes {dimension_semantics = [#tpu.dimension_semantics<parallel>], iteration_bounds = array<i64: 2>, scalar_prefetch = 0 : i64, scratch_operands = 2 : i64, tpu.core_type = #tpu.core_type<tc>, window_params = [{transform_indices = @transform_0, window_bounds = array<i64: 1, 10, 10, 128>}, {pipeline_mode = #tpu.pipeline_mode<synchronous>, transform_indices = @transform_1, window_bounds = array<i64: 1, 128>}, {pipeline_mode = #tpu.pipeline_mode<synchronous>, transform_indices = @transform_2, window_bounds = array<i64: 1, 128>}, {pipeline_mode = #tpu.pipeline_mode<synchronous>, transform_indices = @transform_3, window_bounds = array<i64: 1, 1152, 128>}, {transform_indices = @transform_4, window_bounds = array<i64: 1, 10, 10, 128>}]} {
    %c0 = arith.constant 0 : index
    %c0_0 = arith.constant 0 : index
    %c0_1 = arith.constant 0 : index
    %c0_2 = arith.constant 0 : index
    %0 = vector.load %arg1[%c0, %c0_0, %c0_1, %c0_2] : memref<1x10x10x128xf32, #tpu.memory_space<vmem>>, vector<1x10x10x128xf32>
    %c0_3 = arith.constant 0 : index
    %c0_4 = arith.constant 0 : index
    %c0_5 = arith.constant 0 : index
    %c0_6 = arith.constant 0 : index
    %1 = vector.load %arg5[%c0_3, %c0_4, %c0_5, %c0_6] : memref<1x10x10x128xf32, #tpu.memory_space<vmem>>, vector<1x10x10x128xf32>
    tpu.vector_store %arg5[%c0_3, %c0_4, %c0_5, %c0_6], %0 {strides = array<i32>} : memref<1x10x10x128xf32, #tpu.memory_space<vmem>>, vector<1x10x10x128xf32>,
    %cst = arith.constant 0.000000e+00 : f32
    %2 = vector.broadcast %cst : f32 to vector<10x10x128xf32>
    %c0_7 = arith.constant 0 : index
    %c0_8 = arith.constant 0 : index
    %c0_9 = arith.constant 0 : index
    %3 = vector.load %arg6[%c0_7, %c0_8, %c0_9] : memref<10x10x128xf32, #tpu.memory_space<vmem>>, vector<10x10x128xf32>
    tpu.vector_store %arg6[%c0_7, %c0_8, %c0_9], %2 {strides = array<i32>} : memref<10x10x128xf32, #tpu.memory_space<vmem>>, vector<10x10x128xf32>,
    %c0_10 = arith.constant 0 : index
    %c1 = arith.constant 1 : index
    %c1_11 = arith.constant 1 : index
    %c0_12 = arith.constant 0 : index
    %4 = vector.load %arg5[%c0_10, %c1, %c1_11, %c0_12] : memref<1x10x10x128xf32, #tpu.memory_space<vmem>>, vector<1x8x8x128xf32>
    %5 = vector.shape_cast %4 : vector<1x8x8x128xf32> to vector<8x8x128xf32>
    %c0_13 = arith.constant 0 : index
    %c0_14 = arith.constant 0 : index
    %6 = vector.load %arg2[%c0_13, %c0_14] : memref<1x128xf32, #tpu.memory_space<vmem>>, vector<1x128xf32>
    %7 = vector.shape_cast %6 : vector<1x128xf32> to vector<128xf32>
    %8 = vector.shape_cast %7 : vector<128xf32> to vector<1x1x128xf32>
    %9 = vector.broadcast %8 : vector<1x1x128xf32> to vector<8x8x128xf32>
    %10 = arith.mulf %5, %9 : vector<8x8x128xf32>
    %c0_15 = arith.constant 0 : index
    %c0_16 = arith.constant 0 : index
    %11 = vector.load %arg3[%c0_15, %c0_16] : memref<1x128xf32, #tpu.memory_space<vmem>>, vector<1x128xf32>
    %12 = vector.shape_cast %11 : vector<1x128xf32> to vector<128xf32>
    %13 = vector.shape_cast %12 : vector<128xf32> to vector<1x1x128xf32>
    %14 = vector.broadcast %13 : vector<1x1x128xf32> to vector<8x8x128xf32>
    %15 = arith.addf %10, %14 : vector<8x8x128xf32>
    %cst_17 = arith.constant 0.000000e+00 : f32
    %16 = vector.broadcast %cst_17 : f32 to vector<8x8x128xf32>
    %17 = arith.maximumf %15, %16 : vector<8x8x128xf32>
    %c1_18 = arith.constant 1 : index
    %c1_19 = arith.constant 1 : index
    %c0_20 = arith.constant 0 : index
    %18 = vector.load %arg6[%c1_18, %c1_19, %c0_20] : memref<10x10x128xf32, #tpu.memory_space<vmem>>, vector<8x8x128xf32>
    tpu.vector_store %arg6[%c1_18, %c1_19, %c0_20], %17 {strides = array<i32>} : memref<10x10x128xf32, #tpu.memory_space<vmem>>, vector<8x8x128xf32>,
    %c0_21 = arith.constant 0 : index
    %c0_22 = arith.constant 0 : index
    %c0_23 = arith.constant 0 : index
    %19 = vector.load %arg6[%c0_21, %c0_22, %c0_23] : memref<10x10x128xf32, #tpu.memory_space<vmem>>, vector<8x8x128xf32>
    %20 = vector.shape_cast %19 : vector<8x8x128xf32> to vector<64x128xf32>
    %21 = arith.truncf %20 : vector<64x128xf32> to vector<64x128xbf16>
    %c0_24 = arith.constant 0 : index
    %c0_25 = arith.constant 0 : index
    %22 = vector.load %arg7[%c0_24, %c0_25] : memref<64x1152xbf16, #tpu.memory_space<vmem>>, vector<64x128xbf16>
    tpu.vector_store %arg7[%c0_24, %c0_25], %21 {strides = array<i32>} : memref<64x1152xbf16, #tpu.memory_space<vmem>>, vector<64x128xbf16>,
    %c0_26 = arith.constant 0 : index
    %c1_27 = arith.constant 1 : index
    %c0_28 = arith.constant 0 : index
    %23 = vector.load %arg6[%c0_26, %c1_27, %c0_28] : memref<10x10x128xf32, #tpu.memory_space<vmem>>, vector<8x8x128xf32>
    %24 = vector.shape_cast %23 : vector<8x8x128xf32> to vector<64x128xf32>
    %25 = arith.truncf %24 : vector<64x128xf32> to vector<64x128xbf16>
    %c0_29 = arith.constant 0 : index
    %c128 = arith.constant 128 : index
    %26 = vector.load %arg7[%c0_29, %c128] : memref<64x1152xbf16, #tpu.memory_space<vmem>>, vector<64x128xbf16>
    tpu.vector_store %arg7[%c0_29, %c128], %25 {strides = array<i32>} : memref<64x1152xbf16, #tpu.memory_space<vmem>>, vector<64x128xbf16>,
    %c0_30 = arith.constant 0 : index
    %c2 = arith.constant 2 : index
    %c0_31 = arith.constant 0 : index
    %27 = vector.load %arg6[%c0_30, %c2, %c0_31] : memref<10x10x128xf32, #tpu.memory_space<vmem>>, vector<8x8x128xf32>
    %28 = vector.shape_cast %27 : vector<8x8x128xf32> to vector<64x128xf32>
    %29 = arith.truncf %28 : vector<64x128xf32> to vector<64x128xbf16>
    %c0_32 = arith.constant 0 : index
    %c256 = arith.constant 256 : index
    %30 = vector.load %arg7[%c0_32, %c256] : memref<64x1152xbf16, #tpu.memory_space<vmem>>, vector<64x128xbf16>
    tpu.vector_store %arg7[%c0_32, %c256], %29 {strides = array<i32>} : memref<64x1152xbf16, #tpu.memory_space<vmem>>, vector<64x128xbf16>,
    %c1_33 = arith.constant 1 : index
    %c0_34 = arith.constant 0 : index
    %c0_35 = arith.constant 0 : index
    %31 = vector.load %arg6[%c1_33, %c0_34, %c0_35] : memref<10x10x128xf32, #tpu.memory_space<vmem>>, vector<8x8x128xf32>
    %32 = vector.shape_cast %31 : vector<8x8x128xf32> to vector<64x128xf32>
    %33 = arith.truncf %32 : vector<64x128xf32> to vector<64x128xbf16>
    %c0_36 = arith.constant 0 : index
    %c384 = arith.constant 384 : index
    %34 = vector.load %arg7[%c0_36, %c384] : memref<64x1152xbf16, #tpu.memory_space<vmem>>, vector<64x128xbf16>
    tpu.vector_store %arg7[%c0_36, %c384], %33 {strides = array<i32>} : memref<64x1152xbf16, #tpu.memory_space<vmem>>, vector<64x128xbf16>,
    %c1_37 = arith.constant 1 : index
    %c1_38 = arith.constant 1 : index
    %c0_39 = arith.constant 0 : index
    %35 = vector.load %arg6[%c1_37, %c1_38, %c0_39] : memref<10x10x128xf32, #tpu.memory_space<vmem>>, vector<8x8x128xf32>
    %36 = vector.shape_cast %35 : vector<8x8x128xf32> to vector<64x128xf32>
    %37 = arith.truncf %36 : vector<64x128xf32> to vector<64x128xbf16>
    %c0_40 = arith.constant 0 : index
    %c512 = arith.constant 512 : index
    %38 = vector.load %arg7[%c0_40, %c512] : memref<64x1152xbf16, #tpu.memory_space<vmem>>, vector<64x128xbf16>
    tpu.vector_store %arg7[%c0_40, %c512], %37 {strides = array<i32>} : memref<64x1152xbf16, #tpu.memory_space<vmem>>, vector<64x128xbf16>,
    %c1_41 = arith.constant 1 : index
    %c2_42 = arith.constant 2 : index
    %c0_43 = arith.constant 0 : index
    %39 = vector.load %arg6[%c1_41, %c2_42, %c0_43] : memref<10x10x128xf32, #tpu.memory_space<vmem>>, vector<8x8x128xf32>
    %40 = vector.shape_cast %39 : vector<8x8x128xf32> to vector<64x128xf32>
    %41 = arith.truncf %40 : vector<64x128xf32> to vector<64x128xbf16>
    %c0_44 = arith.constant 0 : index
    %c640 = arith.constant 640 : index
    %42 = vector.load %arg7[%c0_44, %c640] : memref<64x1152xbf16, #tpu.memory_space<vmem>>, vector<64x128xbf16>
    tpu.vector_store %arg7[%c0_44, %c640], %41 {strides = array<i32>} : memref<64x1152xbf16, #tpu.memory_space<vmem>>, vector<64x128xbf16>,
    %c2_45 = arith.constant 2 : index
    %c0_46 = arith.constant 0 : index
    %c0_47 = arith.constant 0 : index
    %43 = vector.load %arg6[%c2_45, %c0_46, %c0_47] : memref<10x10x128xf32, #tpu.memory_space<vmem>>, vector<8x8x128xf32>
    %44 = vector.shape_cast %43 : vector<8x8x128xf32> to vector<64x128xf32>
    %45 = arith.truncf %44 : vector<64x128xf32> to vector<64x128xbf16>
    %c0_48 = arith.constant 0 : index
    %c768 = arith.constant 768 : index
    %46 = vector.load %arg7[%c0_48, %c768] : memref<64x1152xbf16, #tpu.memory_space<vmem>>, vector<64x128xbf16>
    tpu.vector_store %arg7[%c0_48, %c768], %45 {strides = array<i32>} : memref<64x1152xbf16, #tpu.memory_space<vmem>>, vector<64x128xbf16>,
    %c2_49 = arith.constant 2 : index
    %c1_50 = arith.constant 1 : index
    %c0_51 = arith.constant 0 : index
    %47 = vector.load %arg6[%c2_49, %c1_50, %c0_51] : memref<10x10x128xf32, #tpu.memory_space<vmem>>, vector<8x8x128xf32>
    %48 = vector.shape_cast %47 : vector<8x8x128xf32> to vector<64x128xf32>
    %49 = arith.truncf %48 : vector<64x128xf32> to vector<64x128xbf16>
    %c0_52 = arith.constant 0 : index
    %c896 = arith.constant 896 : index
    %50 = vector.load %arg7[%c0_52, %c896] : memref<64x1152xbf16, #tpu.memory_space<vmem>>, vector<64x128xbf16>
    tpu.vector_store %arg7[%c0_52, %c896], %49 {strides = array<i32>} : memref<64x1152xbf16, #tpu.memory_space<vmem>>, vector<64x128xbf16>,
    %c2_53 = arith.constant 2 : index
    %c2_54 = arith.constant 2 : index
    %c0_55 = arith.constant 0 : index
    %51 = vector.load %arg6[%c2_53, %c2_54, %c0_55] : memref<10x10x128xf32, #tpu.memory_space<vmem>>, vector<8x8x128xf32>
    %52 = vector.shape_cast %51 : vector<8x8x128xf32> to vector<64x128xf32>
    %53 = arith.truncf %52 : vector<64x128xf32> to vector<64x128xbf16>
    %c0_56 = arith.constant 0 : index
    %c1024 = arith.constant 1024 : index
    %54 = vector.load %arg7[%c0_56, %c1024] : memref<64x1152xbf16, #tpu.memory_space<vmem>>, vector<64x128xbf16>
    tpu.vector_store %arg7[%c0_56, %c1024], %53 {strides = array<i32>} : memref<64x1152xbf16, #tpu.memory_space<vmem>>, vector<64x128xbf16>,
    %c0_57 = arith.constant 0 : index
    %c0_58 = arith.constant 0 : index
    %55 = vector.load %arg7[%c0_57, %c0_58] : memref<64x1152xbf16, #tpu.memory_space<vmem>>, vector<64x1152xbf16>
    %c0_59 = arith.constant 0 : index
    %c0_60 = arith.constant 0 : index
    %c0_61 = arith.constant 0 : index
    %56 = vector.load %arg4[%c0_59, %c0_60, %c0_61] : memref<1x1152x128xbf16, #tpu.memory_space<vmem>>, vector<1x1152x128xbf16>
    %57 = vector.shape_cast %56 : vector<1x1152x128xbf16> to vector<1152x128xbf16>
    %cst_62 = arith.constant dense<0.000000e+00> : vector<64x128xf32>
    %58 = tpu.matmul %55, %57, %cst_62 {dimension_numbers = #tpu.dot_dimension_numbers<[1], [0], [0], [1], [0, 0, 1, 1], [], []>} : vector<64x1152xbf16>, vector<1152x128xbf16>, vector<64x128xf32> -> vector<64x128xf32>
    %59 = vector.shape_cast %58 : vector<64x128xf32> to vector<8x8x128xf32>
    %60 = arith.addf %5, %59 : vector<8x8x128xf32>
    %c0_63 = arith.constant 0 : index
    %c1_64 = arith.constant 1 : index
    %c1_65 = arith.constant 1 : index
    %c0_66 = arith.constant 0 : index
    %61 = vector.load %arg5[%c0_63, %c1_64, %c1_65, %c0_66] : memref<1x10x10x128xf32, #tpu.memory_space<vmem>>, vector<1x8x8x128xf32>
    %62 = vector.shape_cast %61 : vector<1x8x8x128xf32> to vector<8x8x128xf32>
    %63 = vector.shape_cast %60 : vector<8x8x128xf32> to vector<1x8x8x128xf32>
    tpu.vector_store %arg5[%c0_63, %c1_64, %c1_65, %c0_66], %63 {strides = array<i32>} : memref<1x10x10x128xf32, #tpu.memory_space<vmem>>, vector<1x8x8x128xf32>,
    return
  }
  func.func @transform_0(%arg0: i32) -> (i32, i32, i32, i32) {
    %c0_i32 = arith.constant 0 : i32
    %c0_i32_0 = arith.constant 0 : i32
    %c0_i32_1 = arith.constant 0 : i32
    %c0_i32_2 = arith.constant 0 : i32
    return %arg0, %c0_i32, %c0_i32_0, %c0_i32_1 : i32, i32, i32, i32
  }
  func.func @transform_1(%arg0: i32) -> (i32, i32) {
    %c0_i32 = arith.constant 0 : i32
    %c0_i32_0 = arith.constant 0 : i32
    %c0_i32_1 = arith.constant 0 : i32
    return %c0_i32, %c0_i32_0 : i32, i32
  }
  func.func @transform_2(%arg0: i32) -> (i32, i32) {
    %c0_i32 = arith.constant 0 : i32
    %c0_i32_0 = arith.constant 0 : i32
    %c0_i32_1 = arith.constant 0 : i32
    return %c0_i32, %c0_i32_0 : i32, i32
  }
  func.func @transform_3(%arg0: i32) -> (i32, i32, i32) {
    %c0_i32 = arith.constant 0 : i32
    %c0_i32_0 = arith.constant 0 : i32
    %c0_i32_1 = arith.constant 0 : i32
    %c0_i32_2 = arith.constant 0 : i32
    return %c0_i32, %c0_i32_0, %c0_i32_1 : i32, i32, i32
  }
  func.func @transform_4(%arg0: i32) -> (i32, i32, i32, i32) {
    %c0_i32 = arith.constant 0 : i32
    %c0_i32_0 = arith.constant 0 : i32
    %c0_i32_1 = arith.constant 0 : i32
    %c0_i32_2 = arith.constant 0 : i32
    return %arg0, %c0_i32, %c0_i32_0, %c0_i32_1 : i32, i32, i32, i32
  }
}

module attributes {stable_mosaic.version = 11 : i64} {
  func.func @_transition_kernel(%arg0: i32, %arg1: memref<1x10x10x128xf32, #tpu.memory_space<vmem>>, %arg2: memref<1x128xf32, #tpu.memory_space<vmem>>, %arg3: memref<1x128xf32, #tpu.memory_space<vmem>>, %arg4: memref<16x64xbf16, #tpu.memory_space<vmem>>, %arg5: memref<128x128xbf16, #tpu.memory_space<vmem>>, %arg6: memref<1x6x6x128xf32, #tpu.memory_space<vmem>>) attributes {dimension_semantics = [#tpu.dimension_semantics<parallel>], iteration_bounds = array<i64: 2>, scalar_prefetch = 0 : i64, scratch_operands = 0 : i64, tpu.core_type = #tpu.core_type<tc>, window_params = [{transform_indices = @transform_0, window_bounds = array<i64: 1, 10, 10, 128>}, {pipeline_mode = #tpu.pipeline_mode<synchronous>, transform_indices = @transform_1, window_bounds = array<i64: 1, 128>}, {pipeline_mode = #tpu.pipeline_mode<synchronous>, transform_indices = @transform_2, window_bounds = array<i64: 1, 128>}, {pipeline_mode = #tpu.pipeline_mode<synchronous>, transform_indices = @transform_3, window_bounds = array<i64: 16, 64>}, {pipeline_mode = #tpu.pipeline_mode<synchronous>, transform_indices = @transform_4, window_bounds = array<i64: 128, 128>}, {transform_indices = @transform_5, window_bounds = array<i64: 1, 6, 6, 128>}]} {
    %c0 = arith.constant 0 : index
    %c1 = arith.constant 1 : index
    %c1_0 = arith.constant 1 : index
    %c0_1 = arith.constant 0 : index
    %0 = vector.load %arg1[%c0, %c1, %c1_0, %c0_1] : memref<1x10x10x128xf32, #tpu.memory_space<vmem>>, vector<1x8x8x128xf32>
    %1 = vector.shape_cast %0 : vector<1x8x8x128xf32> to vector<8x8x128xf32>
    %c0_2 = arith.constant 0 : index
    %c0_3 = arith.constant 0 : index
    %2 = vector.load %arg2[%c0_2, %c0_3] : memref<1x128xf32, #tpu.memory_space<vmem>>, vector<1x128xf32>
    %3 = vector.shape_cast %2 : vector<1x128xf32> to vector<128xf32>
    %4 = vector.shape_cast %3 : vector<128xf32> to vector<1x1x128xf32>
    %5 = vector.broadcast %4 : vector<1x1x128xf32> to vector<8x8x128xf32>
    %6 = arith.mulf %1, %5 : vector<8x8x128xf32>
    %c0_4 = arith.constant 0 : index
    %c0_5 = arith.constant 0 : index
    %7 = vector.load %arg3[%c0_4, %c0_5] : memref<1x128xf32, #tpu.memory_space<vmem>>, vector<1x128xf32>
    %8 = vector.shape_cast %7 : vector<1x128xf32> to vector<128xf32>
    %9 = vector.shape_cast %8 : vector<128xf32> to vector<1x1x128xf32>
    %10 = vector.broadcast %9 : vector<1x1x128xf32> to vector<8x8x128xf32>
    %11 = arith.addf %6, %10 : vector<8x8x128xf32>
    %cst = arith.constant 0.000000e+00 : f32
    %12 = vector.broadcast %cst : f32 to vector<8x8x128xf32>
    %13 = arith.maximumf %11, %12 : vector<8x8x128xf32>
    %14 = vector.shape_cast %13 : vector<8x8x128xf32> to vector<64x128xf32>
    %15 = arith.truncf %14 : vector<64x128xf32> to vector<64x128xbf16>
    %c0_6 = arith.constant 0 : index
    %c0_7 = arith.constant 0 : index
    %16 = vector.load %arg4[%c0_6, %c0_7] : memref<16x64xbf16, #tpu.memory_space<vmem>>, vector<16x64xbf16>
    %cst_8 = arith.constant dense<0.000000e+00> : vector<16x128xf32>
    %17 = tpu.matmul %16, %15, %cst_8 {dimension_numbers = #tpu.dot_dimension_numbers<[1], [0], [0], [1], [0, 0, 1, 1], [], []>} : vector<16x64xbf16>, vector<64x128xbf16>, vector<16x128xf32> -> vector<16x128xf32>
    %18 = arith.truncf %17 : vector<16x128xf32> to vector<16x128xbf16>
    %c0_9 = arith.constant 0 : index
    %c0_10 = arith.constant 0 : index
    %19 = vector.load %arg5[%c0_9, %c0_10] : memref<128x128xbf16, #tpu.memory_space<vmem>>, vector<128x128xbf16>
    %cst_11 = arith.constant dense<0.000000e+00> : vector<16x128xf32>
    %20 = tpu.matmul %18, %19, %cst_11 {dimension_numbers = #tpu.dot_dimension_numbers<[1], [0], [0], [1], [0, 0, 1, 1], [], []>} : vector<16x128xbf16>, vector<128x128xbf16>, vector<16x128xf32> -> vector<16x128xf32>
    %cst_12 = arith.constant 0.000000e+00 : f32
    %21 = vector.broadcast %cst_12 : f32 to vector<1x6x6x128xf32>
    %c0_13 = arith.constant 0 : index
    %c0_14 = arith.constant 0 : index
    %c0_15 = arith.constant 0 : index
    %c0_16 = arith.constant 0 : index
    %22 = vector.load %arg6[%c0_13, %c0_14, %c0_15, %c0_16] : memref<1x6x6x128xf32, #tpu.memory_space<vmem>>, vector<1x6x6x128xf32>
    tpu.vector_store %arg6[%c0_13, %c0_14, %c0_15, %c0_16], %21 {strides = array<i32>} : memref<1x6x6x128xf32, #tpu.memory_space<vmem>>, vector<1x6x6x128xf32>,
    %23 = vector.shape_cast %20 : vector<16x128xf32> to vector<4x4x128xf32>
    %c0_17 = arith.constant 0 : index
    %c1_18 = arith.constant 1 : index
    %c1_19 = arith.constant 1 : index
    %c0_20 = arith.constant 0 : index
    %24 = vector.load %arg6[%c0_17, %c1_18, %c1_19, %c0_20] : memref<1x6x6x128xf32, #tpu.memory_space<vmem>>, vector<1x4x4x128xf32>
    %25 = vector.shape_cast %24 : vector<1x4x4x128xf32> to vector<4x4x128xf32>
    %26 = vector.shape_cast %23 : vector<4x4x128xf32> to vector<1x4x4x128xf32>
    tpu.vector_store %arg6[%c0_17, %c1_18, %c1_19, %c0_20], %26 {strides = array<i32>} : memref<1x6x6x128xf32, #tpu.memory_space<vmem>>, vector<1x4x4x128xf32>,
    return
  }
  func.func @transform_0(%arg0: i32) -> (i32, i32, i32, i32) {
    %c0_i32 = arith.constant 0 : i32
    %c0_i32_0 = arith.constant 0 : i32
    %c0_i32_1 = arith.constant 0 : i32
    %c0_i32_2 = arith.constant 0 : i32
    return %arg0, %c0_i32, %c0_i32_0, %c0_i32_1 : i32, i32, i32, i32
  }
  func.func @transform_1(%arg0: i32) -> (i32, i32) {
    %c0_i32 = arith.constant 0 : i32
    %c0_i32_0 = arith.constant 0 : i32
    %c0_i32_1 = arith.constant 0 : i32
    return %c0_i32, %c0_i32_0 : i32, i32
  }
  func.func @transform_2(%arg0: i32) -> (i32, i32) {
    %c0_i32 = arith.constant 0 : i32
    %c0_i32_0 = arith.constant 0 : i32
    %c0_i32_1 = arith.constant 0 : i32
    return %c0_i32, %c0_i32_0 : i32, i32
  }
  func.func @transform_3(%arg0: i32) -> (i32, i32) {
    %c0_i32 = arith.constant 0 : i32
    %c0_i32_0 = arith.constant 0 : i32
    %c0_i32_1 = arith.constant 0 : i32
    return %c0_i32, %c0_i32_0 : i32, i32
  }
  func.func @transform_4(%arg0: i32) -> (i32, i32) {
    %c0_i32 = arith.constant 0 : i32
    %c0_i32_0 = arith.constant 0 : i32
    %c0_i32_1 = arith.constant 0 : i32
    return %c0_i32, %c0_i32_0 : i32, i32
  }
  func.func @transform_5(%arg0: i32) -> (i32, i32, i32, i32) {
    %c0_i32 = arith.constant 0 : i32
    %c0_i32_0 = arith.constant 0 : i32
    %c0_i32_1 = arith.constant 0 : i32
    %c0_i32_2 = arith.constant 0 : i32
    return %arg0, %c0_i32, %c0_i32_0, %c0_i32_1 : i32, i32, i32, i32
  }
}

module attributes {stable_mosaic.version = 11 : i64} {
  func.func @_dense_block_kernel(%arg0: i32, %arg1: memref<1x6x6x128xf32, #tpu.memory_space<vmem>>, %arg2: memref<1x128xf32, #tpu.memory_space<vmem>>, %arg3: memref<1x128xf32, #tpu.memory_space<vmem>>, %arg4: memref<1x1152x128xbf16, #tpu.memory_space<vmem>>, %arg5: memref<1x6x6x128xf32, #tpu.memory_space<vmem>>, %arg6: memref<6x6x128xf32, #tpu.memory_space<vmem>>, %arg7: memref<16x1152xbf16, #tpu.memory_space<vmem>>) attributes {dimension_semantics = [#tpu.dimension_semantics<parallel>], iteration_bounds = array<i64: 2>, scalar_prefetch = 0 : i64, scratch_operands = 2 : i64, tpu.core_type = #tpu.core_type<tc>, window_params = [{transform_indices = @transform_0, window_bounds = array<i64: 1, 6, 6, 128>}, {pipeline_mode = #tpu.pipeline_mode<synchronous>, transform_indices = @transform_1, window_bounds = array<i64: 1, 128>}, {pipeline_mode = #tpu.pipeline_mode<synchronous>, transform_indices = @transform_2, window_bounds = array<i64: 1, 128>}, {pipeline_mode = #tpu.pipeline_mode<synchronous>, transform_indices = @transform_3, window_bounds = array<i64: 1, 1152, 128>}, {transform_indices = @transform_4, window_bounds = array<i64: 1, 6, 6, 128>}]} {
    %c0 = arith.constant 0 : index
    %c0_0 = arith.constant 0 : index
    %c0_1 = arith.constant 0 : index
    %c0_2 = arith.constant 0 : index
    %0 = vector.load %arg1[%c0, %c0_0, %c0_1, %c0_2] : memref<1x6x6x128xf32, #tpu.memory_space<vmem>>, vector<1x6x6x128xf32>
    %c0_3 = arith.constant 0 : index
    %c0_4 = arith.constant 0 : index
    %c0_5 = arith.constant 0 : index
    %c0_6 = arith.constant 0 : index
    %1 = vector.load %arg5[%c0_3, %c0_4, %c0_5, %c0_6] : memref<1x6x6x128xf32, #tpu.memory_space<vmem>>, vector<1x6x6x128xf32>
    tpu.vector_store %arg5[%c0_3, %c0_4, %c0_5, %c0_6], %0 {strides = array<i32>} : memref<1x6x6x128xf32, #tpu.memory_space<vmem>>, vector<1x6x6x128xf32>,
    %cst = arith.constant 0.000000e+00 : f32
    %2 = vector.broadcast %cst : f32 to vector<6x6x128xf32>
    %c0_7 = arith.constant 0 : index
    %c0_8 = arith.constant 0 : index
    %c0_9 = arith.constant 0 : index
    %3 = vector.load %arg6[%c0_7, %c0_8, %c0_9] : memref<6x6x128xf32, #tpu.memory_space<vmem>>, vector<6x6x128xf32>
    tpu.vector_store %arg6[%c0_7, %c0_8, %c0_9], %2 {strides = array<i32>} : memref<6x6x128xf32, #tpu.memory_space<vmem>>, vector<6x6x128xf32>,
    %c0_10 = arith.constant 0 : index
    %c1 = arith.constant 1 : index
    %c1_11 = arith.constant 1 : index
    %c0_12 = arith.constant 0 : index
    %4 = vector.load %arg5[%c0_10, %c1, %c1_11, %c0_12] : memref<1x6x6x128xf32, #tpu.memory_space<vmem>>, vector<1x4x4x128xf32>
    %5 = vector.shape_cast %4 : vector<1x4x4x128xf32> to vector<4x4x128xf32>
    %c0_13 = arith.constant 0 : index
    %c0_14 = arith.constant 0 : index
    %6 = vector.load %arg2[%c0_13, %c0_14] : memref<1x128xf32, #tpu.memory_space<vmem>>, vector<1x128xf32>
    %7 = vector.shape_cast %6 : vector<1x128xf32> to vector<128xf32>
    %8 = vector.shape_cast %7 : vector<128xf32> to vector<1x1x128xf32>
    %9 = vector.broadcast %8 : vector<1x1x128xf32> to vector<4x4x128xf32>
    %10 = arith.mulf %5, %9 : vector<4x4x128xf32>
    %c0_15 = arith.constant 0 : index
    %c0_16 = arith.constant 0 : index
    %11 = vector.load %arg3[%c0_15, %c0_16] : memref<1x128xf32, #tpu.memory_space<vmem>>, vector<1x128xf32>
    %12 = vector.shape_cast %11 : vector<1x128xf32> to vector<128xf32>
    %13 = vector.shape_cast %12 : vector<128xf32> to vector<1x1x128xf32>
    %14 = vector.broadcast %13 : vector<1x1x128xf32> to vector<4x4x128xf32>
    %15 = arith.addf %10, %14 : vector<4x4x128xf32>
    %cst_17 = arith.constant 0.000000e+00 : f32
    %16 = vector.broadcast %cst_17 : f32 to vector<4x4x128xf32>
    %17 = arith.maximumf %15, %16 : vector<4x4x128xf32>
    %c1_18 = arith.constant 1 : index
    %c1_19 = arith.constant 1 : index
    %c0_20 = arith.constant 0 : index
    %18 = vector.load %arg6[%c1_18, %c1_19, %c0_20] : memref<6x6x128xf32, #tpu.memory_space<vmem>>, vector<4x4x128xf32>
    tpu.vector_store %arg6[%c1_18, %c1_19, %c0_20], %17 {strides = array<i32>} : memref<6x6x128xf32, #tpu.memory_space<vmem>>, vector<4x4x128xf32>,
    %c0_21 = arith.constant 0 : index
    %c0_22 = arith.constant 0 : index
    %c0_23 = arith.constant 0 : index
    %19 = vector.load %arg6[%c0_21, %c0_22, %c0_23] : memref<6x6x128xf32, #tpu.memory_space<vmem>>, vector<4x4x128xf32>
    %20 = vector.shape_cast %19 : vector<4x4x128xf32> to vector<16x128xf32>
    %21 = arith.truncf %20 : vector<16x128xf32> to vector<16x128xbf16>
    %c0_24 = arith.constant 0 : index
    %c0_25 = arith.constant 0 : index
    %22 = vector.load %arg7[%c0_24, %c0_25] : memref<16x1152xbf16, #tpu.memory_space<vmem>>, vector<16x128xbf16>
    tpu.vector_store %arg7[%c0_24, %c0_25], %21 {strides = array<i32>} : memref<16x1152xbf16, #tpu.memory_space<vmem>>, vector<16x128xbf16>,
    %c0_26 = arith.constant 0 : index
    %c1_27 = arith.constant 1 : index
    %c0_28 = arith.constant 0 : index
    %23 = vector.load %arg6[%c0_26, %c1_27, %c0_28] : memref<6x6x128xf32, #tpu.memory_space<vmem>>, vector<4x4x128xf32>
    %24 = vector.shape_cast %23 : vector<4x4x128xf32> to vector<16x128xf32>
    %25 = arith.truncf %24 : vector<16x128xf32> to vector<16x128xbf16>
    %c0_29 = arith.constant 0 : index
    %c128 = arith.constant 128 : index
    %26 = vector.load %arg7[%c0_29, %c128] : memref<16x1152xbf16, #tpu.memory_space<vmem>>, vector<16x128xbf16>
    tpu.vector_store %arg7[%c0_29, %c128], %25 {strides = array<i32>} : memref<16x1152xbf16, #tpu.memory_space<vmem>>, vector<16x128xbf16>,
    %c0_30 = arith.constant 0 : index
    %c2 = arith.constant 2 : index
    %c0_31 = arith.constant 0 : index
    %27 = vector.load %arg6[%c0_30, %c2, %c0_31] : memref<6x6x128xf32, #tpu.memory_space<vmem>>, vector<4x4x128xf32>
    %28 = vector.shape_cast %27 : vector<4x4x128xf32> to vector<16x128xf32>
    %29 = arith.truncf %28 : vector<16x128xf32> to vector<16x128xbf16>
    %c0_32 = arith.constant 0 : index
    %c256 = arith.constant 256 : index
    %30 = vector.load %arg7[%c0_32, %c256] : memref<16x1152xbf16, #tpu.memory_space<vmem>>, vector<16x128xbf16>
    tpu.vector_store %arg7[%c0_32, %c256], %29 {strides = array<i32>} : memref<16x1152xbf16, #tpu.memory_space<vmem>>, vector<16x128xbf16>,
    %c1_33 = arith.constant 1 : index
    %c0_34 = arith.constant 0 : index
    %c0_35 = arith.constant 0 : index
    %31 = vector.load %arg6[%c1_33, %c0_34, %c0_35] : memref<6x6x128xf32, #tpu.memory_space<vmem>>, vector<4x4x128xf32>
    %32 = vector.shape_cast %31 : vector<4x4x128xf32> to vector<16x128xf32>
    %33 = arith.truncf %32 : vector<16x128xf32> to vector<16x128xbf16>
    %c0_36 = arith.constant 0 : index
    %c384 = arith.constant 384 : index
    %34 = vector.load %arg7[%c0_36, %c384] : memref<16x1152xbf16, #tpu.memory_space<vmem>>, vector<16x128xbf16>
    tpu.vector_store %arg7[%c0_36, %c384], %33 {strides = array<i32>} : memref<16x1152xbf16, #tpu.memory_space<vmem>>, vector<16x128xbf16>,
    %c1_37 = arith.constant 1 : index
    %c1_38 = arith.constant 1 : index
    %c0_39 = arith.constant 0 : index
    %35 = vector.load %arg6[%c1_37, %c1_38, %c0_39] : memref<6x6x128xf32, #tpu.memory_space<vmem>>, vector<4x4x128xf32>
    %36 = vector.shape_cast %35 : vector<4x4x128xf32> to vector<16x128xf32>
    %37 = arith.truncf %36 : vector<16x128xf32> to vector<16x128xbf16>
    %c0_40 = arith.constant 0 : index
    %c512 = arith.constant 512 : index
    %38 = vector.load %arg7[%c0_40, %c512] : memref<16x1152xbf16, #tpu.memory_space<vmem>>, vector<16x128xbf16>
    tpu.vector_store %arg7[%c0_40, %c512], %37 {strides = array<i32>} : memref<16x1152xbf16, #tpu.memory_space<vmem>>, vector<16x128xbf16>,
    %c1_41 = arith.constant 1 : index
    %c2_42 = arith.constant 2 : index
    %c0_43 = arith.constant 0 : index
    %39 = vector.load %arg6[%c1_41, %c2_42, %c0_43] : memref<6x6x128xf32, #tpu.memory_space<vmem>>, vector<4x4x128xf32>
    %40 = vector.shape_cast %39 : vector<4x4x128xf32> to vector<16x128xf32>
    %41 = arith.truncf %40 : vector<16x128xf32> to vector<16x128xbf16>
    %c0_44 = arith.constant 0 : index
    %c640 = arith.constant 640 : index
    %42 = vector.load %arg7[%c0_44, %c640] : memref<16x1152xbf16, #tpu.memory_space<vmem>>, vector<16x128xbf16>
    tpu.vector_store %arg7[%c0_44, %c640], %41 {strides = array<i32>} : memref<16x1152xbf16, #tpu.memory_space<vmem>>, vector<16x128xbf16>,
    %c2_45 = arith.constant 2 : index
    %c0_46 = arith.constant 0 : index
    %c0_47 = arith.constant 0 : index
    %43 = vector.load %arg6[%c2_45, %c0_46, %c0_47] : memref<6x6x128xf32, #tpu.memory_space<vmem>>, vector<4x4x128xf32>
    %44 = vector.shape_cast %43 : vector<4x4x128xf32> to vector<16x128xf32>
    %45 = arith.truncf %44 : vector<16x128xf32> to vector<16x128xbf16>
    %c0_48 = arith.constant 0 : index
    %c768 = arith.constant 768 : index
    %46 = vector.load %arg7[%c0_48, %c768] : memref<16x1152xbf16, #tpu.memory_space<vmem>>, vector<16x128xbf16>
    tpu.vector_store %arg7[%c0_48, %c768], %45 {strides = array<i32>} : memref<16x1152xbf16, #tpu.memory_space<vmem>>, vector<16x128xbf16>,
    %c2_49 = arith.constant 2 : index
    %c1_50 = arith.constant 1 : index
    %c0_51 = arith.constant 0 : index
    %47 = vector.load %arg6[%c2_49, %c1_50, %c0_51] : memref<6x6x128xf32, #tpu.memory_space<vmem>>, vector<4x4x128xf32>
    %48 = vector.shape_cast %47 : vector<4x4x128xf32> to vector<16x128xf32>
    %49 = arith.truncf %48 : vector<16x128xf32> to vector<16x128xbf16>
    %c0_52 = arith.constant 0 : index
    %c896 = arith.constant 896 : index
    %50 = vector.load %arg7[%c0_52, %c896] : memref<16x1152xbf16, #tpu.memory_space<vmem>>, vector<16x128xbf16>
    tpu.vector_store %arg7[%c0_52, %c896], %49 {strides = array<i32>} : memref<16x1152xbf16, #tpu.memory_space<vmem>>, vector<16x128xbf16>,
    %c2_53 = arith.constant 2 : index
    %c2_54 = arith.constant 2 : index
    %c0_55 = arith.constant 0 : index
    %51 = vector.load %arg6[%c2_53, %c2_54, %c0_55] : memref<6x6x128xf32, #tpu.memory_space<vmem>>, vector<4x4x128xf32>
    %52 = vector.shape_cast %51 : vector<4x4x128xf32> to vector<16x128xf32>
    %53 = arith.truncf %52 : vector<16x128xf32> to vector<16x128xbf16>
    %c0_56 = arith.constant 0 : index
    %c1024 = arith.constant 1024 : index
    %54 = vector.load %arg7[%c0_56, %c1024] : memref<16x1152xbf16, #tpu.memory_space<vmem>>, vector<16x128xbf16>
    tpu.vector_store %arg7[%c0_56, %c1024], %53 {strides = array<i32>} : memref<16x1152xbf16, #tpu.memory_space<vmem>>, vector<16x128xbf16>,
    %c0_57 = arith.constant 0 : index
    %c0_58 = arith.constant 0 : index
    %55 = vector.load %arg7[%c0_57, %c0_58] : memref<16x1152xbf16, #tpu.memory_space<vmem>>, vector<16x1152xbf16>
    %c0_59 = arith.constant 0 : index
    %c0_60 = arith.constant 0 : index
    %c0_61 = arith.constant 0 : index
    %56 = vector.load %arg4[%c0_59, %c0_60, %c0_61] : memref<1x1152x128xbf16, #tpu.memory_space<vmem>>, vector<1x1152x128xbf16>
    %57 = vector.shape_cast %56 : vector<1x1152x128xbf16> to vector<1152x128xbf16>
    %cst_62 = arith.constant dense<0.000000e+00> : vector<16x128xf32>
    %58 = tpu.matmul %55, %57, %cst_62 {dimension_numbers = #tpu.dot_dimension_numbers<[1], [0], [0], [1], [0, 0, 1, 1], [], []>} : vector<16x1152xbf16>, vector<1152x128xbf16>, vector<16x128xf32> -> vector<16x128xf32>
    %59 = vector.shape_cast %58 : vector<16x128xf32> to vector<4x4x128xf32>
    %60 = arith.addf %5, %59 : vector<4x4x128xf32>
    %c0_63 = arith.constant 0 : index
    %c1_64 = arith.constant 1 : index
    %c1_65 = arith.constant 1 : index
    %c0_66 = arith.constant 0 : index
    %61 = vector.load %arg5[%c0_63, %c1_64, %c1_65, %c0_66] : memref<1x6x6x128xf32, #tpu.memory_space<vmem>>, vector<1x4x4x128xf32>
    %62 = vector.shape_cast %61 : vector<1x4x4x128xf32> to vector<4x4x128xf32>
    %63 = vector.shape_cast %60 : vector<4x4x128xf32> to vector<1x4x4x128xf32>
    tpu.vector_store %arg5[%c0_63, %c1_64, %c1_65, %c0_66], %63 {strides = array<i32>} : memref<1x6x6x128xf32, #tpu.memory_space<vmem>>, vector<1x4x4x128xf32>,
    return
  }
  func.func @transform_0(%arg0: i32) -> (i32, i32, i32, i32) {
    %c0_i32 = arith.constant 0 : i32
    %c0_i32_0 = arith.constant 0 : i32
    %c0_i32_1 = arith.constant 0 : i32
    %c0_i32_2 = arith.constant 0 : i32
    return %arg0, %c0_i32, %c0_i32_0, %c0_i32_1 : i32, i32, i32, i32
  }
  func.func @transform_1(%arg0: i32) -> (i32, i32) {
    %c0_i32 = arith.constant 0 : i32
    %c0_i32_0 = arith.constant 0 : i32
    %c0_i32_1 = arith.constant 0 : i32
    return %c0_i32, %c0_i32_0 : i32, i32
  }
  func.func @transform_2(%arg0: i32) -> (i32, i32) {
    %c0_i32 = arith.constant 0 : i32
    %c0_i32_0 = arith.constant 0 : i32
    %c0_i32_1 = arith.constant 0 : i32
    return %c0_i32, %c0_i32_0 : i32, i32
  }
  func.func @transform_3(%arg0: i32) -> (i32, i32, i32) {
    %c0_i32 = arith.constant 0 : i32
    %c0_i32_0 = arith.constant 0 : i32
    %c0_i32_1 = arith.constant 0 : i32
    %c0_i32_2 = arith.constant 0 : i32
    return %c0_i32, %c0_i32_0, %c0_i32_1 : i32, i32, i32
  }
  func.func @transform_4(%arg0: i32) -> (i32, i32, i32, i32) {
    %c0_i32 = arith.constant 0 : i32
    %c0_i32_0 = arith.constant 0 : i32
    %c0_i32_1 = arith.constant 0 : i32
    %c0_i32_2 = arith.constant 0 : i32
    return %arg0, %c0_i32, %c0_i32_0, %c0_i32_1 : i32, i32, i32, i32
  }
}

module attributes {stable_mosaic.version = 11 : i64} {
  func.func @_head_kernel(%arg0: i32, %arg1: memref<1x6x6x128xf32, #tpu.memory_space<vmem>>, %arg2: memref<1x128xf32, #tpu.memory_space<vmem>>, %arg3: memref<1x128xf32, #tpu.memory_space<vmem>>, %arg4: memref<128x128xbf16, #tpu.memory_space<vmem>>, %arg5: memref<1x128xf32, #tpu.memory_space<vmem>>, %arg6: memref<1x1x128xf32, #tpu.memory_space<vmem>>) attributes {dimension_semantics = [#tpu.dimension_semantics<parallel>], iteration_bounds = array<i64: 2>, scalar_prefetch = 0 : i64, scratch_operands = 0 : i64, tpu.core_type = #tpu.core_type<tc>, window_params = [{transform_indices = @transform_0, window_bounds = array<i64: 1, 6, 6, 128>}, {pipeline_mode = #tpu.pipeline_mode<synchronous>, transform_indices = @transform_1, window_bounds = array<i64: 1, 128>}, {pipeline_mode = #tpu.pipeline_mode<synchronous>, transform_indices = @transform_2, window_bounds = array<i64: 1, 128>}, {pipeline_mode = #tpu.pipeline_mode<synchronous>, transform_indices = @transform_3, window_bounds = array<i64: 128, 128>}, {pipeline_mode = #tpu.pipeline_mode<synchronous>, transform_indices = @transform_4, window_bounds = array<i64: 1, 128>}, {transform_indices = @transform_5, window_bounds = array<i64: 1, 1, 128>}]} {
    %c0 = arith.constant 0 : index
    %c1 = arith.constant 1 : index
    %c1_0 = arith.constant 1 : index
    %c0_1 = arith.constant 0 : index
    %0 = vector.load %arg1[%c0, %c1, %c1_0, %c0_1] : memref<1x6x6x128xf32, #tpu.memory_space<vmem>>, vector<1x4x4x128xf32>
    %1 = vector.shape_cast %0 : vector<1x4x4x128xf32> to vector<4x4x128xf32>
    %c0_2 = arith.constant 0 : index
    %c0_3 = arith.constant 0 : index
    %2 = vector.load %arg2[%c0_2, %c0_3] : memref<1x128xf32, #tpu.memory_space<vmem>>, vector<1x128xf32>
    %3 = vector.shape_cast %2 : vector<1x128xf32> to vector<128xf32>
    %4 = vector.shape_cast %3 : vector<128xf32> to vector<1x1x128xf32>
    %5 = vector.broadcast %4 : vector<1x1x128xf32> to vector<4x4x128xf32>
    %6 = arith.mulf %1, %5 : vector<4x4x128xf32>
    %c0_4 = arith.constant 0 : index
    %c0_5 = arith.constant 0 : index
    %7 = vector.load %arg3[%c0_4, %c0_5] : memref<1x128xf32, #tpu.memory_space<vmem>>, vector<1x128xf32>
    %8 = vector.shape_cast %7 : vector<1x128xf32> to vector<128xf32>
    %9 = vector.shape_cast %8 : vector<128xf32> to vector<1x1x128xf32>
    %10 = vector.broadcast %9 : vector<1x1x128xf32> to vector<4x4x128xf32>
    %11 = arith.addf %6, %10 : vector<4x4x128xf32>
    %cst = arith.constant 0.000000e+00 : f32
    %12 = vector.broadcast %cst : f32 to vector<4x4x128xf32>
    %13 = arith.maximumf %11, %12 : vector<4x4x128xf32>
    %14 = vector.shape_cast %13 : vector<4x4x128xf32> to vector<16x128xf32>
    %cst_6 = arith.constant dense<0.000000e+00> : vector<128xf32>
    %15 = vector.multi_reduction <add>, %14, %cst_6 [0] : vector<16x128xf32> to vector<128xf32>
    %16 = vector.shape_cast %15 : vector<128xf32> to vector<1x128xf32>
    %cst_7 = arith.constant 6.250000e-02 : f32
    %17 = vector.broadcast %cst_7 : f32 to vector<1x128xf32>
    %18 = arith.mulf %16, %17 : vector<1x128xf32>
    %19 = arith.truncf %18 : vector<1x128xf32> to vector<1x128xbf16>
    %c0_8 = arith.constant 0 : index
    %c0_9 = arith.constant 0 : index
    %20 = vector.load %arg4[%c0_8, %c0_9] : memref<128x128xbf16, #tpu.memory_space<vmem>>, vector<128x128xbf16>
    %cst_10 = arith.constant dense<0.000000e+00> : vector<1x128xf32>
    %21 = tpu.matmul %19, %20, %cst_10 {dimension_numbers = #tpu.dot_dimension_numbers<[1], [0], [0], [1], [0, 0, 1, 1], [], []>} : vector<1x128xbf16>, vector<128x128xbf16>, vector<1x128xf32> -> vector<1x128xf32>
    %c0_11 = arith.constant 0 : index
    %c0_12 = arith.constant 0 : index
    %22 = vector.load %arg5[%c0_11, %c0_12] : memref<1x128xf32, #tpu.memory_space<vmem>>, vector<1x128xf32>
    %23 = arith.addf %21, %22 : vector<1x128xf32>
    %c0_13 = arith.constant 0 : index
    %c0_14 = arith.constant 0 : index
    %c0_15 = arith.constant 0 : index
    %24 = vector.load %arg6[%c0_13, %c0_14, %c0_15] : memref<1x1x128xf32, #tpu.memory_space<vmem>>, vector<1x1x128xf32>
    %25 = vector.shape_cast %24 : vector<1x1x128xf32> to vector<1x128xf32>
    %26 = vector.shape_cast %23 : vector<1x128xf32> to vector<1x1x128xf32>
    tpu.vector_store %arg6[%c0_13, %c0_14, %c0_15], %26 {strides = array<i32>} : memref<1x1x128xf32, #tpu.memory_space<vmem>>, vector<1x1x128xf32>,
    return
  }
  func.func @transform_0(%arg0: i32) -> (i32, i32, i32, i32) {
    %c0_i32 = arith.constant 0 : i32
    %c0_i32_0 = arith.constant 0 : i32
    %c0_i32_1 = arith.constant 0 : i32
    %c0_i32_2 = arith.constant 0 : i32
    return %arg0, %c0_i32, %c0_i32_0, %c0_i32_1 : i32, i32, i32, i32
  }
  func.func @transform_1(%arg0: i32) -> (i32, i32) {
    %c0_i32 = arith.constant 0 : i32
    %c0_i32_0 = arith.constant 0 : i32
    %c0_i32_1 = arith.constant 0 : i32
    return %c0_i32, %c0_i32_0 : i32, i32
  }
  func.func @transform_2(%arg0: i32) -> (i32, i32) {
    %c0_i32 = arith.constant 0 : i32
    %c0_i32_0 = arith.constant 0 : i32
    %c0_i32_1 = arith.constant 0 : i32
    return %c0_i32, %c0_i32_0 : i32, i32
  }
  func.func @transform_3(%arg0: i32) -> (i32, i32) {
    %c0_i32 = arith.constant 0 : i32
    %c0_i32_0 = arith.constant 0 : i32
    %c0_i32_1 = arith.constant 0 : i32
    return %c0_i32, %c0_i32_0 : i32, i32
  }
  func.func @transform_4(%arg0: i32) -> (i32, i32) {
    %c0_i32 = arith.constant 0 : i32
    %c0_i32_0 = arith.constant 0 : i32
    %c0_i32_1 = arith.constant 0 : i32
    return %c0_i32, %c0_i32_0 : i32, i32
  }
  func.func @transform_5(%arg0: i32) -> (i32, i32, i32) {
    %c0_i32 = arith.constant 0 : i32
    %c0_i32_0 = arith.constant 0 : i32
    %c0_i32_1 = arith.constant 0 : i32
    return %arg0, %c0_i32, %c0_i32_0 : i32, i32, i32
  }
}

</mosaic_0001>

<llo_original>
// kernel: densenet_forward.7
$region0: #{densenet_forward.7}
  #allocation0 [shape = 'u32[]', space=smem, size = 0x4, offset = 0x4, fixed_abs, tag = 'smem constant byte address 0x4 - core index']
  #allocation1 [shape = 'u32[144,128]{1,0:T(1,128)}', space=vmem, size = 0x12000, scoped, tag = 'internal scratch']
  %s0 = inlined_call_operand.vmem [shape: f32[2,18,18,128], index: 0, kind: input, shape index: {}]
  %s1 = inlined_call_operand.vmem [shape: f32[1,128], index: 1, kind: input, shape index: {}]
  %s2 = inlined_call_operand.vmem [shape: f32[1,128], index: 2, kind: input, shape index: {}]
  %s3 = inlined_call_operand.vmem [shape: bf16[64,256], index: 3, kind: input, shape index: {}]
  %s4 = inlined_call_operand.vmem [shape: bf16[128,128], index: 4, kind: input, shape index: {}]
  %s5 = inlined_call_operand.vmem [shape: f32[2,10,10,128], index: 5, kind: output, shape index: {}]
  %s6 = sld [smem:[#allocation0]]
  $region53: #{densenet_forward.7} parent=0
    _
  %s8 = ssub.s32 1, %s6
  %s9 = scalar_select 0, %s8, %s6
  loop: start=0, step=1, limit=4
  $region2: #{densenet_forward.7} parent=0 // loop_pre_header
    _
  $region3: #{densenet_forward.7} parent=0 // loop_header
    %s11 = sphi 0, %s15
    %p12 = scmp.ge.s32.totalorder %s11, 4
    %s21 = sphi 0, %s23
    %s24 = sphi 0, %s21
    %s25 = sphi 0, %s24
    %s41 = sphi 0, %s25
    %s45 = sphi 0, %s45
    %s47 = sphi 0, %s45
    %s48 = sphi 0, %s47
    %s62 = sphi 0, %s48
    %s66 = sphi 0, %s66
    %s68 = sphi 0, %s66
    %s69 = sphi 0, %s68
    %s83 = sphi 0, %s69
    %s87 = sphi 0, %s87
    %s89 = sphi 0, %s87
    %s90 = sphi 0, %s89
    %s104 = sphi 0, %s90
    %s108 = sphi 0, %s108
    %s110 = sphi 0, %s108
    %s111 = sphi 0, %s110
    %s125 = sphi 0, %s111
    %s131 = sphi 0, %s133
    %s134 = sphi 0, %s131
    %s135 = sphi 0, %s134
    %s151 = sphi 0, %s135
  $region4: #{densenet_forward.7} parent=0 // loop_header_branch
    %14 = sbr.rel (%p12) target = $region8
  $region5: #{densenet_forward.7} parent=0 // loop_body
    %s16 = ssub.s32 %s11, 1
    %s17 = ssub.s32 %s11, 2
    %s18 = sadd.s32 %s11, 1
    %s19 = ssub.s32 %s11, %s18
    %p20 = scmp.eq.s32.totalorder %s19, 0
    %s22 = sadd.s32 %s21, 1
    %s23 = scalar_select %p20, %s21, %s22
    %p26 = pneg %p20
    %p27 = scmp.eq.s32.totalorder %s11, 1
    %p28 = por %p26, %p27
    %p29 = scmp.ne.s32.totalorder %s21, %s24
    %p30 = scmp.eq.s32.totalorder %s11, 0
    %p31 = por %p29, %p30
    %p32 = scmp.ne.s32.totalorder %s21, %s24
    %p33 = scmp.eq.s32.totalorder %s16, 1
    %p34 = por %p32, %p33
    %p35 = scmp.ne.s32.totalorder %s24, %s25
    %p36 = scmp.eq.s32.totalorder %s16, 0
    %p37 = por %p35, %p36
    %p38 = scmp.ne.s32.totalorder %s24, %s25
    %p39 = scmp.eq.s32.totalorder %s17, 1
    %p40 = por %p38, %p39
    %p42 = scmp.ne.s32.totalorder %s25, %s41
    %p43 = scmp.eq.s32.totalorder %s17, 0
    %p44 = por %p42, %p43
    %s46 = sadd.s32 %s45, 1
    %p49 = scmp.eq.s32.totalorder %s11, 1
    %p50 = scmp.ne.s32.totalorder %s45, %s47
    %p51 = scmp.eq.s32.totalorder %s11, 0
    %p52 = por %p50, %p51
    %p53 = scmp.ne.s32.totalorder %s45, %s47
    %p54 = scmp.eq.s32.totalorder %s16, 1
    %p55 = por %p53, %p54
    %p56 = scmp.ne.s32.totalorder %s47, %s48
    %p57 = scmp.eq.s32.totalorder %s16, 0
    %p58 = por %p56, %p57
    %p59 = scmp.ne.s32.totalorder %s47, %s48
    %p60 = scmp.eq.s32.totalorder %s17, 1
    %p61 = por %p59, %p60
    %p63 = scmp.ne.s32.totalorder %s48, %s62
    %p64 = scmp.eq.s32.totalorder %s17, 0
    %p65 = por %p63, %p64
    %s67 = sadd.s32 %s66, 1
    %p70 = scmp.eq.s32.totalorder %s11, 1
    %p71 = scmp.ne.s32.totalorder %s66, %s68
    %p72 = scmp.eq.s32.totalorder %s11, 0
    %p73 = por %p71, %p72
    %p74 = scmp.ne.s32.totalorder %s66, %s68
    %p75 = scmp.eq.s32.totalorder %s16, 1
    %p76 = por %p74, %p75
    %p77 = scmp.ne.s32.totalorder %s68, %s69
    %p78 = scmp.eq.s32.totalorder %s16, 0
    %p79 = por %p77, %p78
    %p80 = scmp.ne.s32.totalorder %s68, %s69
    %p81 = scmp.eq.s32.totalorder %s17, 1
    %p82 = por %p80, %p81
    %p84 = scmp.ne.s32.totalorder %s69, %s83
    %p85 = scmp.eq.s32.totalorder %s17, 0
    %p86 = por %p84, %p85
    %s88 = sadd.s32 %s87, 1
    %p91 = scmp.eq.s32.totalorder %s11, 1
    %p92 = scmp.ne.s32.totalorder %s87, %s89
    %p93 = scmp.eq.s32.totalorder %s11, 0
    %p94 = por %p92, %p93
    %p95 = scmp.ne.s32.totalorder %s87, %s89
    %p96 = scmp.eq.s32.totalorder %s16, 1
    %p97 = por %p95, %p96
    %p98 = scmp.ne.s32.totalorder %s89, %s90
    %p99 = scmp.eq.s32.totalorder %s16, 0
    %p100 = por %p98, %p99
    %p101 = scmp.ne.s32.totalorder %s89, %s90
    %p102 = scmp.eq.s32.totalorder %s17, 1
    %p103 = por %p101, %p102
    %p105 = scmp.ne.s32.totalorder %s90, %s104
    %p106 = scmp.eq.s32.totalorder %s17, 0
    %p107 = por %p105, %p106
    %s109 = sadd.s32 %s108, 1
    %p112 = scmp.eq.s32.totalorder %s11, 1
    %p113 = scmp.ne.s32.totalorder %s108, %s110
    %p114 = scmp.eq.s32.totalorder %s11, 0
    %p115 = por %p113, %p114
    %p116 = scmp.ne.s32.totalorder %s108, %s110
    %p117 = scmp.eq.s32.totalorder %s16, 1
    %p118 = por %p116, %p117
    %p119 = scmp.ne.s32.totalorder %s110, %s111
    %p120 = scmp.eq.s32.totalorder %s16, 0
    %p121 = por %p119, %p120
    %p122 = scmp.ne.s32.totalorder %s110, %s111
    %p123 = scmp.eq.s32.totalorder %s17, 1
    %p124 = por %p122, %p123
    %p126 = scmp.ne.s32.totalorder %s111, %s125
    %p127 = scmp.eq.s32.totalorder %s17, 0
    %p128 = por %p126, %p127
    %s129 = ssub.s32 %s11, %s18
    %p130 = scmp.eq.s32.totalorder %s129, 0
    %s132 = sadd.s32 %s131, 1
    %s133 = scalar_select %p130, %s131, %s132
    %p136 = pneg %p130
    %p137 = scmp.eq.s32.totalorder %s11, 1
    %p138 = por %p136, %p137
    %p139 = scmp.ne.s32.totalorder %s131, %s134
    %p140 = scmp.eq.s32.totalorder %s11, 0
    %p141 = por %p139, %p140
    %p142 = scmp.ne.s32.totalorder %s131, %s134
    %p143 = scmp.eq.s32.totalorder %s16, 1
    %p144 = por %p142, %p143
    %p145 = scmp.ne.s32.totalorder %s134, %s135
    %p146 = scmp.eq.s32.totalorder %s16, 0
    %p147 = por %p145, %p146
    %p148 = scmp.ne.s32.totalorder %s134, %s135
    %p149 = scmp.eq.s32.totalorder %s17, 1
    %p150 = por %p148, %p149
    %p152 = scmp.ne.s32.totalorder %s135, %s151
    %p153 = scmp.eq.s32.totalorder %s17, 0
    %p154 = por %p152, %p153
    %p155 = scmp.le.s32.totalorder 1, %s11
    %p156 = scmp.lt.s32.totalorder %s11, 3
    %p157 = pnand %p155, %p156
    %p158 = pneg %p157
    // Predicated region
    $region9: #{densenet_forward.7} parent=5 // pred_check
      _
    $region10: #{densenet_forward.7} parent=5 // pred_check_branch
      %160 = sbr.rel (%p157) target = $region12
    $region11: #{densenet_forward.7} parent=5 // pred_region
      %s161 = ssub.s32 %s11, 1
      // Predicated region
      $region13: #{densenet_forward.7} parent=11 // pred_check
        %p162 = pneg %p58
      $region14: #{densenet_forward.7} parent=11 // pred_check_branch
        %164 = sbr.rel (%p162) target = $region16
      $region15: #{densenet_forward.7} parent=11 // pred_region
        _
      $region16: #{densenet_forward.7} parent=11 // pred_fallthru
        _
      // Predicated region
      $region17: #{densenet_forward.7} parent=11 // pred_check
        %p165 = pneg %p79
      $region18: #{densenet_forward.7} parent=11 // pred_check_branch
        %167 = sbr.rel (%p165) target = $region20
      $region19: #{densenet_forward.7} parent=11 // pred_region
        _
      $region20: #{densenet_forward.7} parent=11 // pred_fallthru
        _
      // Predicated region
      $region21: #{densenet_forward.7} parent=11 // pred_check
        %p168 = pneg %p100
      $region22: #{densenet_forward.7} parent=11 // pred_check_branch
        %170 = sbr.rel (%p168) target = $region24
      $region23: #{densenet_forward.7} parent=11 // pred_region
        _
      $region24: #{densenet_forward.7} parent=11 // pred_fallthru
        _
      // Predicated region
      $region25: #{densenet_forward.7} parent=11 // pred_check
        %p171 = pneg %p121
      $region26: #{densenet_forward.7} parent=11 // pred_check_branch
        %173 = sbr.rel (%p171) target = $region28
      $region27: #{densenet_forward.7} parent=11 // pred_region
        _
      $region28: #{densenet_forward.7} parent=11 // pred_fallthru
        _
    $region12: #{densenet_forward.7} parent=5 // pred_fallthru
      _
    %p174 = scmp.lt.s32.totalorder %s11, 2
    // Predicated region
    $region29: #{densenet_forward.7} parent=5 // pred_check
      %p175 = pneg %p174
    $region30: #{densenet_forward.7} parent=5 // pred_check_branch
      %177 = sbr.rel (%p175) target = $region32
    $region31: #{densenet_forward.7} parent=5 // pred_region
      // Predicated region
      $region33: #{densenet_forward.7} parent=31 // pred_check
        %p178 = pneg %p31
      $region34: #{densenet_forward.7} parent=31 // pred_check_branch
        %180 = sbr.rel (%p178) target = $region36
      $region35: #{densenet_forward.7} parent=31 // pred_region
        %p181 = scmp.lt.s32.totalorder %s11, 1
        %s182 = scalar_select %p181, %s11, 1
        %s183 = smul.addr %s182, 54
        %s184 = smul.addr %s183, 8
        %s185 = scalar_lea.vmem %s0, %s184
      $region36: #{densenet_forward.7} parent=31 // pred_fallthru
        _
    $region32: #{densenet_forward.7} parent=5 // pred_fallthru
      _
    %p186 = scmp.le.s32.totalorder 1, %s11
    %p187 = scmp.lt.s32.totalorder %s11, 3
    %p188 = pnand %p186, %p187
    %p189 = pneg %p188
    // Predicated region
    $region37: #{densenet_forward.7} parent=5 // pred_check
      _
    $region38: #{densenet_forward.7} parent=5 // pred_check_branch
      %191 = sbr.rel (%p188) target = $region40
    $region39: #{densenet_forward.7} parent=5 // pred_region
      %s192 = ssub.s32 %s11, 1
      %p193 = scmp.lt.s32.totalorder %s16, 1
      %s194 = scalar_select %p193, %s16, 1
      %s195 = smul.addr %s194, 54
      %s196 = smul.addr %s195, 8
      %s197 = scalar_lea.vmem %s0, %s196
      %p198 = pneg %p37
      %p199 = pneg %p34
      %p200 = pneg %p58
      %p201 = pneg %p55
      %p202 = pneg %p79
      %p203 = pneg %p76
      %p204 = pneg %p100
      %p205 = pneg %p97
      %p206 = pneg %p121
      %p207 = pneg %p118
      %p208 = pneg %p147
      %p209 = pneg %p144
      %p210 = scmp.lt.s32.totalorder %s16, 1
      %s211 = scalar_select %p210, %s16, 1
      %s212 = smul.addr %s211, 20
      %s213 = smul.addr %s212, 8
      %s214 = scalar_lea.vmem %s5, %s213
      %p215 = scmp.lt.s32.totalorder %s16, 1
      %s216 = scalar_select %p215, %s16, 1
      %s217 = smul.addr %s216, 54
      %s218 = smul.addr %s217, 8
      %s219 = scalar_lea.vmem %s0, %s218
      %p220 = scmp.lt.s32.totalorder %s16, 1
      %s221 = scalar_select %p220, %s16, 1
      %s222 = smul.addr %s221, 20
      %s223 = smul.addr %s222, 8
      %s224 = scalar_lea.vmem %s5, %s223
      %s226 = scalar_lea.vmem %s219, 24
      %v227 = vld [vmem:[%s226 + $0x1] sm:$0xff]
      %v228 = vld [vmem:[%s226 + $0x9] sm:$0xff]
      %v229 = vld [vmem:[%s226 + $0x19] sm:$0xff]
      %v230 = vld [vmem:[%s226 + $0x21] sm:$0xff]
      %v231 = vld [vmem:[%s226 + $0x31] sm:$0xff]
      %v232 = vld [vmem:[%s226 + $0x39] sm:$0xff]
      %v233 = vld [vmem:[%s226 + $0x49] sm:$0xff]
      %v234 = vld [vmem:[%s226 + $0x51] sm:$0xff]
      %v235 = vld [vmem:[%s226 + $0x61] sm:$0xff]
      %v236 = vld [vmem:[%s226 + $0x69] sm:$0xff]
      %v237 = vld [vmem:[%s226 + $0x79] sm:$0xff]
      %v238 = vld [vmem:[%s226 + $0x81] sm:$0xff]
      %v239 = vld [vmem:[%s226 + $0x91] sm:$0xff]
      %v240 = vld [vmem:[%s226 + $0x99] sm:$0xff]
      %v241 = vld [vmem:[%s226 + $0xa9] sm:$0xff]
      %v242 = vld [vmem:[%s226 + $0xb1] sm:$0xff]
      %v243 = vld [vmem:[%s226 + $0xc1] sm:$0xff]
      %v244 = vld [vmem:[%s226 + $0xc9] sm:$0xff]
      %v245 = vld [vmem:[%s226 + $0xd9] sm:$0xff]
      %v246 = vld [vmem:[%s226 + $0xe1] sm:$0xff]
      %v247 = vld [vmem:[%s226 + $0xf1] sm:$0xff]
      %v248 = vld [vmem:[%s226 + $0xf9] sm:$0xff]
      %v249 = vld [vmem:[%s226 + $0x109] sm:$0xff]
      %v250 = vld [vmem:[%s226 + $0x111] sm:$0xff]
      %v251 = vld [vmem:[%s226 + $0x121] sm:$0xff]
      %v252 = vld [vmem:[%s226 + $0x129] sm:$0xff]
      %v253 = vld [vmem:[%s226 + $0x139] sm:$0xff]
      %v254 = vld [vmem:[%s226 + $0x141] sm:$0xff]
      %v255 = vld [vmem:[%s226 + $0x151] sm:$0xff]
      %v256 = vld [vmem:[%s226 + $0x159] sm:$0xff]
      %v257 = vld [vmem:[%s226 + $0x169] sm:$0xff]
      %v258 = vld [vmem:[%s226 + $0x171] sm:$0xff]
      %v259 = vld [vmem:[%s1] sm:$0x1]
      %v261 = vlaneseq
      %v262 = vshrl.u32 %v261, 7
      %v263 = vsub.s32 0, %v262
      %v264 = vrot.slane %v259, %v263
      %v266 = vmul.f32 %v227, %v264
      %v267 = vmul.f32 %v228, %v264
      %v268 = vmul.f32 %v229, %v264
      %v269 = vmul.f32 %v230, %v264
      %v270 = vmul.f32 %v231, %v264
      %v271 = vmul.f32 %v232, %v264
      %v272 = vmul.f32 %v233, %v264
      %v273 = vmul.f32 %v234, %v264
      %v274 = vmul.f32 %v235, %v264
      %v275 = vmul.f32 %v236, %v264
      %v276 = vmul.f32 %v237, %v264
      %v277 = vmul.f32 %v238, %v264
      %v278 = vmul.f32 %v239, %v264
      %v279 = vmul.f32 %v240, %v264
      %v280 = vmul.f32 %v241, %v264
      %v281 = vmul.f32 %v242, %v264
      %v282 = vmul.f32 %v243, %v264
      %v283 = vmul.f32 %v244, %v264
      %v284 = vmul.f32 %v245, %v264
      %v285 = vmul.f32 %v246, %v264
      %v286 = vmul.f32 %v247, %v264
      %v287 = vmul.f32 %v248, %v264
      %v288 = vmul.f32 %v249, %v264
      %v289 = vmul.f32 %v250, %v264
      %v290 = vmul.f32 %v251, %v264
      %v291 = vmul.f32 %v252, %v264
      %v292 = vmul.f32 %v253, %v264
      %v293 = vmul.f32 %v254, %v264
      %v294 = vmul.f32 %v255, %v264
      %v295 = vmul.f32 %v256, %v264
      %v296 = vmul.f32 %v257, %v264
      %v297 = vmul.f32 %v258, %v264
      %v298 = vld [vmem:[%s2] sm:$0x1]
      %v300 = vlaneseq
      %v301 = vshrl.u32 %v300, 7
      %v302 = vsub.s32 0, %v301
      %v303 = vrot.slane %v298, %v302
      %v305 = vadd.f32 %v266, %v303
      %v306 = vadd.f32 %v267, %v303
      %v307 = vadd.f32 %v268, %v303
      %v308 = vadd.f32 %v269, %v303
      %v309 = vadd.f32 %v270, %v303
      %v310 = vadd.f32 %v271, %v303
      %v311 = vadd.f32 %v272, %v303
      %v312 = vadd.f32 %v273, %v303
      %v313 = vadd.f32 %v274, %v303
      %v314 = vadd.f32 %v275, %v303
      %v315 = vadd.f32 %v276, %v303
      %v316 = vadd.f32 %v277, %v303
      %v317 = vadd.f32 %v278, %v303
      %v318 = vadd.f32 %v279, %v303
      %v319 = vadd.f32 %v280, %v303
      %v320 = vadd.f32 %v281, %v303
      %v321 = vadd.f32 %v282, %v303
      %v322 = vadd.f32 %v283, %v303
      %v323 = vadd.f32 %v284, %v303
      %v324 = vadd.f32 %v285, %v303
      %v325 = vadd.f32 %v286, %v303
      %v326 = vadd.f32 %v287, %v303
      %v327 = vadd.f32 %v288, %v303
      %v328 = vadd.f32 %v289, %v303
      %v329 = vadd.f32 %v290, %v303
      %v330 = vadd.f32 %v291, %v303
      %v331 = vadd.f32 %v292, %v303
      %v332 = vadd.f32 %v293, %v303
      %v333 = vadd.f32 %v294, %v303
      %v334 = vadd.f32 %v295, %v303
      %v335 = vadd.f32 %v296, %v303
      %v336 = vadd.f32 %v297, %v303
      %v337 = vmax.f32 %v305, 0.0
      %v338 = vmax.f32 %v306, 0.0
      %v339 = vmax.f32 %v307, 0.0
      %v340 = vmax.f32 %v308, 0.0
      %v341 = vmax.f32 %v309, 0.0
      %v342 = vmax.f32 %v310, 0.0
      %v343 = vmax.f32 %v311, 0.0
      %v344 = vmax.f32 %v312, 0.0
      %v345 = vmax.f32 %v313, 0.0
      %v346 = vmax.f32 %v314, 0.0
      %v347 = vmax.f32 %v315, 0.0
      %v348 = vmax.f32 %v316, 0.0
      %v349 = vmax.f32 %v317, 0.0
      %v350 = vmax.f32 %v318, 0.0
      %v351 = vmax.f32 %v319, 0.0
      %v352 = vmax.f32 %v320, 0.0
      %v353 = vmax.f32 %v321, 0.0
      %v354 = vmax.f32 %v322, 0.0
      %v355 = vmax.f32 %v323, 0.0
      %v356 = vmax.f32 %v324, 0.0
      %v357 = vmax.f32 %v325, 0.0
      %v358 = vmax.f32 %v326, 0.0
      %v359 = vmax.f32 %v327, 0.0
      %v360 = vmax.f32 %v328, 0.0
      %v361 = vmax.f32 %v329, 0.0
      %v362 = vmax.f32 %v330, 0.0
      %v363 = vmax.f32 %v331, 0.0
      %v364 = vmax.f32 %v332, 0.0
      %v365 = vmax.f32 %v333, 0.0
      %v366 = vmax.f32 %v334, 0.0
      %v367 = vmax.f32 %v335, 0.0
      %v368 = vmax.f32 %v336, 0.0
      %v369 = vpack.c.bf16 %v338, %v337
      %v370 = vpack.c.bf16 %v340, %v339
      %v371 = vpack.c.bf16 %v342, %v341
      %v372 = vpack.c.bf16 %v344, %v343
      %v373 = vpack.c.bf16 %v346, %v345
      %v374 = vpack.c.bf16 %v348, %v347
      %v375 = vpack.c.bf16 %v350, %v349
      %v376 = vpack.c.bf16 %v352, %v351
      %v377 = vpack.c.bf16 %v354, %v353
      %v378 = vpack.c.bf16 %v356, %v355
      %v379 = vpack.c.bf16 %v358, %v357
      %v380 = vpack.c.bf16 %v360, %v359
      %v381 = vpack.c.bf16 %v362, %v361
      %v382 = vpack.c.bf16 %v364, %v363
      %v383 = vpack.c.bf16 %v366, %v365
      %v384 = vpack.c.bf16 %v368, %v367
      %v385 = vld [vmem:[%s3] sm:$0xff]
      %v386 = vld [vmem:[%s3 + $0x8] sm:$0xff]
      %v387 = vld [vmem:[%s3 + $0x10] sm:$0xff]
      %v388 = vld [vmem:[%s3 + $0x18] sm:$0xff]
      %v389 = vld [vmem:[%s3 + $0x20] sm:$0xff]
      %v390 = vld [vmem:[%s3 + $0x28] sm:$0xff]
      %v391 = vld [vmem:[%s3 + $0x30] sm:$0xff]
      %v392 = vld [vmem:[%s3 + $0x38] sm:$0xff]
      %v401 = vunpack.c.l.b16 %v385
      %v402 = vunpack.c.h.b16 %v385
      %v403 = vunpack.c.l.b16 %v386
      %v404 = vunpack.c.h.b16 %v386
      %v405 = vunpack.c.l.b16 %v387
      %v406 = vunpack.c.h.b16 %v387
      %v407 = vunpack.c.l.b16 %v388
      %v408 = vunpack.c.h.b16 %v388
      %v409 = vunpack.c.l.b16 %v389
      %v410 = vunpack.c.h.b16 %v389
      %v411 = vunpack.c.l.b16 %v390
      %v412 = vunpack.c.h.b16 %v390
      %v413 = vunpack.c.l.b16 %v391
      %v414 = vunpack.c.h.b16 %v391
      %v415 = vunpack.c.l.b16 %v392
      %v416 = vunpack.c.h.b16 %v392
      %v417 = vpack.c.b16 %v403, %v401
      %v418 = vpack.c.b16 %v404, %v402
      %v419 = vpack.c.b16 %v407, %v405
      %v420 = vpack.c.b16 %v408, %v406
      %v421 = vpack.c.b16 %v411, %v409
      %v422 = vpack.c.b16 %v412, %v410
      %v423 = vpack.c.b16 %v415, %v413
      %v424 = vpack.c.b16 %v416, %v414
      %433 = vmatprep.subr.bf16.mxu0 0
      %434 = vmatpush1.bf16.msra.mxu0 %v369
      %435 = vmatprep.subr.bf16.mxu0 0
      %436 = vmatpush1.bf16.msra.mxu0 %v370
      %437 = vmatprep.subr.bf16.mxu0 0
      %438 = vmatpush1.bf16.msra.mxu0 %v371
      %439 = vmatprep.subr.bf16.mxu0 0
      %440 = vmatpush1.bf16.msra.mxu0 %v372
      %441 = vmatprep.subr.bf16.mxu0 0
      %442 = vmatpush1.bf16.msra.mxu0 %v373
      %443 = vmatprep.subr.bf16.mxu0 0
      %444 = vmatpush1.bf16.msra.mxu0 %v374
      %445 = vmatprep.subr.bf16.mxu0 0
      %446 = vmatpush1.bf16.msra.mxu0 %v375
      %447 = vmatprep.subr.bf16.mxu0 0
      %448 = vmatpush1.bf16.msra.mxu0 %v376
      %449 = vmatprep.subr.bf16.mxu0 0
      %450 = vmatpush1.bf16.msra.mxu0 %v377
      %451 = vmatprep.subr.bf16.mxu0 0
      %452 = vmatpush1.bf16.msra.mxu0 %v378
      %453 = vmatprep.subr.bf16.mxu0 0
      %454 = vmatpush1.bf16.msra.mxu0 %v379
      %455 = vmatprep.subr.bf16.mxu0 0
      %456 = vmatpush1.bf16.msra.mxu0 %v380
      %457 = vmatprep.subr.bf16.mxu0 0
      %458 = vmatpush1.bf16.msra.mxu0 %v381
      %459 = vmatprep.subr.bf16.mxu0 0
      %460 = vmatpush1.bf16.msra.mxu0 %v382
      %461 = vmatprep.subr.bf16.mxu0 0
      %462 = vmatpush1.bf16.msra.mxu0 %v383
      %463 = vmatprep.subr.bf16.mxu0 0
      %464 = vmatpush1.bf16.msra.mxu0 %v384
      %465 = vmatprep.mubr.bf16.mxu0 %v418
      %466 = vmatmul.mubr.bf16.gmra.mrb[0].mxu0 %v417
      %v467 = vpop.f32.mrb[0].mxu0
      %v468 = vadd.f32 0.0, %v467
      %v469 = vpop.f32.mrb[0].mxu0
      %v470 = vpop.f32.mrb[0].mxu0
      %v471 = vadd.f32 0.0, %v470
      %v472 = vpop.f32.mrb[0].mxu0
      %473 = vmatprep.mubr.bf16.mxu0 %v420
      %474 = vmatmul.mubr.bf16.gmra.mrb[0].mxu0 %v419
      %v475 = vpop.f32.mrb[0].mxu0
      %v476 = vadd.f32 0.0, %v475
      %v477 = vpop.f32.mrb[0].mxu0
      %v478 = vpop.f32.mrb[0].mxu0
      %v479 = vadd.f32 0.0, %v478
      %v480 = vpop.f32.mrb[0].mxu0
      %481 = vmatprep.mubr.bf16.mxu0 %v422
      %482 = vmatmul.mubr.bf16.gmra.mrb[0].mxu0 %v421
      %v483 = vpop.f32.mrb[0].mxu0
      %v484 = vadd.f32 0.0, %v483
      %v485 = vpop.f32.mrb[0].mxu0
      %v486 = vpop.f32.mrb[0].mxu0
      %v487 = vadd.f32 0.0, %v486
      %v488 = vpop.f32.mrb[0].mxu0
      %489 = vmatprep.mubr.bf16.mxu0 %v424
      %490 = vmatmul.mubr.bf16.gmra.mrb[0].mxu0 %v423
      %v491 = vpop.f32.mrb[0].mxu0
      %v492 = vadd.f32 0.0, %v491
      %v493 = vpop.f32.mrb[0].mxu0
      %v494 = vpop.f32.mrb[0].mxu0
      %v495 = vadd.f32 0.0, %v494
      %v496 = vpop.f32.mrb[0].mxu0
      %497 = vdwg.mxu0
      %v498 = vpack.c.bf16 %v471, %v468
      %v499 = vpack.c.bf16 %v479, %v476
      %v500 = vpack.c.bf16 %v487, %v484
      %v501 = vpack.c.bf16 %v495, %v492
      %v502 = vld [vmem:[%s4] sm:$0xf]
      %v503 = vld [vmem:[%s4 + $0x4] sm:$0xf]
      %v504 = vld [vmem:[%s4 + $0x8] sm:$0xf]
      %v505 = vld [vmem:[%s4 + $0xc] sm:$0xf]
      %v506 = vld [vmem:[%s4 + $0x10] sm:$0xf]
      %v507 = vld [vmem:[%s4 + $0x14] sm:$0xf]
      %v508 = vld [vmem:[%s4 + $0x18] sm:$0xf]
      %v509 = vld [vmem:[%s4 + $0x1c] sm:$0xf]
      %v510 = vld [vmem:[%s4 + $0x20] sm:$0xf]
      %v511 = vld [vmem:[%s4 + $0x24] sm:$0xf]
      %v512 = vld [vmem:[%s4 + $0x28] sm:$0xf]
      %v513 = vld [vmem:[%s4 + $0x2c] sm:$0xf]
      %v514 = vld [vmem:[%s4 + $0x30] sm:$0xf]
      %v515 = vld [vmem:[%s4 + $0x34] sm:$0xf]
      %v516 = vld [vmem:[%s4 + $0x38] sm:$0xf]
      %v517 = vld [vmem:[%s4 + $0x3c] sm:$0xf]
      %v534 = vunpack.c.l.b16 %v502
      %v535 = vunpack.c.l.b16 %v503
      %v536 = vunpack.c.l.b16 %v504
      %v537 = vunpack.c.l.b16 %v505
      %v538 = vunpack.c.l.b16 %v506
      %v539 = vunpack.c.l.b16 %v507
      %v540 = vunpack.c.l.b16 %v508
      %v541 = vunpack.c.l.b16 %v509
      %v542 = vunpack.c.l.b16 %v510
      %v543 = vunpack.c.l.b16 %v511
      %v544 = vunpack.c.l.b16 %v512
      %v545 = vunpack.c.l.b16 %v513
      %v546 = vunpack.c.l.b16 %v514
      %v547 = vunpack.c.l.b16 %v515
      %v548 = vunpack.c.l.b16 %v516
      %v549 = vunpack.c.l.b16 %v517
      %v550 = vpack.c.b16 %v535, %v534
      %v551 = vpack.c.b16 %v537, %v536
      %v552 = vpack.c.b16 %v539, %v538
      %v553 = vpack.c.b16 %v541, %v540
      %v554 = vpack.c.b16 %v543, %v542
      %v555 = vpack.c.b16 %v545, %v544
      %v556 = vpack.c.b16 %v547, %v546
      %v557 = vpack.c.b16 %v549, %v548
      %566 = vmatprep.subr.bf16.mxu0 0
      %567 = vmatpush1.bf16.msra.mxu0 %v550
      %568 = vmatprep.subr.bf16.mxu0 0
      %569 = vmatpush1.bf16.msra.mxu0 %v551
      %570 = vmatprep.subr.bf16.mxu0 0
      %571 = vmatpush1.bf16.msra.mxu0 %v552
      %572 = vmatprep.subr.bf16.mxu0 0
      %573 = vmatpush1.bf16.msra.mxu0 %v553
      %574 = vmatprep.subr.bf16.mxu0 0
      %575 = vmatpush1.bf16.msra.mxu0 %v554
      %576 = vmatprep.subr.bf16.mxu0 0
      %577 = vmatpush1.bf16.msra.mxu0 %v555
      %578 = vmatprep.subr.bf16.mxu0 0
      %579 = vmatpush1.bf16.msra.mxu0 %v556
      %580 = vmatprep.subr.bf16.mxu0 0
      %581 = vmatpush1.bf16.msra.mxu0 %v557
      %582 = vmatprep.subr.bf16.mxu0 0
      %583 = vmatpush1.bf16.msra.mxu0 0
      %584 = vmatprep.subr.bf16.mxu0 0
      %585 = vmatpush1.bf16.msra.mxu0 0
      %586 = vmatprep.subr.bf16.mxu0 0
      %587 = vmatpush1.bf16.msra.mxu0 0
      %588 = vmatprep.subr.bf16.mxu0 0
      %589 = vmatpush1.bf16.msra.mxu0 0
      %590 = vmatprep.subr.bf16.mxu0 0
      %591 = vmatpush1.bf16.msra.mxu0 0
      %592 = vmatprep.subr.bf16.mxu0 0
      %593 = vmatpush1.bf16.msra.mxu0 0
      %594 = vmatprep.subr.bf16.mxu0 0
      %595 = vmatpush1.bf16.msra.mxu0 0
      %596 = vmatprep.subr.bf16.mxu0 0
      %597 = vmatpush1.bf16.msra.mxu0 0
      %598 = vmatprep.mubr.bf16.mxu0 0
      %599 = vmatmul.mubr.bf16.gmra.mrb[0].mxu0 %v498
      %v600 = vpop.f32.mrb[0].mxu0
      %v601 = vadd.f32 0.0, %v600
      %v602 = vpop.f32.mrb[0].mxu0
      %v603 = vpop.f32.mrb[0].mxu0
      %v604 = vadd.f32 0.0, %v603
      %v605 = vpop.f32.mrb[0].mxu0
      %606 = vmatprep.mubr.bf16.mxu0 0
      %607 = vmatmul.mubr.bf16.gmra.mrb[0].mxu0 %v499
      %v608 = vpop.f32.mrb[0].mxu0
      %v609 = vadd.f32 0.0, %v608
      %v610 = vpop.f32.mrb[0].mxu0
      %v611 = vpop.f32.mrb[0].mxu0
      %v612 = vadd.f32 0.0, %v611
      %v613 = vpop.f32.mrb[0].mxu0
      %614 = vmatprep.mubr.bf16.mxu0 0
      %615 = vmatmul.mubr.bf16.gmra.mrb[0].mxu0 %v500
      %v616 = vpop.f32.mrb[0].mxu0
      %v617 = vadd.f32 0.0, %v616
      %v618 = vpop.f32.mrb[0].mxu0
      %v619 = vpop.f32.mrb[0].mxu0
      %v620 = vadd.f32 0.0, %v619
      %v621 = vpop.f32.mrb[0].mxu0
      %622 = vmatprep.mubr.bf16.mxu0 0
      %623 = vmatmul.mubr.bf16.gmra.mrb[0].mxu0 %v501
      %v624 = vpop.f32.mrb[0].mxu0
      %v625 = vadd.f32 0.0, %v624
      %v626 = vpop.f32.mrb[0].mxu0
      %v627 = vpop.f32.mrb[0].mxu0
      %v628 = vadd.f32 0.0, %v627
      %v629 = vpop.f32.mrb[0].mxu0
      %630 = vdwg.mxu0
      %631 = vst [vmem:[%s224] sm:$0xff] 0.0
      %632 = vst [vmem:[%s224 + $0x8] sm:$0x3] 0.0
      %633 = vst [vmem:[%s224 + $0x10] sm:$0xff] 0.0
      %634 = vst [vmem:[%s224 + $0x18] sm:$0x3] 0.0
      %635 = vst [vmem:[%s224 + $0x20] sm:$0xff] 0.0
      %636 = vst [vmem:[%s224 + $0x28] sm:$0x3] 0.0
      %637 = vst [vmem:[%s224 + $0x30] sm:$0xff] 0.0
      %638 = vst [vmem:[%s224 + $0x38] sm:$0x3] 0.0
      %639 = vst [vmem:[%s224 + $0x40] sm:$0xff] 0.0
      %640 = vst [vmem:[%s224 + $0x48] sm:$0x3] 0.0
      %641 = vst [vmem:[%s224 + $0x50] sm:$0xff] 0.0
      %642 = vst [vmem:[%s224 + $0x58] sm:$0x3] 0.0
      %643 = vst [vmem:[%s224 + $0x60] sm:$0xff] 0.0
      %644 = vst [vmem:[%s224 + $0x68] sm:$0x3] 0.0
      %645 = vst [vmem:[%s224 + $0x70] sm:$0xff] 0.0
      %646 = vst [vmem:[%s224 + $0x78] sm:$0x3] 0.0
      %647 = vst [vmem:[%s224 + $0x80] sm:$0xff] 0.0
      %648 = vst [vmem:[%s224 + $0x88] sm:$0x3] 0.0
      %649 = vst [vmem:[%s224 + $0x90] sm:$0xff] 0.0
      %650 = vst [vmem:[%s224 + $0x98] sm:$0x3] 0.0
      %s651 = scalar_lea.vmem %s224, 16
      %652 = vst [vmem:[%s651 + $0x1] sm:$0xff] %v601
      %653 = vst [vmem:[%s651 + $0x11] sm:$0xff] %v604
      %654 = vst [vmem:[%s651 + $0x21] sm:$0xff] %v609
      %655 = vst [vmem:[%s651 + $0x31] sm:$0xff] %v612
      %656 = vst [vmem:[%s651 + $0x41] sm:$0xff] %v617
      %657 = vst [vmem:[%s651 + $0x51] sm:$0xff] %v620
      %658 = vst [vmem:[%s651 + $0x61] sm:$0xff] %v625
      %659 = vst [vmem:[%s651 + $0x71] sm:$0xff] %v628
      %p660 = scmp.lt.s32.totalorder %s16, 1
      %s661 = scalar_select %p660, %s16, 1
      %s662 = smul.addr %s661, 20
      %s663 = smul.addr %s662, 8
      %s664 = scalar_lea.vmem %s5, %s663
      // Predicated region
      $region41: #{densenet_forward.7} parent=39 // pred_check
        %p665 = pneg %p144
      $region42: #{densenet_forward.7} parent=39 // pred_check_branch
        %667 = sbr.rel (%p665) target = $region44
      $region43: #{densenet_forward.7} parent=39 // pred_region
        _
      $region44: #{densenet_forward.7} parent=39 // pred_fallthru
        _
    $region40: #{densenet_forward.7} parent=5 // pred_fallthru
      _
    %p668 = scmp.le.s32.totalorder 2, %s11
    // Predicated region
    $region45: #{densenet_forward.7} parent=5 // pred_check
      %p669 = pneg %p668
    $region46: #{densenet_forward.7} parent=5 // pred_check_branch
      %671 = sbr.rel (%p669) target = $region48
    $region47: #{densenet_forward.7} parent=5 // pred_region
      %s672 = ssub.s32 %s11, 2
      // Predicated region
      $region49: #{densenet_forward.7} parent=47 // pred_check
        %p673 = pneg %p150
      $region50: #{densenet_forward.7} parent=47 // pred_check_branch
        %675 = sbr.rel (%p673) target = $region52
      $region51: #{densenet_forward.7} parent=47 // pred_region
        %p676 = scmp.lt.s32.totalorder %s17, 1
        %s677 = scalar_select %p676, %s17, 1
        %s678 = smul.addr %s677, 20
        %s679 = smul.addr %s678, 8
        %s680 = scalar_lea.vmem %s5, %s679
      $region52: #{densenet_forward.7} parent=47 // pred_fallthru
        _
    $region48: #{densenet_forward.7} parent=5 // pred_fallthru
      _
  $region6: #{densenet_forward.7} parent=0 // loop_footer
    %s15 = sadd.s32 1, %s11
  $region7: #{densenet_forward.7} parent=0 // loop_footer_branch
    %10 = sbr.rel target = $region3
  $region8: #{densenet_forward.7} parent=0 // loop_exit
    _

// kernel: densenet_forward.9
$region0: #{densenet_forward.9}
  #allocation0 [shape = 'u32[]', space=smem, size = 0x4, offset = 0x4, fixed_abs, tag = 'smem constant byte address 0x4 - core index']
  #allocation1 [shape = 'u32[144,128]{1,0:T(1,128)}', space=vmem, size = 0x12000, scoped, tag = 'internal scratch']
  %s0 = inlined_call_operand.vmem [shape: f32[2,10,10,128], index: 0, kind: input, shape index: {}]
  %s1 = inlined_call_operand.vmem [shape: f32[1,128], index: 1, kind: input, shape index: {}]
  %s2 = inlined_call_operand.vmem [shape: f32[1,128], index: 2, kind: input, shape index: {}]
  %s3 = inlined_call_operand.vmem [shape: bf16[16,64], index: 3, kind: input, shape index: {}]
  %s4 = inlined_call_operand.vmem [shape: bf16[128,128], index: 4, kind: input, shape index: {}]
  %s5 = inlined_call_operand.vmem [shape: f32[2,6,6,128], index: 5, kind: output, shape index: {}]
  %s6 = sld [smem:[#allocation0]]
  $region53: #{densenet_forward.9} parent=0
    _
  %s8 = ssub.s32 1, %s6
  %s9 = scalar_select 0, %s8, %s6
  loop: start=0, step=1, limit=4
  $region2: #{densenet_forward.9} parent=0 // loop_pre_header
    _
  $region3: #{densenet_forward.9} parent=0 // loop_header
    %s11 = sphi 0, %s15
    %p12 = scmp.ge.s32.totalorder %s11, 4
    %s21 = sphi 0, %s23
    %s24 = sphi 0, %s21
    %s25 = sphi 0, %s24
    %s41 = sphi 0, %s25
    %s45 = sphi 0, %s45
    %s47 = sphi 0, %s45
    %s48 = sphi 0, %s47
    %s62 = sphi 0, %s48
    %s66 = sphi 0, %s66
    %s68 = sphi 0, %s66
    %s69 = sphi 0, %s68
    %s83 = sphi 0, %s69
    %s87 = sphi 0, %s87
    %s89 = sphi 0, %s87
    %s90 = sphi 0, %s89
    %s104 = sphi 0, %s90
    %s108 = sphi 0, %s108
    %s110 = sphi 0, %s108
    %s111 = sphi 0, %s110
    %s125 = sphi 0, %s111
    %s131 = sphi 0, %s133
    %s134 = sphi 0, %s131
    %s135 = sphi 0, %s134
    %s151 = sphi 0, %s135
  $region4: #{densenet_forward.9} parent=0 // loop_header_branch
    %14 = sbr.rel (%p12) target = $region8
  $region5: #{densenet_forward.9} parent=0 // loop_body
    %s16 = ssub.s32 %s11, 1
    %s17 = ssub.s32 %s11, 2
    %s18 = sadd.s32 %s11, 1
    %s19 = ssub.s32 %s11, %s18
    %p20 = scmp.eq.s32.totalorder %s19, 0
    %s22 = sadd.s32 %s21, 1
    %s23 = scalar_select %p20, %s21, %s22
    %p26 = pneg %p20
    %p27 = scmp.eq.s32.totalorder %s11, 1
    %p28 = por %p26, %p27
    %p29 = scmp.ne.s32.totalorder %s21, %s24
    %p30 = scmp.eq.s32.totalorder %s11, 0
    %p31 = por %p29, %p30
    %p32 = scmp.ne.s32.totalorder %s21, %s24
    %p33 = scmp.eq.s32.totalorder %s16, 1
    %p34 = por %p32, %p33
    %p35 = scmp.ne.s32.totalorder %s24, %s25
    %p36 = scmp.eq.s32.totalorder %s16, 0
    %p37 = por %p35, %p36
    %p38 = scmp.ne.s32.totalorder %s24, %s25
    %p39 = scmp.eq.s32.totalorder %s17, 1
    %p40 = por %p38, %p39
    %p42 = scmp.ne.s32.totalorder %s25, %s41
    %p43 = scmp.eq.s32.totalorder %s17, 0
    %p44 = por %p42, %p43
    %s46 = sadd.s32 %s45, 1
    %p49 = scmp.eq.s32.totalorder %s11, 1
    %p50 = scmp.ne.s32.totalorder %s45, %s47
    %p51 = scmp.eq.s32.totalorder %s11, 0
    %p52 = por %p50, %p51
    %p53 = scmp.ne.s32.totalorder %s45, %s47
    %p54 = scmp.eq.s32.totalorder %s16, 1
    %p55 = por %p53, %p54
    %p56 = scmp.ne.s32.totalorder %s47, %s48
    %p57 = scmp.eq.s32.totalorder %s16, 0
    %p58 = por %p56, %p57
    %p59 = scmp.ne.s32.totalorder %s47, %s48
    %p60 = scmp.eq.s32.totalorder %s17, 1
    %p61 = por %p59, %p60
    %p63 = scmp.ne.s32.totalorder %s48, %s62
    %p64 = scmp.eq.s32.totalorder %s17, 0
    %p65 = por %p63, %p64
    %s67 = sadd.s32 %s66, 1
    %p70 = scmp.eq.s32.totalorder %s11, 1
    %p71 = scmp.ne.s32.totalorder %s66, %s68
    %p72 = scmp.eq.s32.totalorder %s11, 0
    %p73 = por %p71, %p72
    %p74 = scmp.ne.s32.totalorder %s66, %s68
    %p75 = scmp.eq.s32.totalorder %s16, 1
    %p76 = por %p74, %p75
    %p77 = scmp.ne.s32.totalorder %s68, %s69
    %p78 = scmp.eq.s32.totalorder %s16, 0
    %p79 = por %p77, %p78
    %p80 = scmp.ne.s32.totalorder %s68, %s69
    %p81 = scmp.eq.s32.totalorder %s17, 1
    %p82 = por %p80, %p81
    %p84 = scmp.ne.s32.totalorder %s69, %s83
    %p85 = scmp.eq.s32.totalorder %s17, 0
    %p86 = por %p84, %p85
    %s88 = sadd.s32 %s87, 1
    %p91 = scmp.eq.s32.totalorder %s11, 1
    %p92 = scmp.ne.s32.totalorder %s87, %s89
    %p93 = scmp.eq.s32.totalorder %s11, 0
    %p94 = por %p92, %p93
    %p95 = scmp.ne.s32.totalorder %s87, %s89
    %p96 = scmp.eq.s32.totalorder %s16, 1
    %p97 = por %p95, %p96
    %p98 = scmp.ne.s32.totalorder %s89, %s90
    %p99 = scmp.eq.s32.totalorder %s16, 0
    %p100 = por %p98, %p99
    %p101 = scmp.ne.s32.totalorder %s89, %s90
    %p102 = scmp.eq.s32.totalorder %s17, 1
    %p103 = por %p101, %p102
    %p105 = scmp.ne.s32.totalorder %s90, %s104
    %p106 = scmp.eq.s32.totalorder %s17, 0
    %p107 = por %p105, %p106
    %s109 = sadd.s32 %s108, 1
    %p112 = scmp.eq.s32.totalorder %s11, 1
    %p113 = scmp.ne.s32.totalorder %s108, %s110
    %p114 = scmp.eq.s32.totalorder %s11, 0
    %p115 = por %p113, %p114
    %p116 = scmp.ne.s32.totalorder %s108, %s110
    %p117 = scmp.eq.s32.totalorder %s16, 1
    %p118 = por %p116, %p117
    %p119 = scmp.ne.s32.totalorder %s110, %s111
    %p120 = scmp.eq.s32.totalorder %s16, 0
    %p121 = por %p119, %p120
    %p122 = scmp.ne.s32.totalorder %s110, %s111
    %p123 = scmp.eq.s32.totalorder %s17, 1
    %p124 = por %p122, %p123
    %p126 = scmp.ne.s32.totalorder %s111, %s125
    %p127 = scmp.eq.s32.totalorder %s17, 0
    %p128 = por %p126, %p127
    %s129 = ssub.s32 %s11, %s18
    %p130 = scmp.eq.s32.totalorder %s129, 0
    %s132 = sadd.s32 %s131, 1
    %s133 = scalar_select %p130, %s131, %s132
    %p136 = pneg %p130
    %p137 = scmp.eq.s32.totalorder %s11, 1
    %p138 = por %p136, %p137
    %p139 = scmp.ne.s32.totalorder %s131, %s134
    %p140 = scmp.eq.s32.totalorder %s11, 0
    %p141 = por %p139, %p140
    %p142 = scmp.ne.s32.totalorder %s131, %s134
    %p143 = scmp.eq.s32.totalorder %s16, 1
    %p144 = por %p142, %p143
    %p145 = scmp.ne.s32.totalorder %s134, %s135
    %p146 = scmp.eq.s32.totalorder %s16, 0
    %p147 = por %p145, %p146
    %p148 = scmp.ne.s32.totalorder %s134, %s135
    %p149 = scmp.eq.s32.totalorder %s17, 1
    %p150 = por %p148, %p149
    %p152 = scmp.ne.s32.totalorder %s135, %s151
    %p153 = scmp.eq.s32.totalorder %s17, 0
    %p154 = por %p152, %p153
    %p155 = scmp.le.s32.totalorder 1, %s11
    %p156 = scmp.lt.s32.totalorder %s11, 3
    %p157 = pnand %p155, %p156
    %p158 = pneg %p157
    // Predicated region
    $region9: #{densenet_forward.9} parent=5 // pred_check
      _
    $region10: #{densenet_forward.9} parent=5 // pred_check_branch
      %160 = sbr.rel (%p157) target = $region12
    $region11: #{densenet_forward.9} parent=5 // pred_region
      %s161 = ssub.s32 %s11, 1
      // Predicated region
      $region13: #{densenet_forward.9} parent=11 // pred_check
        %p162 = pneg %p58
      $region14: #{densenet_forward.9} parent=11 // pred_check_branch
        %164 = sbr.rel (%p162) target = $region16
      $region15: #{densenet_forward.9} parent=11 // pred_region
        _
      $region16: #{densenet_forward.9} parent=11 // pred_fallthru
        _
      // Predicated region
      $region17: #{densenet_forward.9} parent=11 // pred_check
        %p165 = pneg %p79
      $region18: #{densenet_forward.9} parent=11 // pred_check_branch
        %167 = sbr.rel (%p165) target = $region20
      $region19: #{densenet_forward.9} parent=11 // pred_region
        _
      $region20: #{densenet_forward.9} parent=11 // pred_fallthru
        _
      // Predicated region
      $region21: #{densenet_forward.9} parent=11 // pred_check
        %p168 = pneg %p100
      $region22: #{densenet_forward.9} parent=11 // pred_check_branch
        %170 = sbr.rel (%p168) target = $region24
      $region23: #{densenet_forward.9} parent=11 // pred_region
        _
      $region24: #{densenet_forward.9} parent=11 // pred_fallthru
        _
      // Predicated region
      $region25: #{densenet_forward.9} parent=11 // pred_check
        %p171 = pneg %p121
      $region26: #{densenet_forward.9} parent=11 // pred_check_branch
        %173 = sbr.rel (%p171) target = $region28
      $region27: #{densenet_forward.9} parent=11 // pred_region
        _
      $region28: #{densenet_forward.9} parent=11 // pred_fallthru
        _
    $region12: #{densenet_forward.9} parent=5 // pred_fallthru
      _
    %p174 = scmp.lt.s32.totalorder %s11, 2
    // Predicated region
    $region29: #{densenet_forward.9} parent=5 // pred_check
      %p175 = pneg %p174
    $region30: #{densenet_forward.9} parent=5 // pred_check_branch
      %177 = sbr.rel (%p175) target = $region32
    $region31: #{densenet_forward.9} parent=5 // pred_region
      // Predicated region
      $region33: #{densenet_forward.9} parent=31 // pred_check
        %p178 = pneg %p31
      $region34: #{densenet_forward.9} parent=31 // pred_check_branch
        %180 = sbr.rel (%p178) target = $region36
      $region35: #{densenet_forward.9} parent=31 // pred_region
        %p181 = scmp.lt.s32.totalorder %s11, 1
        %s182 = scalar_select %p181, %s11, 1
        %s183 = smul.addr %s182, 20
        %s184 = smul.addr %s183, 8
        %s185 = scalar_lea.vmem %s0, %s184
      $region36: #{densenet_forward.9} parent=31 // pred_fallthru
        _
    $region32: #{densenet_forward.9} parent=5 // pred_fallthru
      _
    %p186 = scmp.le.s32.totalorder 1, %s11
    %p187 = scmp.lt.s32.totalorder %s11, 3
    %p188 = pnand %p186, %p187
    %p189 = pneg %p188
    // Predicated region
    $region37: #{densenet_forward.9} parent=5 // pred_check
      _
    $region38: #{densenet_forward.9} parent=5 // pred_check_branch
      %191 = sbr.rel (%p188) target = $region40
    $region39: #{densenet_forward.9} parent=5 // pred_region
      %s192 = ssub.s32 %s11, 1
      %p193 = scmp.lt.s32.totalorder %s16, 1
      %s194 = scalar_select %p193, %s16, 1
      %s195 = smul.addr %s194, 20
      %s196 = smul.addr %s195, 8
      %s197 = scalar_lea.vmem %s0, %s196
      %p198 = pneg %p37
      %p199 = pneg %p34
      %p200 = pneg %p58
      %p201 = pneg %p55
      %p202 = pneg %p79
      %p203 = pneg %p76
      %p204 = pneg %p100
      %p205 = pneg %p97
      %p206 = pneg %p121
      %p207 = pneg %p118
      %p208 = pneg %p147
      %p209 = pneg %p144
      %p210 = scmp.lt.s32.totalorder %s16, 1
      %s211 = scalar_select %p210, %s16, 1
      %s212 = smul.addr %s211, 6
      %s213 = smul.addr %s212, 8
      %s214 = scalar_lea.vmem %s5, %s213
      %p215 = scmp.lt.s32.totalorder %s16, 1
      %s216 = scalar_select %p215, %s16, 1
      %s217 = smul.addr %s216, 20
      %s218 = smul.addr %s217, 8
      %s219 = scalar_lea.vmem %s0, %s218
      %p220 = scmp.lt.s32.totalorder %s16, 1
      %s221 = scalar_select %p220, %s16, 1
      %s222 = smul.addr %s221, 6
      %s223 = smul.addr %s222, 8
      %s224 = scalar_lea.vmem %s5, %s223
      %s226 = scalar_lea.vmem %s219, 16
      %v227 = vld [vmem:[%s226 + $0x1] sm:$0xff]
      %v228 = vld [vmem:[%s226 + $0x11] sm:$0xff]
      %v229 = vld [vmem:[%s226 + $0x21] sm:$0xff]
      %v230 = vld [vmem:[%s226 + $0x31] sm:$0xff]
      %v231 = vld [vmem:[%s226 + $0x41] sm:$0xff]
      %v232 = vld [vmem:[%s226 + $0x51] sm:$0xff]
      %v233 = vld [vmem:[%s226 + $0x61] sm:$0xff]
      %v234 = vld [vmem:[%s226 + $0x71] sm:$0xff]
      %v235 = vld [vmem:[%s1] sm:$0x1]
      %v237 = vlaneseq
      %v238 = vshrl.u32 %v237, 7
      %v239 = vsub.s32 0, %v238
      %v240 = vrot.slane %v235, %v239
      %v242 = vmul.f32 %v227, %v240
      %v243 = vmul.f32 %v228, %v240
      %v244 = vmul.f32 %v229, %v240
      %v245 = vmul.f32 %v230, %v240
      %v246 = vmul.f32 %v231, %v240
      %v247 = vmul.f32 %v232, %v240
      %v248 = vmul.f32 %v233, %v240
      %v249 = vmul.f32 %v234, %v240
      %v250 = vld [vmem:[%s2] sm:$0x1]
      %v252 = vlaneseq
      %v253 = vshrl.u32 %v252, 7
      %v254 = vsub.s32 0, %v253
      %v255 = vrot.slane %v250, %v254
      %v257 = vadd.f32 %v242, %v255
      %v258 = vadd.f32 %v243, %v255
      %v259 = vadd.f32 %v244, %v255
      %v260 = vadd.f32 %v245, %v255
      %v261 = vadd.f32 %v246, %v255
      %v262 = vadd.f32 %v247, %v255
      %v263 = vadd.f32 %v248, %v255
      %v264 = vadd.f32 %v249, %v255
      %v265 = vmax.f32 %v257, 0.0
      %v266 = vmax.f32 %v258, 0.0
      %v267 = vmax.f32 %v259, 0.0
      %v268 = vmax.f32 %v260, 0.0
      %v269 = vmax.f32 %v261, 0.0
      %v270 = vmax.f32 %v262, 0.0
      %v271 = vmax.f32 %v263, 0.0
      %v272 = vmax.f32 %v264, 0.0
      %v273 = vpack.c.bf16 %v266, %v265
      %v274 = vpack.c.bf16 %v268, %v267
      %v275 = vpack.c.bf16 %v270, %v269
      %v276 = vpack.c.bf16 %v272, %v271
      %v277 = vld [vmem:[%s3] sm:$0xf]
      %v278 = vld [vmem:[%s3 + $0x4] sm:$0xf]
      %v281 = vunpack.c.l.b16 %v277
      %v282 = vunpack.c.l.b16 %v278
      %v283 = vpack.c.b16 %v282, %v281
      %vm284 = vcmask 523264
      %v286 = vsel %vm284, %v283, 0
      %288 = vmatprep.subr.bf16.mxu0 0
      %289 = vmatpush1.bf16.msra.mxu0 %v273
      %290 = vmatprep.subr.bf16.mxu0 0
      %291 = vmatpush1.bf16.msra.mxu0 %v274
      %292 = vmatprep.subr.bf16.mxu0 0
      %293 = vmatpush1.bf16.msra.mxu0 %v275
      %294 = vmatprep.subr.bf16.mxu0 0
      %295 = vmatpush1.bf16.msra.mxu0 %v276
      %296 = vmatprep.subr.bf16.mxu0 0
      %297 = vmatpush1.bf16.msra.mxu0 0
      %298 = vmatprep.subr.bf16.mxu0 0
      %299 = vmatpush1.bf16.msra.mxu0 0
      %300 = vmatprep.subr.bf16.mxu0 0
      %301 = vmatpush1.bf16.msra.mxu0 0
      %302 = vmatprep.subr.bf16.mxu0 0
      %303 = vmatpush1.bf16.msra.mxu0 0
      %304 = vmatprep.subr.bf16.mxu0 0
      %305 = vmatpush1.bf16.msra.mxu0 0
      %306 = vmatprep.subr.bf16.mxu0 0
      %307 = vmatpush1.bf16.msra.mxu0 0
      %308 = vmatprep.subr.bf16.mxu0 0
      %309 = vmatpush1.bf16.msra.mxu0 0
      %310 = vmatprep.subr.bf16.mxu0 0
      %311 = vmatpush1.bf16.msra.mxu0 0
      %312 = vmatprep.subr.bf16.mxu0 0
      %313 = vmatpush1.bf16.msra.mxu0 0
      %314 = vmatprep.subr.bf16.mxu0 0
      %315 = vmatpush1.bf16.msra.mxu0 0
      %316 = vmatprep.subr.bf16.mxu0 0
      %317 = vmatpush1.bf16.msra.mxu0 0
      %318 = vmatprep.subr.bf16.mxu0 0
      %319 = vmatpush1.bf16.msra.mxu0 0
      %320 = vmatprep.mubr.bf16.mxu0 0
      %321 = vmatmul.mubr.bf16.gmra.mrb[0].mxu0 %v286
      %v322 = vpop.f32.mrb[0].mxu0
      %v323 = vadd.f32 0.0, %v322
      %v324 = vpop.f32.mrb[0].mxu0
      %v325 = vpop.f32.mrb[0].mxu0
      %v326 = vadd.f32 0.0, %v325
      %v327 = vpop.f32.mrb[0].mxu0
      %328 = vdwg.mxu0
      %v329 = vpack.c.bf16 %v326, %v323
      %v330 = vld [vmem:[%s4] sm:$0xf]
      %v331 = vld [vmem:[%s4 + $0x4] sm:$0xf]
      %v332 = vld [vmem:[%s4 + $0x8] sm:$0xf]
      %v333 = vld [vmem:[%s4 + $0xc] sm:$0xf]
      %v334 = vld [vmem:[%s4 + $0x10] sm:$0xf]
      %v335 = vld [vmem:[%s4 + $0x14] sm:$0xf]
      %v336 = vld [vmem:[%s4 + $0x18] sm:$0xf]
      %v337 = vld [vmem:[%s4 + $0x1c] sm:$0xf]
      %v338 = vld [vmem:[%s4 + $0x20] sm:$0xf]
      %v339 = vld [vmem:[%s4 + $0x24] sm:$0xf]
      %v340 = vld [vmem:[%s4 + $0x28] sm:$0xf]
      %v341 = vld [vmem:[%s4 + $0x2c] sm:$0xf]
      %v342 = vld [vmem:[%s4 + $0x30] sm:$0xf]
      %v343 = vld [vmem:[%s4 + $0x34] sm:$0xf]
      %v344 = vld [vmem:[%s4 + $0x38] sm:$0xf]
      %v345 = vld [vmem:[%s4 + $0x3c] sm:$0xf]
      %v362 = vunpack.c.l.b16 %v330
      %v363 = vunpack.c.l.b16 %v331
      %v364 = vunpack.c.l.b16 %v332
      %v365 = vunpack.c.l.b16 %v333
      %v366 = vunpack.c.l.b16 %v334
      %v367 = vunpack.c.l.b16 %v335
      %v368 = vunpack.c.l.b16 %v336
      %v369 = vunpack.c.l.b16 %v337
      %v370 = vunpack.c.l.b16 %v338
      %v371 = vunpack.c.l.b16 %v339
      %v372 = vunpack.c.l.b16 %v340
      %v373 = vunpack.c.l.b16 %v341
      %v374 = vunpack.c.l.b16 %v342
      %v375 = vunpack.c.l.b16 %v343
      %v376 = vunpack.c.l.b16 %v344
      %v377 = vunpack.c.l.b16 %v345
      %v378 = vpack.c.b16 %v363, %v362
      %v379 = vpack.c.b16 %v365, %v364
      %v380 = vpack.c.b16 %v367, %v366
      %v381 = vpack.c.b16 %v369, %v368
      %v382 = vpack.c.b16 %v371, %v370
      %v383 = vpack.c.b16 %v373, %v372
      %v384 = vpack.c.b16 %v375, %v374
      %v385 = vpack.c.b16 %v377, %v376
      %394 = vmatprep.subr.bf16.mxu0 0
      %395 = vmatpush1.bf16.msra.mxu0 %v378
      %396 = vmatprep.subr.bf16.mxu0 0
      %397 = vmatpush1.bf16.msra.mxu0 %v379
      %398 = vmatprep.subr.bf16.mxu0 0
      %399 = vmatpush1.bf16.msra.mxu0 %v380
      %400 = vmatprep.subr.bf16.mxu0 0
      %401 = vmatpush1.bf16.msra.mxu0 %v381
      %402 = vmatprep.subr.bf16.mxu0 0
      %403 = vmatpush1.bf16.msra.mxu0 %v382
      %404 = vmatprep.subr.bf16.mxu0 0
      %405 = vmatpush1.bf16.msra.mxu0 %v383
      %406 = vmatprep.subr.bf16.mxu0 0
      %407 = vmatpush1.bf16.msra.mxu0 %v384
      %408 = vmatprep.subr.bf16.mxu0 0
      %409 = vmatpush1.bf16.msra.mxu0 %v385
      %410 = vmatprep.subr.bf16.mxu0 0
      %411 = vmatpush1.bf16.msra.mxu0 0
      %412 = vmatprep.subr.bf16.mxu0 0
      %413 = vmatpush1.bf16.msra.mxu0 0
      %414 = vmatprep.subr.bf16.mxu0 0
      %415 = vmatpush1.bf16.msra.mxu0 0
      %416 = vmatprep.subr.bf16.mxu0 0
      %417 = vmatpush1.bf16.msra.mxu0 0
      %418 = vmatprep.subr.bf16.mxu0 0
      %419 = vmatpush1.bf16.msra.mxu0 0
      %420 = vmatprep.subr.bf16.mxu0 0
      %421 = vmatpush1.bf16.msra.mxu0 0
      %422 = vmatprep.subr.bf16.mxu0 0
      %423 = vmatpush1.bf16.msra.mxu0 0
      %424 = vmatprep.subr.bf16.mxu0 0
      %425 = vmatpush1.bf16.msra.mxu0 0
      %426 = vmatprep.mubr.bf16.mxu0 0
      %427 = vmatmul.mubr.bf16.gmra.mrb[0].mxu0 %v329
      %v428 = vpop.f32.mrb[0].mxu0
      %v429 = vadd.f32 0.0, %v428
      %v430 = vpop.f32.mrb[0].mxu0
      %v431 = vpop.f32.mrb[0].mxu0
      %v432 = vadd.f32 0.0, %v431
      %v433 = vpop.f32.mrb[0].mxu0
      %434 = vdwg.mxu0
      %435 = vst [vmem:[%s224] sm:$0x3f] 0.0
      %436 = vst [vmem:[%s224 + $0x8] sm:$0x3f] 0.0
      %437 = vst [vmem:[%s224 + $0x10] sm:$0x3f] 0.0
      %438 = vst [vmem:[%s224 + $0x18] sm:$0x3f] 0.0
      %439 = vst [vmem:[%s224 + $0x20] sm:$0x3f] 0.0
      %440 = vst [vmem:[%s224 + $0x28] sm:$0x3f] 0.0
      %v443 = vcombine.high %v429, %v429
      %v444 = vcombine.high %v432, %v432
      %s447 = scalar_lea.vmem %s224, 8
      %448 = vst [vmem:[%s447 + $0x1] sm:$0xf] %v429
      %449 = vst [vmem:[%s447 + $0x9] sm:$0xf] %v443
      %450 = vst [vmem:[%s447 + $0x11] sm:$0xf] %v432
      %451 = vst [vmem:[%s447 + $0x19] sm:$0xf] %v444
      %p452 = scmp.lt.s32.totalorder %s16, 1
      %s453 = scalar_select %p452, %s16, 1
      %s454 = smul.addr %s453, 6
      %s455 = smul.addr %s454, 8
      %s456 = scalar_lea.vmem %s5, %s455
      // Predicated region
      $region41: #{densenet_forward.9} parent=39 // pred_check
        %p457 = pneg %p144
      $region42: #{densenet_forward.9} parent=39 // pred_check_branch
        %459 = sbr.rel (%p457) target = $region44
      $region43: #{densenet_forward.9} parent=39 // pred_region
        _
      $region44: #{densenet_forward.9} parent=39 // pred_fallthru
        _
    $region40: #{densenet_forward.9} parent=5 // pred_fallthru
      _
    %p460 = scmp.le.s32.totalorder 2, %s11
    // Predicated region
    $region45: #{densenet_forward.9} parent=5 // pred_check
      %p461 = pneg %p460
    $region46: #{densenet_forward.9} parent=5 // pred_check_branch
      %463 = sbr.rel (%p461) target = $region48
    $region47: #{densenet_forward.9} parent=5 // pred_region
      %s464 = ssub.s32 %s11, 2
      // Predicated region
      $region49: #{densenet_forward.9} parent=47 // pred_check
        %p465 = pneg %p150
      $region50: #{densenet_forward.9} parent=47 // pred_check_branch
        %467 = sbr.rel (%p465) target = $region52
      $region51: #{densenet_forward.9} parent=47 // pred_region
        %p468 = scmp.lt.s32.totalorder %s17, 1
        %s469 = scalar_select %p468, %s17, 1
        %s470 = smul.addr %s469, 6
        %s471 = smul.addr %s470, 8
        %s472 = scalar_lea.vmem %s5, %s471
      $region52: #{densenet_forward.9} parent=47 // pred_fallthru
        _
    $region48: #{densenet_forward.9} parent=5 // pred_fallthru
      _
  $region6: #{densenet_forward.9} parent=0 // loop_footer
    %s15 = sadd.s32 1, %s11
  $region7: #{densenet_forward.9} parent=0 // loop_footer_branch
    %10 = sbr.rel target = $region3
  $region8: #{densenet_forward.9} parent=0 // loop_exit
    _

// kernel: densenet_forward.8
$region0: #{densenet_forward.8}
  #allocation0 [shape = 'u32[]', space=smem, size = 0x4, offset = 0x4, fixed_abs, tag = 'smem constant byte address 0x4 - core index']
  #allocation1 [shape = 'u32[144,128]{1,0:T(1,128)}', space=vmem, size = 0x12000, scoped, tag = 'internal scratch']
  #allocation2 [shape = 'f32[10,10,128]{2,1,0:T(8,128)}', space=vmem, size = 0x14000, scoped, tag = 'scratch operand']
  #allocation3 [shape = 'bf16[64,1152]{1,0:T(16,128)(2,1)}', space=vmem, size = 0x24000, scoped, tag = 'scratch operand']
  %s0 = inlined_call_operand.vmem [shape: f32[2,10,10,128], index: 0, kind: input, shape index: {}]
  %s1 = inlined_call_operand.vmem [shape: f32[1,128], index: 1, kind: input, shape index: {}]
  %s2 = inlined_call_operand.vmem [shape: f32[1,128], index: 2, kind: input, shape index: {}]
  %s3 = inlined_call_operand.vmem [shape: bf16[1,1152,128], index: 3, kind: input, shape index: {}]
  %s4 = inlined_call_operand.vmem [shape: f32[2,10,10,128], index: 4, kind: output, shape index: {}]
  %s5 = sld [smem:[#allocation0]]
  $region49: #{densenet_forward.8} parent=0
    _
  %s7 = ssub.s32 1, %s5
  %s8 = scalar_select 0, %s7, %s5
  loop: start=0, step=1, limit=4
  $region2: #{densenet_forward.8} parent=0 // loop_pre_header
    _
  $region3: #{densenet_forward.8} parent=0 // loop_header
    %s10 = sphi 0, %s14
    %p11 = scmp.ge.s32.totalorder %s10, 4
    %s20 = sphi 0, %s22
    %s23 = sphi 0, %s20
    %s24 = sphi 0, %s23
    %s40 = sphi 0, %s24
    %s44 = sphi 0, %s44
    %s46 = sphi 0, %s44
    %s47 = sphi 0, %s46
    %s61 = sphi 0, %s47
    %s65 = sphi 0, %s65
    %s67 = sphi 0, %s65
    %s68 = sphi 0, %s67
    %s82 = sphi 0, %s68
    %s86 = sphi 0, %s86
    %s88 = sphi 0, %s86
    %s89 = sphi 0, %s88
    %s103 = sphi 0, %s89
    %s109 = sphi 0, %s111
    %s112 = sphi 0, %s109
    %s113 = sphi 0, %s112
    %s129 = sphi 0, %s113
  $region4: #{densenet_forward.8} parent=0 // loop_header_branch
    %13 = sbr.rel (%p11) target = $region8
  $region5: #{densenet_forward.8} parent=0 // loop_body
    %s15 = ssub.s32 %s10, 1
    %s16 = ssub.s32 %s10, 2
    %s17 = sadd.s32 %s10, 1
    %s18 = ssub.s32 %s10, %s17
    %p19 = scmp.eq.s32.totalorder %s18, 0
    %s21 = sadd.s32 %s20, 1
    %s22 = scalar_select %p19, %s20, %s21
    %p25 = pneg %p19
    %p26 = scmp.eq.s32.totalorder %s10, 1
    %p27 = por %p25, %p26
    %p28 = scmp.ne.s32.totalorder %s20, %s23
    %p29 = scmp.eq.s32.totalorder %s10, 0
    %p30 = por %p28, %p29
    %p31 = scmp.ne.s32.totalorder %s20, %s23
    %p32 = scmp.eq.s32.totalorder %s15, 1
    %p33 = por %p31, %p32
    %p34 = scmp.ne.s32.totalorder %s23, %s24
    %p35 = scmp.eq.s32.totalorder %s15, 0
    %p36 = por %p34, %p35
    %p37 = scmp.ne.s32.totalorder %s23, %s24
    %p38 = scmp.eq.s32.totalorder %s16, 1
    %p39 = por %p37, %p38
    %p41 = scmp.ne.s32.totalorder %s24, %s40
    %p42 = scmp.eq.s32.totalorder %s16, 0
    %p43 = por %p41, %p42
    %s45 = sadd.s32 %s44, 1
    %p48 = scmp.eq.s32.totalorder %s10, 1
    %p49 = scmp.ne.s32.totalorder %s44, %s46
    %p50 = scmp.eq.s32.totalorder %s10, 0
    %p51 = por %p49, %p50
    %p52 = scmp.ne.s32.totalorder %s44, %s46
    %p53 = scmp.eq.s32.totalorder %s15, 1
    %p54 = por %p52, %p53
    %p55 = scmp.ne.s32.totalorder %s46, %s47
    %p56 = scmp.eq.s32.totalorder %s15, 0
    %p57 = por %p55, %p56
    %p58 = scmp.ne.s32.totalorder %s46, %s47
    %p59 = scmp.eq.s32.totalorder %s16, 1
    %p60 = por %p58, %p59
    %p62 = scmp.ne.s32.totalorder %s47, %s61
    %p63 = scmp.eq.s32.totalorder %s16, 0
    %p64 = por %p62, %p63
    %s66 = sadd.s32 %s65, 1
    %p69 = scmp.eq.s32.totalorder %s10, 1
    %p70 = scmp.ne.s32.totalorder %s65, %s67
    %p71 = scmp.eq.s32.totalorder %s10, 0
    %p72 = por %p70, %p71
    %p73 = scmp.ne.s32.totalorder %s65, %s67
    %p74 = scmp.eq.s32.totalorder %s15, 1
    %p75 = por %p73, %p74
    %p76 = scmp.ne.s32.totalorder %s67, %s68
    %p77 = scmp.eq.s32.totalorder %s15, 0
    %p78 = por %p76, %p77
    %p79 = scmp.ne.s32.totalorder %s67, %s68
    %p80 = scmp.eq.s32.totalorder %s16, 1
    %p81 = por %p79, %p80
    %p83 = scmp.ne.s32.totalorder %s68, %s82
    %p84 = scmp.eq.s32.totalorder %s16, 0
    %p85 = por %p83, %p84
    %s87 = sadd.s32 %s86, 1
    %p90 = scmp.eq.s32.totalorder %s10, 1
    %p91 = scmp.ne.s32.totalorder %s86, %s88
    %p92 = scmp.eq.s32.totalorder %s10, 0
    %p93 = por %p91, %p92
    %p94 = scmp.ne.s32.totalorder %s86, %s88
    %p95 = scmp.eq.s32.totalorder %s15, 1
    %p96 = por %p94, %p95
    %p97 = scmp.ne.s32.totalorder %s88, %s89
    %p98 = scmp.eq.s32.totalorder %s15, 0
    %p99 = por %p97, %p98
    %p100 = scmp.ne.s32.totalorder %s88, %s89
    %p101 = scmp.eq.s32.totalorder %s16, 1
    %p102 = por %p100, %p101
    %p104 = scmp.ne.s32.totalorder %s89, %s103
    %p105 = scmp.eq.s32.totalorder %s16, 0
    %p106 = por %p104, %p105
    %s107 = ssub.s32 %s10, %s17
    %p108 = scmp.eq.s32.totalorder %s107, 0
    %s110 = sadd.s32 %s109, 1
    %s111 = scalar_select %p108, %s109, %s110
    %p114 = pneg %p108
    %p115 = scmp.eq.s32.totalorder %s10, 1
    %p116 = por %p114, %p115
    %p117 = scmp.ne.s32.totalorder %s109, %s112
    %p118 = scmp.eq.s32.totalorder %s10, 0
    %p119 = por %p117, %p118
    %p120 = scmp.ne.s32.totalorder %s109, %s112
    %p121 = scmp.eq.s32.totalorder %s15, 1
    %p122 = por %p120, %p121
    %p123 = scmp.ne.s32.totalorder %s112, %s113
    %p124 = scmp.eq.s32.totalorder %s15, 0
    %p125 = por %p123, %p124
    %p126 = scmp.ne.s32.totalorder %s112, %s113
    %p127 = scmp.eq.s32.totalorder %s16, 1
    %p128 = por %p126, %p127
    %p130 = scmp.ne.s32.totalorder %s113, %s129
    %p131 = scmp.eq.s32.totalorder %s16, 0
    %p132 = por %p130, %p131
    %p133 = scmp.le.s32.totalorder 1, %s10
    %p134 = scmp.lt.s32.totalorder %s10, 3
    %p135 = pnand %p133, %p134
    %p136 = pneg %p135
    // Predicated region
    $region9: #{densenet_forward.8} parent=5 // pred_check
      _
    $region10: #{densenet_forward.8} parent=5 // pred_check_branch
      %138 = sbr.rel (%p135) target = $region12
    $region11: #{densenet_forward.8} parent=5 // pred_region
      %s139 = ssub.s32 %s10, 1
      // Predicated region
      $region13: #{densenet_forward.8} parent=11 // pred_check
        %p140 = pneg %p57
      $region14: #{densenet_forward.8} parent=11 // pred_check_branch
        %142 = sbr.rel (%p140) target = $region16
      $region15: #{densenet_forward.8} parent=11 // pred_region
        _
      $region16: #{densenet_forward.8} parent=11 // pred_fallthru
        _
      // Predicated region
      $region17: #{densenet_forward.8} parent=11 // pred_check
        %p143 = pneg %p78
      $region18: #{densenet_forward.8} parent=11 // pred_check_branch
        %145 = sbr.rel (%p143) target = $region20
      $region19: #{densenet_forward.8} parent=11 // pred_region
        _
      $region20: #{densenet_forward.8} parent=11 // pred_fallthru
        _
      // Predicated region
      $region21: #{densenet_forward.8} parent=11 // pred_check
        %p146 = pneg %p99
      $region22: #{densenet_forward.8} parent=11 // pred_check_branch
        %148 = sbr.rel (%p146) target = $region24
      $region23: #{densenet_forward.8} parent=11 // pred_region
        _
      $region24: #{densenet_forward.8} parent=11 // pred_fallthru
        _
    $region12: #{densenet_forward.8} parent=5 // pred_fallthru
      _
    %p149 = scmp.lt.s32.totalorder %s10, 2
    // Predicated region
    $region25: #{densenet_forward.8} parent=5 // pred_check
      %p150 = pneg %p149
    $region26: #{densenet_forward.8} parent=5 // pred_check_branch
      %152 = sbr.rel (%p150) target = $region28
    $region27: #{densenet_forward.8} parent=5 // pred_region
      // Predicated region
      $region29: #{densenet_forward.8} parent=27 // pred_check
        %p153 = pneg %p30
      $region30: #{densenet_forward.8} parent=27 // pred_check_branch
        %155 = sbr.rel (%p153) target = $region32
      $region31: #{densenet_forward.8} parent=27 // pred_region
        %p156 = scmp.lt.s32.totalorder %s10, 1
        %s157 = scalar_select %p156, %s10, 1
        %s158 = smul.addr %s157, 20
        %s159 = smul.addr %s158, 8
        %s160 = scalar_lea.vmem %s0, %s159
      $region32: #{densenet_forward.8} parent=27 // pred_fallthru
        _
    $region28: #{densenet_forward.8} parent=5 // pred_fallthru
      _
    %p161 = scmp.le.s32.totalorder 1, %s10
    %p162 = scmp.lt.s32.totalorder %s10, 3
    %p163 = pnand %p161, %p162
    %p164 = pneg %p163
    // Predicated region
    $region33: #{densenet_forward.8} parent=5 // pred_check
      _
    $region34: #{densenet_forward.8} parent=5 // pred_check_branch
      %166 = sbr.rel (%p163) target = $region36
    $region35: #{densenet_forward.8} parent=5 // pred_region
      %s167 = ssub.s32 %s10, 1
      %p168 = scmp.lt.s32.totalorder %s15, 1
      %s169 = scalar_select %p168, %s15, 1
      %s170 = smul.addr %s169, 20
      %s171 = smul.addr %s170, 8
      %s172 = scalar_lea.vmem %s0, %s171
      %p173 = pneg %p36
      %p174 = pneg %p33
      %p175 = pneg %p57
      %p176 = pneg %p54
      %p177 = pneg %p78
      %p178 = pneg %p75
      %p179 = pneg %p99
      %p180 = pneg %p96
      %p181 = pneg %p125
      %p182 = pneg %p122
      %p183 = scmp.lt.s32.totalorder %s15, 1
      %s184 = scalar_select %p183, %s15, 1
      %s185 = smul.addr %s184, 20
      %s186 = smul.addr %s185, 8
      %s187 = scalar_lea.vmem %s4, %s186
      %p188 = scmp.lt.s32.totalorder %s15, 1
      %s189 = scalar_select %p188, %s15, 1
      %s190 = smul.addr %s189, 20
      %s191 = smul.addr %s190, 8
      %s192 = scalar_lea.vmem %s0, %s191
      %p193 = scmp.lt.s32.totalorder %s15, 1
      %s194 = scalar_select %p193, %s15, 1
      %s195 = smul.addr %s194, 20
      %s196 = smul.addr %s195, 8
      %s197 = scalar_lea.vmem %s4, %s196
      %v199 = vld [vmem:[%s192] sm:$0xff]
      %v200 = vld [vmem:[%s192 + $0x8] sm:$0x3]
      %v201 = vld [vmem:[%s192 + $0x10] sm:$0xff]
      %v202 = vld [vmem:[%s192 + $0x18] sm:$0x3]
      %v203 = vld [vmem:[%s192 + $0x20] sm:$0xff]
      %v204 = vld [vmem:[%s192 + $0x28] sm:$0x3]
      %v205 = vld [vmem:[%s192 + $0x30] sm:$0xff]
      %v206 = vld [vmem:[%s192 + $0x38] sm:$0x3]
      %v207 = vld [vmem:[%s192 + $0x40] sm:$0xff]
      %v208 = vld [vmem:[%s192 + $0x48] sm:$0x3]
      %v209 = vld [vmem:[%s192 + $0x50] sm:$0xff]
      %v210 = vld [vmem:[%s192 + $0x58] sm:$0x3]
      %v211 = vld [vmem:[%s192 + $0x60] sm:$0xff]
      %v212 = vld [vmem:[%s192 + $0x68] sm:$0x3]
      %v213 = vld [vmem:[%s192 + $0x70] sm:$0xff]
      %v214 = vld [vmem:[%s192 + $0x78] sm:$0x3]
      %v215 = vld [vmem:[%s192 + $0x80] sm:$0xff]
      %v216 = vld [vmem:[%s192 + $0x88] sm:$0x3]
      %v217 = vld [vmem:[%s192 + $0x90] sm:$0xff]
      %v218 = vld [vmem:[%s192 + $0x98] sm:$0x3]
      %219 = vst [vmem:[%s197] sm:$0xff] %v199
      %220 = vst [vmem:[%s197 + $0x8] sm:$0x3] %v200
      %221 = vst [vmem:[%s197 + $0x10] sm:$0xff] %v201
      %222 = vst [vmem:[%s197 + $0x18] sm:$0x3] %v202
      %223 = vst [vmem:[%s197 + $0x20] sm:$0xff] %v203
      %224 = vst [vmem:[%s197 + $0x28] sm:$0x3] %v204
      %225 = vst [vmem:[%s197 + $0x30] sm:$0xff] %v205
      %226 = vst [vmem:[%s197 + $0x38] sm:$0x3] %v206
      %227 = vst [vmem:[%s197 + $0x40] sm:$0xff] %v207
      %228 = vst [vmem:[%s197 + $0x48] sm:$0x3] %v208
      %229 = vst [vmem:[%s197 + $0x50] sm:$0xff] %v209
      %230 = vst [vmem:[%s197 + $0x58] sm:$0x3] %v210
      %231 = vst [vmem:[%s197 + $0x60] sm:$0xff] %v211
      %232 = vst [vmem:[%s197 + $0x68] sm:$0x3] %v212
      %233 = vst [vmem:[%s197 + $0x70] sm:$0xff] %v213
      %234 = vst [vmem:[%s197 + $0x78] sm:$0x3] %v214
      %235 = vst [vmem:[%s197 + $0x80] sm:$0xff] %v215
      %236 = vst [vmem:[%s197 + $0x88] sm:$0x3] %v216
      %237 = vst [vmem:[%s197 + $0x90] sm:$0xff] %v217
      %238 = vst [vmem:[%s197 + $0x98] sm:$0x3] %v218
      %239 = vst [vmem:[#allocation2] sm:$0xff] 0.0
      %240 = vst [vmem:[#allocation2 + $0x8] sm:$0x3] 0.0
      %241 = vst [vmem:[#allocation2 + $0x10] sm:$0xff] 0.0
      %242 = vst [vmem:[#allocation2 + $0x18] sm:$0x3] 0.0
      %243 = vst [vmem:[#allocation2 + $0x20] sm:$0xff] 0.0
      %244 = vst [vmem:[#allocation2 + $0x28] sm:$0x3] 0.0
      %245 = vst [vmem:[#allocation2 + $0x30] sm:$0xff] 0.0
      %246 = vst [vmem:[#allocation2 + $0x38] sm:$0x3] 0.0
      %247 = vst [vmem:[#allocation2 + $0x40] sm:$0xff] 0.0
      %248 = vst [vmem:[#allocation2 + $0x48] sm:$0x3] 0.0
      %249 = vst [vmem:[#allocation2 + $0x50] sm:$0xff] 0.0
      %250 = vst [vmem:[#allocation2 + $0x58] sm:$0x3] 0.0
      %251 = vst [vmem:[#allocation2 + $0x60] sm:$0xff] 0.0
      %252 = vst [vmem:[#allocation2 + $0x68] sm:$0x3] 0.0
      %253 = vst [vmem:[#allocation2 + $0x70] sm:$0xff] 0.0
      %254 = vst [vmem:[#allocation2 + $0x78] sm:$0x3] 0.0
      %255 = vst [vmem:[#allocation2 + $0x80] sm:$0xff] 0.0
      %256 = vst [vmem:[#allocation2 + $0x88] sm:$0x3] 0.0
      %257 = vst [vmem:[#allocation2 + $0x90] sm:$0xff] 0.0
      %258 = vst [vmem:[#allocation2 + $0x98] sm:$0x3] 0.0
      %s259 = scalar_lea.vmem %s197, 16
      %v260 = vld [vmem:[%s259 + $0x1] sm:$0xff]
      %v261 = vld [vmem:[%s259 + $0x11] sm:$0xff]
      %v262 = vld [vmem:[%s259 + $0x21] sm:$0xff]
      %v263 = vld [vmem:[%s259 + $0x31] sm:$0xff]
      %v264 = vld [vmem:[%s259 + $0x41] sm:$0xff]
      %v265 = vld [vmem:[%s259 + $0x51] sm:$0xff]
      %v266 = vld [vmem:[%s259 + $0x61] sm:$0xff]
      %v267 = vld [vmem:[%s259 + $0x71] sm:$0xff]
      %v268 = vld [vmem:[%s1] sm:$0x1]
      %v270 = vlaneseq
      %v271 = vshrl.u32 %v270, 7
      %v272 = vsub.s32 0, %v271
      %v273 = vrot.slane %v268, %v272
      %v275 = vmul.f32 %v260, %v273
      %v276 = vmul.f32 %v261, %v273
      %v277 = vmul.f32 %v262, %v273
      %v278 = vmul.f32 %v263, %v273
      %v279 = vmul.f32 %v264, %v273
      %v280 = vmul.f32 %v265, %v273
      %v281 = vmul.f32 %v266, %v273
      %v282 = vmul.f32 %v267, %v273
      %v283 = vld [vmem:[%s2] sm:$0x1]
      %v285 = vlaneseq
      %v286 = vshrl.u32 %v285, 7
      %v287 = vsub.s32 0, %v286
      %v288 = vrot.slane %v283, %v287
      %v290 = vadd.f32 %v275, %v288
      %v291 = vadd.f32 %v276, %v288
      %v292 = vadd.f32 %v277, %v288
      %v293 = vadd.f32 %v278, %v288
      %v294 = vadd.f32 %v279, %v288
      %v295 = vadd.f32 %v280, %v288
      %v296 = vadd.f32 %v281, %v288
      %v297 = vadd.f32 %v282, %v288
      %v298 = vmax.f32 %v290, 0.0
      %v299 = vmax.f32 %v291, 0.0
      %v300 = vmax.f32 %v292, 0.0
      %v301 = vmax.f32 %v293, 0.0
      %v302 = vmax.f32 %v294, 0.0
      %v303 = vmax.f32 %v295, 0.0
      %v304 = vmax.f32 %v296, 0.0
      %v305 = vmax.f32 %v297, 0.0
      %s306 = scalar_lea.vmem [#allocation2], 16
      %307 = vst [vmem:[%s306 + $0x1] sm:$0xff] %v298
      %308 = vst [vmem:[%s306 + $0x11] sm:$0xff] %v299
      %309 = vst [vmem:[%s306 + $0x21] sm:$0xff] %v300
      %310 = vst [vmem:[%s306 + $0x31] sm:$0xff] %v301
      %311 = vst [vmem:[%s306 + $0x41] sm:$0xff] %v302
      %312 = vst [vmem:[%s306 + $0x51] sm:$0xff] %v303
      %313 = vst [vmem:[%s306 + $0x61] sm:$0xff] %v304
      %314 = vst [vmem:[%s306 + $0x71] sm:$0xff] %v305
      %v315 = vld [vmem:[#allocation2] sm:$0xff]
      %v316 = vld [vmem:[#allocation2 + $0x10] sm:$0xff]
      %v317 = vld [vmem:[#allocation2 + $0x20] sm:$0xff]
      %v318 = vld [vmem:[#allocation2 + $0x30] sm:$0xff]
      %v319 = vld [vmem:[#allocation2 + $0x40] sm:$0xff]
      %v320 = vld [vmem:[#allocation2 + $0x50] sm:$0xff]
      %v321 = vld [vmem:[#allocation2 + $0x60] sm:$0xff]
      %v322 = vld [vmem:[#allocation2 + $0x70] sm:$0xff]
      %v323 = vpack.c.bf16 %v316, %v315
      %v324 = vpack.c.bf16 %v318, %v317
      %v325 = vpack.c.bf16 %v320, %v319
      %v326 = vpack.c.bf16 %v322, %v321
      %327 = vst [vmem:[#allocation3] sm:$0xff] %v323
      %328 = vst [vmem:[#allocation3 + $0x48] sm:$0xff] %v324
      %329 = vst [vmem:[#allocation3 + $0x90] sm:$0xff] %v325
      %330 = vst [vmem:[#allocation3 + $0xd8] sm:$0xff] %v326
      %v331 = vld [vmem:[#allocation2 + $0x1] sm:$0xff]
      %v332 = vld [vmem:[#allocation2 + $0x11] sm:$0xff]
      %v333 = vld [vmem:[#allocation2 + $0x21] sm:$0xff]
      %v334 = vld [vmem:[#allocation2 + $0x31] sm:$0xff]
      %v335 = vld [vmem:[#allocation2 + $0x41] sm:$0xff]
      %v336 = vld [vmem:[#allocation2 + $0x51] sm:$0xff]
      %v337 = vld [vmem:[#allocation2 + $0x61] sm:$0xff]
      %v338 = vld [vmem:[#allocation2 + $0x71] sm:$0xff]
      %v339 = vpack.c.bf16 %v332, %v331
      %v340 = vpack.c.bf16 %v334, %v333
      %v341 = vpack.c.bf16 %v336, %v335
      %v342 = vpack.c.bf16 %v338, %v337
      %343 = vst [vmem:[#allocation3 + $0x8] sm:$0xff] %v339
      %344 = vst [vmem:[#allocation3 + $0x50] sm:$0xff] %v340
      %345 = vst [vmem:[#allocation3 + $0x98] sm:$0xff] %v341
      %346 = vst [vmem:[#allocation3 + $0xe0] sm:$0xff] %v342
      %v347 = vld [vmem:[#allocation2 + $0x2] sm:$0xff]
      %v348 = vld [vmem:[#allocation2 + $0x12] sm:$0xff]
      %v349 = vld [vmem:[#allocation2 + $0x22] sm:$0xff]
      %v350 = vld [vmem:[#allocation2 + $0x32] sm:$0xff]
      %v351 = vld [vmem:[#allocation2 + $0x42] sm:$0xff]
      %v352 = vld [vmem:[#allocation2 + $0x52] sm:$0xff]
      %v353 = vld [vmem:[#allocation2 + $0x62] sm:$0xff]
      %v354 = vld [vmem:[#allocation2 + $0x72] sm:$0xff]
      %v355 = vpack.c.bf16 %v348, %v347
      %v356 = vpack.c.bf16 %v350, %v349
      %v357 = vpack.c.bf16 %v352, %v351
      %v358 = vpack.c.bf16 %v354, %v353
      %359 = vst [vmem:[#allocation3 + $0x10] sm:$0xff] %v355
      %360 = vst [vmem:[#allocation3 + $0x58] sm:$0xff] %v356
      %361 = vst [vmem:[#allocation3 + $0xa0] sm:$0xff] %v357
      %362 = vst [vmem:[#allocation3 + $0xe8] sm:$0xff] %v358
      %v363 = vld [vmem:[%s306] sm:$0xff]
      %v364 = vld [vmem:[%s306 + $0x10] sm:$0xff]
      %v365 = vld [vmem:[%s306 + $0x20] sm:$0xff]
      %v366 = vld [vmem:[%s306 + $0x30] sm:$0xff]
      %v367 = vld [vmem:[%s306 + $0x40] sm:$0xff]
      %v368 = vld [vmem:[%s306 + $0x50] sm:$0xff]
      %v369 = vld [vmem:[%s306 + $0x60] sm:$0xff]
      %v370 = vld [vmem:[%s306 + $0x70] sm:$0xff]
      %v371 = vpack.c.bf16 %v364, %v363
      %v372 = vpack.c.bf16 %v366, %v365
      %v373 = vpack.c.bf16 %v368, %v367
      %v374 = vpack.c.bf16 %v370, %v369
      %375 = vst [vmem:[#allocation3 + $0x18] sm:$0xff] %v371
      %376 = vst [vmem:[#allocation3 + $0x60] sm:$0xff] %v372
      %377 = vst [vmem:[#allocation3 + $0xa8] sm:$0xff] %v373
      %378 = vst [vmem:[#allocation3 + $0xf0] sm:$0xff] %v374
      %v379 = vld [vmem:[%s306 + $0x1] sm:$0xff]
      %v380 = vld [vmem:[%s306 + $0x11] sm:$0xff]
      %v381 = vld [vmem:[%s306 + $0x21] sm:$0xff]
      %v382 = vld [vmem:[%s306 + $0x31] sm:$0xff]
      %v383 = vld [vmem:[%s306 + $0x41] sm:$0xff]
      %v384 = vld [vmem:[%s306 + $0x51] sm:$0xff]
      %v385 = vld [vmem:[%s306 + $0x61] sm:$0xff]
      %v386 = vld [vmem:[%s306 + $0x71] sm:$0xff]
      %v387 = vpack.c.bf16 %v380, %v379
      %v388 = vpack.c.bf16 %v382, %v381
      %v389 = vpack.c.bf16 %v384, %v383
      %v390 = vpack.c.bf16 %v386, %v385
      %391 = vst [vmem:[#allocation3 + $0x20] sm:$0xff] %v387
      %392 = vst [vmem:[#allocation3 + $0x68] sm:$0xff] %v388
      %393 = vst [vmem:[#allocation3 + $0xb0] sm:$0xff] %v389
      %394 = vst [vmem:[#allocation3 + $0xf8] sm:$0xff] %v390
      %v395 = vld [vmem:[%s306 + $0x2] sm:$0xff]
      %v396 = vld [vmem:[%s306 + $0x12] sm:$0xff]
      %v397 = vld [vmem:[%s306 + $0x22] sm:$0xff]
      %v398 = vld [vmem:[%s306 + $0x32] sm:$0xff]
      %v399 = vld [vmem:[%s306 + $0x42] sm:$0xff]
      %v400 = vld [vmem:[%s306 + $0x52] sm:$0xff]
      %v401 = vld [vmem:[%s306 + $0x62] sm:$0xff]
      %v402 = vld [vmem:[%s306 + $0x72] sm:$0xff]
      %v403 = vpack.c.bf16 %v396, %v395
      %v404 = vpack.c.bf16 %v398, %v397
      %v405 = vpack.c.bf16 %v400, %v399
      %v406 = vpack.c.bf16 %v402, %v401
      %407 = vst [vmem:[#allocation3 + $0x28] sm:$0xff] %v403
      %408 = vst [vmem:[#allocation3 + $0x70] sm:$0xff] %v404
      %409 = vst [vmem:[#allocation3 + $0xb8] sm:$0xff] %v405
      %410 = vst [vmem:[#allocation3 + $0x100] sm:$0xff] %v406
      %s411 = scalar_lea.vmem [#allocation2], 32
      %v412 = vld [vmem:[%s411] sm:$0xff]
      %v413 = vld [vmem:[%s411 + $0x10] sm:$0xff]
      %v414 = vld [vmem:[%s411 + $0x20] sm:$0xff]
      %v415 = vld [vmem:[%s411 + $0x30] sm:$0xff]
      %v416 = vld [vmem:[%s411 + $0x40] sm:$0xff]
      %v417 = vld [vmem:[%s411 + $0x50] sm:$0xff]
      %v418 = vld [vmem:[%s411 + $0x60] sm:$0xff]
      %v419 = vld [vmem:[%s411 + $0x70] sm:$0xff]
      %v420 = vpack.c.bf16 %v413, %v412
      %v421 = vpack.c.bf16 %v415, %v414
      %v422 = vpack.c.bf16 %v417, %v416
      %v423 = vpack.c.bf16 %v419, %v418
      %424 = vst [vmem:[#allocation3 + $0x30] sm:$0xff] %v420
      %425 = vst [vmem:[#allocation3 + $0x78] sm:$0xff] %v421
      %426 = vst [vmem:[#allocation3 + $0xc0] sm:$0xff] %v422
      %427 = vst [vmem:[#allocation3 + $0x108] sm:$0xff] %v423
      %v428 = vld [vmem:[%s411 + $0x1] sm:$0xff]
      %v429 = vld [vmem:[%s411 + $0x11] sm:$0xff]
      %v430 = vld [vmem:[%s411 + $0x21] sm:$0xff]
      %v431 = vld [vmem:[%s411 + $0x31] sm:$0xff]
      %v432 = vld [vmem:[%s411 + $0x41] sm:$0xff]
      %v433 = vld [vmem:[%s411 + $0x51] sm:$0xff]
      %v434 = vld [vmem:[%s411 + $0x61] sm:$0xff]
      %v435 = vld [vmem:[%s411 + $0x71] sm:$0xff]
      %v436 = vpack.c.bf16 %v429, %v428
      %v437 = vpack.c.bf16 %v431, %v430
      %v438 = vpack.c.bf16 %v433, %v432
      %v439 = vpack.c.bf16 %v435, %v434
      %440 = vst [vmem:[#allocation3 + $0x38] sm:$0xff] %v436
      %441 = vst [vmem:[#allocation3 + $0x80] sm:$0xff] %v437
      %442 = vst [vmem:[#allocation3 + $0xc8] sm:$0xff] %v438
      %443 = vst [vmem:[#allocation3 + $0x110] sm:$0xff] %v439
      %v444 = vld [vmem:[%s411 + $0x2] sm:$0xff]
      %v445 = vld [vmem:[%s411 + $0x12] sm:$0xff]
      %v446 = vld [vmem:[%s411 + $0x22] sm:$0xff]
      %v447 = vld [vmem:[%s411 + $0x32] sm:$0xff]
      %v448 = vld [vmem:[%s411 + $0x42] sm:$0xff]
      %v449 = vld [vmem:[%s411 + $0x52] sm:$0xff]
      %v450 = vld [vmem:[%s411 + $0x62] sm:$0xff]
      %v451 = vld [vmem:[%s411 + $0x72] sm:$0xff]
      %v452 = vpack.c.bf16 %v445, %v444
      %v453 = vpack.c.bf16 %v447, %v446
      %v454 = vpack.c.bf16 %v449, %v448
      %v455 = vpack.c.bf16 %v451, %v450
      %456 = vst [vmem:[#allocation3 + $0x40] sm:$0xff] %v452
      %457 = vst [vmem:[#allocation3 + $0x88] sm:$0xff] %v453
      %458 = vst [vmem:[#allocation3 + $0xd0] sm:$0xff] %v454
      %459 = vst [vmem:[#allocation3 + $0x118] sm:$0xff] %v455
      %v460 = vld [vmem:[#allocation3] sm:$0xff]
      %v461 = vld [vmem:[#allocation3 + $0x8] sm:$0xff]
      %v462 = vld [vmem:[#allocation3 + $0x10] sm:$0xff]
      %v463 = vld [vmem:[#allocation3 + $0x18] sm:$0xff]
      %v464 = vld [vmem:[#allocation3 + $0x20] sm:$0xff]
      %v465 = vld [vmem:[#allocation3 + $0x28] sm:$0xff]
      %v466 = vld [vmem:[#allocation3 + $0x30] sm:$0xff]
      %v467 = vld [vmem:[#allocation3 + $0x38] sm:$0xff]
      %v468 = vld [vmem:[#allocation3 + $0x40] sm:$0xff]
      %v469 = vld [vmem:[#allocation3 + $0x48] sm:$0xff]
      %v470 = vld [vmem:[#allocation3 + $0x50] sm:$0xff]
      %v471 = vld [vmem:[#allocation3 + $0x58] sm:$0xff]
      %v472 = vld [vmem:[#allocation3 + $0x60] sm:$0xff]
      %v473 = vld [vmem:[#allocation3 + $0x68] sm:$0xff]
      %v474 = vld [vmem:[#allocation3 + $0x70] sm:$0xff]
      %v475 = vld [vmem:[#allocation3 + $0x78] sm:$0xff]
      %v476 = vld [vmem:[#allocation3 + $0x80] sm:$0xff]
      %v477 = vld [vmem:[#allocation3 + $0x88] sm:$0xff]
      %v478 = vld [vmem:[#allocation3 + $0x90] sm:$0xff]
      %v479 = vld [vmem:[#allocation3 + $0x98] sm:$0xff]
      %v480 = vld [vmem:[#allocation3 + $0xa0] sm:$0xff]
      %v481 = vld [vmem:[#allocation3 + $0xa8] sm:$0xff]
      %v482 = vld [vmem:[#allocation3 + $0xb0] sm:$0xff]
      %v483 = vld [vmem:[#allocation3 + $0xb8] sm:$0xff]
      %v484 = vld [vmem:[#allocation3 + $0xc0] sm:$0xff]
      %v485 = vld [vmem:[#allocation3 + $0xc8] sm:$0xff]
      %v486 = vld [vmem:[#allocation3 + $0xd0] sm:$0xff]
      %v487 = vld [vmem:[#allocation3 + $0xd8] sm:$0xff]
      %v488 = vld [vmem:[#allocation3 + $0xe0] sm:$0xff]
      %v489 = vld [vmem:[#allocation3 + $0xe8] sm:$0xff]
      %v490 = vld [vmem:[#allocation3 + $0xf0] sm:$0xff]
      %v491 = vld [vmem:[#allocation3 + $0xf8] sm:$0xff]
      %v492 = vld [vmem:[#allocation3 + $0x100] sm:$0xff]
      %v493 = vld [vmem:[#allocation3 + $0x108] sm:$0xff]
      %v494 = vld [vmem:[#allocation3 + $0x110] sm:$0xff]
      %v495 = vld [vmem:[#allocation3 + $0x118] sm:$0xff]
      %v496 = vld [vmem:[%s3] sm:$0xf]
      %v497 = vld [vmem:[%s3 + $0x4] sm:$0xf]
      %v498 = vld [vmem:[%s3 + $0x8] sm:$0xf]
      %v499 = vld [vmem:[%s3 + $0xc] sm:$0xf]
      %v500 = vld [vmem:[%s3 + $0x10] sm:$0xf]
      %v501 = vld [vmem:[%s3 + $0x14] sm:$0xf]
      %v502 = vld [vmem:[%s3 + $0x18] sm:$0xf]
      %v503 = vld [vmem:[%s3 + $0x1c] sm:$0xf]
      %v504 = vld [vmem:[%s3 + $0x20] sm:$0xf]
      %v505 = vld [vmem:[%s3 + $0x24] sm:$0xf]
      %v506 = vld [vmem:[%s3 + $0x28] sm:$0xf]
      %v507 = vld [vmem:[%s3 + $0x2c] sm:$0xf]
      %v508 = vld [vmem:[%s3 + $0x30] sm:$0xf]
      %v509 = vld [vmem:[%s3 + $0x34] sm:$0xf]
      %v510 = vld [vmem:[%s3 + $0x38] sm:$0xf]
      %v511 = vld [vmem:[%s3 + $0x3c] sm:$0xf]
      %v512 = vld [vmem:[%s3 + $0x40] sm:$0xf]
      %v513 = vld [vmem:[%s3 + $0x44] sm:$0xf]
      %v514 = vld [vmem:[%s3 + $0x48] sm:$0xf]
      %v515 = vld [vmem:[%s3 + $0x4c] sm:$0xf]
      %v516 = vld [vmem:[%s3 + $0x50] sm:$0xf]
      %v517 = vld [vmem:[%s3 + $0x54] sm:$0xf]
      %v518 = vld [vmem:[%s3 + $0x58] sm:$0xf]
      %v519 = vld [vmem:[%s3 + $0x5c] sm:$0xf]
      %v520 = vld [vmem:[%s3 + $0x60] sm:$0xf]
      %v521 = vld [vmem:[%s3 + $0x64] sm:$0xf]
      %v522 = vld [vmem:[%s3 + $0x68] sm:$0xf]
      %v523 = vld [vmem:[%s3 + $0x6c] sm:$0xf]
      %v524 = vld [vmem:[%s3 + $0x70] sm:$0xf]
      %v525 = vld [vmem:[%s3 + $0x74] sm:$0xf]
      %v526 = vld [vmem:[%s3 + $0x78] sm:$0xf]
      %v527 = vld [vmem:[%s3 + $0x7c] sm:$0xf]
      %v528 = vld [vmem:[%s3 + $0x80] sm:$0xf]
      %v529 = vld [vmem:[%s3 + $0x84] sm:$0xf]
      %v530 = vld [vmem:[%s3 + $0x88] sm:$0xf]
      %v531 = vld [vmem:[%s3 + $0x8c] sm:$0xf]
      %v532 = vld [vmem:[%s3 + $0x90] sm:$0xf]
      %v533 = vld [vmem:[%s3 + $0x94] sm:$0xf]
      %v534 = vld [vmem:[%s3 + $0x98] sm:$0xf]
      %v535 = vld [vmem:[%s3 + $0x9c] sm:$0xf]
      %v536 = vld [vmem:[%s3 + $0xa0] sm:$0xf]
      %v537 = vld [vmem:[%s3 + $0xa4] sm:$0xf]
      %v538 = vld [vmem:[%s3 + $0xa8] sm:$0xf]
      %v539 = vld [vmem:[%s3 + $0xac] sm:$0xf]
      %v540 = vld [vmem:[%s3 + $0xb0] sm:$0xf]
      %v541 = vld [vmem:[%s3 + $0xb4] sm:$0xf]
      %v542 = vld [vmem:[%s3 + $0xb8] sm:$0xf]
      %v543 = vld [vmem:[%s3 + $0xbc] sm:$0xf]
      %v544 = vld [vmem:[%s3 + $0xc0] sm:$0xf]
      %v545 = vld [vmem:[%s3 + $0xc4] sm:$0xf]
      %v546 = vld [vmem:[%s3 + $0xc8] sm:$0xf]
      %v547 = vld [vmem:[%s3 + $0xcc] sm:$0xf]
      %v548 = vld [vmem:[%s3 + $0xd0] sm:$0xf]
      %v549 = vld [vmem:[%s3 + $0xd4] sm:$0xf]
      %v550 = vld [vmem:[%s3 + $0xd8] sm:$0xf]
      %v551 = vld [vmem:[%s3 + $0xdc] sm:$0xf]
      %v552 = vld [vmem:[%s3 + $0xe0] sm:$0xf]
      %v553 = vld [vmem:[%s3 + $0xe4] sm:$0xf]
      %v554 = vld [vmem:[%s3 + $0xe8] sm:$0xf]
      %v555 = vld [vmem:[%s3 + $0xec] sm:$0xf]
      %v556 = vld [vmem:[%s3 + $0xf0] sm:$0xf]
      %v557 = vld [vmem:[%s3 + $0xf4] sm:$0xf]
      %v558 = vld [vmem:[%s3 + $0xf8] sm:$0xf]
      %v559 = vld [vmem:[%s3 + $0xfc] sm:$0xf]
      %v560 = vld [vmem:[%s3 + $0x100] sm:$0xf]
      %v561 = vld [vmem:[%s3 + $0x104] sm:$0xf]
      %v562 = vld [vmem:[%s3 + $0x108] sm:$0xf]
      %v563 = vld [vmem:[%s3 + $0x10c] sm:$0xf]
      %v564 = vld [vmem:[%s3 + $0x110] sm:$0xf]
      %v565 = vld [vmem:[%s3 + $0x114] sm:$0xf]
      %v566 = vld [vmem:[%s3 + $0x118] sm:$0xf]
      %v567 = vld [vmem:[%s3 + $0x11c] sm:$0xf]
      %v568 = vld [vmem:[%s3 + $0x120] sm:$0xf]
      %v569 = vld [vmem:[%s3 + $0x124] sm:$0xf]
      %v570 = vld [vmem:[%s3 + $0x128] sm:$0xf]
      %v571 = vld [vmem:[%s3 + $0x12c] sm:$0xf]
      %v572 = vld [vmem:[%s3 + $0x130] sm:$0xf]
      %v573 = vld [vmem:[%s3 + $0x134] sm:$0xf]
      %v574 = vld [vmem:[%s3 + $0x138] sm:$0xf]
      %v575 = vld [vmem:[%s3 + $0x13c] sm:$0xf]
      %v576 = vld [vmem:[%s3 + $0x140] sm:$0xf]
      %v577 = vld [vmem:[%s3 + $0x144] sm:$0xf]
      %v578 = vld [vmem:[%s3 + $0x148] sm:$0xf]
      %v579 = vld [vmem:[%s3 + $0x14c] sm:$0xf]
      %v580 = vld [vmem:[%s3 + $0x150] sm:$0xf]
      %v581 = vld [vmem:[%s3 + $0x154] sm:$0xf]
      %v582 = vld [vmem:[%s3 + $0x158] sm:$0xf]
      %v583 = vld [vmem:[%s3 + $0x15c] sm:$0xf]
      %v584 = vld [vmem:[%s3 + $0x160] sm:$0xf]
      %v585 = vld [vmem:[%s3 + $0x164] sm:$0xf]
      %v586 = vld [vmem:[%s3 + $0x168] sm:$0xf]
      %v587 = vld [vmem:[%s3 + $0x16c] sm:$0xf]
      %v588 = vld [vmem:[%s3 + $0x170] sm:$0xf]
      %v589 = vld [vmem:[%s3 + $0x174] sm:$0xf]
      %v590 = vld [vmem:[%s3 + $0x178] sm:$0xf]
      %v591 = vld [vmem:[%s3 + $0x17c] sm:$0xf]
      %v592 = vld [vmem:[%s3 + $0x180] sm:$0xf]
      %v593 = vld [vmem:[%s3 + $0x184] sm:$0xf]
      %v594 = vld [vmem:[%s3 + $0x188] sm:$0xf]
      %v595 = vld [vmem:[%s3 + $0x18c] sm:$0xf]
      %v596 = vld [vmem:[%s3 + $0x190] sm:$0xf]
      %v597 = vld [vmem:[%s3 + $0x194] sm:$0xf]
      %v598 = vld [vmem:[%s3 + $0x198] sm:$0xf]
      %v599 = vld [vmem:[%s3 + $0x19c] sm:$0xf]
      %v600 = vld [vmem:[%s3 + $0x1a0] sm:$0xf]
      %v601 = vld [vmem:[%s3 + $0x1a4] sm:$0xf]
      %v602 = vld [vmem:[%s3 + $0x1a8] sm:$0xf]
      %v603 = vld [vmem:[%s3 + $0x1ac] sm:$0xf]
      %v604 = vld [vmem:[%s3 + $0x1b0] sm:$0xf]
      %v605 = vld [vmem:[%s3 + $0x1b4] sm:$0xf]
      %v606 = vld [vmem:[%s3 + $0x1b8] sm:$0xf]
      %v607 = vld [vmem:[%s3 + $0x1bc] sm:$0xf]
      %v608 = vld [vmem:[%s3 + $0x1c0] sm:$0xf]
      %v609 = vld [vmem:[%s3 + $0x1c4] sm:$0xf]
      %v610 = vld [vmem:[%s3 + $0x1c8] sm:$0xf]
      %v611 = vld [vmem:[%s3 + $0x1cc] sm:$0xf]
      %v612 = vld [vmem:[%s3 + $0x1d0] sm:$0xf]
      %v613 = vld [vmem:[%s3 + $0x1d4] sm:$0xf]
      %v614 = vld [vmem:[%s3 + $0x1d8] sm:$0xf]
      %v615 = vld [vmem:[%s3 + $0x1dc] sm:$0xf]
      %v616 = vld [vmem:[%s3 + $0x1e0] sm:$0xf]
      %v617 = vld [vmem:[%s3 + $0x1e4] sm:$0xf]
      %v618 = vld [vmem:[%s3 + $0x1e8] sm:$0xf]
      %v619 = vld [vmem:[%s3 + $0x1ec] sm:$0xf]
      %v620 = vld [vmem:[%s3 + $0x1f0] sm:$0xf]
      %v621 = vld [vmem:[%s3 + $0x1f4] sm:$0xf]
      %v622 = vld [vmem:[%s3 + $0x1f8] sm:$0xf]
      %v623 = vld [vmem:[%s3 + $0x1fc] sm:$0xf]
      %v624 = vld [vmem:[%s3 + $0x200] sm:$0xf]
      %v625 = vld [vmem:[%s3 + $0x204] sm:$0xf]
      %v626 = vld [vmem:[%s3 + $0x208] sm:$0xf]
      %v627 = vld [vmem:[%s3 + $0x20c] sm:$0xf]
      %v628 = vld [vmem:[%s3 + $0x210] sm:$0xf]
      %v629 = vld [vmem:[%s3 + $0x214] sm:$0xf]
      %v630 = vld [vmem:[%s3 + $0x218] sm:$0xf]
      %v631 = vld [vmem:[%s3 + $0x21c] sm:$0xf]
      %v632 = vld [vmem:[%s3 + $0x220] sm:$0xf]
      %v633 = vld [vmem:[%s3 + $0x224] sm:$0xf]
      %v634 = vld [vmem:[%s3 + $0x228] sm:$0xf]
      %v635 = vld [vmem:[%s3 + $0x22c] sm:$0xf]
      %v636 = vld [vmem:[%s3 + $0x230] sm:$0xf]
      %v637 = vld [vmem:[%s3 + $0x234] sm:$0xf]
      %v638 = vld [vmem:[%s3 + $0x238] sm:$0xf]
      %v639 = vld [vmem:[%s3 + $0x23c] sm:$0xf]
      %v784 = vunpack.c.l.b16 %v496
      %v785 = vunpack.c.l.b16 %v497
      %v786 = vunpack.c.l.b16 %v498
      %v787 = vunpack.c.l.b16 %v499
      %v788 = vunpack.c.l.b16 %v500
      %v789 = vunpack.c.l.b16 %v501
      %v790 = vunpack.c.l.b16 %v502
      %v791 = vunpack.c.l.b16 %v503
      %v792 = vunpack.c.l.b16 %v504
      %v793 = vunpack.c.l.b16 %v505
      %v794 = vunpack.c.l.b16 %v506
      %v795 = vunpack.c.l.b16 %v507
      %v796 = vunpack.c.l.b16 %v508
      %v797 = vunpack.c.l.b16 %v509
      %v798 = vunpack.c.l.b16 %v510
      %v799 = vunpack.c.l.b16 %v511
      %v800 = vunpack.c.l.b16 %v512
      %v801 = vunpack.c.l.b16 %v513
      %v802 = vunpack.c.l.b16 %v514
      %v803 = vunpack.c.l.b16 %v515
      %v804 = vunpack.c.l.b16 %v516
      %v805 = vunpack.c.l.b16 %v517
      %v806 = vunpack.c.l.b16 %v518
      %v807 = vunpack.c.l.b16 %v519
      %v808 = vunpack.c.l.b16 %v520
      %v809 = vunpack.c.l.b16 %v521
      %v810 = vunpack.c.l.b16 %v522
      %v811 = vunpack.c.l.b16 %v523
      %v812 = vunpack.c.l.b16 %v524
      %v813 = vunpack.c.l.b16 %v525
      %v814 = vunpack.c.l.b16 %v526
      %v815 = vunpack.c.l.b16 %v527
      %v816 = vunpack.c.l.b16 %v528
      %v817 = vunpack.c.l.b16 %v529
      %v818 = vunpack.c.l.b16 %v530
      %v819 = vunpack.c.l.b16 %v531
      %v820 = vunpack.c.l.b16 %v532
      %v821 = vunpack.c.l.b16 %v533
      %v822 = vunpack.c.l.b16 %v534
      %v823 = vunpack.c.l.b16 %v535
      %v824 = vunpack.c.l.b16 %v536
      %v825 = vunpack.c.l.b16 %v537
      %v826 = vunpack.c.l.b16 %v538
      %v827 = vunpack.c.l.b16 %v539
      %v828 = vunpack.c.l.b16 %v540
      %v829 = vunpack.c.l.b16 %v541
      %v830 = vunpack.c.l.b16 %v542
      %v831 = vunpack.c.l.b16 %v543
      %v832 = vunpack.c.l.b16 %v544
      %v833 = vunpack.c.l.b16 %v545
      %v834 = vunpack.c.l.b16 %v546
      %v835 = vunpack.c.l.b16 %v547
      %v836 = vunpack.c.l.b16 %v548
      %v837 = vunpack.c.l.b16 %v549
      %v838 = vunpack.c.l.b16 %v550
      %v839 = vunpack.c.l.b16 %v551
      %v840 = vunpack.c.l.b16 %v552
      %v841 = vunpack.c.l.b16 %v553
      %v842 = vunpack.c.l.b16 %v554
      %v843 = vunpack.c.l.b16 %v555
      %v844 = vunpack.c.l.b16 %v556
      %v845 = vunpack.c.l.b16 %v557
      %v846 = vunpack.c.l.b16 %v558
      %v847 = vunpack.c.l.b16 %v559
      %v848 = vunpack.c.l.b16 %v560
      %v849 = vunpack.c.l.b16 %v561
      %v850 = vunpack.c.l.b16 %v562
      %v851 = vunpack.c.l.b16 %v563
      %v852 = vunpack.c.l.b16 %v564
      %v853 = vunpack.c.l.b16 %v565
      %v854 = vunpack.c.l.b16 %v566
      %v855 = vunpack.c.l.b16 %v567
      %v856 = vunpack.c.l.b16 %v568
      %v857 = vunpack.c.l.b16 %v569
      %v858 = vunpack.c.l.b16 %v570
      %v859 = vunpack.c.l.b16 %v571
      %v860 = vunpack.c.l.b16 %v572
      %v861 = vunpack.c.l.b16 %v573
      %v862 = vunpack.c.l.b16 %v574
      %v863 = vunpack.c.l.b16 %v575
      %v864 = vunpack.c.l.b16 %v576
      %v865 = vunpack.c.l.b16 %v577
      %v866 = vunpack.c.l.b16 %v578
      %v867 = vunpack.c.l.b16 %v579
      %v868 = vunpack.c.l.b16 %v580
      %v869 = vunpack.c.l.b16 %v581
      %v870 = vunpack.c.l.b16 %v582
      %v871 = vunpack.c.l.b16 %v583
      %v872 = vunpack.c.l.b16 %v584
      %v873 = vunpack.c.l.b16 %v585
      %v874 = vunpack.c.l.b16 %v586
      %v875 = vunpack.c.l.b16 %v587
      %v876 = vunpack.c.l.b16 %v588
      %v877 = vunpack.c.l.b16 %v589
      %v878 = vunpack.c.l.b16 %v590
      %v879 = vunpack.c.l.b16 %v591
      %v880 = vunpack.c.l.b16 %v592
      %v881 = vunpack.c.l.b16 %v593
      %v882 = vunpack.c.l.b16 %v594
      %v883 = vunpack.c.l.b16 %v595
      %v884 = vunpack.c.l.b16 %v596
      %v885 = vunpack.c.l.b16 %v597
      %v886 = vunpack.c.l.b16 %v598
      %v887 = vunpack.c.l.b16 %v599
      %v888 = vunpack.c.l.b16 %v600
      %v889 = vunpack.c.l.b16 %v601
      %v890 = vunpack.c.l.b16 %v602
      %v891 = vunpack.c.l.b16 %v603
      %v892 = vunpack.c.l.b16 %v604
      %v893 = vunpack.c.l.b16 %v605
      %v894 = vunpack.c.l.b16 %v606
      %v895 = vunpack.c.l.b16 %v607
      %v896 = vunpack.c.l.b16 %v608
      %v897 = vunpack.c.l.b16 %v609
      %v898 = vunpack.c.l.b16 %v610
      %v899 = vunpack.c.l.b16 %v611
      %v900 = vunpack.c.l.b16 %v612
      %v901 = vunpack.c.l.b16 %v613
      %v902 = vunpack.c.l.b16 %v614
      %v903 = vunpack.c.l.b16 %v615
      %v904 = vunpack.c.l.b16 %v616
      %v905 = vunpack.c.l.b16 %v617
      %v906 = vunpack.c.l.b16 %v618
      %v907 = vunpack.c.l.b16 %v619
      %v908 = vunpack.c.l.b16 %v620
      %v909 = vunpack.c.l.b16 %v621
      %v910 = vunpack.c.l.b16 %v622
      %v911 = vunpack.c.l.b16 %v623
      %v912 = vunpack.c.l.b16 %v624
      %v913 = vunpack.c.l.b16 %v625
      %v914 = vunpack.c.l.b16 %v626
      %v915 = vunpack.c.l.b16 %v627
      %v916 = vunpack.c.l.b16 %v628
      %v917 = vunpack.c.l.b16 %v629
      %v918 = vunpack.c.l.b16 %v630
      %v919 = vunpack.c.l.b16 %v631
      %v920 = vunpack.c.l.b16 %v632
      %v921 = vunpack.c.l.b16 %v633
      %v922 = vunpack.c.l.b16 %v634
      %v923 = vunpack.c.l.b16 %v635
      %v924 = vunpack.c.l.b16 %v636
      %v925 = vunpack.c.l.b16 %v637
      %v926 = vunpack.c.l.b16 %v638
      %v927 = vunpack.c.l.b16 %v639
      %v928 = vpack.c.b16 %v785, %v784
      %v929 = vpack.c.b16 %v787, %v786
      %v930 = vpack.c.b16 %v789, %v788
      %v931 = vpack.c.b16 %v791, %v790
      %v932 = vpack.c.b16 %v793, %v792
      %v933 = vpack.c.b16 %v795, %v794
      %v934 = vpack.c.b16 %v797, %v796
      %v935 = vpack.c.b16 %v799, %v798
      %v936 = vpack.c.b16 %v801, %v800
      %v937 = vpack.c.b16 %v803, %v802
      %v938 = vpack.c.b16 %v805, %v804
      %v939 = vpack.c.b16 %v807, %v806
      %v940 = vpack.c.b16 %v809, %v808
      %v941 = vpack.c.b16 %v811, %v810
      %v942 = vpack.c.b16 %v813, %v812
      %v943 = vpack.c.b16 %v815, %v814
      %v944 = vpack.c.b16 %v817, %v816
      %v945 = vpack.c.b16 %v819, %v818
      %v946 = vpack.c.b16 %v821, %v820
      %v947 = vpack.c.b16 %v823, %v822
      %v948 = vpack.c.b16 %v825, %v824
      %v949 = vpack.c.b16 %v827, %v826
      %v950 = vpack.c.b16 %v829, %v828
      %v951 = vpack.c.b16 %v831, %v830
      %v952 = vpack.c.b16 %v833, %v832
      %v953 = vpack.c.b16 %v835, %v834
      %v954 = vpack.c.b16 %v837, %v836
      %v955 = vpack.c.b16 %v839, %v838
      %v956 = vpack.c.b16 %v841, %v840
      %v957 = vpack.c.b16 %v843, %v842
      %v958 = vpack.c.b16 %v845, %v844
      %v959 = vpack.c.b16 %v847, %v846
      %v960 = vpack.c.b16 %v849, %v848
      %v961 = vpack.c.b16 %v851, %v850
      %v962 = vpack.c.b16 %v853, %v852
      %v963 = vpack.c.b16 %v855, %v854
      %v964 = vpack.c.b16 %v857, %v856
      %v965 = vpack.c.b16 %v859, %v858
      %v966 = vpack.c.b16 %v861, %v860
      %v967 = vpack.c.b16 %v863, %v862
      %v968 = vpack.c.b16 %v865, %v864
      %v969 = vpack.c.b16 %v867, %v866
      %v970 = vpack.c.b16 %v869, %v868
      %v971 = vpack.c.b16 %v871, %v870
      %v972 = vpack.c.b16 %v873, %v872
      %v973 = vpack.c.b16 %v875, %v874
      %v974 = vpack.c.b16 %v877, %v876
      %v975 = vpack.c.b16 %v879, %v878
      %v976 = vpack.c.b16 %v881, %v880
      %v977 = vpack.c.b16 %v883, %v882
      %v978 = vpack.c.b16 %v885, %v884
      %v979 = vpack.c.b16 %v887, %v886
      %v980 = vpack.c.b16 %v889, %v888
      %v981 = vpack.c.b16 %v891, %v890
      %v982 = vpack.c.b16 %v893, %v892
      %v983 = vpack.c.b16 %v895, %v894
      %v984 = vpack.c.b16 %v897, %v896
      %v985 = vpack.c.b16 %v899, %v898
      %v986 = vpack.c.b16 %v901, %v900
      %v987 = vpack.c.b16 %v903, %v902
      %v988 = vpack.c.b16 %v905, %v904
      %v989 = vpack.c.b16 %v907, %v906
      %v990 = vpack.c.b16 %v909, %v908
      %v991 = vpack.c.b16 %v911, %v910
      %v992 = vpack.c.b16 %v913, %v912
      %v993 = vpack.c.b16 %v915, %v914
      %v994 = vpack.c.b16 %v917, %v916
      %v995 = vpack.c.b16 %v919, %v918
      %v996 = vpack.c.b16 %v921, %v920
      %v997 = vpack.c.b16 %v923, %v922
      %v998 = vpack.c.b16 %v925, %v924
      %v999 = vpack.c.b16 %v927, %v926
      %1072 = vmatprep.subr.bf16.mxu0 0
      %1073 = vmatpush1.bf16.msra.mxu0 %v928
      %1074 = vmatprep.subr.bf16.mxu0 0
      %1075 = vmatpush1.bf16.msra.mxu0 %v929
      %1076 = vmatprep.subr.bf16.mxu0 0
      %1077 = vmatpush1.bf16.msra.mxu0 %v930
      %1078 = vmatprep.subr.bf16.mxu0 0
      %1079 = vmatpush1.bf16.msra.mxu0 %v931
      %1080 = vmatprep.subr.bf16.mxu0 0
      %1081 = vmatpush1.bf16.msra.mxu0 %v932
      %1082 = vmatprep.subr.bf16.mxu0 0
      %1083 = vmatpush1.bf16.msra.mxu0 %v933
      %1084 = vmatprep.subr.bf16.mxu0 0
      %1085 = vmatpush1.bf16.msra.mxu0 %v934
      %1086 = vmatprep.subr.bf16.mxu0 0
      %1087 = vmatpush1.bf16.msra.mxu0 %v935
      %1088 = vmatprep.subr.bf16.mxu0 0
      %1089 = vmatpush1.bf16.msra.mxu0 %v936
      %1090 = vmatprep.subr.bf16.mxu0 0
      %1091 = vmatpush1.bf16.msra.mxu0 %v937
      %1092 = vmatprep.subr.bf16.mxu0 0
      %1093 = vmatpush1.bf16.msra.mxu0 %v938
      %1094 = vmatprep.subr.bf16.mxu0 0
      %1095 = vmatpush1.bf16.msra.mxu0 %v939
      %1096 = vmatprep.subr.bf16.mxu0 0
      %1097 = vmatpush1.bf16.msra.mxu0 %v940
      %1098 = vmatprep.subr.bf16.mxu0 0
      %1099 = vmatpush1.bf16.msra.mxu0 %v941
      %1100 = vmatprep.subr.bf16.mxu0 0
      %1101 = vmatpush1.bf16.msra.mxu0 %v942
      %1102 = vmatprep.subr.bf16.mxu0 0
      %1103 = vmatpush1.bf16.msra.mxu0 %v943
      %1104 = vmatprep.mubr.bf16.mxu0 %v461
      %1105 = vmatmul.mubr.bf16.gmra.mrb[0].mxu0 %v460
      %v1106 = vpop.f32.mrb[0].mxu0
      %v1107 = vadd.f32 0.0, %v1106
      %v1108 = vpop.f32.mrb[0].mxu0
      %v1109 = vpop.f32.mrb[0].mxu0
      %v1110 = vadd.f32 0.0, %v1109
      %v1111 = vpop.f32.mrb[0].mxu0
      %1112 = vmatprep.mubr.bf16.mxu0 %v470
      %1113 = vmatmul.mubr.bf16.gmra.mrb[0].mxu0 %v469
      %v1114 = vpop.f32.mrb[0].mxu0
      %v1115 = vadd.f32 0.0, %v1114
      %v1116 = vpop.f32.mrb[0].mxu0
      %v1117 = vpop.f32.mrb[0].mxu0
      %v1118 = vadd.f32 0.0, %v1117
      %v1119 = vpop.f32.mrb[0].mxu0
      %1120 = vmatprep.mubr.bf16.mxu0 %v479
      %1121 = vmatmul.mubr.bf16.gmra.mrb[0].mxu0 %v478
      %v1122 = vpop.f32.mrb[0].mxu0
      %v1123 = vadd.f32 0.0, %v1122
      %v1124 = vpop.f32.mrb[0].mxu0
      %v1125 = vpop.f32.mrb[0].mxu0
      %v1126 = vadd.f32 0.0, %v1125
      %v1127 = vpop.f32.mrb[0].mxu0
      %1128 = vmatprep.mubr.bf16.mxu0 %v488
      %1129 = vmatmul.mubr.bf16.gmra.mrb[0].mxu0 %v487
      %v1130 = vpop.f32.mrb[0].mxu0
      %v1131 = vadd.f32 0.0, %v1130
      %v1132 = vpop.f32.mrb[0].mxu0
      %v1133 = vpop.f32.mrb[0].mxu0
      %v1134 = vadd.f32 0.0, %v1133
      %v1135 = vpop.f32.mrb[0].mxu0
      %1136 = vdwg.mxu0
      %1137 = vmatprep.subr.bf16.mxu0 0
      %1138 = vmatpush1.bf16.msra.mxu0 %v944
      %1139 = vmatprep.subr.bf16.mxu0 0
      %1140 = vmatpush1.bf16.msra.mxu0 %v945
      %1141 = vmatprep.subr.bf16.mxu0 0
      %1142 = vmatpush1.bf16.msra.mxu0 %v946
      %1143 = vmatprep.subr.bf16.mxu0 0
      %1144 = vmatpush1.bf16.msra.mxu0 %v947
      %1145 = vmatprep.subr.bf16.mxu0 0
      %1146 = vmatpush1.bf16.msra.mxu0 %v948
      %1147 = vmatprep.subr.bf16.mxu0 0
      %1148 = vmatpush1.bf16.msra.mxu0 %v949
      %1149 = vmatprep.subr.bf16.mxu0 0
      %1150 = vmatpush1.bf16.msra.mxu0 %v950
      %1151 = vmatprep.subr.bf16.mxu0 0
      %1152 = vmatpush1.bf16.msra.mxu0 %v951
      %1153 = vmatprep.subr.bf16.mxu0 0
      %1154 = vmatpush1.bf16.msra.mxu0 %v952
      %1155 = vmatprep.subr.bf16.mxu0 0
      %1156 = vmatpush1.bf16.msra.mxu0 %v953
      %1157 = vmatprep.subr.bf16.mxu0 0
      %1158 = vmatpush1.bf16.msra.mxu0 %v954
      %1159 = vmatprep.subr.bf16.mxu0 0
      %1160 = vmatpush1.bf16.msra.mxu0 %v955
      %1161 = vmatprep.subr.bf16.mxu0 0
      %1162 = vmatpush1.bf16.msra.mxu0 %v956
      %1163 = vmatprep.subr.bf16.mxu0 0
      %1164 = vmatpush1.bf16.msra.mxu0 %v957
      %1165 = vmatprep.subr.bf16.mxu0 0
      %1166 = vmatpush1.bf16.msra.mxu0 %v958
      %1167 = vmatprep.subr.bf16.mxu0 0
      %1168 = vmatpush1.bf16.msra.mxu0 %v959
      %1169 = vmatprep.mubr.bf16.mxu0 %v463
      %1170 = vmatmul.mubr.bf16.gmra.mrb[0].mxu0 %v462
      %v1171 = vpop.f32.mrb[0].mxu0
      %v1172 = vadd.f32 %v1107, %v1171
      %v1173 = vpop.f32.mrb[0].mxu0
      %v1174 = vpop.f32.mrb[0].mxu0
      %v1175 = vadd.f32 %v1110, %v1174
      %v1176 = vpop.f32.mrb[0].mxu0
      %1177 = vmatprep.mubr.bf16.mxu0 %v472
      %1178 = vmatmul.mubr.bf16.gmra.mrb[0].mxu0 %v471
      %v1179 = vpop.f32.mrb[0].mxu0
      %v1180 = vadd.f32 %v1115, %v1179
      %v1181 = vpop.f32.mrb[0].mxu0
      %v1182 = vpop.f32.mrb[0].mxu0
      %v1183 = vadd.f32 %v1118, %v1182
      %v1184 = vpop.f32.mrb[0].mxu0
      %1185 = vmatprep.mubr.bf16.mxu0 %v481
      %1186 = vmatmul.mubr.bf16.gmra.mrb[0].mxu0 %v480
      %v1187 = vpop.f32.mrb[0].mxu0
      %v1188 = vadd.f32 %v1123, %v1187
      %v1189 = vpop.f32.mrb[0].mxu0
      %v1190 = vpop.f32.mrb[0].mxu0
      %v1191 = vadd.f32 %v1126, %v1190
      %v1192 = vpop.f32.mrb[0].mxu0
      %1193 = vmatprep.mubr.bf16.mxu0 %v490
      %1194 = vmatmul.mubr.bf16.gmra.mrb[0].mxu0 %v489
      %v1195 = vpop.f32.mrb[0].mxu0
      %v1196 = vadd.f32 %v1131, %v1195
      %v1197 = vpop.f32.mrb[0].mxu0
      %v1198 = vpop.f32.mrb[0].mxu0
      %v1199 = vadd.f32 %v1134, %v1198
      %v1200 = vpop.f32.mrb[0].mxu0
      %1201 = vdwg.mxu0
      %1202 = vmatprep.subr.bf16.mxu0 0
      %1203 = vmatpush1.bf16.msra.mxu0 %v960
      %1204 = vmatprep.subr.bf16.mxu0 0
      %1205 = vmatpush1.bf16.msra.mxu0 %v961
      %1206 = vmatprep.subr.bf16.mxu0 0
      %1207 = vmatpush1.bf16.msra.mxu0 %v962
      %1208 = vmatprep.subr.bf16.mxu0 0
      %1209 = vmatpush1.bf16.msra.mxu0 %v963
      %1210 = vmatprep.subr.bf16.mxu0 0
      %1211 = vmatpush1.bf16.msra.mxu0 %v964
      %1212 = vmatprep.subr.bf16.mxu0 0
      %1213 = vmatpush1.bf16.msra.mxu0 %v965
      %1214 = vmatprep.subr.bf16.mxu0 0
      %1215 = vmatpush1.bf16.msra.mxu0 %v966
      %1216 = vmatprep.subr.bf16.mxu0 0
      %1217 = vmatpush1.bf16.msra.mxu0 %v967
      %1218 = vmatprep.subr.bf16.mxu0 0
      %1219 = vmatpush1.bf16.msra.mxu0 %v968
      %1220 = vmatprep.subr.bf16.mxu0 0
      %1221 = vmatpush1.bf16.msra.mxu0 %v969
      %1222 = vmatprep.subr.bf16.mxu0 0
      %1223 = vmatpush1.bf16.msra.mxu0 %v970
      %1224 = vmatprep.subr.bf16.mxu0 0
      %1225 = vmatpush1.bf16.msra.mxu0 %v971
      %1226 = vmatprep.subr.bf16.mxu0 0
      %1227 = vmatpush1.bf16.msra.mxu0 %v972
      %1228 = vmatprep.subr.bf16.mxu0 0
      %1229 = vmatpush1.bf16.msra.mxu0 %v973
      %1230 = vmatprep.subr.bf16.mxu0 0
      %1231 = vmatpush1.bf16.msra.mxu0 %v974
      %1232 = vmatprep.subr.bf16.mxu0 0
      %1233 = vmatpush1.bf16.msra.mxu0 %v975
      %1234 = vmatprep.mubr.bf16.mxu0 %v465
      %1235 = vmatmul.mubr.bf16.gmra.mrb[0].mxu0 %v464
      %v1236 = vpop.f32.mrb[0].mxu0
      %v1237 = vadd.f32 %v1172, %v1236
      %v1238 = vpop.f32.mrb[0].mxu0
      %v1239 = vpop.f32.mrb[0].mxu0
      %v1240 = vadd.f32 %v1175, %v1239
      %v1241 = vpop.f32.mrb[0].mxu0
      %1242 = vmatprep.mubr.bf16.mxu0 %v474
      %1243 = vmatmul.mubr.bf16.gmra.mrb[0].mxu0 %v473
      %v1244 = vpop.f32.mrb[0].mxu0
      %v1245 = vadd.f32 %v1180, %v1244
      %v1246 = vpop.f32.mrb[0].mxu0
      %v1247 = vpop.f32.mrb[0].mxu0
      %v1248 = vadd.f32 %v1183, %v1247
      %v1249 = vpop.f32.mrb[0].mxu0
      %1250 = vmatprep.mubr.bf16.mxu0 %v483
      %1251 = vmatmul.mubr.bf16.gmra.mrb[0].mxu0 %v482
      %v1252 = vpop.f32.mrb[0].mxu0
      %v1253 = vadd.f32 %v1188, %v1252
      %v1254 = vpop.f32.mrb[0].mxu0
      %v1255 = vpop.f32.mrb[0].mxu0
      %v1256 = vadd.f32 %v1191, %v1255
      %v1257 = vpop.f32.mrb[0].mxu0
      %1258 = vmatprep.mubr.bf16.mxu0 %v492
      %1259 = vmatmul.mubr.bf16.gmra.mrb[0].mxu0 %v491
      %v1260 = vpop.f32.mrb[0].mxu0
      %v1261 = vadd.f32 %v1196, %v1260
      %v1262 = vpop.f32.mrb[0].mxu0
      %v1263 = vpop.f32.mrb[0].mxu0
      %v1264 = vadd.f32 %v1199, %v1263
      %v1265 = vpop.f32.mrb[0].mxu0
      %1266 = vdwg.mxu0
      %1267 = vmatprep.subr.bf16.mxu0 0
      %1268 = vmatpush1.bf16.msra.mxu0 %v976
      %1269 = vmatprep.subr.bf16.mxu0 0
      %1270 = vmatpush1.bf16.msra.mxu0 %v977
      %1271 = vmatprep.subr.bf16.mxu0 0
      %1272 = vmatpush1.bf16.msra.mxu0 %v978
      %1273 = vmatprep.subr.bf16.mxu0 0
      %1274 = vmatpush1.bf16.msra.mxu0 %v979
      %1275 = vmatprep.subr.bf16.mxu0 0
      %1276 = vmatpush1.bf16.msra.mxu0 %v980
      %1277 = vmatprep.subr.bf16.mxu0 0
      %1278 = vmatpush1.bf16.msra.mxu0 %v981
      %1279 = vmatprep.subr.bf16.mxu0 0
      %1280 = vmatpush1.bf16.msra.mxu0 %v982
      %1281 = vmatprep.subr.bf16.mxu0 0
      %1282 = vmatpush1.bf16.msra.mxu0 %v983
      %1283 = vmatprep.subr.bf16.mxu0 0
      %1284 = vmatpush1.bf16.msra.mxu0 %v984
      %1285 = vmatprep.subr.bf16.mxu0 0
      %1286 = vmatpush1.bf16.msra.mxu0 %v985
      %1287 = vmatprep.subr.bf16.mxu0 0
      %1288 = vmatpush1.bf16.msra.mxu0 %v986
      %1289 = vmatprep.subr.bf16.mxu0 0
      %1290 = vmatpush1.bf16.msra.mxu0 %v987
      %1291 = vmatprep.subr.bf16.mxu0 0
      %1292 = vmatpush1.bf16.msra.mxu0 %v988
      %1293 = vmatprep.subr.bf16.mxu0 0
      %1294 = vmatpush1.bf16.msra.mxu0 %v989
      %1295 = vmatprep.subr.bf16.mxu0 0
      %1296 = vmatpush1.bf16.msra.mxu0 %v990
      %1297 = vmatprep.subr.bf16.mxu0 0
      %1298 = vmatpush1.bf16.msra.mxu0 %v991
      %1299 = vmatprep.mubr.bf16.mxu0 %v467
      %1300 = vmatmul.mubr.bf16.gmra.mrb[0].mxu0 %v466
      %v1301 = vpop.f32.mrb[0].mxu0
      %v1302 = vadd.f32 %v1237, %v1301
      %v1303 = vpop.f32.mrb[0].mxu0
      %v1304 = vpop.f32.mrb[0].mxu0
      %v1305 = vadd.f32 %v1240, %v1304
      %v1306 = vpop.f32.mrb[0].mxu0
      %1307 = vmatprep.mubr.bf16.mxu0 %v476
      %1308 = vmatmul.mubr.bf16.gmra.mrb[0].mxu0 %v475
      %v1309 = vpop.f32.mrb[0].mxu0
      %v1310 = vadd.f32 %v1245, %v1309
      %v1311 = vpop.f32.mrb[0].mxu0
      %v1312 = vpop.f32.mrb[0].mxu0
      %v1313 = vadd.f32 %v1248, %v1312
      %v1314 = vpop.f32.mrb[0].mxu0
      %1315 = vmatprep.mubr.bf16.mxu0 %v485
      %1316 = vmatmul.mubr.bf16.gmra.mrb[0].mxu0 %v484
      %v1317 = vpop.f32.mrb[0].mxu0
      %v1318 = vadd.f32 %v1253, %v1317
      %v1319 = vpop.f32.mrb[0].mxu0
      %v1320 = vpop.f32.mrb[0].mxu0
      %v1321 = vadd.f32 %v1256, %v1320
      %v1322 = vpop.f32.mrb[0].mxu0
      %1323 = vmatprep.mubr.bf16.mxu0 %v494
      %1324 = vmatmul.mubr.bf16.gmra.mrb[0].mxu0 %v493
      %v1325 = vpop.f32.mrb[0].mxu0
      %v1326 = vadd.f32 %v1261, %v1325
      %v1327 = vpop.f32.mrb[0].mxu0
      %v1328 = vpop.f32.mrb[0].mxu0
      %v1329 = vadd.f32 %v1264, %v1328
      %v1330 = vpop.f32.mrb[0].mxu0
      %1331 = vdwg.mxu0
      %1332 = vmatprep.subr.bf16.mxu0 0
      %1333 = vmatpush1.bf16.msra.mxu0 %v992
      %1334 = vmatprep.subr.bf16.mxu0 0
      %1335 = vmatpush1.bf16.msra.mxu0 %v993
      %1336 = vmatprep.subr.bf16.mxu0 0
      %1337 = vmatpush1.bf16.msra.mxu0 %v994
      %1338 = vmatprep.subr.bf16.mxu0 0
      %1339 = vmatpush1.bf16.msra.mxu0 %v995
      %1340 = vmatprep.subr.bf16.mxu0 0
      %1341 = vmatpush1.bf16.msra.mxu0 %v996
      %1342 = vmatprep.subr.bf16.mxu0 0
      %1343 = vmatpush1.bf16.msra.mxu0 %v997
      %1344 = vmatprep.subr.bf16.mxu0 0
      %1345 = vmatpush1.bf16.msra.mxu0 %v998
      %1346 = vmatprep.subr.bf16.mxu0 0
      %1347 = vmatpush1.bf16.msra.mxu0 %v999
      %1348 = vmatprep.subr.bf16.mxu0 0
      %1349 = vmatpush1.bf16.msra.mxu0 0
      %1350 = vmatprep.subr.bf16.mxu0 0
      %1351 = vmatpush1.bf16.msra.mxu0 0
      %1352 = vmatprep.subr.bf16.mxu0 0
      %1353 = vmatpush1.bf16.msra.mxu0 0
      %1354 = vmatprep.subr.bf16.mxu0 0
      %1355 = vmatpush1.bf16.msra.mxu0 0
      %1356 = vmatprep.subr.bf16.mxu0 0
      %1357 = vmatpush1.bf16.msra.mxu0 0
      %1358 = vmatprep.subr.bf16.mxu0 0
      %1359 = vmatpush1.bf16.msra.mxu0 0
      %1360 = vmatprep.subr.bf16.mxu0 0
      %1361 = vmatpush1.bf16.msra.mxu0 0
      %1362 = vmatprep.subr.bf16.mxu0 0
      %1363 = vmatpush1.bf16.msra.mxu0 0
      %1364 = vmatprep.mubr.bf16.mxu0 0
      %1365 = vmatmul.mubr.bf16.gmra.mrb[0].mxu0 %v468
      %v1366 = vpop.f32.mrb[0].mxu0
      %v1367 = vadd.f32 %v1302, %v1366
      %v1368 = vpop.f32.mrb[0].mxu0
      %v1369 = vpop.f32.mrb[0].mxu0
      %v1370 = vadd.f32 %v1305, %v1369
      %v1371 = vpop.f32.mrb[0].mxu0
      %1372 = vmatprep.mubr.bf16.mxu0 0
      %1373 = vmatmul.mubr.bf16.gmra.mrb[0].mxu0 %v477
      %v1374 = vpop.f32.mrb[0].mxu0
      %v1375 = vadd.f32 %v1310, %v1374
      %v1376 = vpop.f32.mrb[0].mxu0
      %v1377 = vpop.f32.mrb[0].mxu0
      %v1378 = vadd.f32 %v1313, %v1377
      %v1379 = vpop.f32.mrb[0].mxu0
      %1380 = vmatprep.mubr.bf16.mxu0 0
      %1381 = vmatmul.mubr.bf16.gmra.mrb[0].mxu0 %v486
      %v1382 = vpop.f32.mrb[0].mxu0
      %v1383 = vadd.f32 %v1318, %v1382
      %v1384 = vpop.f32.mrb[0].mxu0
      %v1385 = vpop.f32.mrb[0].mxu0
      %v1386 = vadd.f32 %v1321, %v1385
      %v1387 = vpop.f32.mrb[0].mxu0
      %1388 = vmatprep.mubr.bf16.mxu0 0
      %1389 = vmatmul.mubr.bf16.gmra.mrb[0].mxu0 %v495
      %v1390 = vpop.f32.mrb[0].mxu0
      %v1391 = vadd.f32 %v1326, %v1390
      %v1392 = vpop.f32.mrb[0].mxu0
      %v1393 = vpop.f32.mrb[0].mxu0
      %v1394 = vadd.f32 %v1329, %v1393
      %v1395 = vpop.f32.mrb[0].mxu0
      %1396 = vdwg.mxu0
      %v1397 = vadd.f32 %v260, %v1367
      %v1398 = vadd.f32 %v261, %v1370
      %v1399 = vadd.f32 %v262, %v1375
      %v1400 = vadd.f32 %v263, %v1378
      %v1401 = vadd.f32 %v264, %v1383
      %v1402 = vadd.f32 %v265, %v1386
      %v1403 = vadd.f32 %v266, %v1391
      %v1404 = vadd.f32 %v267, %v1394
      %1405 = vst [vmem:[%s259 + $0x1] sm:$0xff] %v1397
      %1406 = vst [vmem:[%s259 + $0x11] sm:$0xff] %v1398
      %1407 = vst [vmem:[%s259 + $0x21] sm:$0xff] %v1399
      %1408 = vst [vmem:[%s259 + $0x31] sm:$0xff] %v1400
      %1409 = vst [vmem:[%s259 + $0x41] sm:$0xff] %v1401
      %1410 = vst [vmem:[%s259 + $0x51] sm:$0xff] %v1402
      %1411 = vst [vmem:[%s259 + $0x61] sm:$0xff] %v1403
      %1412 = vst [vmem:[%s259 + $0x71] sm:$0xff] %v1404
      %p1413 = scmp.lt.s32.totalorder %s15, 1
      %s1414 = scalar_select %p1413, %s15, 1
      %s1415 = smul.addr %s1414, 20
      %s1416 = smul.addr %s1415, 8
      %s1417 = scalar_lea.vmem %s4, %s1416
      // Predicated region
      $region37: #{densenet_forward.8} parent=35 // pred_check
        %p1418 = pneg %p122
      $region38: #{densenet_forward.8} parent=35 // pred_check_branch
        %1420 = sbr.rel (%p1418) target = $region40
      $region39: #{densenet_forward.8} parent=35 // pred_region
        _
      $region40: #{densenet_forward.8} parent=35 // pred_fallthru
        _
    $region36: #{densenet_forward.8} parent=5 // pred_fallthru
      _
    %p1421 = scmp.le.s32.totalorder 2, %s10
    // Predicated region
    $region41: #{densenet_forward.8} parent=5 // pred_check
      %p1422 = pneg %p1421
    $region42: #{densenet_forward.8} parent=5 // pred_check_branch
      %1424 = sbr.rel (%p1422) target = $region44
    $region43: #{densenet_forward.8} parent=5 // pred_region
      %s1425 = ssub.s32 %s10, 2
      // Predicated region
      $region45: #{densenet_forward.8} parent=43 // pred_check
        %p1426 = pneg %p128
      $region46: #{densenet_forward.8} parent=43 // pred_check_branch
        %1428 = sbr.rel (%p1426) target = $region48
      $region47: #{densenet_forward.8} parent=43 // pred_region
        %p1429 = scmp.lt.s32.totalorder %s16, 1
        %s1430 = scalar_select %p1429, %s16, 1
        %s1431 = smul.addr %s1430, 20
        %s1432 = smul.addr %s1431, 8
        %s1433 = scalar_lea.vmem %s4, %s1432
      $region48: #{densenet_forward.8} parent=43 // pred_fallthru
        _
    $region44: #{densenet_forward.8} parent=5 // pred_fallthru
      _
  $region6: #{densenet_forward.8} parent=0 // loop_footer
    %s14 = sadd.s32 1, %s10
  $region7: #{densenet_forward.8} parent=0 // loop_footer_branch
    %9 = sbr.rel target = $region3
  $region8: #{densenet_forward.8} parent=0 // loop_exit
    _

// kernel: densenet_forward.11
$region0: #{densenet_forward.11}
  #allocation0 [shape = 'u32[]', space=smem, size = 0x4, offset = 0x4, fixed_abs, tag = 'smem constant byte address 0x4 - core index']
  #allocation1 [shape = 'u32[144,128]{1,0:T(1,128)}', space=vmem, size = 0x12000, scoped, tag = 'internal scratch']
  %s0 = inlined_call_operand.vmem [shape: f32[2,6,6,128], index: 0, kind: input, shape index: {}]
  %s1 = inlined_call_operand.vmem [shape: f32[1,128], index: 1, kind: input, shape index: {}]
  %s2 = inlined_call_operand.vmem [shape: f32[1,128], index: 2, kind: input, shape index: {}]
  %s3 = inlined_call_operand.vmem [shape: bf16[128,128], index: 3, kind: input, shape index: {}]
  %s4 = inlined_call_operand.vmem [shape: f32[1,128], index: 4, kind: input, shape index: {}]
  %s5 = inlined_call_operand.hbm [shape: f32[2,1,128], index: 5, kind: output, shape index: {}]
  %s6 = sld [smem:[#allocation0]]
  $region53: #{densenet_forward.11} parent=0
    _
  %s8 = ssub.s32 1, %s6
  %s9 = scalar_select 0, %s8, %s6
  $region1: #{densenet_forward.11} parent=0
    #allocation2 [shape = 'u8[1024]{0}', space=vmem, size = 0x400, scoped, tag = 'output window, operand 0']
    #allocation3 [shape = 's32[2]{0}', space=sflag, size = 0x8, scoped, tag = 'scoped memory for densenet_forward.11']
    %10 = vsyncpa [#allocation3], 0
    %s11 = scalar_lea.sflag [#allocation3], 1
    %12 = vsyncpa %s11, 0
    loop: start=0, step=1, limit=4
    $region2: #{densenet_forward.11} parent=1 // loop_pre_header
      _
    $region3: #{densenet_forward.11} parent=1 // loop_header
      %s14 = sphi 0, %s18
      %p15 = scmp.ge.s32.totalorder %s14, 4
      %s24 = sphi 0, %s26
      %s27 = sphi 0, %s24
      %s28 = sphi 0, %s27
      %s44 = sphi 0, %s28
      %s48 = sphi 0, %s48
      %s50 = sphi 0, %s48
      %s51 = sphi 0, %s50
      %s65 = sphi 0, %s51
      %s69 = sphi 0, %s69
      %s71 = sphi 0, %s69
      %s72 = sphi 0, %s71
      %s86 = sphi 0, %s72
      %s90 = sphi 0, %s90
      %s92 = sphi 0, %s90
      %s93 = sphi 0, %s92
      %s107 = sphi 0, %s93
      %s111 = sphi 0, %s111
      %s113 = sphi 0, %s111
      %s114 = sphi 0, %s113
      %s128 = sphi 0, %s114
      %s134 = sphi 0, %s136
      %s137 = sphi 0, %s134
      %s138 = sphi 0, %s137
      %s154 = sphi 0, %s138
    $region4: #{densenet_forward.11} parent=1 // loop_header_branch
      %17 = sbr.rel (%p15) target = $region8
    $region5: #{densenet_forward.11} parent=1 // loop_body
      %s19 = ssub.s32 %s14, 1
      %s20 = ssub.s32 %s14, 2
      %s21 = sadd.s32 %s14, 1
      %s22 = ssub.s32 %s14, %s21
      %p23 = scmp.eq.s32.totalorder %s22, 0
      %s25 = sadd.s32 %s24, 1
      %s26 = scalar_select %p23, %s24, %s25
      %p29 = pneg %p23
      %p30 = scmp.eq.s32.totalorder %s14, 1
      %p31 = por %p29, %p30
      %p32 = scmp.ne.s32.totalorder %s24, %s27
      %p33 = scmp.eq.s32.totalorder %s14, 0
      %p34 = por %p32, %p33
      %p35 = scmp.ne.s32.totalorder %s24, %s27
      %p36 = scmp.eq.s32.totalorder %s19, 1
      %p37 = por %p35, %p36
      %p38 = scmp.ne.s32.totalorder %s27, %s28
      %p39 = scmp.eq.s32.totalorder %s19, 0
      %p40 = por %p38, %p39
      %p41 = scmp.ne.s32.totalorder %s27, %s28
      %p42 = scmp.eq.s32.totalorder %s20, 1
      %p43 = por %p41, %p42
      %p45 = scmp.ne.s32.totalorder %s28, %s44
      %p46 = scmp.eq.s32.totalorder %s20, 0
      %p47 = por %p45, %p46
      %s49 = sadd.s32 %s48, 1
      %p52 = scmp.eq.s32.totalorder %s14, 1
      %p53 = scmp.ne.s32.totalorder %s48, %s50
      %p54 = scmp.eq.s32.totalorder %s14, 0
      %p55 = por %p53, %p54
      %p56 = scmp.ne.s32.totalorder %s48, %s50
      %p57 = scmp.eq.s32.totalorder %s19, 1
      %p58 = por %p56, %p57
      %p59 = scmp.ne.s32.totalorder %s50, %s51
      %p60 = scmp.eq.s32.totalorder %s19, 0
      %p61 = por %p59, %p60
      %p62 = scmp.ne.s32.totalorder %s50, %s51
      %p63 = scmp.eq.s32.totalorder %s20, 1
      %p64 = por %p62, %p63
      %p66 = scmp.ne.s32.totalorder %s51, %s65
      %p67 = scmp.eq.s32.totalorder %s20, 0
      %p68 = por %p66, %p67
      %s70 = sadd.s32 %s69, 1
      %p73 = scmp.eq.s32.totalorder %s14, 1
      %p74 = scmp.ne.s32.totalorder %s69, %s71
      %p75 = scmp.eq.s32.totalorder %s14, 0
      %p76 = por %p74, %p75
      %p77 = scmp.ne.s32.totalorder %s69, %s71
      %p78 = scmp.eq.s32.totalorder %s19, 1
      %p79 = por %p77, %p78
      %p80 = scmp.ne.s32.totalorder %s71, %s72
      %p81 = scmp.eq.s32.totalorder %s19, 0
      %p82 = por %p80, %p81
      %p83 = scmp.ne.s32.totalorder %s71, %s72
      %p84 = scmp.eq.s32.totalorder %s20, 1
      %p85 = por %p83, %p84
      %p87 = scmp.ne.s32.totalorder %s72, %s86
      %p88 = scmp.eq.s32.totalorder %s20, 0
      %p89 = por %p87, %p88
      %s91 = sadd.s32 %s90, 1
      %p94 = scmp.eq.s32.totalorder %s14, 1
      %p95 = scmp.ne.s32.totalorder %s90, %s92
      %p96 = scmp.eq.s32.totalorder %s14, 0
      %p97 = por %p95, %p96
      %p98 = scmp.ne.s32.totalorder %s90, %s92
      %p99 = scmp.eq.s32.totalorder %s19, 1
      %p100 = por %p98, %p99
      %p101 = scmp.ne.s32.totalorder %s92, %s93
      %p102 = scmp.eq.s32.totalorder %s19, 0
      %p103 = por %p101, %p102
      %p104 = scmp.ne.s32.totalorder %s92, %s93
      %p105 = scmp.eq.s32.totalorder %s20, 1
      %p106 = por %p104, %p105
      %p108 = scmp.ne.s32.totalorder %s93, %s107
      %p109 = scmp.eq.s32.totalorder %s20, 0
      %p110 = por %p108, %p109
      %s112 = sadd.s32 %s111, 1
      %p115 = scmp.eq.s32.totalorder %s14, 1
      %p116 = scmp.ne.s32.totalorder %s111, %s113
      %p117 = scmp.eq.s32.totalorder %s14, 0
      %p118 = por %p116, %p117
      %p119 = scmp.ne.s32.totalorder %s111, %s113
      %p120 = scmp.eq.s32.totalorder %s19, 1
      %p121 = por %p119, %p120
      %p122 = scmp.ne.s32.totalorder %s113, %s114
      %p123 = scmp.eq.s32.totalorder %s19, 0
      %p124 = por %p122, %p123
      %p125 = scmp.ne.s32.totalorder %s113, %s114
      %p126 = scmp.eq.s32.totalorder %s20, 1
      %p127 = por %p125, %p126
      %p129 = scmp.ne.s32.totalorder %s114, %s128
      %p130 = scmp.eq.s32.totalorder %s20, 0
      %p131 = por %p129, %p130
      %s132 = ssub.s32 %s14, %s21
      %p133 = scmp.eq.s32.totalorder %s132, 0
      %s135 = sadd.s32 %s134, 1
      %s136 = scalar_select %p133, %s134, %s135
      %p139 = pneg %p133
      %p140 = scmp.eq.s32.totalorder %s14, 1
      %p141 = por %p139, %p140
      %p142 = scmp.ne.s32.totalorder %s134, %s137
      %p143 = scmp.eq.s32.totalorder %s14, 0
      %p144 = por %p142, %p143
      %p145 = scmp.ne.s32.totalorder %s134, %s137
      %p146 = scmp.eq.s32.totalorder %s19, 1
      %p147 = por %p145, %p146
      %p148 = scmp.ne.s32.totalorder %s137, %s138
      %p149 = scmp.eq.s32.totalorder %s19, 0
      %p150 = por %p148, %p149
      %p151 = scmp.ne.s32.totalorder %s137, %s138
      %p152 = scmp.eq.s32.totalorder %s20, 1
      %p153 = por %p151, %p152
      %p155 = scmp.ne.s32.totalorder %s138, %s154
      %p156 = scmp.eq.s32.totalorder %s20, 0
      %p157 = por %p155, %p156
      %p158 = scmp.le.s32.totalorder 1, %s14
      %p159 = scmp.lt.s32.totalorder %s14, 3
      %p160 = pnand %p158, %p159
      %p161 = pneg %p160
      // Predicated region
      $region9: #{densenet_forward.11} parent=5 // pred_check
        _
      $region10: #{densenet_forward.11} parent=5 // pred_check_branch
        %163 = sbr.rel (%p160) target = $region12
      $region11: #{densenet_forward.11} parent=5 // pred_region
        %s164 = ssub.s32 %s14, 1
        // Predicated region
        $region13: #{densenet_forward.11} parent=11 // pred_check
          %p165 = pneg %p61
        $region14: #{densenet_forward.11} parent=11 // pred_check_branch
          %167 = sbr.rel (%p165) target = $region16
        $region15: #{densenet_forward.11} parent=11 // pred_region
          _
        $region16: #{densenet_forward.11} parent=11 // pred_fallthru
          _
        // Predicated region
        $region17: #{densenet_forward.11} parent=11 // pred_check
          %p168 = pneg %p82
        $region18: #{densenet_forward.11} parent=11 // pred_check_branch
          %170 = sbr.rel (%p168) target = $region20
        $region19: #{densenet_forward.11} parent=11 // pred_region
          _
        $region20: #{densenet_forward.11} parent=11 // pred_fallthru
          _
        // Predicated region
        $region21: #{densenet_forward.11} parent=11 // pred_check
          %p171 = pneg %p103
        $region22: #{densenet_forward.11} parent=11 // pred_check_branch
          %173 = sbr.rel (%p171) target = $region24
        $region23: #{densenet_forward.11} parent=11 // pred_region
          _
        $region24: #{densenet_forward.11} parent=11 // pred_fallthru
          _
        // Predicated region
        $region25: #{densenet_forward.11} parent=11 // pred_check
          %p174 = pneg %p124
        $region26: #{densenet_forward.11} parent=11 // pred_check_branch
          %176 = sbr.rel (%p174) target = $region28
        $region27: #{densenet_forward.11} parent=11 // pred_region
          _
        $region28: #{densenet_forward.11} parent=11 // pred_fallthru
          _
      $region12: #{densenet_forward.11} parent=5 // pred_fallthru
        _
      %p177 = scmp.lt.s32.totalorder %s14, 2
      // Predicated region
      $region29: #{densenet_forward.11} parent=5 // pred_check
        %p178 = pneg %p177
      $region30: #{densenet_forward.11} parent=5 // pred_check_branch
        %180 = sbr.rel (%p178) target = $region32
      $region31: #{densenet_forward.11} parent=5 // pred_region
        // Predicated region
        $region33: #{densenet_forward.11} parent=31 // pred_check
          %p181 = pneg %p34
        $region34: #{densenet_forward.11} parent=31 // pred_check_branch
          %183 = sbr.rel (%p181) target = $region36
        $region35: #{densenet_forward.11} parent=31 // pred_region
          %p184 = scmp.lt.s32.totalorder %s14, 1
          %s185 = scalar_select %p184, %s14, 1
          %s186 = smul.addr %s185, 6
          %s187 = smul.addr %s186, 8
          %s188 = scalar_lea.vmem %s0, %s187
        $region36: #{densenet_forward.11} parent=31 // pred_fallthru
          _
      $region32: #{densenet_forward.11} parent=5 // pred_fallthru
        _
      %p189 = scmp.le.s32.totalorder 1, %s14
      %p190 = scmp.lt.s32.totalorder %s14, 3
      %p191 = pnand %p189, %p190
      %p192 = pneg %p191
      // Predicated region
      $region37: #{densenet_forward.11} parent=5 // pred_check
        _
      $region38: #{densenet_forward.11} parent=5 // pred_check_branch
        %194 = sbr.rel (%p191) target = $region40
      $region39: #{densenet_forward.11} parent=5 // pred_region
        %s195 = ssub.s32 %s14, 1
        %p196 = scmp.lt.s32.totalorder %s19, 1
        %s197 = scalar_select %p196, %s19, 1
        %s198 = smul.addr %s197, 6
        %s199 = smul.addr %s198, 8
        %s200 = scalar_lea.vmem %s0, %s199
        %p201 = pneg %p40
        %p202 = pneg %p37
        %p203 = pneg %p61
        %p204 = pneg %p58
        %p205 = pneg %p82
        %p206 = pneg %p79
        %p207 = pneg %p103
        %p208 = pneg %p100
        %p209 = pneg %p124
        %p210 = pneg %p121
        %p211 = pneg %p150
        %p212 = pneg %p147
        %s213 = sand.u32 %s137, 1
        %s214 = scalar_lea.sflag [#allocation3], %s213
        %s215 = sand.u32 %s137, 1
        %s216 = scalar_lea.vmem [#allocation2], %s215
        %p217 = scmp.lt.s32.totalorder %s19, 1
        %s218 = scalar_select %p217, %s19, 1
        %s219 = smul.addr %s218, 6
        %s220 = smul.addr %s219, 8
        %s221 = scalar_lea.vmem %s0, %s220
        %s223 = scalar_lea.vmem %s221, 8
        %v224 = vld [vmem:[%s223 + $0x1] sm:$0xf]
        %v225 = vld [vmem:[%s223 + $0x9] sm:$0xf]
        %v226 = vld [vmem:[%s223 + $0x11] sm:$0xf]
        %v227 = vld [vmem:[%s223 + $0x19] sm:$0xf]
        %v228 = vld [vmem:[%s1] sm:$0x1]
        %v230 = vlaneseq
        %v231 = vshrl.u32 %v230, 7
        %v232 = vsub.s32 0, %v231
        %v233 = vrot.slane %v228, %v232
        %v235 = vmul.f32 %v224, %v233
        %v236 = vmul.f32 %v225, %v233
        %v237 = vmul.f32 %v226, %v233
        %v238 = vmul.f32 %v227, %v233
        %v239 = vld [vmem:[%s2] sm:$0x1]
        %v241 = vlaneseq
        %v242 = vshrl.u32 %v241, 7
        %v243 = vsub.s32 0, %v242
        %v244 = vrot.slane %v239, %v243
        %v246 = vadd.f32 %v235, %v244
        %v247 = vadd.f32 %v236, %v244
        %v248 = vadd.f32 %v237, %v244
        %v249 = vadd.f32 %v238, %v244
        %v250 = vmax.f32 %v246, 0.0
        %v251 = vmax.f32 %v247, 0.0
        %v252 = vmax.f32 %v248, 0.0
        %v253 = vmax.f32 %v249, 0.0
        %v258 = vcombine.low %v250, %v251
        %v259 = vcombine.low %v252, %v253
        %v262 = vadd.f32 %v258, %v259
        %v263 = vrot.slane %v262, 4
        %v264 = vadd.f32 %v262, %v263
        %v265 = vrot.slane %v264, 2
        %v266 = vadd.f32 %v264, %v265
        %v267 = vrot.slane %v266, 1
        %v268 = vadd.f32 %v266, %v267
        %v269 = vmul.f32 %v268, 0.0625
        %v270 = vpack.c.bf16 %v269, %v269
        %v271 = vld [vmem:[%s3] sm:$0xf]
        %v272 = vld [vmem:[%s3 + $0x4] sm:$0xf]
        %v273 = vld [vmem:[%s3 + $0x8] sm:$0xf]
        %v274 = vld [vmem:[%s3 + $0xc] sm:$0xf]
        %v275 = vld [vmem:[%s3 + $0x10] sm:$0xf]
        %v276 = vld [vmem:[%s3 + $0x14] sm:$0xf]
        %v277 = vld [vmem:[%s3 + $0x18] sm:$0xf]
        %v278 = vld [vmem:[%s3 + $0x1c] sm:$0xf]
        %v279 = vld [vmem:[%s3 + $0x20] sm:$0xf]
        %v280 = vld [vmem:[%s3 + $0x24] sm:$0xf]
        %v281 = vld [vmem:[%s3 + $0x28] sm:$0xf]
        %v282 = vld [vmem:[%s3 + $0x2c] sm:$0xf]
        %v283 = vld [vmem:[%s3 + $0x30] sm:$0xf]
        %v284 = vld [vmem:[%s3 + $0x34] sm:$0xf]
        %v285 = vld [vmem:[%s3 + $0x38] sm:$0xf]
        %v286 = vld [vmem:[%s3 + $0x3c] sm:$0xf]
        %v287 = vld [vmem:[%s4] sm:$0x1]
        %v304 = vunpack.c.l.b16 %v271
        %v305 = vunpack.c.l.b16 %v272
        %v306 = vunpack.c.l.b16 %v273
        %v307 = vunpack.c.l.b16 %v274
        %v308 = vunpack.c.l.b16 %v275
        %v309 = vunpack.c.l.b16 %v276
        %v310 = vunpack.c.l.b16 %v277
        %v311 = vunpack.c.l.b16 %v278
        %v312 = vunpack.c.l.b16 %v279
        %v313 = vunpack.c.l.b16 %v280
        %v314 = vunpack.c.l.b16 %v281
        %v315 = vunpack.c.l.b16 %v282
        %v316 = vunpack.c.l.b16 %v283
        %v317 = vunpack.c.l.b16 %v284
        %v318 = vunpack.c.l.b16 %v285
        %v319 = vunpack.c.l.b16 %v286
        %v320 = vpack.c.b16 %v305, %v304
        %v321 = vpack.c.b16 %v307, %v306
        %v322 = vpack.c.b16 %v309, %v308
        %v323 = vpack.c.b16 %v311, %v310
        %v324 = vpack.c.b16 %v313, %v312
        %v325 = vpack.c.b16 %v315, %v314
        %v326 = vpack.c.b16 %v317, %v316
        %v327 = vpack.c.b16 %v319, %v318
        %336 = vmatprep.subr.bf16.mxu0 0
        %337 = vmatpush1.bf16.msra.mxu0 %v320
        %338 = vmatprep.subr.bf16.mxu0 0
        %339 = vmatpush1.bf16.msra.mxu0 %v321
        %340 = vmatprep.subr.bf16.mxu0 0
        %341 = vmatpush1.bf16.msra.mxu0 %v322
        %342 = vmatprep.subr.bf16.mxu0 0
        %343 = vmatpush1.bf16.msra.mxu0 %v323
        %344 = vmatprep.subr.bf16.mxu0 0
        %345 = vmatpush1.bf16.msra.mxu0 %v324
        %346 = vmatprep.subr.bf16.mxu0 0
        %347 = vmatpush1.bf16.msra.mxu0 %v325
        %348 = vmatprep.subr.bf16.mxu0 0
        %349 = vmatpush1.bf16.msra.mxu0 %v326
        %350 = vmatprep.subr.bf16.mxu0 0
        %351 = vmatpush1.bf16.msra.mxu0 %v327
        %352 = vmatprep.subr.bf16.mxu0 0
        %353 = vmatpush1.bf16.msra.mxu0 0
        %354 = vmatprep.subr.bf16.mxu0 0
        %355 = vmatpush1.bf16.msra.mxu0 0
        %356 = vmatprep.subr.bf16.mxu0 0
        %357 = vmatpush1.bf16.msra.mxu0 0
        %358 = vmatprep.subr.bf16.mxu0 0
        %359 = vmatpush1.bf16.msra.mxu0 0
        %360 = vmatprep.subr.bf16.mxu0 0
        %361 = vmatpush1.bf16.msra.mxu0 0
        %362 = vmatprep.subr.bf16.mxu0 0
        %363 = vmatpush1.bf16.msra.mxu0 0
        %364 = vmatprep.subr.bf16.mxu0 0
        %365 = vmatpush1.bf16.msra.mxu0 0
        %366 = vmatprep.subr.bf16.mxu0 0
        %367 = vmatpush1.bf16.msra.mxu0 0
        %368 = vmatprep.mubr.bf16.mxu0 0
        %369 = vmatmul.mubr.bf16.gmra.mrb[0].mxu0 %v270
        %v370 = vpop.f32.mrb[0].mxu0
        %v371 = vadd.f32 %v287, %v370
        %v372 = vpop.f32.mrb[0].mxu0
        %v373 = vpop.f32.mrb[0].mxu0
        %v374 = vpop.f32.mrb[0].mxu0
        %375 = vdwg.mxu0
        %376 = vst [vmem:[%s216] sm:$0x1] %v371
        %s377 = sand.u32 %s137, 1
        %s378 = scalar_lea.sflag [#allocation3], %s377
        %s379 = sand.u32 %s137, 1
        %s380 = scalar_lea.vmem [#allocation2], %s379
        // Predicated region
        $region41: #{densenet_forward.11} parent=39 // pred_check
          %p381 = pneg %p147
        $region42: #{densenet_forward.11} parent=39 // pred_check_branch
          %383 = sbr.rel (%p381) target = $region44
        $region43: #{densenet_forward.11} parent=39 // pred_region
          %s385 = ssub.s32 16, 16
          %386 = vsyncadd %s378, %s385
          %s387 = smul.addr %s19, 16
          %s388 = scalar_lea.hbm %s5, %s387
          %s390 = sshll.u32 %s380, 4
          %s391 = int_to_ptr.vmem [resolvable:$true] %s390
          %393 = dma.vmem_to_hbm [thread:$0]  %s391, 16, %s388, %s378
        $region44: #{densenet_forward.11} parent=39 // pred_fallthru
          _
      $region40: #{densenet_forward.11} parent=5 // pred_fallthru
        _
      %p394 = scmp.le.s32.totalorder 2, %s14
      // Predicated region
      $region45: #{densenet_forward.11} parent=5 // pred_check
        %p395 = pneg %p394
      $region46: #{densenet_forward.11} parent=5 // pred_check_branch
        %397 = sbr.rel (%p395) target = $region48
      $region47: #{densenet_forward.11} parent=5 // pred_region
        %s398 = ssub.s32 %s14, 2
        // Predicated region
        $region49: #{densenet_forward.11} parent=47 // pred_check
          %p399 = pneg %p153
        $region50: #{densenet_forward.11} parent=47 // pred_check_branch
          %401 = sbr.rel (%p399) target = $region52
        $region51: #{densenet_forward.11} parent=47 // pred_region
          %s402 = sand.u32 %s138, 1
          %s403 = scalar_lea.sflag [#allocation3], %s402
          %s404 = sand.u32 %s138, 1
          %s405 = scalar_lea.vmem [#allocation2], %s404
          %406 = dma.done %s403, 16
        $region52: #{densenet_forward.11} parent=47 // pred_fallthru
          _
      $region48: #{densenet_forward.11} parent=5 // pred_fallthru
        _
    $region6: #{densenet_forward.11} parent=1 // loop_footer
      %s18 = sadd.s32 1, %s14
    $region7: #{densenet_forward.11} parent=1 // loop_footer_branch
      %13 = sbr.rel target = $region3
    $region8: #{densenet_forward.11} parent=1 // loop_exit
      _
    %407 = vsyncpa [#allocation3], 1
    %s408 = scalar_lea.sflag [#allocation3], 1
    %409 = vsyncpa %s408, 1

// kernel: densenet_forward.10
$region0: #{densenet_forward.10}
  #allocation0 [shape = 'u32[]', space=smem, size = 0x4, offset = 0x4, fixed_abs, tag = 'smem constant byte address 0x4 - core index']
  #allocation1 [shape = 'u32[144,128]{1,0:T(1,128)}', space=vmem, size = 0x12000, scoped, tag = 'internal scratch']
  #allocation2 [shape = 'f32[6,6,128]{2,1,0:T(8,128)}', space=vmem, size = 0x6000, scoped, tag = 'scratch operand']
  #allocation3 [shape = 'bf16[16,1152]{1,0:T(16,128)(2,1)}', space=vmem, size = 0x9000, scoped, tag = 'scratch operand']
  %s0 = inlined_call_operand.vmem [shape: f32[2,6,6,128], index: 0, kind: input, shape index: {}]
  %s1 = inlined_call_operand.vmem [shape: f32[1,128], index: 1, kind: input, shape index: {}]
  %s2 = inlined_call_operand.vmem [shape: f32[1,128], index: 2, kind: input, shape index: {}]
  %s3 = inlined_call_operand.vmem [shape: bf16[1,1152,128], index: 3, kind: input, shape index: {}]
  %s4 = inlined_call_operand.vmem [shape: f32[2,6,6,128], index: 4, kind: output, shape index: {}]
  %s5 = sld [smem:[#allocation0]]
  $region49: #{densenet_forward.10} parent=0
    _
  %s7 = ssub.s32 1, %s5
  %s8 = scalar_select 0, %s7, %s5
  loop: start=0, step=1, limit=4
  $region2: #{densenet_forward.10} parent=0 // loop_pre_header
    _
  $region3: #{densenet_forward.10} parent=0 // loop_header
    %s10 = sphi 0, %s14
    %p11 = scmp.ge.s32.totalorder %s10, 4
    %s20 = sphi 0, %s22
    %s23 = sphi 0, %s20
    %s24 = sphi 0, %s23
    %s40 = sphi 0, %s24
    %s44 = sphi 0, %s44
    %s46 = sphi 0, %s44
    %s47 = sphi 0, %s46
    %s61 = sphi 0, %s47
    %s65 = sphi 0, %s65
    %s67 = sphi 0, %s65
    %s68 = sphi 0, %s67
    %s82 = sphi 0, %s68
    %s86 = sphi 0, %s86
    %s88 = sphi 0, %s86
    %s89 = sphi 0, %s88
    %s103 = sphi 0, %s89
    %s109 = sphi 0, %s111
    %s112 = sphi 0, %s109
    %s113 = sphi 0, %s112
    %s129 = sphi 0, %s113
  $region4: #{densenet_forward.10} parent=0 // loop_header_branch
    %13 = sbr.rel (%p11) target = $region8
  $region5: #{densenet_forward.10} parent=0 // loop_body
    %s15 = ssub.s32 %s10, 1
    %s16 = ssub.s32 %s10, 2
    %s17 = sadd.s32 %s10, 1
    %s18 = ssub.s32 %s10, %s17
    %p19 = scmp.eq.s32.totalorder %s18, 0
    %s21 = sadd.s32 %s20, 1
    %s22 = scalar_select %p19, %s20, %s21
    %p25 = pneg %p19
    %p26 = scmp.eq.s32.totalorder %s10, 1
    %p27 = por %p25, %p26
    %p28 = scmp.ne.s32.totalorder %s20, %s23
    %p29 = scmp.eq.s32.totalorder %s10, 0
    %p30 = por %p28, %p29
    %p31 = scmp.ne.s32.totalorder %s20, %s23
    %p32 = scmp.eq.s32.totalorder %s15, 1
    %p33 = por %p31, %p32
    %p34 = scmp.ne.s32.totalorder %s23, %s24
    %p35 = scmp.eq.s32.totalorder %s15, 0
    %p36 = por %p34, %p35
    %p37 = scmp.ne.s32.totalorder %s23, %s24
    %p38 = scmp.eq.s32.totalorder %s16, 1
    %p39 = por %p37, %p38
    %p41 = scmp.ne.s32.totalorder %s24, %s40
    %p42 = scmp.eq.s32.totalorder %s16, 0
    %p43 = por %p41, %p42
    %s45 = sadd.s32 %s44, 1
    %p48 = scmp.eq.s32.totalorder %s10, 1
    %p49 = scmp.ne.s32.totalorder %s44, %s46
    %p50 = scmp.eq.s32.totalorder %s10, 0
    %p51 = por %p49, %p50
    %p52 = scmp.ne.s32.totalorder %s44, %s46
    %p53 = scmp.eq.s32.totalorder %s15, 1
    %p54 = por %p52, %p53
    %p55 = scmp.ne.s32.totalorder %s46, %s47
    %p56 = scmp.eq.s32.totalorder %s15, 0
    %p57 = por %p55, %p56
    %p58 = scmp.ne.s32.totalorder %s46, %s47
    %p59 = scmp.eq.s32.totalorder %s16, 1
    %p60 = por %p58, %p59
    %p62 = scmp.ne.s32.totalorder %s47, %s61
    %p63 = scmp.eq.s32.totalorder %s16, 0
    %p64 = por %p62, %p63
    %s66 = sadd.s32 %s65, 1
    %p69 = scmp.eq.s32.totalorder %s10, 1
    %p70 = scmp.ne.s32.totalorder %s65, %s67
    %p71 = scmp.eq.s32.totalorder %s10, 0
    %p72 = por %p70, %p71
    %p73 = scmp.ne.s32.totalorder %s65, %s67
    %p74 = scmp.eq.s32.totalorder %s15, 1
    %p75 = por %p73, %p74
    %p76 = scmp.ne.s32.totalorder %s67, %s68
    %p77 = scmp.eq.s32.totalorder %s15, 0
    %p78 = por %p76, %p77
    %p79 = scmp.ne.s32.totalorder %s67, %s68
    %p80 = scmp.eq.s32.totalorder %s16, 1
    %p81 = por %p79, %p80
    %p83 = scmp.ne.s32.totalorder %s68, %s82
    %p84 = scmp.eq.s32.totalorder %s16, 0
    %p85 = por %p83, %p84
    %s87 = sadd.s32 %s86, 1
    %p90 = scmp.eq.s32.totalorder %s10, 1
    %p91 = scmp.ne.s32.totalorder %s86, %s88
    %p92 = scmp.eq.s32.totalorder %s10, 0
    %p93 = por %p91, %p92
    %p94 = scmp.ne.s32.totalorder %s86, %s88
    %p95 = scmp.eq.s32.totalorder %s15, 1
    %p96 = por %p94, %p95
    %p97 = scmp.ne.s32.totalorder %s88, %s89
    %p98 = scmp.eq.s32.totalorder %s15, 0
    %p99 = por %p97, %p98
    %p100 = scmp.ne.s32.totalorder %s88, %s89
    %p101 = scmp.eq.s32.totalorder %s16, 1
    %p102 = por %p100, %p101
    %p104 = scmp.ne.s32.totalorder %s89, %s103
    %p105 = scmp.eq.s32.totalorder %s16, 0
    %p106 = por %p104, %p105
    %s107 = ssub.s32 %s10, %s17
    %p108 = scmp.eq.s32.totalorder %s107, 0
    %s110 = sadd.s32 %s109, 1
    %s111 = scalar_select %p108, %s109, %s110
    %p114 = pneg %p108
    %p115 = scmp.eq.s32.totalorder %s10, 1
    %p116 = por %p114, %p115
    %p117 = scmp.ne.s32.totalorder %s109, %s112
    %p118 = scmp.eq.s32.totalorder %s10, 0
    %p119 = por %p117, %p118
    %p120 = scmp.ne.s32.totalorder %s109, %s112
    %p121 = scmp.eq.s32.totalorder %s15, 1
    %p122 = por %p120, %p121
    %p123 = scmp.ne.s32.totalorder %s112, %s113
    %p124 = scmp.eq.s32.totalorder %s15, 0
    %p125 = por %p123, %p124
    %p126 = scmp.ne.s32.totalorder %s112, %s113
    %p127 = scmp.eq.s32.totalorder %s16, 1
    %p128 = por %p126, %p127
    %p130 = scmp.ne.s32.totalorder %s113, %s129
    %p131 = scmp.eq.s32.totalorder %s16, 0
    %p132 = por %p130, %p131
    %p133 = scmp.le.s32.totalorder 1, %s10
    %p134 = scmp.lt.s32.totalorder %s10, 3
    %p135 = pnand %p133, %p134
    %p136 = pneg %p135
    // Predicated region
    $region9: #{densenet_forward.10} parent=5 // pred_check
      _
    $region10: #{densenet_forward.10} parent=5 // pred_check_branch
      %138 = sbr.rel (%p135) target = $region12
    $region11: #{densenet_forward.10} parent=5 // pred_region
      %s139 = ssub.s32 %s10, 1
      // Predicated region
      $region13: #{densenet_forward.10} parent=11 // pred_check
        %p140 = pneg %p57
      $region14: #{densenet_forward.10} parent=11 // pred_check_branch
        %142 = sbr.rel (%p140) target = $region16
      $region15: #{densenet_forward.10} parent=11 // pred_region
        _
      $region16: #{densenet_forward.10} parent=11 // pred_fallthru
        _
      // Predicated region
      $region17: #{densenet_forward.10} parent=11 // pred_check
        %p143 = pneg %p78
      $region18: #{densenet_forward.10} parent=11 // pred_check_branch
        %145 = sbr.rel (%p143) target = $region20
      $region19: #{densenet_forward.10} parent=11 // pred_region
        _
      $region20: #{densenet_forward.10} parent=11 // pred_fallthru
        _
      // Predicated region
      $region21: #{densenet_forward.10} parent=11 // pred_check
        %p146 = pneg %p99
      $region22: #{densenet_forward.10} parent=11 // pred_check_branch
        %148 = sbr.rel (%p146) target = $region24
      $region23: #{densenet_forward.10} parent=11 // pred_region
        _
      $region24: #{densenet_forward.10} parent=11 // pred_fallthru
        _
    $region12: #{densenet_forward.10} parent=5 // pred_fallthru
      _
    %p149 = scmp.lt.s32.totalorder %s10, 2
    // Predicated region
    $region25: #{densenet_forward.10} parent=5 // pred_check
      %p150 = pneg %p149
    $region26: #{densenet_forward.10} parent=5 // pred_check_branch
      %152 = sbr.rel (%p150) target = $region28
    $region27: #{densenet_forward.10} parent=5 // pred_region
      // Predicated region
      $region29: #{densenet_forward.10} parent=27 // pred_check
        %p153 = pneg %p30
      $region30: #{densenet_forward.10} parent=27 // pred_check_branch
        %155 = sbr.rel (%p153) target = $region32
      $region31: #{densenet_forward.10} parent=27 // pred_region
        %p156 = scmp.lt.s32.totalorder %s10, 1
        %s157 = scalar_select %p156, %s10, 1
        %s158 = smul.addr %s157, 6
        %s159 = smul.addr %s158, 8
        %s160 = scalar_lea.vmem %s0, %s159
      $region32: #{densenet_forward.10} parent=27 // pred_fallthru
        _
    $region28: #{densenet_forward.10} parent=5 // pred_fallthru
      _
    %p161 = scmp.le.s32.totalorder 1, %s10
    %p162 = scmp.lt.s32.totalorder %s10, 3
    %p163 = pnand %p161, %p162
    %p164 = pneg %p163
    // Predicated region
    $region33: #{densenet_forward.10} parent=5 // pred_check
      _
    $region34: #{densenet_forward.10} parent=5 // pred_check_branch
      %166 = sbr.rel (%p163) target = $region36
    $region35: #{densenet_forward.10} parent=5 // pred_region
      %s167 = ssub.s32 %s10, 1
      %p168 = scmp.lt.s32.totalorder %s15, 1
      %s169 = scalar_select %p168, %s15, 1
      %s170 = smul.addr %s169, 6
      %s171 = smul.addr %s170, 8
      %s172 = scalar_lea.vmem %s0, %s171
      %p173 = pneg %p36
      %p174 = pneg %p33
      %p175 = pneg %p57
      %p176 = pneg %p54
      %p177 = pneg %p78
      %p178 = pneg %p75
      %p179 = pneg %p99
      %p180 = pneg %p96
      %p181 = pneg %p125
      %p182 = pneg %p122
      %p183 = scmp.lt.s32.totalorder %s15, 1
      %s184 = scalar_select %p183, %s15, 1
      %s185 = smul.addr %s184, 6
      %s186 = smul.addr %s185, 8
      %s187 = scalar_lea.vmem %s4, %s186
      %p188 = scmp.lt.s32.totalorder %s15, 1
      %s189 = scalar_select %p188, %s15, 1
      %s190 = smul.addr %s189, 6
      %s191 = smul.addr %s190, 8
      %s192 = scalar_lea.vmem %s0, %s191
      %p193 = scmp.lt.s32.totalorder %s15, 1
      %s194 = scalar_select %p193, %s15, 1
      %s195 = smul.addr %s194, 6
      %s196 = smul.addr %s195, 8
      %s197 = scalar_lea.vmem %s4, %s196
      %v199 = vld [vmem:[%s192] sm:$0x3f]
      %v200 = vld [vmem:[%s192 + $0x8] sm:$0x3f]
      %v201 = vld [vmem:[%s192 + $0x10] sm:$0x3f]
      %v202 = vld [vmem:[%s192 + $0x18] sm:$0x3f]
      %v203 = vld [vmem:[%s192 + $0x20] sm:$0x3f]
      %v204 = vld [vmem:[%s192 + $0x28] sm:$0x3f]
      %205 = vst [vmem:[%s197] sm:$0x3f] %v199
      %206 = vst [vmem:[%s197 + $0x8] sm:$0x3f] %v200
      %207 = vst [vmem:[%s197 + $0x10] sm:$0x3f] %v201
      %208 = vst [vmem:[%s197 + $0x18] sm:$0x3f] %v202
      %209 = vst [vmem:[%s197 + $0x20] sm:$0x3f] %v203
      %210 = vst [vmem:[%s197 + $0x28] sm:$0x3f] %v204
      %211 = vst [vmem:[#allocation2] sm:$0x3f] 0.0
      %212 = vst [vmem:[#allocation2 + $0x8] sm:$0x3f] 0.0
      %213 = vst [vmem:[#allocation2 + $0x10] sm:$0x3f] 0.0
      %214 = vst [vmem:[#allocation2 + $0x18] sm:$0x3f] 0.0
      %215 = vst [vmem:[#allocation2 + $0x20] sm:$0x3f] 0.0
      %216 = vst [vmem:[#allocation2 + $0x28] sm:$0x3f] 0.0
      %s217 = scalar_lea.vmem %s197, 8
      %v218 = vld [vmem:[%s217 + $0x1] sm:$0xf]
      %v219 = vld [vmem:[%s217 + $0x9] sm:$0xf]
      %v220 = vld [vmem:[%s217 + $0x11] sm:$0xf]
      %v221 = vld [vmem:[%s217 + $0x19] sm:$0xf]
      %v222 = vld [vmem:[%s1] sm:$0x1]
      %v224 = vlaneseq
      %v225 = vshrl.u32 %v224, 7
      %v226 = vsub.s32 0, %v225
      %v227 = vrot.slane %v222, %v226
      %v229 = vmul.f32 %v218, %v227
      %v230 = vmul.f32 %v219, %v227
      %v231 = vmul.f32 %v220, %v227
      %v232 = vmul.f32 %v221, %v227
      %v233 = vld [vmem:[%s2] sm:$0x1]
      %v235 = vlaneseq
      %v236 = vshrl.u32 %v235, 7
      %v237 = vsub.s32 0, %v236
      %v238 = vrot.slane %v233, %v237
      %v240 = vadd.f32 %v229, %v238
      %v241 = vadd.f32 %v230, %v238
      %v242 = vadd.f32 %v231, %v238
      %v243 = vadd.f32 %v232, %v238
      %v244 = vmax.f32 %v240, 0.0
      %v245 = vmax.f32 %v241, 0.0
      %v246 = vmax.f32 %v242, 0.0
      %v247 = vmax.f32 %v243, 0.0
      %s248 = scalar_lea.vmem [#allocation2], 8
      %249 = vst [vmem:[%s248 + $0x1] sm:$0xf] %v244
      %250 = vst [vmem:[%s248 + $0x9] sm:$0xf] %v245
      %251 = vst [vmem:[%s248 + $0x11] sm:$0xf] %v246
      %252 = vst [vmem:[%s248 + $0x19] sm:$0xf] %v247
      %v253 = vld [vmem:[#allocation2] sm:$0xf]
      %v254 = vld [vmem:[#allocation2 + $0x8] sm:$0xf]
      %v255 = vld [vmem:[#allocation2 + $0x10] sm:$0xf]
      %v256 = vld [vmem:[#allocation2 + $0x18] sm:$0xf]
      %v261 = vcombine.low %v253, %v254
      %v262 = vcombine.low %v255, %v256
      %v265 = vpack.c.bf16 %v262, %v261
      %266 = vst [vmem:[#allocation3] sm:$0xff] %v265
      %v267 = vld [vmem:[#allocation2 + $0x1] sm:$0xf]
      %v268 = vld [vmem:[#allocation2 + $0x9] sm:$0xf]
      %v269 = vld [vmem:[#allocation2 + $0x11] sm:$0xf]
      %v270 = vld [vmem:[#allocation2 + $0x19] sm:$0xf]
      %v275 = vcombine.low %v267, %v268
      %v276 = vcombine.low %v269, %v270
      %v279 = vpack.c.bf16 %v276, %v275
      %280 = vst [vmem:[#allocation3 + $0x8] sm:$0xff] %v279
      %v281 = vld [vmem:[#allocation2 + $0x2] sm:$0xf]
      %v282 = vld [vmem:[#allocation2 + $0xa] sm:$0xf]
      %v283 = vld [vmem:[#allocation2 + $0x12] sm:$0xf]
      %v284 = vld [vmem:[#allocation2 + $0x1a] sm:$0xf]
      %v289 = vcombine.low %v281, %v282
      %v290 = vcombine.low %v283, %v284
      %v293 = vpack.c.bf16 %v290, %v289
      %294 = vst [vmem:[#allocation3 + $0x10] sm:$0xff] %v293
      %v295 = vld [vmem:[%s248] sm:$0xf]
      %v296 = vld [vmem:[%s248 + $0x8] sm:$0xf]
      %v297 = vld [vmem:[%s248 + $0x10] sm:$0xf]
      %v298 = vld [vmem:[%s248 + $0x18] sm:$0xf]
      %v303 = vcombine.low %v295, %v296
      %v304 = vcombine.low %v297, %v298
      %v307 = vpack.c.bf16 %v304, %v303
      %308 = vst [vmem:[#allocation3 + $0x18] sm:$0xff] %v307
      %v309 = vld [vmem:[%s248 + $0x1] sm:$0xf]
      %v310 = vld [vmem:[%s248 + $0x9] sm:$0xf]
      %v311 = vld [vmem:[%s248 + $0x11] sm:$0xf]
      %v312 = vld [vmem:[%s248 + $0x19] sm:$0xf]
      %v317 = vcombine.low %v309, %v310
      %v318 = vcombine.low %v311, %v312
      %v321 = vpack.c.bf16 %v318, %v317
      %322 = vst [vmem:[#allocation3 + $0x20] sm:$0xff] %v321
      %v323 = vld [vmem:[%s248 + $0x2] sm:$0xf]
      %v324 = vld [vmem:[%s248 + $0xa] sm:$0xf]
      %v325 = vld [vmem:[%s248 + $0x12] sm:$0xf]
      %v326 = vld [vmem:[%s248 + $0x1a] sm:$0xf]
      %v331 = vcombine.low %v323, %v324
      %v332 = vcombine.low %v325, %v326
      %v335 = vpack.c.bf16 %v332, %v331
      %336 = vst [vmem:[#allocation3 + $0x28] sm:$0xff] %v335
      %s337 = scalar_lea.vmem [#allocation2], 16
      %v338 = vld [vmem:[%s337] sm:$0xf]
      %v339 = vld [vmem:[%s337 + $0x8] sm:$0xf]
      %v340 = vld [vmem:[%s337 + $0x10] sm:$0xf]
      %v341 = vld [vmem:[%s337 + $0x18] sm:$0xf]
      %v346 = vcombine.low %v338, %v339
      %v347 = vcombine.low %v340, %v341
      %v350 = vpack.c.bf16 %v347, %v346
      %351 = vst [vmem:[#allocation3 + $0x30] sm:$0xff] %v350
      %v352 = vld [vmem:[%s337 + $0x1] sm:$0xf]
      %v353 = vld [vmem:[%s337 + $0x9] sm:$0xf]
      %v354 = vld [vmem:[%s337 + $0x11] sm:$0xf]
      %v355 = vld [vmem:[%s337 + $0x19] sm:$0xf]
      %v360 = vcombine.low %v352, %v353
      %v361 = vcombine.low %v354, %v355
      %v364 = vpack.c.bf16 %v361, %v360
      %365 = vst [vmem:[#allocation3 + $0x38] sm:$0xff] %v364
      %v366 = vld [vmem:[%s337 + $0x2] sm:$0xf]
      %v367 = vld [vmem:[%s337 + $0xa] sm:$0xf]
      %v368 = vld [vmem:[%s337 + $0x12] sm:$0xf]
      %v369 = vld [vmem:[%s337 + $0x1a] sm:$0xf]
      %v374 = vcombine.low %v366, %v367
      %v375 = vcombine.low %v368, %v369
      %v378 = vpack.c.bf16 %v375, %v374
      %379 = vst [vmem:[#allocation3 + $0x40] sm:$0xff] %v378
      %v380 = vld [vmem:[#allocation3] sm:$0xff]
      %v381 = vld [vmem:[#allocation3 + $0x8] sm:$0xff]
      %v382 = vld [vmem:[#allocation3 + $0x10] sm:$0xff]
      %v383 = vld [vmem:[#allocation3 + $0x18] sm:$0xff]
      %v384 = vld [vmem:[#allocation3 + $0x20] sm:$0xff]
      %v385 = vld [vmem:[#allocation3 + $0x28] sm:$0xff]
      %v386 = vld [vmem:[#allocation3 + $0x30] sm:$0xff]
      %v387 = vld [vmem:[#allocation3 + $0x38] sm:$0xff]
      %v388 = vld [vmem:[#allocation3 + $0x40] sm:$0xff]
      %v389 = vld [vmem:[%s3] sm:$0xf]
      %v390 = vld [vmem:[%s3 + $0x4] sm:$0xf]
      %v391 = vld [vmem:[%s3 + $0x8] sm:$0xf]
      %v392 = vld [vmem:[%s3 + $0xc] sm:$0xf]
      %v393 = vld [vmem:[%s3 + $0x10] sm:$0xf]
      %v394 = vld [vmem:[%s3 + $0x14] sm:$0xf]
      %v395 = vld [vmem:[%s3 + $0x18] sm:$0xf]
      %v396 = vld [vmem:[%s3 + $0x1c] sm:$0xf]
      %v397 = vld [vmem:[%s3 + $0x20] sm:$0xf]
      %v398 = vld [vmem:[%s3 + $0x24] sm:$0xf]
      %v399 = vld [vmem:[%s3 + $0x28] sm:$0xf]
      %v400 = vld [vmem:[%s3 + $0x2c] sm:$0xf]
      %v401 = vld [vmem:[%s3 + $0x30] sm:$0xf]
      %v402 = vld [vmem:[%s3 + $0x34] sm:$0xf]
      %v403 = vld [vmem:[%s3 + $0x38] sm:$0xf]
      %v404 = vld [vmem:[%s3 + $0x3c] sm:$0xf]
      %v405 = vld [vmem:[%s3 + $0x40] sm:$0xf]
      %v406 = vld [vmem:[%s3 + $0x44] sm:$0xf]
      %v407 = vld [vmem:[%s3 + $0x48] sm:$0xf]
      %v408 = vld [vmem:[%s3 + $0x4c] sm:$0xf]
      %v409 = vld [vmem:[%s3 + $0x50] sm:$0xf]
      %v410 = vld [vmem:[%s3 + $0x54] sm:$0xf]
      %v411 = vld [vmem:[%s3 + $0x58] sm:$0xf]
      %v412 = vld [vmem:[%s3 + $0x5c] sm:$0xf]
      %v413 = vld [vmem:[%s3 + $0x60] sm:$0xf]
      %v414 = vld [vmem:[%s3 + $0x64] sm:$0xf]
      %v415 = vld [vmem:[%s3 + $0x68] sm:$0xf]
      %v416 = vld [vmem:[%s3 + $0x6c] sm:$0xf]
      %v417 = vld [vmem:[%s3 + $0x70] sm:$0xf]
      %v418 = vld [vmem:[%s3 + $0x74] sm:$0xf]
      %v419 = vld [vmem:[%s3 + $0x78] sm:$0xf]
      %v420 = vld [vmem:[%s3 + $0x7c] sm:$0xf]
      %v421 = vld [vmem:[%s3 + $0x80] sm:$0xf]
      %v422 = vld [vmem:[%s3 + $0x84] sm:$0xf]
      %v423 = vld [vmem:[%s3 + $0x88] sm:$0xf]
      %v424 = vld [vmem:[%s3 + $0x8c] sm:$0xf]
      %v425 = vld [vmem:[%s3 + $0x90] sm:$0xf]
      %v426 = vld [vmem:[%s3 + $0x94] sm:$0xf]
      %v427 = vld [vmem:[%s3 + $0x98] sm:$0xf]
      %v428 = vld [vmem:[%s3 + $0x9c] sm:$0xf]
      %v429 = vld [vmem:[%s3 + $0xa0] sm:$0xf]
      %v430 = vld [vmem:[%s3 + $0xa4] sm:$0xf]
      %v431 = vld [vmem:[%s3 + $0xa8] sm:$0xf]
      %v432 = vld [vmem:[%s3 + $0xac] sm:$0xf]
      %v433 = vld [vmem:[%s3 + $0xb0] sm:$0xf]
      %v434 = vld [vmem:[%s3 + $0xb4] sm:$0xf]
      %v435 = vld [vmem:[%s3 + $0xb8] sm:$0xf]
      %v436 = vld [vmem:[%s3 + $0xbc] sm:$0xf]
      %v437 = vld [vmem:[%s3 + $0xc0] sm:$0xf]
      %v438 = vld [vmem:[%s3 + $0xc4] sm:$0xf]
      %v439 = vld [vmem:[%s3 + $0xc8] sm:$0xf]
      %v440 = vld [vmem:[%s3 + $0xcc] sm:$0xf]
      %v441 = vld [vmem:[%s3 + $0xd0] sm:$0xf]
      %v442 = vld [vmem:[%s3 + $0xd4] sm:$0xf]
      %v443 = vld [vmem:[%s3 + $0xd8] sm:$0xf]
      %v444 = vld [vmem:[%s3 + $0xdc] sm:$0xf]
      %v445 = vld [vmem:[%s3 + $0xe0] sm:$0xf]
      %v446 = vld [vmem:[%s3 + $0xe4] sm:$0xf]
      %v447 = vld [vmem:[%s3 + $0xe8] sm:$0xf]
      %v448 = vld [vmem:[%s3 + $0xec] sm:$0xf]
      %v449 = vld [vmem:[%s3 + $0xf0] sm:$0xf]
      %v450 = vld [vmem:[%s3 + $0xf4] sm:$0xf]
      %v451 = vld [vmem:[%s3 + $0xf8] sm:$0xf]
      %v452 = vld [vmem:[%s3 + $0xfc] sm:$0xf]
      %v453 = vld [vmem:[%s3 + $0x100] sm:$0xf]
      %v454 = vld [vmem:[%s3 + $0x104] sm:$0xf]
      %v455 = vld [vmem:[%s3 + $0x108] sm:$0xf]
      %v456 = vld [vmem:[%s3 + $0x10c] sm:$0xf]
      %v457 = vld [vmem:[%s3 + $0x110] sm:$0xf]
      %v458 = vld [vmem:[%s3 + $0x114] sm:$0xf]
      %v459 = vld [vmem:[%s3 + $0x118] sm:$0xf]
      %v460 = vld [vmem:[%s3 + $0x11c] sm:$0xf]
      %v461 = vld [vmem:[%s3 + $0x120] sm:$0xf]
      %v462 = vld [vmem:[%s3 + $0x124] sm:$0xf]
      %v463 = vld [vmem:[%s3 + $0x128] sm:$0xf]
      %v464 = vld [vmem:[%s3 + $0x12c] sm:$0xf]
      %v465 = vld [vmem:[%s3 + $0x130] sm:$0xf]
      %v466 = vld [vmem:[%s3 + $0x134] sm:$0xf]
      %v467 = vld [vmem:[%s3 + $0x138] sm:$0xf]
      %v468 = vld [vmem:[%s3 + $0x13c] sm:$0xf]
      %v469 = vld [vmem:[%s3 + $0x140] sm:$0xf]
      %v470 = vld [vmem:[%s3 + $0x144] sm:$0xf]
      %v471 = vld [vmem:[%s3 + $0x148] sm:$0xf]
      %v472 = vld [vmem:[%s3 + $0x14c] sm:$0xf]
      %v473 = vld [vmem:[%s3 + $0x150] sm:$0xf]
      %v474 = vld [vmem:[%s3 + $0x154] sm:$0xf]
      %v475 = vld [vmem:[%s3 + $0x158] sm:$0xf]
      %v476 = vld [vmem:[%s3 + $0x15c] sm:$0xf]
      %v477 = vld [vmem:[%s3 + $0x160] sm:$0xf]
      %v478 = vld [vmem:[%s3 + $0x164] sm:$0xf]
      %v479 = vld [vmem:[%s3 + $0x168] sm:$0xf]
      %v480 = vld [vmem:[%s3 + $0x16c] sm:$0xf]
      %v481 = vld [vmem:[%s3 + $0x170] sm:$0xf]
      %v482 = vld [vmem:[%s3 + $0x174] sm:$0xf]
      %v483 = vld [vmem:[%s3 + $0x178] sm:$0xf]
      %v484 = vld [vmem:[%s3 + $0x17c] sm:$0xf]
      %v485 = vld [vmem:[%s3 + $0x180] sm:$0xf]
      %v486 = vld [vmem:[%s3 + $0x184] sm:$0xf]
      %v487 = vld [vmem:[%s3 + $0x188] sm:$0xf]
      %v488 = vld [vmem:[%s3 + $0x18c] sm:$0xf]
      %v489 = vld [vmem:[%s3 + $0x190] sm:$0xf]
      %v490 = vld [vmem:[%s3 + $0x194] sm:$0xf]
      %v491 = vld [vmem:[%s3 + $0x198] sm:$0xf]
      %v492 = vld [vmem:[%s3 + $0x19c] sm:$0xf]
      %v493 = vld [vmem:[%s3 + $0x1a0] sm:$0xf]
      %v494 = vld [vmem:[%s3 + $0x1a4] sm:$0xf]
      %v495 = vld [vmem:[%s3 + $0x1a8] sm:$0xf]
      %v496 = vld [vmem:[%s3 + $0x1ac] sm:$0xf]
      %v497 = vld [vmem:[%s3 + $0x1b0] sm:$0xf]
      %v498 = vld [vmem:[%s3 + $0x1b4] sm:$0xf]
      %v499 = vld [vmem:[%s3 + $0x1b8] sm:$0xf]
      %v500 = vld [vmem:[%s3 + $0x1bc] sm:$0xf]
      %v501 = vld [vmem:[%s3 + $0x1c0] sm:$0xf]
      %v502 = vld [vmem:[%s3 + $0x1c4] sm:$0xf]
      %v503 = vld [vmem:[%s3 + $0x1c8] sm:$0xf]
      %v504 = vld [vmem:[%s3 + $0x1cc] sm:$0xf]
      %v505 = vld [vmem:[%s3 + $0x1d0] sm:$0xf]
      %v506 = vld [vmem:[%s3 + $0x1d4] sm:$0xf]
      %v507 = vld [vmem:[%s3 + $0x1d8] sm:$0xf]
      %v508 = vld [vmem:[%s3 + $0x1dc] sm:$0xf]
      %v509 = vld [vmem:[%s3 + $0x1e0] sm:$0xf]
      %v510 = vld [vmem:[%s3 + $0x1e4] sm:$0xf]
      %v511 = vld [vmem:[%s3 + $0x1e8] sm:$0xf]
      %v512 = vld [vmem:[%s3 + $0x1ec] sm:$0xf]
      %v513 = vld [vmem:[%s3 + $0x1f0] sm:$0xf]
      %v514 = vld [vmem:[%s3 + $0x1f4] sm:$0xf]
      %v515 = vld [vmem:[%s3 + $0x1f8] sm:$0xf]
      %v516 = vld [vmem:[%s3 + $0x1fc] sm:$0xf]
      %v517 = vld [vmem:[%s3 + $0x200] sm:$0xf]
      %v518 = vld [vmem:[%s3 + $0x204] sm:$0xf]
      %v519 = vld [vmem:[%s3 + $0x208] sm:$0xf]
      %v520 = vld [vmem:[%s3 + $0x20c] sm:$0xf]
      %v521 = vld [vmem:[%s3 + $0x210] sm:$0xf]
      %v522 = vld [vmem:[%s3 + $0x214] sm:$0xf]
      %v523 = vld [vmem:[%s3 + $0x218] sm:$0xf]
      %v524 = vld [vmem:[%s3 + $0x21c] sm:$0xf]
      %v525 = vld [vmem:[%s3 + $0x220] sm:$0xf]
      %v526 = vld [vmem:[%s3 + $0x224] sm:$0xf]
      %v527 = vld [vmem:[%s3 + $0x228] sm:$0xf]
      %v528 = vld [vmem:[%s3 + $0x22c] sm:$0xf]
      %v529 = vld [vmem:[%s3 + $0x230] sm:$0xf]
      %v530 = vld [vmem:[%s3 + $0x234] sm:$0xf]
      %v531 = vld [vmem:[%s3 + $0x238] sm:$0xf]
      %v532 = vld [vmem:[%s3 + $0x23c] sm:$0xf]
      %v677 = vunpack.c.l.b16 %v389
      %v678 = vunpack.c.l.b16 %v390
      %v679 = vunpack.c.l.b16 %v391
      %v680 = vunpack.c.l.b16 %v392
      %v681 = vunpack.c.l.b16 %v393
      %v682 = vunpack.c.l.b16 %v394
      %v683 = vunpack.c.l.b16 %v395
      %v684 = vunpack.c.l.b16 %v396
      %v685 = vunpack.c.l.b16 %v397
      %v686 = vunpack.c.l.b16 %v398
      %v687 = vunpack.c.l.b16 %v399
      %v688 = vunpack.c.l.b16 %v400
      %v689 = vunpack.c.l.b16 %v401
      %v690 = vunpack.c.l.b16 %v402
      %v691 = vunpack.c.l.b16 %v403
      %v692 = vunpack.c.l.b16 %v404
      %v693 = vunpack.c.l.b16 %v405
      %v694 = vunpack.c.l.b16 %v406
      %v695 = vunpack.c.l.b16 %v407
      %v696 = vunpack.c.l.b16 %v408
      %v697 = vunpack.c.l.b16 %v409
      %v698 = vunpack.c.l.b16 %v410
      %v699 = vunpack.c.l.b16 %v411
      %v700 = vunpack.c.l.b16 %v412
      %v701 = vunpack.c.l.b16 %v413
      %v702 = vunpack.c.l.b16 %v414
      %v703 = vunpack.c.l.b16 %v415
      %v704 = vunpack.c.l.b16 %v416
      %v705 = vunpack.c.l.b16 %v417
      %v706 = vunpack.c.l.b16 %v418
      %v707 = vunpack.c.l.b16 %v419
      %v708 = vunpack.c.l.b16 %v420
      %v709 = vunpack.c.l.b16 %v421
      %v710 = vunpack.c.l.b16 %v422
      %v711 = vunpack.c.l.b16 %v423
      %v712 = vunpack.c.l.b16 %v424
      %v713 = vunpack.c.l.b16 %v425
      %v714 = vunpack.c.l.b16 %v426
      %v715 = vunpack.c.l.b16 %v427
      %v716 = vunpack.c.l.b16 %v428
      %v717 = vunpack.c.l.b16 %v429
      %v718 = vunpack.c.l.b16 %v430
      %v719 = vunpack.c.l.b16 %v431
      %v720 = vunpack.c.l.b16 %v432
      %v721 = vunpack.c.l.b16 %v433
      %v722 = vunpack.c.l.b16 %v434
      %v723 = vunpack.c.l.b16 %v435
      %v724 = vunpack.c.l.b16 %v436
      %v725 = vunpack.c.l.b16 %v437
      %v726 = vunpack.c.l.b16 %v438
      %v727 = vunpack.c.l.b16 %v439
      %v728 = vunpack.c.l.b16 %v440
      %v729 = vunpack.c.l.b16 %v441
      %v730 = vunpack.c.l.b16 %v442
      %v731 = vunpack.c.l.b16 %v443
      %v732 = vunpack.c.l.b16 %v444
      %v733 = vunpack.c.l.b16 %v445
      %v734 = vunpack.c.l.b16 %v446
      %v735 = vunpack.c.l.b16 %v447
      %v736 = vunpack.c.l.b16 %v448
      %v737 = vunpack.c.l.b16 %v449
      %v738 = vunpack.c.l.b16 %v450
      %v739 = vunpack.c.l.b16 %v451
      %v740 = vunpack.c.l.b16 %v452
      %v741 = vunpack.c.l.b16 %v453
      %v742 = vunpack.c.l.b16 %v454
      %v743 = vunpack.c.l.b16 %v455
      %v744 = vunpack.c.l.b16 %v456
      %v745 = vunpack.c.l.b16 %v457
      %v746 = vunpack.c.l.b16 %v458
      %v747 = vunpack.c.l.b16 %v459
      %v748 = vunpack.c.l.b16 %v460
      %v749 = vunpack.c.l.b16 %v461
      %v750 = vunpack.c.l.b16 %v462
      %v751 = vunpack.c.l.b16 %v463
      %v752 = vunpack.c.l.b16 %v464
      %v753 = vunpack.c.l.b16 %v465
      %v754 = vunpack.c.l.b16 %v466
      %v755 = vunpack.c.l.b16 %v467
      %v756 = vunpack.c.l.b16 %v468
      %v757 = vunpack.c.l.b16 %v469
      %v758 = vunpack.c.l.b16 %v470
      %v759 = vunpack.c.l.b16 %v471
      %v760 = vunpack.c.l.b16 %v472
      %v761 = vunpack.c.l.b16 %v473
      %v762 = vunpack.c.l.b16 %v474
      %v763 = vunpack.c.l.b16 %v475
      %v764 = vunpack.c.l.b16 %v476
      %v765 = vunpack.c.l.b16 %v477
      %v766 = vunpack.c.l.b16 %v478
      %v767 = vunpack.c.l.b16 %v479
      %v768 = vunpack.c.l.b16 %v480
      %v769 = vunpack.c.l.b16 %v481
      %v770 = vunpack.c.l.b16 %v482
      %v771 = vunpack.c.l.b16 %v483
      %v772 = vunpack.c.l.b16 %v484
      %v773 = vunpack.c.l.b16 %v485
      %v774 = vunpack.c.l.b16 %v486
      %v775 = vunpack.c.l.b16 %v487
      %v776 = vunpack.c.l.b16 %v488
      %v777 = vunpack.c.l.b16 %v489
      %v778 = vunpack.c.l.b16 %v490
      %v779 = vunpack.c.l.b16 %v491
      %v780 = vunpack.c.l.b16 %v492
      %v781 = vunpack.c.l.b16 %v493
      %v782 = vunpack.c.l.b16 %v494
      %v783 = vunpack.c.l.b16 %v495
      %v784 = vunpack.c.l.b16 %v496
      %v785 = vunpack.c.l.b16 %v497
      %v786 = vunpack.c.l.b16 %v498
      %v787 = vunpack.c.l.b16 %v499
      %v788 = vunpack.c.l.b16 %v500
      %v789 = vunpack.c.l.b16 %v501
      %v790 = vunpack.c.l.b16 %v502
      %v791 = vunpack.c.l.b16 %v503
      %v792 = vunpack.c.l.b16 %v504
      %v793 = vunpack.c.l.b16 %v505
      %v794 = vunpack.c.l.b16 %v506
      %v795 = vunpack.c.l.b16 %v507
      %v796 = vunpack.c.l.b16 %v508
      %v797 = vunpack.c.l.b16 %v509
      %v798 = vunpack.c.l.b16 %v510
      %v799 = vunpack.c.l.b16 %v511
      %v800 = vunpack.c.l.b16 %v512
      %v801 = vunpack.c.l.b16 %v513
      %v802 = vunpack.c.l.b16 %v514
      %v803 = vunpack.c.l.b16 %v515
      %v804 = vunpack.c.l.b16 %v516
      %v805 = vunpack.c.l.b16 %v517
      %v806 = vunpack.c.l.b16 %v518
      %v807 = vunpack.c.l.b16 %v519
      %v808 = vunpack.c.l.b16 %v520
      %v809 = vunpack.c.l.b16 %v521
      %v810 = vunpack.c.l.b16 %v522
      %v811 = vunpack.c.l.b16 %v523
      %v812 = vunpack.c.l.b16 %v524
      %v813 = vunpack.c.l.b16 %v525
      %v814 = vunpack.c.l.b16 %v526
      %v815 = vunpack.c.l.b16 %v527
      %v816 = vunpack.c.l.b16 %v528
      %v817 = vunpack.c.l.b16 %v529
      %v818 = vunpack.c.l.b16 %v530
      %v819 = vunpack.c.l.b16 %v531
      %v820 = vunpack.c.l.b16 %v532
      %v821 = vpack.c.b16 %v678, %v677
      %v822 = vpack.c.b16 %v680, %v679
      %v823 = vpack.c.b16 %v682, %v681
      %v824 = vpack.c.b16 %v684, %v683
      %v825 = vpack.c.b16 %v686, %v685
      %v826 = vpack.c.b16 %v688, %v687
      %v827 = vpack.c.b16 %v690, %v689
      %v828 = vpack.c.b16 %v692, %v691
      %v829 = vpack.c.b16 %v694, %v693
      %v830 = vpack.c.b16 %v696, %v695
      %v831 = vpack.c.b16 %v698, %v697
      %v832 = vpack.c.b16 %v700, %v699
      %v833 = vpack.c.b16 %v702, %v701
      %v834 = vpack.c.b16 %v704, %v703
      %v835 = vpack.c.b16 %v706, %v705
      %v836 = vpack.c.b16 %v708, %v707
      %v837 = vpack.c.b16 %v710, %v709
      %v838 = vpack.c.b16 %v712, %v711
      %v839 = vpack.c.b16 %v714, %v713
      %v840 = vpack.c.b16 %v716, %v715
      %v841 = vpack.c.b16 %v718, %v717
      %v842 = vpack.c.b16 %v720, %v719
      %v843 = vpack.c.b16 %v722, %v721
      %v844 = vpack.c.b16 %v724, %v723
      %v845 = vpack.c.b16 %v726, %v725
      %v846 = vpack.c.b16 %v728, %v727
      %v847 = vpack.c.b16 %v730, %v729
      %v848 = vpack.c.b16 %v732, %v731
      %v849 = vpack.c.b16 %v734, %v733
      %v850 = vpack.c.b16 %v736, %v735
      %v851 = vpack.c.b16 %v738, %v737
      %v852 = vpack.c.b16 %v740, %v739
      %v853 = vpack.c.b16 %v742, %v741
      %v854 = vpack.c.b16 %v744, %v743
      %v855 = vpack.c.b16 %v746, %v745
      %v856 = vpack.c.b16 %v748, %v747
      %v857 = vpack.c.b16 %v750, %v749
      %v858 = vpack.c.b16 %v752, %v751
      %v859 = vpack.c.b16 %v754, %v753
      %v860 = vpack.c.b16 %v756, %v755
      %v861 = vpack.c.b16 %v758, %v757
      %v862 = vpack.c.b16 %v760, %v759
      %v863 = vpack.c.b16 %v762, %v761
      %v864 = vpack.c.b16 %v764, %v763
      %v865 = vpack.c.b16 %v766, %v765
      %v866 = vpack.c.b16 %v768, %v767
      %v867 = vpack.c.b16 %v770, %v769
      %v868 = vpack.c.b16 %v772, %v771
      %v869 = vpack.c.b16 %v774, %v773
      %v870 = vpack.c.b16 %v776, %v775
      %v871 = vpack.c.b16 %v778, %v777
      %v872 = vpack.c.b16 %v780, %v779
      %v873 = vpack.c.b16 %v782, %v781
      %v874 = vpack.c.b16 %v784, %v783
      %v875 = vpack.c.b16 %v786, %v785
      %v876 = vpack.c.b16 %v788, %v787
      %v877 = vpack.c.b16 %v790, %v789
      %v878 = vpack.c.b16 %v792, %v791
      %v879 = vpack.c.b16 %v794, %v793
      %v880 = vpack.c.b16 %v796, %v795
      %v881 = vpack.c.b16 %v798, %v797
      %v882 = vpack.c.b16 %v800, %v799
      %v883 = vpack.c.b16 %v802, %v801
      %v884 = vpack.c.b16 %v804, %v803
      %v885 = vpack.c.b16 %v806, %v805
      %v886 = vpack.c.b16 %v808, %v807
      %v887 = vpack.c.b16 %v810, %v809
      %v888 = vpack.c.b16 %v812, %v811
      %v889 = vpack.c.b16 %v814, %v813
      %v890 = vpack.c.b16 %v816, %v815
      %v891 = vpack.c.b16 %v818, %v817
      %v892 = vpack.c.b16 %v820, %v819
      %965 = vmatprep.subr.bf16.mxu0 0
      %966 = vmatpush1.bf16.msra.mxu0 %v821
      %967 = vmatprep.subr.bf16.mxu0 0
      %968 = vmatpush1.bf16.msra.mxu0 %v822
      %969 = vmatprep.subr.bf16.mxu0 0
      %970 = vmatpush1.bf16.msra.mxu0 %v823
      %971 = vmatprep.subr.bf16.mxu0 0
      %972 = vmatpush1.bf16.msra.mxu0 %v824
      %973 = vmatprep.subr.bf16.mxu0 0
      %974 = vmatpush1.bf16.msra.mxu0 %v825
      %975 = vmatprep.subr.bf16.mxu0 0
      %976 = vmatpush1.bf16.msra.mxu0 %v826
      %977 = vmatprep.subr.bf16.mxu0 0
      %978 = vmatpush1.bf16.msra.mxu0 %v827
      %979 = vmatprep.subr.bf16.mxu0 0
      %980 = vmatpush1.bf16.msra.mxu0 %v828
      %981 = vmatprep.subr.bf16.mxu0 0
      %982 = vmatpush1.bf16.msra.mxu0 %v829
      %983 = vmatprep.subr.bf16.mxu0 0
      %984 = vmatpush1.bf16.msra.mxu0 %v830
      %985 = vmatprep.subr.bf16.mxu0 0
      %986 = vmatpush1.bf16.msra.mxu0 %v831
      %987 = vmatprep.subr.bf16.mxu0 0
      %988 = vmatpush1.bf16.msra.mxu0 %v832
      %989 = vmatprep.subr.bf16.mxu0 0
      %990 = vmatpush1.bf16.msra.mxu0 %v833
      %991 = vmatprep.subr.bf16.mxu0 0
      %992 = vmatpush1.bf16.msra.mxu0 %v834
      %993 = vmatprep.subr.bf16.mxu0 0
      %994 = vmatpush1.bf16.msra.mxu0 %v835
      %995 = vmatprep.subr.bf16.mxu0 0
      %996 = vmatpush1.bf16.msra.mxu0 %v836
      %997 = vmatprep.mubr.bf16.mxu0 %v381
      %998 = vmatmul.mubr.bf16.gmra.mrb[0].mxu0 %v380
      %v999 = vpop.f32.mrb[0].mxu0
      %v1000 = vadd.f32 0.0, %v999
      %v1001 = vpop.f32.mrb[0].mxu0
      %v1002 = vpop.f32.mrb[0].mxu0
      %v1003 = vadd.f32 0.0, %v1002
      %v1004 = vpop.f32.mrb[0].mxu0
      %1005 = vdwg.mxu0
      %1006 = vmatprep.subr.bf16.mxu0 0
      %1007 = vmatpush1.bf16.msra.mxu0 %v837
      %1008 = vmatprep.subr.bf16.mxu0 0
      %1009 = vmatpush1.bf16.msra.mxu0 %v838
      %1010 = vmatprep.subr.bf16.mxu0 0
      %1011 = vmatpush1.bf16.msra.mxu0 %v839
      %1012 = vmatprep.subr.bf16.mxu0 0
      %1013 = vmatpush1.bf16.msra.mxu0 %v840
      %1014 = vmatprep.subr.bf16.mxu0 0
      %1015 = vmatpush1.bf16.msra.mxu0 %v841
      %1016 = vmatprep.subr.bf16.mxu0 0
      %1017 = vmatpush1.bf16.msra.mxu0 %v842
      %1018 = vmatprep.subr.bf16.mxu0 0
      %1019 = vmatpush1.bf16.msra.mxu0 %v843
      %1020 = vmatprep.subr.bf16.mxu0 0
      %1021 = vmatpush1.bf16.msra.mxu0 %v844
      %1022 = vmatprep.subr.bf16.mxu0 0
      %1023 = vmatpush1.bf16.msra.mxu0 %v845
      %1024 = vmatprep.subr.bf16.mxu0 0
      %1025 = vmatpush1.bf16.msra.mxu0 %v846
      %1026 = vmatprep.subr.bf16.mxu0 0
      %1027 = vmatpush1.bf16.msra.mxu0 %v847
      %1028 = vmatprep.subr.bf16.mxu0 0
      %1029 = vmatpush1.bf16.msra.mxu0 %v848
      %1030 = vmatprep.subr.bf16.mxu0 0
      %1031 = vmatpush1.bf16.msra.mxu0 %v849
      %1032 = vmatprep.subr.bf16.mxu0 0
      %1033 = vmatpush1.bf16.msra.mxu0 %v850
      %1034 = vmatprep.subr.bf16.mxu0 0
      %1035 = vmatpush1.bf16.msra.mxu0 %v851
      %1036 = vmatprep.subr.bf16.mxu0 0
      %1037 = vmatpush1.bf16.msra.mxu0 %v852
      %1038 = vmatprep.mubr.bf16.mxu0 %v383
      %1039 = vmatmul.mubr.bf16.gmra.mrb[0].mxu0 %v382
      %v1040 = vpop.f32.mrb[0].mxu0
      %v1041 = vadd.f32 %v1000, %v1040
      %v1042 = vpop.f32.mrb[0].mxu0
      %v1043 = vpop.f32.mrb[0].mxu0
      %v1044 = vadd.f32 %v1003, %v1043
      %v1045 = vpop.f32.mrb[0].mxu0
      %1046 = vdwg.mxu0
      %1047 = vmatprep.subr.bf16.mxu0 0
      %1048 = vmatpush1.bf16.msra.mxu0 %v853
      %1049 = vmatprep.subr.bf16.mxu0 0
      %1050 = vmatpush1.bf16.msra.mxu0 %v854
      %1051 = vmatprep.subr.bf16.mxu0 0
      %1052 = vmatpush1.bf16.msra.mxu0 %v855
      %1053 = vmatprep.subr.bf16.mxu0 0
      %1054 = vmatpush1.bf16.msra.mxu0 %v856
      %1055 = vmatprep.subr.bf16.mxu0 0
      %1056 = vmatpush1.bf16.msra.mxu0 %v857
      %1057 = vmatprep.subr.bf16.mxu0 0
      %1058 = vmatpush1.bf16.msra.mxu0 %v858
      %1059 = vmatprep.subr.bf16.mxu0 0
      %1060 = vmatpush1.bf16.msra.mxu0 %v859
      %1061 = vmatprep.subr.bf16.mxu0 0
      %1062 = vmatpush1.bf16.msra.mxu0 %v860
      %1063 = vmatprep.subr.bf16.mxu0 0
      %1064 = vmatpush1.bf16.msra.mxu0 %v861
      %1065 = vmatprep.subr.bf16.mxu0 0
      %1066 = vmatpush1.bf16.msra.mxu0 %v862
      %1067 = vmatprep.subr.bf16.mxu0 0
      %1068 = vmatpush1.bf16.msra.mxu0 %v863
      %1069 = vmatprep.subr.bf16.mxu0 0
      %1070 = vmatpush1.bf16.msra.mxu0 %v864
      %1071 = vmatprep.subr.bf16.mxu0 0
      %1072 = vmatpush1.bf16.msra.mxu0 %v865
      %1073 = vmatprep.subr.bf16.mxu0 0
      %1074 = vmatpush1.bf16.msra.mxu0 %v866
      %1075 = vmatprep.subr.bf16.mxu0 0
      %1076 = vmatpush1.bf16.msra.mxu0 %v867
      %1077 = vmatprep.subr.bf16.mxu0 0
      %1078 = vmatpush1.bf16.msra.mxu0 %v868
      %1079 = vmatprep.mubr.bf16.mxu0 %v385
      %1080 = vmatmul.mubr.bf16.gmra.mrb[0].mxu0 %v384
      %v1081 = vpop.f32.mrb[0].mxu0
      %v1082 = vadd.f32 %v1041, %v1081
      %v1083 = vpop.f32.mrb[0].mxu0
      %v1084 = vpop.f32.mrb[0].mxu0
      %v1085 = vadd.f32 %v1044, %v1084
      %v1086 = vpop.f32.mrb[0].mxu0
      %1087 = vdwg.mxu0
      %1088 = vmatprep.subr.bf16.mxu0 0
      %1089 = vmatpush1.bf16.msra.mxu0 %v869
      %1090 = vmatprep.subr.bf16.mxu0 0
      %1091 = vmatpush1.bf16.msra.mxu0 %v870
      %1092 = vmatprep.subr.bf16.mxu0 0
      %1093 = vmatpush1.bf16.msra.mxu0 %v871
      %1094 = vmatprep.subr.bf16.mxu0 0
      %1095 = vmatpush1.bf16.msra.mxu0 %v872
      %1096 = vmatprep.subr.bf16.mxu0 0
      %1097 = vmatpush1.bf16.msra.mxu0 %v873
      %1098 = vmatprep.subr.bf16.mxu0 0
      %1099 = vmatpush1.bf16.msra.mxu0 %v874
      %1100 = vmatprep.subr.bf16.mxu0 0
      %1101 = vmatpush1.bf16.msra.mxu0 %v875
      %1102 = vmatprep.subr.bf16.mxu0 0
      %1103 = vmatpush1.bf16.msra.mxu0 %v876
      %1104 = vmatprep.subr.bf16.mxu0 0
      %1105 = vmatpush1.bf16.msra.mxu0 %v877
      %1106 = vmatprep.subr.bf16.mxu0 0
      %1107 = vmatpush1.bf16.msra.mxu0 %v878
      %1108 = vmatprep.subr.bf16.mxu0 0
      %1109 = vmatpush1.bf16.msra.mxu0 %v879
      %1110 = vmatprep.subr.bf16.mxu0 0
      %1111 = vmatpush1.bf16.msra.mxu0 %v880
      %1112 = vmatprep.subr.bf16.mxu0 0
      %1113 = vmatpush1.bf16.msra.mxu0 %v881
      %1114 = vmatprep.subr.bf16.mxu0 0
      %1115 = vmatpush1.bf16.msra.mxu0 %v882
      %1116 = vmatprep.subr.bf16.mxu0 0
      %1117 = vmatpush1.bf16.msra.mxu0 %v883
      %1118 = vmatprep.subr.bf16.mxu0 0
      %1119 = vmatpush1.bf16.msra.mxu0 %v884
      %1120 = vmatprep.mubr.bf16.mxu0 %v387
      %1121 = vmatmul.mubr.bf16.gmra.mrb[0].mxu0 %v386
      %v1122 = vpop.f32.mrb[0].mxu0
      %v1123 = vadd.f32 %v1082, %v1122
      %v1124 = vpop.f32.mrb[0].mxu0
      %v1125 = vpop.f32.mrb[0].mxu0
      %v1126 = vadd.f32 %v1085, %v1125
      %v1127 = vpop.f32.mrb[0].mxu0
      %1128 = vdwg.mxu0
      %1129 = vmatprep.subr.bf16.mxu0 0
      %1130 = vmatpush1.bf16.msra.mxu0 %v885
      %1131 = vmatprep.subr.bf16.mxu0 0
      %1132 = vmatpush1.bf16.msra.mxu0 %v886
      %1133 = vmatprep.subr.bf16.mxu0 0
      %1134 = vmatpush1.bf16.msra.mxu0 %v887
      %1135 = vmatprep.subr.bf16.mxu0 0
      %1136 = vmatpush1.bf16.msra.mxu0 %v888
      %1137 = vmatprep.subr.bf16.mxu0 0
      %1138 = vmatpush1.bf16.msra.mxu0 %v889
      %1139 = vmatprep.subr.bf16.mxu0 0
      %1140 = vmatpush1.bf16.msra.mxu0 %v890
      %1141 = vmatprep.subr.bf16.mxu0 0
      %1142 = vmatpush1.bf16.msra.mxu0 %v891
      %1143 = vmatprep.subr.bf16.mxu0 0
      %1144 = vmatpush1.bf16.msra.mxu0 %v892
      %1145 = vmatprep.subr.bf16.mxu0 0
      %1146 = vmatpush1.bf16.msra.mxu0 0
      %1147 = vmatprep.subr.bf16.mxu0 0
      %1148 = vmatpush1.bf16.msra.mxu0 0
      %1149 = vmatprep.subr.bf16.mxu0 0
      %1150 = vmatpush1.bf16.msra.mxu0 0
      %1151 = vmatprep.subr.bf16.mxu0 0
      %1152 = vmatpush1.bf16.msra.mxu0 0
      %1153 = vmatprep.subr.bf16.mxu0 0
      %1154 = vmatpush1.bf16.msra.mxu0 0
      %1155 = vmatprep.subr.bf16.mxu0 0
      %1156 = vmatpush1.bf16.msra.mxu0 0
      %1157 = vmatprep.subr.bf16.mxu0 0
      %1158 = vmatpush1.bf16.msra.mxu0 0
      %1159 = vmatprep.subr.bf16.mxu0 0
      %1160 = vmatpush1.bf16.msra.mxu0 0
      %1161 = vmatprep.mubr.bf16.mxu0 0
      %1162 = vmatmul.mubr.bf16.gmra.mrb[0].mxu0 %v388
      %v1163 = vpop.f32.mrb[0].mxu0
      %v1164 = vadd.f32 %v1123, %v1163
      %v1165 = vpop.f32.mrb[0].mxu0
      %v1166 = vpop.f32.mrb[0].mxu0
      %v1167 = vadd.f32 %v1126, %v1166
      %v1168 = vpop.f32.mrb[0].mxu0
      %1169 = vdwg.mxu0
      %v1172 = vcombine.high %v1164, %v1164
      %v1173 = vcombine.high %v1167, %v1167
      %v1176 = vadd.f32 %v218, %v1164
      %v1177 = vadd.f32 %v219, %v1172
      %v1178 = vadd.f32 %v220, %v1167
      %v1179 = vadd.f32 %v221, %v1173
      %1180 = vst [vmem:[%s217 + $0x1] sm:$0xf] %v1176
      %1181 = vst [vmem:[%s217 + $0x9] sm:$0xf] %v1177
      %1182 = vst [vmem:[%s217 + $0x11] sm:$0xf] %v1178
      %1183 = vst [vmem:[%s217 + $0x19] sm:$0xf] %v1179
      %p1184 = scmp.lt.s32.totalorder %s15, 1
      %s1185 = scalar_select %p1184, %s15, 1
      %s1186 = smul.addr %s1185, 6
      %s1187 = smul.addr %s1186, 8
      %s1188 = scalar_lea.vmem %s4, %s1187
      // Predicated region
      $region37: #{densenet_forward.10} parent=35 // pred_check
        %p1189 = pneg %p122
      $region38: #{densenet_forward.10} parent=35 // pred_check_branch
        %1191 = sbr.rel (%p1189) target = $region40
      $region39: #{densenet_forward.10} parent=35 // pred_region
        _
      $region40: #{densenet_forward.10} parent=35 // pred_fallthru
        _
    $region36: #{densenet_forward.10} parent=5 // pred_fallthru
      _
    %p1192 = scmp.le.s32.totalorder 2, %s10
    // Predicated region
    $region41: #{densenet_forward.10} parent=5 // pred_check
      %p1193 = pneg %p1192
    $region42: #{densenet_forward.10} parent=5 // pred_check_branch
      %1195 = sbr.rel (%p1193) target = $region44
    $region43: #{densenet_forward.10} parent=5 // pred_region
      %s1196 = ssub.s32 %s10, 2
      // Predicated region
      $region45: #{densenet_forward.10} parent=43 // pred_check
        %p1197 = pneg %p128
      $region46: #{densenet_forward.10} parent=43 // pred_check_branch
        %1199 = sbr.rel (%p1197) target = $region48
      $region47: #{densenet_forward.10} parent=43 // pred_region
        %p1200 = scmp.lt.s32.totalorder %s16, 1
        %s1201 = scalar_select %p1200, %s16, 1
        %s1202 = smul.addr %s1201, 6
        %s1203 = smul.addr %s1202, 8
        %s1204 = scalar_lea.vmem %s4, %s1203
      $region48: #{densenet_forward.10} parent=43 // pred_fallthru
        _
    $region44: #{densenet_forward.10} parent=5 // pred_fallthru
      _
  $region6: #{densenet_forward.10} parent=0 // loop_footer
    %s14 = sadd.s32 1, %s10
  $region7: #{densenet_forward.10} parent=0 // loop_footer_branch
    %9 = sbr.rel target = $region3
  $region8: #{densenet_forward.10} parent=0 // loop_exit
    _

// kernel: densenet_forward.6
$region0: #{densenet_forward.6}
  #allocation0 [shape = 'u32[]', space=smem, size = 0x4, offset = 0x4, fixed_abs, tag = 'smem constant byte address 0x4 - core index']
  #allocation1 [shape = 'u32[144,128]{1,0:T(1,128)}', space=vmem, size = 0x12000, scoped, tag = 'internal scratch']
  #allocation2 [shape = 'f32[18,18,128]{2,1,0:T(8,128)}', space=vmem, size = 0x36000, scoped, tag = 'scratch operand']
  #allocation3 [shape = 'bf16[256,1152]{1,0:T(16,128)(2,1)}', space=vmem, size = 0x90000, scoped, tag = 'scratch operand']
  %s0 = inlined_call_operand.vmem [shape: f32[2,18,18,128], index: 0, kind: input, shape index: {}]
  %s1 = inlined_call_operand.vmem [shape: f32[2,128], index: 1, kind: input, shape index: {}]
  %s2 = inlined_call_operand.vmem [shape: f32[2,128], index: 2, kind: input, shape index: {}]
  %s3 = inlined_call_operand.vmem [shape: bf16[2,1152,128], index: 3, kind: input, shape index: {}]
  %s4 = inlined_call_operand.vmem [shape: f32[2,18,18,128], index: 4, kind: output, shape index: {}]
  %s5 = sld [smem:[#allocation0]]
  $region49: #{densenet_forward.6} parent=0
    _
  %s7 = ssub.s32 1, %s5
  %s8 = scalar_select 0, %s7, %s5
  loop: start=0, step=1, limit=4
  $region2: #{densenet_forward.6} parent=0 // loop_pre_header
    _
  $region3: #{densenet_forward.6} parent=0 // loop_header
    %s10 = sphi 0, %s14
    %p11 = scmp.ge.s32.totalorder %s10, 4
    %s20 = sphi 0, %s22
    %s23 = sphi 0, %s20
    %s24 = sphi 0, %s23
    %s40 = sphi 0, %s24
    %s44 = sphi 0, %s44
    %s46 = sphi 0, %s44
    %s47 = sphi 0, %s46
    %s61 = sphi 0, %s47
    %s65 = sphi 0, %s65
    %s67 = sphi 0, %s65
    %s68 = sphi 0, %s67
    %s82 = sphi 0, %s68
    %s86 = sphi 0, %s86
    %s88 = sphi 0, %s86
    %s89 = sphi 0, %s88
    %s103 = sphi 0, %s89
    %s109 = sphi 0, %s111
    %s112 = sphi 0, %s109
    %s113 = sphi 0, %s112
    %s129 = sphi 0, %s113
  $region4: #{densenet_forward.6} parent=0 // loop_header_branch
    %13 = sbr.rel (%p11) target = $region8
  $region5: #{densenet_forward.6} parent=0 // loop_body
    %s15 = ssub.s32 %s10, 1
    %s16 = ssub.s32 %s10, 2
    %s17 = sadd.s32 %s10, 1
    %s18 = ssub.s32 %s10, %s17
    %p19 = scmp.eq.s32.totalorder %s18, 0
    %s21 = sadd.s32 %s20, 1
    %s22 = scalar_select %p19, %s20, %s21
    %p25 = pneg %p19
    %p26 = scmp.eq.s32.totalorder %s10, 1
    %p27 = por %p25, %p26
    %p28 = scmp.ne.s32.totalorder %s20, %s23
    %p29 = scmp.eq.s32.totalorder %s10, 0
    %p30 = por %p28, %p29
    %p31 = scmp.ne.s32.totalorder %s20, %s23
    %p32 = scmp.eq.s32.totalorder %s15, 1
    %p33 = por %p31, %p32
    %p34 = scmp.ne.s32.totalorder %s23, %s24
    %p35 = scmp.eq.s32.totalorder %s15, 0
    %p36 = por %p34, %p35
    %p37 = scmp.ne.s32.totalorder %s23, %s24
    %p38 = scmp.eq.s32.totalorder %s16, 1
    %p39 = por %p37, %p38
    %p41 = scmp.ne.s32.totalorder %s24, %s40
    %p42 = scmp.eq.s32.totalorder %s16, 0
    %p43 = por %p41, %p42
    %s45 = sadd.s32 %s44, 1
    %p48 = scmp.eq.s32.totalorder %s10, 1
    %p49 = scmp.ne.s32.totalorder %s44, %s46
    %p50 = scmp.eq.s32.totalorder %s10, 0
    %p51 = por %p49, %p50
    %p52 = scmp.ne.s32.totalorder %s44, %s46
    %p53 = scmp.eq.s32.totalorder %s15, 1
    %p54 = por %p52, %p53
    %p55 = scmp.ne.s32.totalorder %s46, %s47
    %p56 = scmp.eq.s32.totalorder %s15, 0
    %p57 = por %p55, %p56
    %p58 = scmp.ne.s32.totalorder %s46, %s47
    %p59 = scmp.eq.s32.totalorder %s16, 1
    %p60 = por %p58, %p59
    %p62 = scmp.ne.s32.totalorder %s47, %s61
    %p63 = scmp.eq.s32.totalorder %s16, 0
    %p64 = por %p62, %p63
    %s66 = sadd.s32 %s65, 1
    %p69 = scmp.eq.s32.totalorder %s10, 1
    %p70 = scmp.ne.s32.totalorder %s65, %s67
    %p71 = scmp.eq.s32.totalorder %s10, 0
    %p72 = por %p70, %p71
    %p73 = scmp.ne.s32.totalorder %s65, %s67
    %p74 = scmp.eq.s32.totalorder %s15, 1
    %p75 = por %p73, %p74
    %p76 = scmp.ne.s32.totalorder %s67, %s68
    %p77 = scmp.eq.s32.totalorder %s15, 0
    %p78 = por %p76, %p77
    %p79 = scmp.ne.s32.totalorder %s67, %s68
    %p80 = scmp.eq.s32.totalorder %s16, 1
    %p81 = por %p79, %p80
    %p83 = scmp.ne.s32.totalorder %s68, %s82
    %p84 = scmp.eq.s32.totalorder %s16, 0
    %p85 = por %p83, %p84
    %s87 = sadd.s32 %s86, 1
    %p90 = scmp.eq.s32.totalorder %s10, 1
    %p91 = scmp.ne.s32.totalorder %s86, %s88
    %p92 = scmp.eq.s32.totalorder %s10, 0
    %p93 = por %p91, %p92
    %p94 = scmp.ne.s32.totalorder %s86, %s88
    %p95 = scmp.eq.s32.totalorder %s15, 1
    %p96 = por %p94, %p95
    %p97 = scmp.ne.s32.totalorder %s88, %s89
    %p98 = scmp.eq.s32.totalorder %s15, 0
    %p99 = por %p97, %p98
    %p100 = scmp.ne.s32.totalorder %s88, %s89
    %p101 = scmp.eq.s32.totalorder %s16, 1
    %p102 = por %p100, %p101
    %p104 = scmp.ne.s32.totalorder %s89, %s103
    %p105 = scmp.eq.s32.totalorder %s16, 0
    %p106 = por %p104, %p105
    %s107 = ssub.s32 %s10, %s17
    %p108 = scmp.eq.s32.totalorder %s107, 0
    %s110 = sadd.s32 %s109, 1
    %s111 = scalar_select %p108, %s109, %s110
    %p114 = pneg %p108
    %p115 = scmp.eq.s32.totalorder %s10, 1
    %p116 = por %p114, %p115
    %p117 = scmp.ne.s32.totalorder %s109, %s112
    %p118 = scmp.eq.s32.totalorder %s10, 0
    %p119 = por %p117, %p118
    %p120 = scmp.ne.s32.totalorder %s109, %s112
    %p121 = scmp.eq.s32.totalorder %s15, 1
    %p122 = por %p120, %p121
    %p123 = scmp.ne.s32.totalorder %s112, %s113
    %p124 = scmp.eq.s32.totalorder %s15, 0
    %p125 = por %p123, %p124
    %p126 = scmp.ne.s32.totalorder %s112, %s113
    %p127 = scmp.eq.s32.totalorder %s16, 1
    %p128 = por %p126, %p127
    %p130 = scmp.ne.s32.totalorder %s113, %s129
    %p131 = scmp.eq.s32.totalorder %s16, 0
    %p132 = por %p130, %p131
    %p133 = scmp.le.s32.totalorder 1, %s10
    %p134 = scmp.lt.s32.totalorder %s10, 3
    %p135 = pnand %p133, %p134
    %p136 = pneg %p135
    // Predicated region
    $region9: #{densenet_forward.6} parent=5 // pred_check
      _
    $region10: #{densenet_forward.6} parent=5 // pred_check_branch
      %138 = sbr.rel (%p135) target = $region12
    $region11: #{densenet_forward.6} parent=5 // pred_region
      %s139 = ssub.s32 %s10, 1
      // Predicated region
      $region13: #{densenet_forward.6} parent=11 // pred_check
        %p140 = pneg %p57
      $region14: #{densenet_forward.6} parent=11 // pred_check_branch
        %142 = sbr.rel (%p140) target = $region16
      $region15: #{densenet_forward.6} parent=11 // pred_region
        _
      $region16: #{densenet_forward.6} parent=11 // pred_fallthru
        _
      // Predicated region
      $region17: #{densenet_forward.6} parent=11 // pred_check
        %p143 = pneg %p78
      $region18: #{densenet_forward.6} parent=11 // pred_check_branch
        %145 = sbr.rel (%p143) target = $region20
      $region19: #{densenet_forward.6} parent=11 // pred_region
        _
      $region20: #{densenet_forward.6} parent=11 // pred_fallthru
        _
      // Predicated region
      $region21: #{densenet_forward.6} parent=11 // pred_check
        %p146 = pneg %p99
      $region22: #{densenet_forward.6} parent=11 // pred_check_branch
        %148 = sbr.rel (%p146) target = $region24
      $region23: #{densenet_forward.6} parent=11 // pred_region
        _
      $region24: #{densenet_forward.6} parent=11 // pred_fallthru
        _
    $region12: #{densenet_forward.6} parent=5 // pred_fallthru
      _
    %p149 = scmp.lt.s32.totalorder %s10, 2
    // Predicated region
    $region25: #{densenet_forward.6} parent=5 // pred_check
      %p150 = pneg %p149
    $region26: #{densenet_forward.6} parent=5 // pred_check_branch
      %152 = sbr.rel (%p150) target = $region28
    $region27: #{densenet_forward.6} parent=5 // pred_region
      // Predicated region
      $region29: #{densenet_forward.6} parent=27 // pred_check
        %p153 = pneg %p30
      $region30: #{densenet_forward.6} parent=27 // pred_check_branch
        %155 = sbr.rel (%p153) target = $region32
      $region31: #{densenet_forward.6} parent=27 // pred_region
        %p156 = scmp.lt.s32.totalorder %s10, 1
        %s157 = scalar_select %p156, %s10, 1
        %s158 = smul.addr %s157, 54
        %s159 = smul.addr %s158, 8
        %s160 = scalar_lea.vmem %s0, %s159
      $region32: #{densenet_forward.6} parent=27 // pred_fallthru
        _
    $region28: #{densenet_forward.6} parent=5 // pred_fallthru
      _
    %p161 = scmp.le.s32.totalorder 1, %s10
    %p162 = scmp.lt.s32.totalorder %s10, 3
    %p163 = pnand %p161, %p162
    %p164 = pneg %p163
    // Predicated region
    $region33: #{densenet_forward.6} parent=5 // pred_check
      _
    $region34: #{densenet_forward.6} parent=5 // pred_check_branch
      %166 = sbr.rel (%p163) target = $region36
    $region35: #{densenet_forward.6} parent=5 // pred_region
      %s167 = ssub.s32 %s10, 1
      %p168 = scmp.lt.s32.totalorder %s15, 1
      %s169 = scalar_select %p168, %s15, 1
      %s170 = smul.addr %s169, 54
      %s171 = smul.addr %s170, 8
      %s172 = scalar_lea.vmem %s0, %s171
      %p173 = pneg %p36
      %p174 = pneg %p33
      %p175 = pneg %p57
      %p176 = pneg %p54
      %p177 = pneg %p78
      %p178 = pneg %p75
      %p179 = pneg %p99
      %p180 = pneg %p96
      %p181 = pneg %p125
      %p182 = pneg %p122
      %p183 = scmp.lt.s32.totalorder %s15, 1
      %s184 = scalar_select %p183, %s15, 1
      %s185 = smul.addr %s184, 54
      %s186 = smul.addr %s185, 8
      %s187 = scalar_lea.vmem %s4, %s186
      %p188 = scmp.lt.s32.totalorder %s15, 1
      %s189 = scalar_select %p188, %s15, 1
      %s190 = smul.addr %s189, 54
      %s191 = smul.addr %s190, 8
      %s192 = scalar_lea.vmem %s0, %s191
      %p193 = scmp.lt.s32.totalorder %s15, 1
      %s194 = scalar_select %p193, %s15, 1
      %s195 = smul.addr %s194, 54
      %s196 = smul.addr %s195, 8
      %s197 = scalar_lea.vmem %s4, %s196
      %v199 = vld [vmem:[%s192] sm:$0xff]
      %v200 = vld [vmem:[%s192 + $0x8] sm:$0xff]
      %v201 = vld [vmem:[%s192 + $0x10] sm:$0x3]
      %v202 = vld [vmem:[%s192 + $0x18] sm:$0xff]
      %v203 = vld [vmem:[%s192 + $0x20] sm:$0xff]
      %v204 = vld [vmem:[%s192 + $0x28] sm:$0x3]
      %v205 = vld [vmem:[%s192 + $0x30] sm:$0xff]
      %v206 = vld [vmem:[%s192 + $0x38] sm:$0xff]
      %v207 = vld [vmem:[%s192 + $0x40] sm:$0x3]
      %v208 = vld [vmem:[%s192 + $0x48] sm:$0xff]
      %v209 = vld [vmem:[%s192 + $0x50] sm:$0xff]
      %v210 = vld [vmem:[%s192 + $0x58] sm:$0x3]
      %v211 = vld [vmem:[%s192 + $0x60] sm:$0xff]
      %v212 = vld [vmem:[%s192 + $0x68] sm:$0xff]
      %v213 = vld [vmem:[%s192 + $0x70] sm:$0x3]
      %v214 = vld [vmem:[%s192 + $0x78] sm:$0xff]
      %v215 = vld [vmem:[%s192 + $0x80] sm:$0xff]
      %v216 = vld [vmem:[%s192 + $0x88] sm:$0x3]
      %v217 = vld [vmem:[%s192 + $0x90] sm:$0xff]
      %v218 = vld [vmem:[%s192 + $0x98] sm:$0xff]
      %v219 = vld [vmem:[%s192 + $0xa0] sm:$0x3]
      %v220 = vld [vmem:[%s192 + $0xa8] sm:$0xff]
      %v221 = vld [vmem:[%s192 + $0xb0] sm:$0xff]
      %v222 = vld [vmem:[%s192 + $0xb8] sm:$0x3]
      %v223 = vld [vmem:[%s192 + $0xc0] sm:$0xff]
      %v224 = vld [vmem:[%s192 + $0xc8] sm:$0xff]
      %v225 = vld [vmem:[%s192 + $0xd0] sm:$0x3]
      %v226 = vld [vmem:[%s192 + $0xd8] sm:$0xff]
      %v227 = vld [vmem:[%s192 + $0xe0] sm:$0xff]
      %v228 = vld [vmem:[%s192 + $0xe8] sm:$0x3]
      %v229 = vld [vmem:[%s192 + $0xf0] sm:$0xff]
      %v230 = vld [vmem:[%s192 + $0xf8] sm:$0xff]
      %v231 = vld [vmem:[%s192 + $0x100] sm:$0x3]
      %v232 = vld [vmem:[%s192 + $0x108] sm:$0xff]
      %v233 = vld [vmem:[%s192 + $0x110] sm:$0xff]
      %v234 = vld [vmem:[%s192 + $0x118] sm:$0x3]
      %v235 = vld [vmem:[%s192 + $0x120] sm:$0xff]
      %v236 = vld [vmem:[%s192 + $0x128] sm:$0xff]
      %v237 = vld [vmem:[%s192 + $0x130] sm:$0x3]
      %v238 = vld [vmem:[%s192 + $0x138] sm:$0xff]
      %v239 = vld [vmem:[%s192 + $0x140] sm:$0xff]
      %v240 = vld [vmem:[%s192 + $0x148] sm:$0x3]
      %v241 = vld [vmem:[%s192 + $0x150] sm:$0xff]
      %v242 = vld [vmem:[%s192 + $0x158] sm:$0xff]
      %v243 = vld [vmem:[%s192 + $0x160] sm:$0x3]
      %v244 = vld [vmem:[%s192 + $0x168] sm:$0xff]
      %v245 = vld [vmem:[%s192 + $0x170] sm:$0xff]
      %v246 = vld [vmem:[%s192 + $0x178] sm:$0x3]
      %v247 = vld [vmem:[%s192 + $0x180] sm:$0xff]
      %v248 = vld [vmem:[%s192 + $0x188] sm:$0xff]
      %v249 = vld [vmem:[%s192 + $0x190] sm:$0x3]
      %v250 = vld [vmem:[%s192 + $0x198] sm:$0xff]
      %v251 = vld [vmem:[%s192 + $0x1a0] sm:$0xff]
      %v252 = vld [vmem:[%s192 + $0x1a8] sm:$0x3]
      %253 = vst [vmem:[%s197] sm:$0xff] %v199
      %254 = vst [vmem:[%s197 + $0x8] sm:$0xff] %v200
      %255 = vst [vmem:[%s197 + $0x10] sm:$0x3] %v201
      %256 = vst [vmem:[%s197 + $0x18] sm:$0xff] %v202
      %257 = vst [vmem:[%s197 + $0x20] sm:$0xff] %v203
      %258 = vst [vmem:[%s197 + $0x28] sm:$0x3] %v204
      %259 = vst [vmem:[%s197 + $0x30] sm:$0xff] %v205
      %260 = vst [vmem:[%s197 + $0x38] sm:$0xff] %v206
      %261 = vst [vmem:[%s197 + $0x40] sm:$0x3] %v207
      %262 = vst [vmem:[%s197 + $0x48] sm:$0xff] %v208
      %263 = vst [vmem:[%s197 + $0x50] sm:$0xff] %v209
      %264 = vst [vmem:[%s197 + $0x58] sm:$0x3] %v210
      %265 = vst [vmem:[%s197 + $0x60] sm:$0xff] %v211
      %266 = vst [vmem:[%s197 + $0x68] sm:$0xff] %v212
      %267 = vst [vmem:[%s197 + $0x70] sm:$0x3] %v213
      %268 = vst [vmem:[%s197 + $0x78] sm:$0xff] %v214
      %269 = vst [vmem:[%s197 + $0x80] sm:$0xff] %v215
      %270 = vst [vmem:[%s197 + $0x88] sm:$0x3] %v216
      %271 = vst [vmem:[%s197 + $0x90] sm:$0xff] %v217
      %272 = vst [vmem:[%s197 + $0x98] sm:$0xff] %v218
      %273 = vst [vmem:[%s197 + $0xa0] sm:$0x3] %v219
      %274 = vst [vmem:[%s197 + $0xa8] sm:$0xff] %v220
      %275 = vst [vmem:[%s197 + $0xb0] sm:$0xff] %v221
      %276 = vst [vmem:[%s197 + $0xb8] sm:$0x3] %v222
      %277 = vst [vmem:[%s197 + $0xc0] sm:$0xff] %v223
      %278 = vst [vmem:[%s197 + $0xc8] sm:$0xff] %v224
      %279 = vst [vmem:[%s197 + $0xd0] sm:$0x3] %v225
      %280 = vst [vmem:[%s197 + $0xd8] sm:$0xff] %v226
      %281 = vst [vmem:[%s197 + $0xe0] sm:$0xff] %v227
      %282 = vst [vmem:[%s197 + $0xe8] sm:$0x3] %v228
      %283 = vst [vmem:[%s197 + $0xf0] sm:$0xff] %v229
      %284 = vst [vmem:[%s197 + $0xf8] sm:$0xff] %v230
      %285 = vst [vmem:[%s197 + $0x100] sm:$0x3] %v231
      %286 = vst [vmem:[%s197 + $0x108] sm:$0xff] %v232
      %287 = vst [vmem:[%s197 + $0x110] sm:$0xff] %v233
      %288 = vst [vmem:[%s197 + $0x118] sm:$0x3] %v234
      %289 = vst [vmem:[%s197 + $0x120] sm:$0xff] %v235
      %290 = vst [vmem:[%s197 + $0x128] sm:$0xff] %v236
      %291 = vst [vmem:[%s197 + $0x130] sm:$0x3] %v237
      %292 = vst [vmem:[%s197 + $0x138] sm:$0xff] %v238
      %293 = vst [vmem:[%s197 + $0x140] sm:$0xff] %v239
      %294 = vst [vmem:[%s197 + $0x148] sm:$0x3] %v240
      %295 = vst [vmem:[%s197 + $0x150] sm:$0xff] %v241
      %296 = vst [vmem:[%s197 + $0x158] sm:$0xff] %v242
      %297 = vst [vmem:[%s197 + $0x160] sm:$0x3] %v243
      %298 = vst [vmem:[%s197 + $0x168] sm:$0xff] %v244
      %299 = vst [vmem:[%s197 + $0x170] sm:$0xff] %v245
      %300 = vst [vmem:[%s197 + $0x178] sm:$0x3] %v246
      %301 = vst [vmem:[%s197 + $0x180] sm:$0xff] %v247
      %302 = vst [vmem:[%s197 + $0x188] sm:$0xff] %v248
      %303 = vst [vmem:[%s197 + $0x190] sm:$0x3] %v249
      %304 = vst [vmem:[%s197 + $0x198] sm:$0xff] %v250
      %305 = vst [vmem:[%s197 + $0x1a0] sm:$0xff] %v251
      %306 = vst [vmem:[%s197 + $0x1a8] sm:$0x3] %v252
      %307 = vst [vmem:[#allocation2] sm:$0xff] 0.0
      %308 = vst [vmem:[#allocation2 + $0x8] sm:$0xff] 0.0
      %309 = vst [vmem:[#allocation2 + $0x10] sm:$0x3] 0.0
      %310 = vst [vmem:[#allocation2 + $0x18] sm:$0xff] 0.0
      %311 = vst [vmem:[#allocation2 + $0x20] sm:$0xff] 0.0
      %312 = vst [vmem:[#allocation2 + $0x28] sm:$0x3] 0.0
      %313 = vst [vmem:[#allocation2 + $0x30] sm:$0xff] 0.0
      %314 = vst [vmem:[#allocation2 + $0x38] sm:$0xff] 0.0
      %315 = vst [vmem:[#allocation2 + $0x40] sm:$0x3] 0.0
      %316 = vst [vmem:[#allocation2 + $0x48] sm:$0xff] 0.0
      %317 = vst [vmem:[#allocation2 + $0x50] sm:$0xff] 0.0
      %318 = vst [vmem:[#allocation2 + $0x58] sm:$0x3] 0.0
      %319 = vst [vmem:[#allocation2 + $0x60] sm:$0xff] 0.0
      %320 = vst [vmem:[#allocation2 + $0x68] sm:$0xff] 0.0
      %321 = vst [vmem:[#allocation2 + $0x70] sm:$0x3] 0.0
      %322 = vst [vmem:[#allocation2 + $0x78] sm:$0xff] 0.0
      %323 = vst [vmem:[#allocation2 + $0x80] sm:$0xff] 0.0
      %324 = vst [vmem:[#allocation2 + $0x88] sm:$0x3] 0.0
      %325 = vst [vmem:[#allocation2 + $0x90] sm:$0xff] 0.0
      %326 = vst [vmem:[#allocation2 + $0x98] sm:$0xff] 0.0
      %327 = vst [vmem:[#allocation2 + $0xa0] sm:$0x3] 0.0
      %328 = vst [vmem:[#allocation2 + $0xa8] sm:$0xff] 0.0
      %329 = vst [vmem:[#allocation2 + $0xb0] sm:$0xff] 0.0
      %330 = vst [vmem:[#allocation2 + $0xb8] sm:$0x3] 0.0
      %331 = vst [vmem:[#allocation2 + $0xc0] sm:$0xff] 0.0
      %332 = vst [vmem:[#allocation2 + $0xc8] sm:$0xff] 0.0
      %333 = vst [vmem:[#allocation2 + $0xd0] sm:$0x3] 0.0
      %334 = vst [vmem:[#allocation2 + $0xd8] sm:$0xff] 0.0
      %335 = vst [vmem:[#allocation2 + $0xe0] sm:$0xff] 0.0
      %336 = vst [vmem:[#allocation2 + $0xe8] sm:$0x3] 0.0
      %337 = vst [vmem:[#allocation2 + $0xf0] sm:$0xff] 0.0
      %338 = vst [vmem:[#allocation2 + $0xf8] sm:$0xff] 0.0
      %339 = vst [vmem:[#allocation2 + $0x100] sm:$0x3] 0.0
      %340 = vst [vmem:[#allocation2 + $0x108] sm:$0xff] 0.0
      %341 = vst [vmem:[#allocation2 + $0x110] sm:$0xff] 0.0
      %342 = vst [vmem:[#allocation2 + $0x118] sm:$0x3] 0.0
      %343 = vst [vmem:[#allocation2 + $0x120] sm:$0xff] 0.0
      %344 = vst [vmem:[#allocation2 + $0x128] sm:$0xff] 0.0
      %345 = vst [vmem:[#allocation2 + $0x130] sm:$0x3] 0.0
      %346 = vst [vmem:[#allocation2 + $0x138] sm:$0xff] 0.0
      %347 = vst [vmem:[#allocation2 + $0x140] sm:$0xff] 0.0
      %348 = vst [vmem:[#allocation2 + $0x148] sm:$0x3] 0.0
      %349 = vst [vmem:[#allocation2 + $0x150] sm:$0xff] 0.0
      %350 = vst [vmem:[#allocation2 + $0x158] sm:$0xff] 0.0
      %351 = vst [vmem:[#allocation2 + $0x160] sm:$0x3] 0.0
      %352 = vst [vmem:[#allocation2 + $0x168] sm:$0xff] 0.0
      %353 = vst [vmem:[#allocation2 + $0x170] sm:$0xff] 0.0
      %354 = vst [vmem:[#allocation2 + $0x178] sm:$0x3] 0.0
      %355 = vst [vmem:[#allocation2 + $0x180] sm:$0xff] 0.0
      %356 = vst [vmem:[#allocation2 + $0x188] sm:$0xff] 0.0
      %357 = vst [vmem:[#allocation2 + $0x190] sm:$0x3] 0.0
      %358 = vst [vmem:[#allocation2 + $0x198] sm:$0xff] 0.0
      %359 = vst [vmem:[#allocation2 + $0x1a0] sm:$0xff] 0.0
      %360 = vst [vmem:[#allocation2 + $0x1a8] sm:$0x3] 0.0
      %s361 = scalar_lea.vmem %s197, 24
      %v362 = vld [vmem:[%s361 + $0x1] sm:$0xff]
      %v363 = vld [vmem:[%s361 + $0x9] sm:$0xff]
      %v364 = vld [vmem:[%s361 + $0x19] sm:$0xff]
      %v365 = vld [vmem:[%s361 + $0x21] sm:$0xff]
      %v366 = vld [vmem:[%s361 + $0x31] sm:$0xff]
      %v367 = vld [vmem:[%s361 + $0x39] sm:$0xff]
      %v368 = vld [vmem:[%s361 + $0x49] sm:$0xff]
      %v369 = vld [vmem:[%s361 + $0x51] sm:$0xff]
      %v370 = vld [vmem:[%s361 + $0x61] sm:$0xff]
      %v371 = vld [vmem:[%s361 + $0x69] sm:$0xff]
      %v372 = vld [vmem:[%s361 + $0x79] sm:$0xff]
      %v373 = vld [vmem:[%s361 + $0x81] sm:$0xff]
      %v374 = vld [vmem:[%s361 + $0x91] sm:$0xff]
      %v375 = vld [vmem:[%s361 + $0x99] sm:$0xff]
      %v376 = vld [vmem:[%s361 + $0xa9] sm:$0xff]
      %v377 = vld [vmem:[%s361 + $0xb1] sm:$0xff]
      %v378 = vld [vmem:[%s361 + $0xc1] sm:$0xff]
      %v379 = vld [vmem:[%s361 + $0xc9] sm:$0xff]
      %v380 = vld [vmem:[%s361 + $0xd9] sm:$0xff]
      %v381 = vld [vmem:[%s361 + $0xe1] sm:$0xff]
      %v382 = vld [vmem:[%s361 + $0xf1] sm:$0xff]
      %v383 = vld [vmem:[%s361 + $0xf9] sm:$0xff]
      %v384 = vld [vmem:[%s361 + $0x109] sm:$0xff]
      %v385 = vld [vmem:[%s361 + $0x111] sm:$0xff]
      %v386 = vld [vmem:[%s361 + $0x121] sm:$0xff]
      %v387 = vld [vmem:[%s361 + $0x129] sm:$0xff]
      %v388 = vld [vmem:[%s361 + $0x139] sm:$0xff]
      %v389 = vld [vmem:[%s361 + $0x141] sm:$0xff]
      %v390 = vld [vmem:[%s361 + $0x151] sm:$0xff]
      %v391 = vld [vmem:[%s361 + $0x159] sm:$0xff]
      %v392 = vld [vmem:[%s361 + $0x169] sm:$0xff]
      %v393 = vld [vmem:[%s361 + $0x171] sm:$0xff]
      %s394 = scalar_lea.vmem [#allocation2], 24
      %395 = vst [vmem:[%s394 + $0x1] sm:$0xff] %v362
      %396 = vst [vmem:[%s394 + $0x9] sm:$0xff] %v363
      %397 = vst [vmem:[%s394 + $0x19] sm:$0xff] %v364
      %398 = vst [vmem:[%s394 + $0x21] sm:$0xff] %v365
      %399 = vst [vmem:[%s394 + $0x31] sm:$0xff] %v366
      %400 = vst [vmem:[%s394 + $0x39] sm:$0xff] %v367
      %401 = vst [vmem:[%s394 + $0x49] sm:$0xff] %v368
      %402 = vst [vmem:[%s394 + $0x51] sm:$0xff] %v369
      %403 = vst [vmem:[%s394 + $0x61] sm:$0xff] %v370
      %404 = vst [vmem:[%s394 + $0x69] sm:$0xff] %v371
      %405 = vst [vmem:[%s394 + $0x79] sm:$0xff] %v372
      %406 = vst [vmem:[%s394 + $0x81] sm:$0xff] %v373
      %407 = vst [vmem:[%s394 + $0x91] sm:$0xff] %v374
      %408 = vst [vmem:[%s394 + $0x99] sm:$0xff] %v375
      %409 = vst [vmem:[%s394 + $0xa9] sm:$0xff] %v376
      %410 = vst [vmem:[%s394 + $0xb1] sm:$0xff] %v377
      %411 = vst [vmem:[%s394 + $0xc1] sm:$0xff] %v378
      %412 = vst [vmem:[%s394 + $0xc9] sm:$0xff] %v379
      %413 = vst [vmem:[%s394 + $0xd9] sm:$0xff] %v380
      %414 = vst [vmem:[%s394 + $0xe1] sm:$0xff] %v381
      %415 = vst [vmem:[%s394 + $0xf1] sm:$0xff] %v382
      %416 = vst [vmem:[%s394 + $0xf9] sm:$0xff] %v383
      %417 = vst [vmem:[%s394 + $0x109] sm:$0xff] %v384
      %418 = vst [vmem:[%s394 + $0x111] sm:$0xff] %v385
      %419 = vst [vmem:[%s394 + $0x121] sm:$0xff] %v386
      %420 = vst [vmem:[%s394 + $0x129] sm:$0xff] %v387
      %421 = vst [vmem:[%s394 + $0x139] sm:$0xff] %v388
      %422 = vst [vmem:[%s394 + $0x141] sm:$0xff] %v389
      %423 = vst [vmem:[%s394 + $0x151] sm:$0xff] %v390
      %424 = vst [vmem:[%s394 + $0x159] sm:$0xff] %v391
      %425 = vst [vmem:[%s394 + $0x169] sm:$0xff] %v392
      %426 = vst [vmem:[%s394 + $0x171] sm:$0xff] %v393
      %v427 = vld [vmem:[#allocation2] sm:$0xff]
      %v428 = vld [vmem:[#allocation2 + $0x8] sm:$0xff]
      %v429 = vld [vmem:[#allocation2 + $0x18] sm:$0xff]
      %v430 = vld [vmem:[#allocation2 + $0x20] sm:$0xff]
      %v431 = vld [vmem:[#allocation2 + $0x30] sm:$0xff]
      %v432 = vld [vmem:[#allocation2 + $0x38] sm:$0xff]
      %v433 = vld [vmem:[#allocation2 + $0x48] sm:$0xff]
      %v434 = vld [vmem:[#allocation2 + $0x50] sm:$0xff]
      %v435 = vld [vmem:[#allocation2 + $0x60] sm:$0xff]
      %v436 = vld [vmem:[#allocation2 + $0x68] sm:$0xff]
      %v437 = vld [vmem:[#allocation2 + $0x78] sm:$0xff]
      %v438 = vld [vmem:[#allocation2 + $0x80] sm:$0xff]
      %v439 = vld [vmem:[#allocation2 + $0x90] sm:$0xff]
      %v440 = vld [vmem:[#allocation2 + $0x98] sm:$0xff]
      %v441 = vld [vmem:[#allocation2 + $0xa8] sm:$0xff]
      %v442 = vld [vmem:[#allocation2 + $0xb0] sm:$0xff]
      %v443 = vld [vmem:[#allocation2 + $0xc0] sm:$0xff]
      %v444 = vld [vmem:[#allocation2 + $0xc8] sm:$0xff]
      %v445 = vld [vmem:[#allocation2 + $0xd8] sm:$0xff]
      %v446 = vld [vmem:[#allocation2 + $0xe0] sm:$0xff]
      %v447 = vld [vmem:[#allocation2 + $0xf0] sm:$0xff]
      %v448 = vld [vmem:[#allocation2 + $0xf8] sm:$0xff]
      %v449 = vld [vmem:[#allocation2 + $0x108] sm:$0xff]
      %v450 = vld [vmem:[#allocation2 + $0x110] sm:$0xff]
      %v451 = vld [vmem:[#allocation2 + $0x120] sm:$0xff]
      %v452 = vld [vmem:[#allocation2 + $0x128] sm:$0xff]
      %v453 = vld [vmem:[#allocation2 + $0x138] sm:$0xff]
      %v454 = vld [vmem:[#allocation2 + $0x140] sm:$0xff]
      %v455 = vld [vmem:[#allocation2 + $0x150] sm:$0xff]
      %v456 = vld [vmem:[#allocation2 + $0x158] sm:$0xff]
      %v457 = vld [vmem:[#allocation2 + $0x168] sm:$0xff]
      %v458 = vld [vmem:[#allocation2 + $0x170] sm:$0xff]
      %v459 = vpack.c.bf16 %v428, %v427
      %v460 = vpack.c.bf16 %v430, %v429
      %v461 = vpack.c.bf16 %v432, %v431
      %v462 = vpack.c.bf16 %v434, %v433
      %v463 = vpack.c.bf16 %v436, %v435
      %v464 = vpack.c.bf16 %v438, %v437
      %v465 = vpack.c.bf16 %v440, %v439
      %v466 = vpack.c.bf16 %v442, %v441
      %v467 = vpack.c.bf16 %v444, %v443
      %v468 = vpack.c.bf16 %v446, %v445
      %v469 = vpack.c.bf16 %v448, %v447
      %v470 = vpack.c.bf16 %v450, %v449
      %v471 = vpack.c.bf16 %v452, %v451
      %v472 = vpack.c.bf16 %v454, %v453
      %v473 = vpack.c.bf16 %v456, %v455
      %v474 = vpack.c.bf16 %v458, %v457
      %475 = vst [vmem:[#allocation3] sm:$0xff] %v459
      %476 = vst [vmem:[#allocation3 + $0x48] sm:$0xff] %v460
      %477 = vst [vmem:[#allocation3 + $0x90] sm:$0xff] %v461
      %478 = vst [vmem:[#allocation3 + $0xd8] sm:$0xff] %v462
      %479 = vst [vmem:[#allocation3 + $0x120] sm:$0xff] %v463
      %480 = vst [vmem:[#allocation3 + $0x168] sm:$0xff] %v464
      %481 = vst [vmem:[#allocation3 + $0x1b0] sm:$0xff] %v465
      %482 = vst [vmem:[#allocation3 + $0x1f8] sm:$0xff] %v466
      %483 = vst [vmem:[#allocation3 + $0x240] sm:$0xff] %v467
      %484 = vst [vmem:[#allocation3 + $0x288] sm:$0xff] %v468
      %485 = vst [vmem:[#allocation3 + $0x2d0] sm:$0xff] %v469
      %486 = vst [vmem:[#allocation3 + $0x318] sm:$0xff] %v470
      %487 = vst [vmem:[#allocation3 + $0x360] sm:$0xff] %v471
      %488 = vst [vmem:[#allocation3 + $0x3a8] sm:$0xff] %v472
      %489 = vst [vmem:[#allocation3 + $0x3f0] sm:$0xff] %v473
      %490 = vst [vmem:[#allocation3 + $0x438] sm:$0xff] %v474
      %v491 = vld [vmem:[#allocation2 + $0x1] sm:$0xff]
      %v492 = vld [vmem:[#allocation2 + $0x9] sm:$0xff]
      %v493 = vld [vmem:[#allocation2 + $0x19] sm:$0xff]
      %v494 = vld [vmem:[#allocation2 + $0x21] sm:$0xff]
      %v495 = vld [vmem:[#allocation2 + $0x31] sm:$0xff]
      %v496 = vld [vmem:[#allocation2 + $0x39] sm:$0xff]
      %v497 = vld [vmem:[#allocation2 + $0x49] sm:$0xff]
      %v498 = vld [vmem:[#allocation2 + $0x51] sm:$0xff]
      %v499 = vld [vmem:[#allocation2 + $0x61] sm:$0xff]
      %v500 = vld [vmem:[#allocation2 + $0x69] sm:$0xff]
      %v501 = vld [vmem:[#allocation2 + $0x79] sm:$0xff]
      %v502 = vld [vmem:[#allocation2 + $0x81] sm:$0xff]
      %v503 = vld [vmem:[#allocation2 + $0x91] sm:$0xff]
      %v504 = vld [vmem:[#allocation2 + $0x99] sm:$0xff]
      %v505 = vld [vmem:[#allocation2 + $0xa9] sm:$0xff]
      %v506 = vld [vmem:[#allocation2 + $0xb1] sm:$0xff]
      %v507 = vld [vmem:[#allocation2 + $0xc1] sm:$0xff]
      %v508 = vld [vmem:[#allocation2 + $0xc9] sm:$0xff]
      %v509 = vld [vmem:[#allocation2 + $0xd9] sm:$0xff]
      %v510 = vld [vmem:[#allocation2 + $0xe1] sm:$0xff]
      %v511 = vld [vmem:[#allocation2 + $0xf1] sm:$0xff]
      %v512 = vld [vmem:[#allocation2 + $0xf9] sm:$0xff]
      %v513 = vld [vmem:[#allocation2 + $0x109] sm:$0xff]
      %v514 = vld [vmem:[#allocation2 + $0x111] sm:$0xff]
      %v515 = vld [vmem:[#allocation2 + $0x121] sm:$0xff]
      %v516 = vld [vmem:[#allocation2 + $0x129] sm:$0xff]
      %v517 = vld [vmem:[#allocation2 + $0x139] sm:$0xff]
      %v518 = vld [vmem:[#allocation2 + $0x141] sm:$0xff]
      %v519 = vld [vmem:[#allocation2 + $0x151] sm:$0xff]
      %v520 = vld [vmem:[#allocation2 + $0x159] sm:$0xff]
      %v521 = vld [vmem:[#allocation2 + $0x169] sm:$0xff]
      %v522 = vld [vmem:[#allocation2 + $0x171] sm:$0xff]
      %v523 = vpack.c.bf16 %v492, %v491
      %v524 = vpack.c.bf16 %v494, %v493
      %v525 = vpack.c.bf16 %v496, %v495
      %v526 = vpack.c.bf16 %v498, %v497
      %v527 = vpack.c.bf16 %v500, %v499
      %v528 = vpack.c.bf16 %v502, %v501
      %v529 = vpack.c.bf16 %v504, %v503
      %v530 = vpack.c.bf16 %v506, %v505
      %v531 = vpack.c.bf16 %v508, %v507
      %v532 = vpack.c.bf16 %v510, %v509
      %v533 = vpack.c.bf16 %v512, %v511
      %v534 = vpack.c.bf16 %v514, %v513
      %v535 = vpack.c.bf16 %v516, %v515
      %v536 = vpack.c.bf16 %v518, %v517
      %v537 = vpack.c.bf16 %v520, %v519
      %v538 = vpack.c.bf16 %v522, %v521
      %539 = vst [vmem:[#allocation3 + $0x8] sm:$0xff] %v523
      %540 = vst [vmem:[#allocation3 + $0x50] sm:$0xff] %v524
      %541 = vst [vmem:[#allocation3 + $0x98] sm:$0xff] %v525
      %542 = vst [vmem:[#allocation3 + $0xe0] sm:$0xff] %v526
      %543 = vst [vmem:[#allocation3 + $0x128] sm:$0xff] %v527
      %544 = vst [vmem:[#allocation3 + $0x170] sm:$0xff] %v528
      %545 = vst [vmem:[#allocation3 + $0x1b8] sm:$0xff] %v529
      %546 = vst [vmem:[#allocation3 + $0x200] sm:$0xff] %v530
      %547 = vst [vmem:[#allocation3 + $0x248] sm:$0xff] %v531
      %548 = vst [vmem:[#allocation3 + $0x290] sm:$0xff] %v532
      %549 = vst [vmem:[#allocation3 + $0x2d8] sm:$0xff] %v533
      %550 = vst [vmem:[#allocation3 + $0x320] sm:$0xff] %v534
      %551 = vst [vmem:[#allocation3 + $0x368] sm:$0xff] %v535
      %552 = vst [vmem:[#allocation3 + $0x3b0] sm:$0xff] %v536
      %553 = vst [vmem:[#allocation3 + $0x3f8] sm:$0xff] %v537
      %554 = vst [vmem:[#allocation3 + $0x440] sm:$0xff] %v538
      %v555 = vld [vmem:[#allocation2 + $0x2] sm:$0xff]
      %v556 = vld [vmem:[#allocation2 + $0xa] sm:$0xff]
      %v557 = vld [vmem:[#allocation2 + $0x1a] sm:$0xff]
      %v558 = vld [vmem:[#allocation2 + $0x22] sm:$0xff]
      %v559 = vld [vmem:[#allocation2 + $0x32] sm:$0xff]
      %v560 = vld [vmem:[#allocation2 + $0x3a] sm:$0xff]
      %v561 = vld [vmem:[#allocation2 + $0x4a] sm:$0xff]
      %v562 = vld [vmem:[#allocation2 + $0x52] sm:$0xff]
      %v563 = vld [vmem:[#allocation2 + $0x62] sm:$0xff]
      %v564 = vld [vmem:[#allocation2 + $0x6a] sm:$0xff]
      %v565 = vld [vmem:[#allocation2 + $0x7a] sm:$0xff]
      %v566 = vld [vmem:[#allocation2 + $0x82] sm:$0xff]
      %v567 = vld [vmem:[#allocation2 + $0x92] sm:$0xff]
      %v568 = vld [vmem:[#allocation2 + $0x9a] sm:$0xff]
      %v569 = vld [vmem:[#allocation2 + $0xaa] sm:$0xff]
      %v570 = vld [vmem:[#allocation2 + $0xb2] sm:$0xff]
      %v571 = vld [vmem:[#allocation2 + $0xc2] sm:$0xff]
      %v572 = vld [vmem:[#allocation2 + $0xca] sm:$0xff]
      %v573 = vld [vmem:[#allocation2 + $0xda] sm:$0xff]
      %v574 = vld [vmem:[#allocation2 + $0xe2] sm:$0xff]
      %v575 = vld [vmem:[#allocation2 + $0xf2] sm:$0xff]
      %v576 = vld [vmem:[#allocation2 + $0xfa] sm:$0xff]
      %v577 = vld [vmem:[#allocation2 + $0x10a] sm:$0xff]
      %v578 = vld [vmem:[#allocation2 + $0x112] sm:$0xff]
      %v579 = vld [vmem:[#allocation2 + $0x122] sm:$0xff]
      %v580 = vld [vmem:[#allocation2 + $0x12a] sm:$0xff]
      %v581 = vld [vmem:[#allocation2 + $0x13a] sm:$0xff]
      %v582 = vld [vmem:[#allocation2 + $0x142] sm:$0xff]
      %v583 = vld [vmem:[#allocation2 + $0x152] sm:$0xff]
      %v584 = vld [vmem:[#allocation2 + $0x15a] sm:$0xff]
      %v585 = vld [vmem:[#allocation2 + $0x16a] sm:$0xff]
      %v586 = vld [vmem:[#allocation2 + $0x172] sm:$0xff]
      %v587 = vpack.c.bf16 %v556, %v555
      %v588 = vpack.c.bf16 %v558, %v557
      %v589 = vpack.c.bf16 %v560, %v559
      %v590 = vpack.c.bf16 %v562, %v561
      %v591 = vpack.c.bf16 %v564, %v563
      %v592 = vpack.c.bf16 %v566, %v565
      %v593 = vpack.c.bf16 %v568, %v567
      %v594 = vpack.c.bf16 %v570, %v569
      %v595 = vpack.c.bf16 %v572, %v571
      %v596 = vpack.c.bf16 %v574, %v573
      %v597 = vpack.c.bf16 %v576, %v575
      %v598 = vpack.c.bf16 %v578, %v577
      %v599 = vpack.c.bf16 %v580, %v579
      %v600 = vpack.c.bf16 %v582, %v581
      %v601 = vpack.c.bf16 %v584, %v583
      %v602 = vpack.c.bf16 %v586, %v585
      %603 = vst [vmem:[#allocation3 + $0x10] sm:$0xff] %v587
      %604 = vst [vmem:[#allocation3 + $0x58] sm:$0xff] %v588
      %605 = vst [vmem:[#allocation3 + $0xa0] sm:$0xff] %v589
      %606 = vst [vmem:[#allocation3 + $0xe8] sm:$0xff] %v590
      %607 = vst [vmem:[#allocation3 + $0x130] sm:$0xff] %v591
      %608 = vst [vmem:[#allocation3 + $0x178] sm:$0xff] %v592
      %609 = vst [vmem:[#allocation3 + $0x1c0] sm:$0xff] %v593
      %610 = vst [vmem:[#allocation3 + $0x208] sm:$0xff] %v594
      %611 = vst [vmem:[#allocation3 + $0x250] sm:$0xff] %v595
      %612 = vst [vmem:[#allocation3 + $0x298] sm:$0xff] %v596
      %613 = vst [vmem:[#allocation3 + $0x2e0] sm:$0xff] %v597
      %614 = vst [vmem:[#allocation3 + $0x328] sm:$0xff] %v598
      %615 = vst [vmem:[#allocation3 + $0x370] sm:$0xff] %v599
      %616 = vst [vmem:[#allocation3 + $0x3b8] sm:$0xff] %v600
      %617 = vst [vmem:[#allocation3 + $0x400] sm:$0xff] %v601
      %618 = vst [vmem:[#allocation3 + $0x448] sm:$0xff] %v602
      %v619 = vld [vmem:[%s394] sm:$0xff]
      %v620 = vld [vmem:[%s394 + $0x8] sm:$0xff]
      %v621 = vld [vmem:[%s394 + $0x18] sm:$0xff]
      %v622 = vld [vmem:[%s394 + $0x20] sm:$0xff]
      %v623 = vld [vmem:[%s394 + $0x30] sm:$0xff]
      %v624 = vld [vmem:[%s394 + $0x38] sm:$0xff]
      %v625 = vld [vmem:[%s394 + $0x48] sm:$0xff]
      %v626 = vld [vmem:[%s394 + $0x50] sm:$0xff]
      %v627 = vld [vmem:[%s394 + $0x60] sm:$0xff]
      %v628 = vld [vmem:[%s394 + $0x68] sm:$0xff]
      %v629 = vld [vmem:[%s394 + $0x78] sm:$0xff]
      %v630 = vld [vmem:[%s394 + $0x80] sm:$0xff]
      %v631 = vld [vmem:[%s394 + $0x90] sm:$0xff]
      %v632 = vld [vmem:[%s394 + $0x98] sm:$0xff]
      %v633 = vld [vmem:[%s394 + $0xa8] sm:$0xff]
      %v634 = vld [vmem:[%s394 + $0xb0] sm:$0xff]
      %v635 = vld [vmem:[%s394 + $0xc0] sm:$0xff]
      %v636 = vld [vmem:[%s394 + $0xc8] sm:$0xff]
      %v637 = vld [vmem:[%s394 + $0xd8] sm:$0xff]
      %v638 = vld [vmem:[%s394 + $0xe0] sm:$0xff]
      %v639 = vld [vmem:[%s394 + $0xf0] sm:$0xff]
      %v640 = vld [vmem:[%s394 + $0xf8] sm:$0xff]
      %v641 = vld [vmem:[%s394 + $0x108] sm:$0xff]
      %v642 = vld [vmem:[%s394 + $0x110] sm:$0xff]
      %v643 = vld [vmem:[%s394 + $0x120] sm:$0xff]
      %v644 = vld [vmem:[%s394 + $0x128] sm:$0xff]
      %v645 = vld [vmem:[%s394 + $0x138] sm:$0xff]
      %v646 = vld [vmem:[%s394 + $0x140] sm:$0xff]
      %v647 = vld [vmem:[%s394 + $0x150] sm:$0xff]
      %v648 = vld [vmem:[%s394 + $0x158] sm:$0xff]
      %v649 = vld [vmem:[%s394 + $0x168] sm:$0xff]
      %v650 = vld [vmem:[%s394 + $0x170] sm:$0xff]
      %v651 = vpack.c.bf16 %v620, %v619
      %v652 = vpack.c.bf16 %v622, %v621
      %v653 = vpack.c.bf16 %v624, %v623
      %v654 = vpack.c.bf16 %v626, %v625
      %v655 = vpack.c.bf16 %v628, %v627
      %v656 = vpack.c.bf16 %v630, %v629
      %v657 = vpack.c.bf16 %v632, %v631
      %v658 = vpack.c.bf16 %v634, %v633
      %v659 = vpack.c.bf16 %v636, %v635
      %v660 = vpack.c.bf16 %v638, %v637
      %v661 = vpack.c.bf16 %v640, %v639
      %v662 = vpack.c.bf16 %v642, %v641
      %v663 = vpack.c.bf16 %v644, %v643
      %v664 = vpack.c.bf16 %v646, %v645
      %v665 = vpack.c.bf16 %v648, %v647
      %v666 = vpack.c.bf16 %v650, %v649
      %667 = vst [vmem:[#allocation3 + $0x18] sm:$0xff] %v651
      %668 = vst [vmem:[#allocation3 + $0x60] sm:$0xff] %v652
      %669 = vst [vmem:[#allocation3 + $0xa8] sm:$0xff] %v653
      %670 = vst [vmem:[#allocation3 + $0xf0] sm:$0xff] %v654
      %671 = vst [vmem:[#allocation3 + $0x138] sm:$0xff] %v655
      %672 = vst [vmem:[#allocation3 + $0x180] sm:$0xff] %v656
      %673 = vst [vmem:[#allocation3 + $0x1c8] sm:$0xff] %v657
      %674 = vst [vmem:[#allocation3 + $0x210] sm:$0xff] %v658
      %675 = vst [vmem:[#allocation3 + $0x258] sm:$0xff] %v659
      %676 = vst [vmem:[#allocation3 + $0x2a0] sm:$0xff] %v660
      %677 = vst [vmem:[#allocation3 + $0x2e8] sm:$0xff] %v661
      %678 = vst [vmem:[#allocation3 + $0x330] sm:$0xff] %v662
      %679 = vst [vmem:[#allocation3 + $0x378] sm:$0xff] %v663
      %680 = vst [vmem:[#allocation3 + $0x3c0] sm:$0xff] %v664
      %681 = vst [vmem:[#allocation3 + $0x408] sm:$0xff] %v665
      %682 = vst [vmem:[#allocation3 + $0x450] sm:$0xff] %v666
      %v683 = vld [vmem:[%s394 + $0x1] sm:$0xff]
      %v684 = vld [vmem:[%s394 + $0x9] sm:$0xff]
      %v685 = vld [vmem:[%s394 + $0x19] sm:$0xff]
      %v686 = vld [vmem:[%s394 + $0x21] sm:$0xff]
      %v687 = vld [vmem:[%s394 + $0x31] sm:$0xff]
      %v688 = vld [vmem:[%s394 + $0x39] sm:$0xff]
      %v689 = vld [vmem:[%s394 + $0x49] sm:$0xff]
      %v690 = vld [vmem:[%s394 + $0x51] sm:$0xff]
      %v691 = vld [vmem:[%s394 + $0x61] sm:$0xff]
      %v692 = vld [vmem:[%s394 + $0x69] sm:$0xff]
      %v693 = vld [vmem:[%s394 + $0x79] sm:$0xff]
      %v694 = vld [vmem:[%s394 + $0x81] sm:$0xff]
      %v695 = vld [vmem:[%s394 + $0x91] sm:$0xff]
      %v696 = vld [vmem:[%s394 + $0x99] sm:$0xff]
      %v697 = vld [vmem:[%s394 + $0xa9] sm:$0xff]
      %v698 = vld [vmem:[%s394 + $0xb1] sm:$0xff]
      %v699 = vld [vmem:[%s394 + $0xc1] sm:$0xff]
      %v700 = vld [vmem:[%s394 + $0xc9] sm:$0xff]
      %v701 = vld [vmem:[%s394 + $0xd9] sm:$0xff]
      %v702 = vld [vmem:[%s394 + $0xe1] sm:$0xff]
      %v703 = vld [vmem:[%s394 + $0xf1] sm:$0xff]
      %v704 = vld [vmem:[%s394 + $0xf9] sm:$0xff]
      %v705 = vld [vmem:[%s394 + $0x109] sm:$0xff]
      %v706 = vld [vmem:[%s394 + $0x111] sm:$0xff]
      %v707 = vld [vmem:[%s394 + $0x121] sm:$0xff]
      %v708 = vld [vmem:[%s394 + $0x129] sm:$0xff]
      %v709 = vld [vmem:[%s394 + $0x139] sm:$0xff]
      %v710 = vld [vmem:[%s394 + $0x141] sm:$0xff]
      %v711 = vld [vmem:[%s394 + $0x151] sm:$0xff]
      %v712 = vld [vmem:[%s394 + $0x159] sm:$0xff]
      %v713 = vld [vmem:[%s394 + $0x169] sm:$0xff]
      %v714 = vld [vmem:[%s394 + $0x171] sm:$0xff]
      %v715 = vpack.c.bf16 %v684, %v683
      %v716 = vpack.c.bf16 %v686, %v685
      %v717 = vpack.c.bf16 %v688, %v687
      %v718 = vpack.c.bf16 %v690, %v689
      %v719 = vpack.c.bf16 %v692, %v691
      %v720 = vpack.c.bf16 %v694, %v693
      %v721 = vpack.c.bf16 %v696, %v695
      %v722 = vpack.c.bf16 %v698, %v697
      %v723 = vpack.c.bf16 %v700, %v699
      %v724 = vpack.c.bf16 %v702, %v701
      %v725 = vpack.c.bf16 %v704, %v703
      %v726 = vpack.c.bf16 %v706, %v705
      %v727 = vpack.c.bf16 %v708, %v707
      %v728 = vpack.c.bf16 %v710, %v709
      %v729 = vpack.c.bf16 %v712, %v711
      %v730 = vpack.c.bf16 %v714, %v713
      %731 = vst [vmem:[#allocation3 + $0x20] sm:$0xff] %v715
      %732 = vst [vmem:[#allocation3 + $0x68] sm:$0xff] %v716
      %733 = vst [vmem:[#allocation3 + $0xb0] sm:$0xff] %v717
      %734 = vst [vmem:[#allocation3 + $0xf8] sm:$0xff] %v718
      %735 = vst [vmem:[#allocation3 + $0x140] sm:$0xff] %v719
      %736 = vst [vmem:[#allocation3 + $0x188] sm:$0xff] %v720
      %737 = vst [vmem:[#allocation3 + $0x1d0] sm:$0xff] %v721
      %738 = vst [vmem:[#allocation3 + $0x218] sm:$0xff] %v722
      %739 = vst [vmem:[#allocation3 + $0x260] sm:$0xff] %v723
      %740 = vst [vmem:[#allocation3 + $0x2a8] sm:$0xff] %v724
      %741 = vst [vmem:[#allocation3 + $0x2f0] sm:$0xff] %v725
      %742 = vst [vmem:[#allocation3 + $0x338] sm:$0xff] %v726
      %743 = vst [vmem:[#allocation3 + $0x380] sm:$0xff] %v727
      %744 = vst [vmem:[#allocation3 + $0x3c8] sm:$0xff] %v728
      %745 = vst [vmem:[#allocation3 + $0x410] sm:$0xff] %v729
      %746 = vst [vmem:[#allocation3 + $0x458] sm:$0xff] %v730
      %v747 = vld [vmem:[%s394 + $0x2] sm:$0xff]
      %v748 = vld [vmem:[%s394 + $0xa] sm:$0xff]
      %v749 = vld [vmem:[%s394 + $0x1a] sm:$0xff]
      %v750 = vld [vmem:[%s394 + $0x22] sm:$0xff]
      %v751 = vld [vmem:[%s394 + $0x32] sm:$0xff]
      %v752 = vld [vmem:[%s394 + $0x3a] sm:$0xff]
      %v753 = vld [vmem:[%s394 + $0x4a] sm:$0xff]
      %v754 = vld [vmem:[%s394 + $0x52] sm:$0xff]
      %v755 = vld [vmem:[%s394 + $0x62] sm:$0xff]
      %v756 = vld [vmem:[%s394 + $0x6a] sm:$0xff]
      %v757 = vld [vmem:[%s394 + $0x7a] sm:$0xff]
      %v758 = vld [vmem:[%s394 + $0x82] sm:$0xff]
      %v759 = vld [vmem:[%s394 + $0x92] sm:$0xff]
      %v760 = vld [vmem:[%s394 + $0x9a] sm:$0xff]
      %v761 = vld [vmem:[%s394 + $0xaa] sm:$0xff]
      %v762 = vld [vmem:[%s394 + $0xb2] sm:$0xff]
      %v763 = vld [vmem:[%s394 + $0xc2] sm:$0xff]
      %v764 = vld [vmem:[%s394 + $0xca] sm:$0xff]
      %v765 = vld [vmem:[%s394 + $0xda] sm:$0xff]
      %v766 = vld [vmem:[%s394 + $0xe2] sm:$0xff]
      %v767 = vld [vmem:[%s394 + $0xf2] sm:$0xff]
      %v768 = vld [vmem:[%s394 + $0xfa] sm:$0xff]
      %v769 = vld [vmem:[%s394 + $0x10a] sm:$0xff]
      %v770 = vld [vmem:[%s394 + $0x112] sm:$0xff]
      %v771 = vld [vmem:[%s394 + $0x122] sm:$0xff]
      %v772 = vld [vmem:[%s394 + $0x12a] sm:$0xff]
      %v773 = vld [vmem:[%s394 + $0x13a] sm:$0xff]
      %v774 = vld [vmem:[%s394 + $0x142] sm:$0xff]
      %v775 = vld [vmem:[%s394 + $0x152] sm:$0xff]
      %v776 = vld [vmem:[%s394 + $0x15a] sm:$0xff]
      %v777 = vld [vmem:[%s394 + $0x16a] sm:$0xff]
      %v778 = vld [vmem:[%s394 + $0x172] sm:$0xff]
      %v779 = vpack.c.bf16 %v748, %v747
      %v780 = vpack.c.bf16 %v750, %v749
      %v781 = vpack.c.bf16 %v752, %v751
      %v782 = vpack.c.bf16 %v754, %v753
      %v783 = vpack.c.bf16 %v756, %v755
      %v784 = vpack.c.bf16 %v758, %v757
      %v785 = vpack.c.bf16 %v760, %v759
      %v786 = vpack.c.bf16 %v762, %v761
      %v787 = vpack.c.bf16 %v764, %v763
      %v788 = vpack.c.bf16 %v766, %v765
      %v789 = vpack.c.bf16 %v768, %v767
      %v790 = vpack.c.bf16 %v770, %v769
      %v791 = vpack.c.bf16 %v772, %v771
      %v792 = vpack.c.bf16 %v774, %v773
      %v793 = vpack.c.bf16 %v776, %v775
      %v794 = vpack.c.bf16 %v778, %v777
      %795 = vst [vmem:[#allocation3 + $0x28] sm:$0xff] %v779
      %796 = vst [vmem:[#allocation3 + $0x70] sm:$0xff] %v780
      %797 = vst [vmem:[#allocation3 + $0xb8] sm:$0xff] %v781
      %798 = vst [vmem:[#allocation3 + $0x100] sm:$0xff] %v782
      %799 = vst [vmem:[#allocation3 + $0x148] sm:$0xff] %v783
      %800 = vst [vmem:[#allocation3 + $0x190] sm:$0xff] %v784
      %801 = vst [vmem:[#allocation3 + $0x1d8] sm:$0xff] %v785
      %802 = vst [vmem:[#allocation3 + $0x220] sm:$0xff] %v786
      %803 = vst [vmem:[#allocation3 + $0x268] sm:$0xff] %v787
      %804 = vst [vmem:[#allocation3 + $0x2b0] sm:$0xff] %v788
      %805 = vst [vmem:[#allocation3 + $0x2f8] sm:$0xff] %v789
      %806 = vst [vmem:[#allocation3 + $0x340] sm:$0xff] %v790
      %807 = vst [vmem:[#allocation3 + $0x388] sm:$0xff] %v791
      %808 = vst [vmem:[#allocation3 + $0x3d0] sm:$0xff] %v792
      %809 = vst [vmem:[#allocation3 + $0x418] sm:$0xff] %v793
      %810 = vst [vmem:[#allocation3 + $0x460] sm:$0xff] %v794
      %s811 = scalar_lea.vmem [#allocation2], 48
      %v812 = vld [vmem:[%s811] sm:$0xff]
      %v813 = vld [vmem:[%s811 + $0x8] sm:$0xff]
      %v814 = vld [vmem:[%s811 + $0x18] sm:$0xff]
      %v815 = vld [vmem:[%s811 + $0x20] sm:$0xff]
      %v816 = vld [vmem:[%s811 + $0x30] sm:$0xff]
      %v817 = vld [vmem:[%s811 + $0x38] sm:$0xff]
      %v818 = vld [vmem:[%s811 + $0x48] sm:$0xff]
      %v819 = vld [vmem:[%s811 + $0x50] sm:$0xff]
      %v820 = vld [vmem:[%s811 + $0x60] sm:$0xff]
      %v821 = vld [vmem:[%s811 + $0x68] sm:$0xff]
      %v822 = vld [vmem:[%s811 + $0x78] sm:$0xff]
      %v823 = vld [vmem:[%s811 + $0x80] sm:$0xff]
      %v824 = vld [vmem:[%s811 + $0x90] sm:$0xff]
      %v825 = vld [vmem:[%s811 + $0x98] sm:$0xff]
      %v826 = vld [vmem:[%s811 + $0xa8] sm:$0xff]
      %v827 = vld [vmem:[%s811 + $0xb0] sm:$0xff]
      %v828 = vld [vmem:[%s811 + $0xc0] sm:$0xff]
      %v829 = vld [vmem:[%s811 + $0xc8] sm:$0xff]
      %v830 = vld [vmem:[%s811 + $0xd8] sm:$0xff]
      %v831 = vld [vmem:[%s811 + $0xe0] sm:$0xff]
      %v832 = vld [vmem:[%s811 + $0xf0] sm:$0xff]
      %v833 = vld [vmem:[%s811 + $0xf8] sm:$0xff]
      %v834 = vld [vmem:[%s811 + $0x108] sm:$0xff]
      %v835 = vld [vmem:[%s811 + $0x110] sm:$0xff]
      %v836 = vld [vmem:[%s811 + $0x120] sm:$0xff]
      %v837 = vld [vmem:[%s811 + $0x128] sm:$0xff]
      %v838 = vld [vmem:[%s811 + $0x138] sm:$0xff]
      %v839 = vld [vmem:[%s811 + $0x140] sm:$0xff]
      %v840 = vld [vmem:[%s811 + $0x150] sm:$0xff]
      %v841 = vld [vmem:[%s811 + $0x158] sm:$0xff]
      %v842 = vld [vmem:[%s811 + $0x168] sm:$0xff]
      %v843 = vld [vmem:[%s811 + $0x170] sm:$0xff]
      %v844 = vpack.c.bf16 %v813, %v812
      %v845 = vpack.c.bf16 %v815, %v814
      %v846 = vpack.c.bf16 %v817, %v816
      %v847 = vpack.c.bf16 %v819, %v818
      %v848 = vpack.c.bf16 %v821, %v820
      %v849 = vpack.c.bf16 %v823, %v822
      %v850 = vpack.c.bf16 %v825, %v824
      %v851 = vpack.c.bf16 %v827, %v826
      %v852 = vpack.c.bf16 %v829, %v828
      %v853 = vpack.c.bf16 %v831, %v830
      %v854 = vpack.c.bf16 %v833, %v832
      %v855 = vpack.c.bf16 %v835, %v834
      %v856 = vpack.c.bf16 %v837, %v836
      %v857 = vpack.c.bf16 %v839, %v838
      %v858 = vpack.c.bf16 %v841, %v840
      %v859 = vpack.c.bf16 %v843, %v842
      %860 = vst [vmem:[#allocation3 + $0x30] sm:$0xff] %v844
      %861 = vst [vmem:[#allocation3 + $0x78] sm:$0xff] %v845
      %862 = vst [vmem:[#allocation3 + $0xc0] sm:$0xff] %v846
      %863 = vst [vmem:[#allocation3 + $0x108] sm:$0xff] %v847
      %864 = vst [vmem:[#allocation3 + $0x150] sm:$0xff] %v848
      %865 = vst [vmem:[#allocation3 + $0x198] sm:$0xff] %v849
      %866 = vst [vmem:[#allocation3 + $0x1e0] sm:$0xff] %v850
      %867 = vst [vmem:[#allocation3 + $0x228] sm:$0xff] %v851
      %868 = vst [vmem:[#allocation3 + $0x270] sm:$0xff] %v852
      %869 = vst [vmem:[#allocation3 + $0x2b8] sm:$0xff] %v853
      %870 = vst [vmem:[#allocation3 + $0x300] sm:$0xff] %v854
      %871 = vst [vmem:[#allocation3 + $0x348] sm:$0xff] %v855
      %872 = vst [vmem:[#allocation3 + $0x390] sm:$0xff] %v856
      %873 = vst [vmem:[#allocation3 + $0x3d8] sm:$0xff] %v857
      %874 = vst [vmem:[#allocation3 + $0x420] sm:$0xff] %v858
      %875 = vst [vmem:[#allocation3 + $0x468] sm:$0xff] %v859
      %v876 = vld [vmem:[%s811 + $0x1] sm:$0xff]
      %v877 = vld [vmem:[%s811 + $0x9] sm:$0xff]
      %v878 = vld [vmem:[%s811 + $0x19] sm:$0xff]
      %v879 = vld [vmem:[%s811 + $0x21] sm:$0xff]
      %v880 = vld [vmem:[%s811 + $0x31] sm:$0xff]
      %v881 = vld [vmem:[%s811 + $0x39] sm:$0xff]
      %v882 = vld [vmem:[%s811 + $0x49] sm:$0xff]
      %v883 = vld [vmem:[%s811 + $0x51] sm:$0xff]
      %v884 = vld [vmem:[%s811 + $0x61] sm:$0xff]
      %v885 = vld [vmem:[%s811 + $0x69] sm:$0xff]
      %v886 = vld [vmem:[%s811 + $0x79] sm:$0xff]
      %v887 = vld [vmem:[%s811 + $0x81] sm:$0xff]
      %v888 = vld [vmem:[%s811 + $0x91] sm:$0xff]
      %v889 = vld [vmem:[%s811 + $0x99] sm:$0xff]
      %v890 = vld [vmem:[%s811 + $0xa9] sm:$0xff]
      %v891 = vld [vmem:[%s811 + $0xb1] sm:$0xff]
      %v892 = vld [vmem:[%s811 + $0xc1] sm:$0xff]
      %v893 = vld [vmem:[%s811 + $0xc9] sm:$0xff]
      %v894 = vld [vmem:[%s811 + $0xd9] sm:$0xff]
      %v895 = vld [vmem:[%s811 + $0xe1] sm:$0xff]
      %v896 = vld [vmem:[%s811 + $0xf1] sm:$0xff]
      %v897 = vld [vmem:[%s811 + $0xf9] sm:$0xff]
      %v898 = vld [vmem:[%s811 + $0x109] sm:$0xff]
      %v899 = vld [vmem:[%s811 + $0x111] sm:$0xff]
      %v900 = vld [vmem:[%s811 + $0x121] sm:$0xff]
      %v901 = vld [vmem:[%s811 + $0x129] sm:$0xff]
      %v902 = vld [vmem:[%s811 + $0x139] sm:$0xff]
      %v903 = vld [vmem:[%s811 + $0x141] sm:$0xff]
      %v904 = vld [vmem:[%s811 + $0x151] sm:$0xff]
      %v905 = vld [vmem:[%s811 + $0x159] sm:$0xff]
      %v906 = vld [vmem:[%s811 + $0x169] sm:$0xff]
      %v907 = vld [vmem:[%s811 + $0x171] sm:$0xff]
      %v908 = vpack.c.bf16 %v877, %v876
      %v909 = vpack.c.bf16 %v879, %v878
      %v910 = vpack.c.bf16 %v881, %v880
      %v911 = vpack.c.bf16 %v883, %v882
      %v912 = vpack.c.bf16 %v885, %v884
      %v913 = vpack.c.bf16 %v887, %v886
      %v914 = vpack.c.bf16 %v889, %v888
      %v915 = vpack.c.bf16 %v891, %v890
      %v916 = vpack.c.bf16 %v893, %v892
      %v917 = vpack.c.bf16 %v895, %v894
      %v918 = vpack.c.bf16 %v897, %v896
      %v919 = vpack.c.bf16 %v899, %v898
      %v920 = vpack.c.bf16 %v901, %v900
      %v921 = vpack.c.bf16 %v903, %v902
      %v922 = vpack.c.bf16 %v905, %v904
      %v923 = vpack.c.bf16 %v907, %v906
      %924 = vst [vmem:[#allocation3 + $0x38] sm:$0xff] %v908
      %925 = vst [vmem:[#allocation3 + $0x80] sm:$0xff] %v909
      %926 = vst [vmem:[#allocation3 + $0xc8] sm:$0xff] %v910
      %927 = vst [vmem:[#allocation3 + $0x110] sm:$0xff] %v911
      %928 = vst [vmem:[#allocation3 + $0x158] sm:$0xff] %v912
      %929 = vst [vmem:[#allocation3 + $0x1a0] sm:$0xff] %v913
      %930 = vst [vmem:[#allocation3 + $0x1e8] sm:$0xff] %v914
      %931 = vst [vmem:[#allocation3 + $0x230] sm:$0xff] %v915
      %932 = vst [vmem:[#allocation3 + $0x278] sm:$0xff] %v916
      %933 = vst [vmem:[#allocation3 + $0x2c0] sm:$0xff] %v917
      %934 = vst [vmem:[#allocation3 + $0x308] sm:$0xff] %v918
      %935 = vst [vmem:[#allocation3 + $0x350] sm:$0xff] %v919
      %936 = vst [vmem:[#allocation3 + $0x398] sm:$0xff] %v920
      %937 = vst [vmem:[#allocation3 + $0x3e0] sm:$0xff] %v921
      %938 = vst [vmem:[#allocation3 + $0x428] sm:$0xff] %v922
      %939 = vst [vmem:[#allocation3 + $0x470] sm:$0xff] %v923
      %v940 = vld [vmem:[%s811 + $0x2] sm:$0xff]
      %v941 = vld [vmem:[%s811 + $0xa] sm:$0xff]
      %v942 = vld [vmem:[%s811 + $0x1a] sm:$0xff]
      %v943 = vld [vmem:[%s811 + $0x22] sm:$0xff]
      %v944 = vld [vmem:[%s811 + $0x32] sm:$0xff]
      %v945 = vld [vmem:[%s811 + $0x3a] sm:$0xff]
      %v946 = vld [vmem:[%s811 + $0x4a] sm:$0xff]
      %v947 = vld [vmem:[%s811 + $0x52] sm:$0xff]
      %v948 = vld [vmem:[%s811 + $0x62] sm:$0xff]
      %v949 = vld [vmem:[%s811 + $0x6a] sm:$0xff]
      %v950 = vld [vmem:[%s811 + $0x7a] sm:$0xff]
      %v951 = vld [vmem:[%s811 + $0x82] sm:$0xff]
      %v952 = vld [vmem:[%s811 + $0x92] sm:$0xff]
      %v953 = vld [vmem:[%s811 + $0x9a] sm:$0xff]
      %v954 = vld [vmem:[%s811 + $0xaa] sm:$0xff]
      %v955 = vld [vmem:[%s811 + $0xb2] sm:$0xff]
      %v956 = vld [vmem:[%s811 + $0xc2] sm:$0xff]
      %v957 = vld [vmem:[%s811 + $0xca] sm:$0xff]
      %v958 = vld [vmem:[%s811 + $0xda] sm:$0xff]
      %v959 = vld [vmem:[%s811 + $0xe2] sm:$0xff]
      %v960 = vld [vmem:[%s811 + $0xf2] sm:$0xff]
      %v961 = vld [vmem:[%s811 + $0xfa] sm:$0xff]
      %v962 = vld [vmem:[%s811 + $0x10a] sm:$0xff]
      %v963 = vld [vmem:[%s811 + $0x112] sm:$0xff]
      %v964 = vld [vmem:[%s811 + $0x122] sm:$0xff]
      %v965 = vld [vmem:[%s811 + $0x12a] sm:$0xff]
      %v966 = vld [vmem:[%s811 + $0x13a] sm:$0xff]
      %v967 = vld [vmem:[%s811 + $0x142] sm:$0xff]
      %v968 = vld [vmem:[%s811 + $0x152] sm:$0xff]
      %v969 = vld [vmem:[%s811 + $0x15a] sm:$0xff]
      %v970 = vld [vmem:[%s811 + $0x16a] sm:$0xff]
      %v971 = vld [vmem:[%s811 + $0x172] sm:$0xff]
      %v972 = vpack.c.bf16 %v941, %v940
      %v973 = vpack.c.bf16 %v943, %v942
      %v974 = vpack.c.bf16 %v945, %v944
      %v975 = vpack.c.bf16 %v947, %v946
      %v976 = vpack.c.bf16 %v949, %v948
      %v977 = vpack.c.bf16 %v951, %v950
      %v978 = vpack.c.bf16 %v953, %v952
      %v979 = vpack.c.bf16 %v955, %v954
      %v980 = vpack.c.bf16 %v957, %v956
      %v981 = vpack.c.bf16 %v959, %v958
      %v982 = vpack.c.bf16 %v961, %v960
      %v983 = vpack.c.bf16 %v963, %v962
      %v984 = vpack.c.bf16 %v965, %v964
      %v985 = vpack.c.bf16 %v967, %v966
      %v986 = vpack.c.bf16 %v969, %v968
      %v987 = vpack.c.bf16 %v971, %v970
      %988 = vst [vmem:[#allocation3 + $0x40] sm:$0xff] %v972
      %989 = vst [vmem:[#allocation3 + $0x88] sm:$0xff] %v973
      %990 = vst [vmem:[#allocation3 + $0xd0] sm:$0xff] %v974
      %991 = vst [vmem:[#allocation3 + $0x118] sm:$0xff] %v975
      %992 = vst [vmem:[#allocation3 + $0x160] sm:$0xff] %v976
      %993 = vst [vmem:[#allocation3 + $0x1a8] sm:$0xff] %v977
      %994 = vst [vmem:[#allocation3 + $0x1f0] sm:$0xff] %v978
      %995 = vst [vmem:[#allocation3 + $0x238] sm:$0xff] %v979
      %996 = vst [vmem:[#allocation3 + $0x280] sm:$0xff] %v980
      %997 = vst [vmem:[#allocation3 + $0x2c8] sm:$0xff] %v981
      %998 = vst [vmem:[#allocation3 + $0x310] sm:$0xff] %v982
      %999 = vst [vmem:[#allocation3 + $0x358] sm:$0xff] %v983
      %1000 = vst [vmem:[#allocation3 + $0x3a0] sm:$0xff] %v984
      %1001 = vst [vmem:[#allocation3 + $0x3e8] sm:$0xff] %v985
      %1002 = vst [vmem:[#allocation3 + $0x430] sm:$0xff] %v986
      %1003 = vst [vmem:[#allocation3 + $0x478] sm:$0xff] %v987
      %v1004 = vld [vmem:[#allocation3] sm:$0xff]
      %v1005 = vld [vmem:[#allocation3 + $0x8] sm:$0xff]
      %v1006 = vld [vmem:[#allocation3 + $0x10] sm:$0xff]
      %v1007 = vld [vmem:[#allocation3 + $0x18] sm:$0xff]
      %v1008 = vld [vmem:[#allocation3 + $0x20] sm:$0xff]
      %v1009 = vld [vmem:[#allocation3 + $0x28] sm:$0xff]
      %v1010 = vld [vmem:[#allocation3 + $0x30] sm:$0xff]
      %v1011 = vld [vmem:[#allocation3 + $0x38] sm:$0xff]
      %v1012 = vld [vmem:[#allocation3 + $0x40] sm:$0xff]
      %v1013 = vld [vmem:[#allocation3 + $0x48] sm:$0xff]
      %v1014 = vld [vmem:[#allocation3 + $0x50] sm:$0xff]
      %v1015 = vld [vmem:[#allocation3 + $0x58] sm:$0xff]
      %v1016 = vld [vmem:[#allocation3 + $0x60] sm:$0xff]
      %v1017 = vld [vmem:[#allocation3 + $0x68] sm:$0xff]
      %v1018 = vld [vmem:[#allocation3 + $0x70] sm:$0xff]
      %v1019 = vld [vmem:[#allocation3 + $0x78] sm:$0xff]
      %v1020 = vld [vmem:[#allocation3 + $0x80] sm:$0xff]
      %v1021 = vld [vmem:[#allocation3 + $0x88] sm:$0xff]
      %v1022 = vld [vmem:[#allocation3 + $0x90] sm:$0xff]
      %v1023 = vld [vmem:[#allocation3 + $0x98] sm:$0xff]
      %v1024 = vld [vmem:[#allocation3 + $0xa0] sm:$0xff]
      %v1025 = vld [vmem:[#allocation3 + $0xa8] sm:$0xff]
      %v1026 = vld [vmem:[#allocation3 + $0xb0] sm:$0xff]
      %v1027 = vld [vmem:[#allocation3 + $0xb8] sm:$0xff]
      %v1028 = vld [vmem:[#allocation3 + $0xc0] sm:$0xff]
      %v1029 = vld [vmem:[#allocation3 + $0xc8] sm:$0xff]
      %v1030 = vld [vmem:[#allocation3 + $0xd0] sm:$0xff]
      %v1031 = vld [vmem:[#allocation3 + $0xd8] sm:$0xff]
      %v1032 = vld [vmem:[#allocation3 + $0xe0] sm:$0xff]
      %v1033 = vld [vmem:[#allocation3 + $0xe8] sm:$0xff]
      %v1034 = vld [vmem:[#allocation3 + $0xf0] sm:$0xff]
      %v1035 = vld [vmem:[#allocation3 + $0xf8] sm:$0xff]
      %v1036 = vld [vmem:[#allocation3 + $0x100] sm:$0xff]
      %v1037 = vld [vmem:[#allocation3 + $0x108] sm:$0xff]
      %v1038 = vld [vmem:[#allocation3 + $0x110] sm:$0xff]
      %v1039 = vld [vmem:[#allocation3 + $0x118] sm:$0xff]
      %v1040 = vld [vmem:[#allocation3 + $0x120] sm:$0xff]
      %v1041 = vld [vmem:[#allocation3 + $0x128] sm:$0xff]
      %v1042 = vld [vmem:[#allocation3 + $0x130] sm:$0xff]
      %v1043 = vld [vmem:[#allocation3 + $0x138] sm:$0xff]
      %v1044 = vld [vmem:[#allocation3 + $0x140] sm:$0xff]
      %v1045 = vld [vmem:[#allocation3 + $0x148] sm:$0xff]
      %v1046 = vld [vmem:[#allocation3 + $0x150] sm:$0xff]
      %v1047 = vld [vmem:[#allocation3 + $0x158] sm:$0xff]
      %v1048 = vld [vmem:[#allocation3 + $0x160] sm:$0xff]
      %v1049 = vld [vmem:[#allocation3 + $0x168] sm:$0xff]
      %v1050 = vld [vmem:[#allocation3 + $0x170] sm:$0xff]
      %v1051 = vld [vmem:[#allocation3 + $0x178] sm:$0xff]
      %v1052 = vld [vmem:[#allocation3 + $0x180] sm:$0xff]
      %v1053 = vld [vmem:[#allocation3 + $0x188] sm:$0xff]
      %v1054 = vld [vmem:[#allocation3 + $0x190] sm:$0xff]
      %v1055 = vld [vmem:[#allocation3 + $0x198] sm:$0xff]
      %v1056 = vld [vmem:[#allocation3 + $0x1a0] sm:$0xff]
      %v1057 = vld [vmem:[#allocation3 + $0x1a8] sm:$0xff]
      %v1058 = vld [vmem:[#allocation3 + $0x1b0] sm:$0xff]
      %v1059 = vld [vmem:[#allocation3 + $0x1b8] sm:$0xff]
      %v1060 = vld [vmem:[#allocation3 + $0x1c0] sm:$0xff]
      %v1061 = vld [vmem:[#allocation3 + $0x1c8] sm:$0xff]
      %v1062 = vld [vmem:[#allocation3 + $0x1d0] sm:$0xff]
      %v1063 = vld [vmem:[#allocation3 + $0x1d8] sm:$0xff]
      %v1064 = vld [vmem:[#allocation3 + $0x1e0] sm:$0xff]
      %v1065 = vld [vmem:[#allocation3 + $0x1e8] sm:$0xff]
      %v1066 = vld [vmem:[#allocation3 + $0x1f0] sm:$0xff]
      %v1067 = vld [vmem:[#allocation3 + $0x1f8] sm:$0xff]
      %v1068 = vld [vmem:[#allocation3 + $0x200] sm:$0xff]
      %v1069 = vld [vmem:[#allocation3 + $0x208] sm:$0xff]
      %v1070 = vld [vmem:[#allocation3 + $0x210] sm:$0xff]
      %v1071 = vld [vmem:[#allocation3 + $0x218] sm:$0xff]
      %v1072 = vld [vmem:[#allocation3 + $0x220] sm:$0xff]
      %v1073 = vld [vmem:[#allocation3 + $0x228] sm:$0xff]
      %v1074 = vld [vmem:[#allocation3 + $0x230] sm:$0xff]
      %v1075 = vld [vmem:[#allocation3 + $0x238] sm:$0xff]
      %v1076 = vld [vmem:[#allocation3 + $0x240] sm:$0xff]
      %v1077 = vld [vmem:[#allocation3 + $0x248] sm:$0xff]
      %v1078 = vld [vmem:[#allocation3 + $0x250] sm:$0xff]
      %v1079 = vld [vmem:[#allocation3 + $0x258] sm:$0xff]
      %v1080 = vld [vmem:[#allocation3 + $0x260] sm:$0xff]
      %v1081 = vld [vmem:[#allocation3 + $0x268] sm:$0xff]
      %v1082 = vld [vmem:[#allocation3 + $0x270] sm:$0xff]
      %v1083 = vld [vmem:[#allocation3 + $0x278] sm:$0xff]
      %v1084 = vld [vmem:[#allocation3 + $0x280] sm:$0xff]
      %v1085 = vld [vmem:[#allocation3 + $0x288] sm:$0xff]
      %v1086 = vld [vmem:[#allocation3 + $0x290] sm:$0xff]
      %v1087 = vld [vmem:[#allocation3 + $0x298] sm:$0xff]
      %v1088 = vld [vmem:[#allocation3 + $0x2a0] sm:$0xff]
      %v1089 = vld [vmem:[#allocation3 + $0x2a8] sm:$0xff]
      %v1090 = vld [vmem:[#allocation3 + $0x2b0] sm:$0xff]
      %v1091 = vld [vmem:[#allocation3 + $0x2b8] sm:$0xff]
      %v1092 = vld [vmem:[#allocation3 + $0x2c0] sm:$0xff]
      %v1093 = vld [vmem:[#allocation3 + $0x2c8] sm:$0xff]
      %v1094 = vld [vmem:[#allocation3 + $0x2d0] sm:$0xff]
      %v1095 = vld [vmem:[#allocation3 + $0x2d8] sm:$0xff]
      %v1096 = vld [vmem:[#allocation3 + $0x2e0] sm:$0xff]
      %v1097 = vld [vmem:[#allocation3 + $0x2e8] sm:$0xff]
      %v1098 = vld [vmem:[#allocation3 + $0x2f0] sm:$0xff]
      %v1099 = vld [vmem:[#allocation3 + $0x2f8] sm:$0xff]
      %v1100 = vld [vmem:[#allocation3 + $0x300] sm:$0xff]
      %v1101 = vld [vmem:[#allocation3 + $0x308] sm:$0xff]
      %v1102 = vld [vmem:[#allocation3 + $0x310] sm:$0xff]
      %v1103 = vld [vmem:[#allocation3 + $0x318] sm:$0xff]
      %v1104 = vld [vmem:[#allocation3 + $0x320] sm:$0xff]
      %v1105 = vld [vmem:[#allocation3 + $0x328] sm:$0xff]
      %v1106 = vld [vmem:[#allocation3 + $0x330] sm:$0xff]
      %v1107 = vld [vmem:[#allocation3 + $0x338] sm:$0xff]
      %v1108 = vld [vmem:[#allocation3 + $0x340] sm:$0xff]
      %v1109 = vld [vmem:[#allocation3 + $0x348] sm:$0xff]
      %v1110 = vld [vmem:[#allocation3 + $0x350] sm:$0xff]
      %v1111 = vld [vmem:[#allocation3 + $0x358] sm:$0xff]
      %v1112 = vld [vmem:[#allocation3 + $0x360] sm:$0xff]
      %v1113 = vld [vmem:[#allocation3 + $0x368] sm:$0xff]
      %v1114 = vld [vmem:[#allocation3 + $0x370] sm:$0xff]
      %v1115 = vld [vmem:[#allocation3 + $0x378] sm:$0xff]
      %v1116 = vld [vmem:[#allocation3 + $0x380] sm:$0xff]
      %v1117 = vld [vmem:[#allocation3 + $0x388] sm:$0xff]
      %v1118 = vld [vmem:[#allocation3 + $0x390] sm:$0xff]
      %v1119 = vld [vmem:[#allocation3 + $0x398] sm:$0xff]
      %v1120 = vld [vmem:[#allocation3 + $0x3a0] sm:$0xff]
      %v1121 = vld [vmem:[#allocation3 + $0x3a8] sm:$0xff]
      %v1122 = vld [vmem:[#allocation3 + $0x3b0] sm:$0xff]
      %v1123 = vld [vmem:[#allocation3 + $0x3b8] sm:$0xff]
      %v1124 = vld [vmem:[#allocation3 + $0x3c0] sm:$0xff]
      %v1125 = vld [vmem:[#allocation3 + $0x3c8] sm:$0xff]
      %v1126 = vld [vmem:[#allocation3 + $0x3d0] sm:$0xff]
      %v1127 = vld [vmem:[#allocation3 + $0x3d8] sm:$0xff]
      %v1128 = vld [vmem:[#allocation3 + $0x3e0] sm:$0xff]
      %v1129 = vld [vmem:[#allocation3 + $0x3e8] sm:$0xff]
      %v1130 = vld [vmem:[#allocation3 + $0x3f0] sm:$0xff]
      %v1131 = vld [vmem:[#allocation3 + $0x3f8] sm:$0xff]
      %v1132 = vld [vmem:[#allocation3 + $0x400] sm:$0xff]
      %v1133 = vld [vmem:[#allocation3 + $0x408] sm:$0xff]
      %v1134 = vld [vmem:[#allocation3 + $0x410] sm:$0xff]
      %v1135 = vld [vmem:[#allocation3 + $0x418] sm:$0xff]
      %v1136 = vld [vmem:[#allocation3 + $0x420] sm:$0xff]
      %v1137 = vld [vmem:[#allocation3 + $0x428] sm:$0xff]
      %v1138 = vld [vmem:[#allocation3 + $0x430] sm:$0xff]
      %v1139 = vld [vmem:[#allocation3 + $0x438] sm:$0xff]
      %v1140 = vld [vmem:[#allocation3 + $0x440] sm:$0xff]
      %v1141 = vld [vmem:[#allocation3 + $0x448] sm:$0xff]
      %v1142 = vld [vmem:[#allocation3 + $0x450] sm:$0xff]
      %v1143 = vld [vmem:[#allocation3 + $0x458] sm:$0xff]
      %v1144 = vld [vmem:[#allocation3 + $0x460] sm:$0xff]
      %v1145 = vld [vmem:[#allocation3 + $0x468] sm:$0xff]
      %v1146 = vld [vmem:[#allocation3 + $0x470] sm:$0xff]
      %v1147 = vld [vmem:[#allocation3 + $0x478] sm:$0xff]
      %v1148 = vld [vmem:[%s3] sm:$0xf]
      %v1149 = vld [vmem:[%s3 + $0x4] sm:$0xf]
      %v1150 = vld [vmem:[%s3 + $0x8] sm:$0xf]
      %v1151 = vld [vmem:[%s3 + $0xc] sm:$0xf]
      %v1152 = vld [vmem:[%s3 + $0x10] sm:$0xf]
      %v1153 = vld [vmem:[%s3 + $0x14] sm:$0xf]
      %v1154 = vld [vmem:[%s3 + $0x18] sm:$0xf]
      %v1155 = vld [vmem:[%s3 + $0x1c] sm:$0xf]
      %v1156 = vld [vmem:[%s3 + $0x20] sm:$0xf]
      %v1157 = vld [vmem:[%s3 + $0x24] sm:$0xf]
      %v1158 = vld [vmem:[%s3 + $0x28] sm:$0xf]
      %v1159 = vld [vmem:[%s3 + $0x2c] sm:$0xf]
      %v1160 = vld [vmem:[%s3 + $0x30] sm:$0xf]
      %v1161 = vld [vmem:[%s3 + $0x34] sm:$0xf]
      %v1162 = vld [vmem:[%s3 + $0x38] sm:$0xf]
      %v1163 = vld [vmem:[%s3 + $0x3c] sm:$0xf]
      %v1164 = vld [vmem:[%s3 + $0x40] sm:$0xf]
      %v1165 = vld [vmem:[%s3 + $0x44] sm:$0xf]
      %v1166 = vld [vmem:[%s3 + $0x48] sm:$0xf]
      %v1167 = vld [vmem:[%s3 + $0x4c] sm:$0xf]
      %v1168 = vld [vmem:[%s3 + $0x50] sm:$0xf]
      %v1169 = vld [vmem:[%s3 + $0x54] sm:$0xf]
      %v1170 = vld [vmem:[%s3 + $0x58] sm:$0xf]
      %v1171 = vld [vmem:[%s3 + $0x5c] sm:$0xf]
      %v1172 = vld [vmem:[%s3 + $0x60] sm:$0xf]
      %v1173 = vld [vmem:[%s3 + $0x64] sm:$0xf]
      %v1174 = vld [vmem:[%s3 + $0x68] sm:$0xf]
      %v1175 = vld [vmem:[%s3 + $0x6c] sm:$0xf]
      %v1176 = vld [vmem:[%s3 + $0x70] sm:$0xf]
      %v1177 = vld [vmem:[%s3 + $0x74] sm:$0xf]
      %v1178 = vld [vmem:[%s3 + $0x78] sm:$0xf]
      %v1179 = vld [vmem:[%s3 + $0x7c] sm:$0xf]
      %v1180 = vld [vmem:[%s3 + $0x80] sm:$0xf]
      %v1181 = vld [vmem:[%s3 + $0x84] sm:$0xf]
      %v1182 = vld [vmem:[%s3 + $0x88] sm:$0xf]
      %v1183 = vld [vmem:[%s3 + $0x8c] sm:$0xf]
      %v1184 = vld [vmem:[%s3 + $0x90] sm:$0xf]
      %v1185 = vld [vmem:[%s3 + $0x94] sm:$0xf]
      %v1186 = vld [vmem:[%s3 + $0x98] sm:$0xf]
      %v1187 = vld [vmem:[%s3 + $0x9c] sm:$0xf]
      %v1188 = vld [vmem:[%s3 + $0xa0] sm:$0xf]
      %v1189 = vld [vmem:[%s3 + $0xa4] sm:$0xf]
      %v1190 = vld [vmem:[%s3 + $0xa8] sm:$0xf]
      %v1191 = vld [vmem:[%s3 + $0xac] sm:$0xf]
      %v1192 = vld [vmem:[%s3 + $0xb0] sm:$0xf]
      %v1193 = vld [vmem:[%s3 + $0xb4] sm:$0xf]
      %v1194 = vld [vmem:[%s3 + $0xb8] sm:$0xf]
      %v1195 = vld [vmem:[%s3 + $0xbc] sm:$0xf]
      %v1196 = vld [vmem:[%s3 + $0xc0] sm:$0xf]
      %v1197 = vld [vmem:[%s3 + $0xc4] sm:$0xf]
      %v1198 = vld [vmem:[%s3 + $0xc8] sm:$0xf]
      %v1199 = vld [vmem:[%s3 + $0xcc] sm:$0xf]
      %v1200 = vld [vmem:[%s3 + $0xd0] sm:$0xf]
      %v1201 = vld [vmem:[%s3 + $0xd4] sm:$0xf]
      %v1202 = vld [vmem:[%s3 + $0xd8] sm:$0xf]
      %v1203 = vld [vmem:[%s3 + $0xdc] sm:$0xf]
      %v1204 = vld [vmem:[%s3 + $0xe0] sm:$0xf]
      %v1205 = vld [vmem:[%s3 + $0xe4] sm:$0xf]
      %v1206 = vld [vmem:[%s3 + $0xe8] sm:$0xf]
      %v1207 = vld [vmem:[%s3 + $0xec] sm:$0xf]
      %v1208 = vld [vmem:[%s3 + $0xf0] sm:$0xf]
      %v1209 = vld [vmem:[%s3 + $0xf4] sm:$0xf]
      %v1210 = vld [vmem:[%s3 + $0xf8] sm:$0xf]
      %v1211 = vld [vmem:[%s3 + $0xfc] sm:$0xf]
      %v1212 = vld [vmem:[%s3 + $0x100] sm:$0xf]
      %v1213 = vld [vmem:[%s3 + $0x104] sm:$0xf]
      %v1214 = vld [vmem:[%s3 + $0x108] sm:$0xf]
      %v1215 = vld [vmem:[%s3 + $0x10c] sm:$0xf]
      %v1216 = vld [vmem:[%s3 + $0x110] sm:$0xf]
      %v1217 = vld [vmem:[%s3 + $0x114] sm:$0xf]
      %v1218 = vld [vmem:[%s3 + $0x118] sm:$0xf]
      %v1219 = vld [vmem:[%s3 + $0x11c] sm:$0xf]
      %v1220 = vld [vmem:[%s3 + $0x120] sm:$0xf]
      %v1221 = vld [vmem:[%s3 + $0x124] sm:$0xf]
      %v1222 = vld [vmem:[%s3 + $0x128] sm:$0xf]
      %v1223 = vld [vmem:[%s3 + $0x12c] sm:$0xf]
      %v1224 = vld [vmem:[%s3 + $0x130] sm:$0xf]
      %v1225 = vld [vmem:[%s3 + $0x134] sm:$0xf]
      %v1226 = vld [vmem:[%s3 + $0x138] sm:$0xf]
      %v1227 = vld [vmem:[%s3 + $0x13c] sm:$0xf]
      %v1228 = vld [vmem:[%s3 + $0x140] sm:$0xf]
      %v1229 = vld [vmem:[%s3 + $0x144] sm:$0xf]
      %v1230 = vld [vmem:[%s3 + $0x148] sm:$0xf]
      %v1231 = vld [vmem:[%s3 + $0x14c] sm:$0xf]
      %v1232 = vld [vmem:[%s3 + $0x150] sm:$0xf]
      %v1233 = vld [vmem:[%s3 + $0x154] sm:$0xf]
      %v1234 = vld [vmem:[%s3 + $0x158] sm:$0xf]
      %v1235 = vld [vmem:[%s3 + $0x15c] sm:$0xf]
      %v1236 = vld [vmem:[%s3 + $0x160] sm:$0xf]
      %v1237 = vld [vmem:[%s3 + $0x164] sm:$0xf]
      %v1238 = vld [vmem:[%s3 + $0x168] sm:$0xf]
      %v1239 = vld [vmem:[%s3 + $0x16c] sm:$0xf]
      %v1240 = vld [vmem:[%s3 + $0x170] sm:$0xf]
      %v1241 = vld [vmem:[%s3 + $0x174] sm:$0xf]
      %v1242 = vld [vmem:[%s3 + $0x178] sm:$0xf]
      %v1243 = vld [vmem:[%s3 + $0x17c] sm:$0xf]
      %v1244 = vld [vmem:[%s3 + $0x180] sm:$0xf]
      %v1245 = vld [vmem:[%s3 + $0x184] sm:$0xf]
      %v1246 = vld [vmem:[%s3 + $0x188] sm:$0xf]
      %v1247 = vld [vmem:[%s3 + $0x18c] sm:$0xf]
      %v1248 = vld [vmem:[%s3 + $0x190] sm:$0xf]
      %v1249 = vld [vmem:[%s3 + $0x194] sm:$0xf]
      %v1250 = vld [vmem:[%s3 + $0x198] sm:$0xf]
      %v1251 = vld [vmem:[%s3 + $0x19c] sm:$0xf]
      %v1252 = vld [vmem:[%s3 + $0x1a0] sm:$0xf]
      %v1253 = vld [vmem:[%s3 + $0x1a4] sm:$0xf]
      %v1254 = vld [vmem:[%s3 + $0x1a8] sm:$0xf]
      %v1255 = vld [vmem:[%s3 + $0x1ac] sm:$0xf]
      %v1256 = vld [vmem:[%s3 + $0x1b0] sm:$0xf]
      %v1257 = vld [vmem:[%s3 + $0x1b4] sm:$0xf]
      %v1258 = vld [vmem:[%s3 + $0x1b8] sm:$0xf]
      %v1259 = vld [vmem:[%s3 + $0x1bc] sm:$0xf]
      %v1260 = vld [vmem:[%s3 + $0x1c0] sm:$0xf]
      %v1261 = vld [vmem:[%s3 + $0x1c4] sm:$0xf]
      %v1262 = vld [vmem:[%s3 + $0x1c8] sm:$0xf]
      %v1263 = vld [vmem:[%s3 + $0x1cc] sm:$0xf]
      %v1264 = vld [vmem:[%s3 + $0x1d0] sm:$0xf]
      %v1265 = vld [vmem:[%s3 + $0x1d4] sm:$0xf]
      %v1266 = vld [vmem:[%s3 + $0x1d8] sm:$0xf]
      %v1267 = vld [vmem:[%s3 + $0x1dc] sm:$0xf]
      %v1268 = vld [vmem:[%s3 + $0x1e0] sm:$0xf]
      %v1269 = vld [vmem:[%s3 + $0x1e4] sm:$0xf]
      %v1270 = vld [vmem:[%s3 + $0x1e8] sm:$0xf]
      %v1271 = vld [vmem:[%s3 + $0x1ec] sm:$0xf]
      %v1272 = vld [vmem:[%s3 + $0x1f0] sm:$0xf]
      %v1273 = vld [vmem:[%s3 + $0x1f4] sm:$0xf]
      %v1274 = vld [vmem:[%s3 + $0x1f8] sm:$0xf]
      %v1275 = vld [vmem:[%s3 + $0x1fc] sm:$0xf]
      %v1276 = vld [vmem:[%s3 + $0x200] sm:$0xf]
      %v1277 = vld [vmem:[%s3 + $0x204] sm:$0xf]
      %v1278 = vld [vmem:[%s3 + $0x208] sm:$0xf]
      %v1279 = vld [vmem:[%s3 + $0x20c] sm:$0xf]
      %v1280 = vld [vmem:[%s3 + $0x210] sm:$0xf]
      %v1281 = vld [vmem:[%s3 + $0x214] sm:$0xf]
      %v1282 = vld [vmem:[%s3 + $0x218] sm:$0xf]
      %v1283 = vld [vmem:[%s3 + $0x21c] sm:$0xf]
      %v1284 = vld [vmem:[%s3 + $0x220] sm:$0xf]
      %v1285 = vld [vmem:[%s3 + $0x224] sm:$0xf]
      %v1286 = vld [vmem:[%s3 + $0x228] sm:$0xf]
      %v1287 = vld [vmem:[%s3 + $0x22c] sm:$0xf]
      %v1288 = vld [vmem:[%s3 + $0x230] sm:$0xf]
      %v1289 = vld [vmem:[%s3 + $0x234] sm:$0xf]
      %v1290 = vld [vmem:[%s3 + $0x238] sm:$0xf]
      %v1291 = vld [vmem:[%s3 + $0x23c] sm:$0xf]
      %v1436 = vunpack.c.l.b16 %v1148
      %v1437 = vunpack.c.l.b16 %v1149
      %v1438 = vunpack.c.l.b16 %v1150
      %v1439 = vunpack.c.l.b16 %v1151
      %v1440 = vunpack.c.l.b16 %v1152
      %v1441 = vunpack.c.l.b16 %v1153
      %v1442 = vunpack.c.l.b16 %v1154
      %v1443 = vunpack.c.l.b16 %v1155
      %v1444 = vunpack.c.l.b16 %v1156
      %v1445 = vunpack.c.l.b16 %v1157
      %v1446 = vunpack.c.l.b16 %v1158
      %v1447 = vunpack.c.l.b16 %v1159
      %v1448 = vunpack.c.l.b16 %v1160
      %v1449 = vunpack.c.l.b16 %v1161
      %v1450 = vunpack.c.l.b16 %v1162
      %v1451 = vunpack.c.l.b16 %v1163
      %v1452 = vunpack.c.l.b16 %v1164
      %v1453 = vunpack.c.l.b16 %v1165
      %v1454 = vunpack.c.l.b16 %v1166
      %v1455 = vunpack.c.l.b16 %v1167
      %v1456 = vunpack.c.l.b16 %v1168
      %v1457 = vunpack.c.l.b16 %v1169
      %v1458 = vunpack.c.l.b16 %v1170
      %v1459 = vunpack.c.l.b16 %v1171
      %v1460 = vunpack.c.l.b16 %v1172
      %v1461 = vunpack.c.l.b16 %v1173
      %v1462 = vunpack.c.l.b16 %v1174
      %v1463 = vunpack.c.l.b16 %v1175
      %v1464 = vunpack.c.l.b16 %v1176
      %v1465 = vunpack.c.l.b16 %v1177
      %v1466 = vunpack.c.l.b16 %v1178
      %v1467 = vunpack.c.l.b16 %v1179
      %v1468 = vunpack.c.l.b16 %v1180
      %v1469 = vunpack.c.l.b16 %v1181
      %v1470 = vunpack.c.l.b16 %v1182
      %v1471 = vunpack.c.l.b16 %v1183
      %v1472 = vunpack.c.l.b16 %v1184
      %v1473 = vunpack.c.l.b16 %v1185
      %v1474 = vunpack.c.l.b16 %v1186
      %v1475 = vunpack.c.l.b16 %v1187
      %v1476 = vunpack.c.l.b16 %v1188
      %v1477 = vunpack.c.l.b16 %v1189
      %v1478 = vunpack.c.l.b16 %v1190
      %v1479 = vunpack.c.l.b16 %v1191
      %v1480 = vunpack.c.l.b16 %v1192
      %v1481 = vunpack.c.l.b16 %v1193
      %v1482 = vunpack.c.l.b16 %v1194
      %v1483 = vunpack.c.l.b16 %v1195
      %v1484 = vunpack.c.l.b16 %v1196
      %v1485 = vunpack.c.l.b16 %v1197
      %v1486 = vunpack.c.l.b16 %v1198
      %v1487 = vunpack.c.l.b16 %v1199
      %v1488 = vunpack.c.l.b16 %v1200
      %v1489 = vunpack.c.l.b16 %v1201
      %v1490 = vunpack.c.l.b16 %v1202
      %v1491 = vunpack.c.l.b16 %v1203
      %v1492 = vunpack.c.l.b16 %v1204
      %v1493 = vunpack.c.l.b16 %v1205
      %v1494 = vunpack.c.l.b16 %v1206
      %v1495 = vunpack.c.l.b16 %v1207
      %v1496 = vunpack.c.l.b16 %v1208
      %v1497 = vunpack.c.l.b16 %v1209
      %v1498 = vunpack.c.l.b16 %v1210
      %v1499 = vunpack.c.l.b16 %v1211
      %v1500 = vunpack.c.l.b16 %v1212
      %v1501 = vunpack.c.l.b16 %v1213
      %v1502 = vunpack.c.l.b16 %v1214
      %v1503 = vunpack.c.l.b16 %v1215
      %v1504 = vunpack.c.l.b16 %v1216
      %v1505 = vunpack.c.l.b16 %v1217
      %v1506 = vunpack.c.l.b16 %v1218
      %v1507 = vunpack.c.l.b16 %v1219
      %v1508 = vunpack.c.l.b16 %v1220
      %v1509 = vunpack.c.l.b16 %v1221
      %v1510 = vunpack.c.l.b16 %v1222
      %v1511 = vunpack.c.l.b16 %v1223
      %v1512 = vunpack.c.l.b16 %v1224
      %v1513 = vunpack.c.l.b16 %v1225
      %v1514 = vunpack.c.l.b16 %v1226
      %v1515 = vunpack.c.l.b16 %v1227
      %v1516 = vunpack.c.l.b16 %v1228
      %v1517 = vunpack.c.l.b16 %v1229
      %v1518 = vunpack.c.l.b16 %v1230
      %v1519 = vunpack.c.l.b16 %v1231
      %v1520 = vunpack.c.l.b16 %v1232
      %v1521 = vunpack.c.l.b16 %v1233
      %v1522 = vunpack.c.l.b16 %v1234
      %v1523 = vunpack.c.l.b16 %v1235
      %v1524 = vunpack.c.l.b16 %v1236
      %v1525 = vunpack.c.l.b16 %v1237
      %v1526 = vunpack.c.l.b16 %v1238
      %v1527 = vunpack.c.l.b16 %v1239
      %v1528 = vunpack.c.l.b16 %v1240
      %v1529 = vunpack.c.l.b16 %v1241
      %v1530 = vunpack.c.l.b16 %v1242
      %v1531 = vunpack.c.l.b16 %v1243
      %v1532 = vunpack.c.l.b16 %v1244
      %v1533 = vunpack.c.l.b16 %v1245
      %v1534 = vunpack.c.l.b16 %v1246
      %v1535 = vunpack.c.l.b16 %v1247
      %v1536 = vunpack.c.l.b16 %v1248
      %v1537 = vunpack.c.l.b16 %v1249
      %v1538 = vunpack.c.l.b16 %v1250
      %v1539 = vunpack.c.l.b16 %v1251
      %v1540 = vunpack.c.l.b16 %v1252
      %v1541 = vunpack.c.l.b16 %v1253
      %v1542 = vunpack.c.l.b16 %v1254
      %v1543 = vunpack.c.l.b16 %v1255
      %v1544 = vunpack.c.l.b16 %v1256
      %v1545 = vunpack.c.l.b16 %v1257
      %v1546 = vunpack.c.l.b16 %v1258
      %v1547 = vunpack.c.l.b16 %v1259
      %v1548 = vunpack.c.l.b16 %v1260
      %v1549 = vunpack.c.l.b16 %v1261
      %v1550 = vunpack.c.l.b16 %v1262
      %v1551 = vunpack.c.l.b16 %v1263
      %v1552 = vunpack.c.l.b16 %v1264
      %v1553 = vunpack.c.l.b16 %v1265
      %v1554 = vunpack.c.l.b16 %v1266
      %v1555 = vunpack.c.l.b16 %v1267
      %v1556 = vunpack.c.l.b16 %v1268
      %v1557 = vunpack.c.l.b16 %v1269
      %v1558 = vunpack.c.l.b16 %v1270
      %v1559 = vunpack.c.l.b16 %v1271
      %v1560 = vunpack.c.l.b16 %v1272
      %v1561 = vunpack.c.l.b16 %v1273
      %v1562 = vunpack.c.l.b16 %v1274
      %v1563 = vunpack.c.l.b16 %v1275
      %v1564 = vunpack.c.l.b16 %v1276
      %v1565 = vunpack.c.l.b16 %v1277
      %v1566 = vunpack.c.l.b16 %v1278
      %v1567 = vunpack.c.l.b16 %v1279
      %v1568 = vunpack.c.l.b16 %v1280
      %v1569 = vunpack.c.l.b16 %v1281
      %v1570 = vunpack.c.l.b16 %v1282
      %v1571 = vunpack.c.l.b16 %v1283
      %v1572 = vunpack.c.l.b16 %v1284
      %v1573 = vunpack.c.l.b16 %v1285
      %v1574 = vunpack.c.l.b16 %v1286
      %v1575 = vunpack.c.l.b16 %v1287
      %v1576 = vunpack.c.l.b16 %v1288
      %v1577 = vunpack.c.l.b16 %v1289
      %v1578 = vunpack.c.l.b16 %v1290
      %v1579 = vunpack.c.l.b16 %v1291
      %v1580 = vpack.c.b16 %v1437, %v1436
      %v1581 = vpack.c.b16 %v1439, %v1438
      %v1582 = vpack.c.b16 %v1441, %v1440
      %v1583 = vpack.c.b16 %v1443, %v1442
      %v1584 = vpack.c.b16 %v1445, %v1444
      %v1585 = vpack.c.b16 %v1447, %v1446
      %v1586 = vpack.c.b16 %v1449, %v1448
      %v1587 = vpack.c.b16 %v1451, %v1450
      %v1588 = vpack.c.b16 %v1453, %v1452
      %v1589 = vpack.c.b16 %v1455, %v1454
      %v1590 = vpack.c.b16 %v1457, %v1456
      %v1591 = vpack.c.b16 %v1459, %v1458
      %v1592 = vpack.c.b16 %v1461, %v1460
      %v1593 = vpack.c.b16 %v1463, %v1462
      %v1594 = vpack.c.b16 %v1465, %v1464
      %v1595 = vpack.c.b16 %v1467, %v1466
      %v1596 = vpack.c.b16 %v1469, %v1468
      %v1597 = vpack.c.b16 %v1471, %v1470
      %v1598 = vpack.c.b16 %v1473, %v1472
      %v1599 = vpack.c.b16 %v1475, %v1474
      %v1600 = vpack.c.b16 %v1477, %v1476
      %v1601 = vpack.c.b16 %v1479, %v1478
      %v1602 = vpack.c.b16 %v1481, %v1480
      %v1603 = vpack.c.b16 %v1483, %v1482
      %v1604 = vpack.c.b16 %v1485, %v1484
      %v1605 = vpack.c.b16 %v1487, %v1486
      %v1606 = vpack.c.b16 %v1489, %v1488
      %v1607 = vpack.c.b16 %v1491, %v1490
      %v1608 = vpack.c.b16 %v1493, %v1492
      %v1609 = vpack.c.b16 %v1495, %v1494
      %v1610 = vpack.c.b16 %v1497, %v1496
      %v1611 = vpack.c.b16 %v1499, %v1498
      %v1612 = vpack.c.b16 %v1501, %v1500
      %v1613 = vpack.c.b16 %v1503, %v1502
      %v1614 = vpack.c.b16 %v1505, %v1504
      %v1615 = vpack.c.b16 %v1507, %v1506
      %v1616 = vpack.c.b16 %v1509, %v1508
      %v1617 = vpack.c.b16 %v1511, %v1510
      %v1618 = vpack.c.b16 %v1513, %v1512
      %v1619 = vpack.c.b16 %v1515, %v1514
      %v1620 = vpack.c.b16 %v1517, %v1516
      %v1621 = vpack.c.b16 %v1519, %v1518
      %v1622 = vpack.c.b16 %v1521, %v1520
      %v1623 = vpack.c.b16 %v1523, %v1522
      %v1624 = vpack.c.b16 %v1525, %v1524
      %v1625 = vpack.c.b16 %v1527, %v1526
      %v1626 = vpack.c.b16 %v1529, %v1528
      %v1627 = vpack.c.b16 %v1531, %v1530
      %v1628 = vpack.c.b16 %v1533, %v1532
      %v1629 = vpack.c.b16 %v1535, %v1534
      %v1630 = vpack.c.b16 %v1537, %v1536
      %v1631 = vpack.c.b16 %v1539, %v1538
      %v1632 = vpack.c.b16 %v1541, %v1540
      %v1633 = vpack.c.b16 %v1543, %v1542
      %v1634 = vpack.c.b16 %v1545, %v1544
      %v1635 = vpack.c.b16 %v1547, %v1546
      %v1636 = vpack.c.b16 %v1549, %v1548
      %v1637 = vpack.c.b16 %v1551, %v1550
      %v1638 = vpack.c.b16 %v1553, %v1552
      %v1639 = vpack.c.b16 %v1555, %v1554
      %v1640 = vpack.c.b16 %v1557, %v1556
      %v1641 = vpack.c.b16 %v1559, %v1558
      %v1642 = vpack.c.b16 %v1561, %v1560
      %v1643 = vpack.c.b16 %v1563, %v1562
      %v1644 = vpack.c.b16 %v1565, %v1564
      %v1645 = vpack.c.b16 %v1567, %v1566
      %v1646 = vpack.c.b16 %v1569, %v1568
      %v1647 = vpack.c.b16 %v1571, %v1570
      %v1648 = vpack.c.b16 %v1573, %v1572
      %v1649 = vpack.c.b16 %v1575, %v1574
      %v1650 = vpack.c.b16 %v1577, %v1576
      %v1651 = vpack.c.b16 %v1579, %v1578
      %1724 = vmatprep.subr.bf16.mxu0 0
      %1725 = vmatpush1.bf16.msra.mxu0 %v1580
      %1726 = vmatprep.subr.bf16.mxu0 0
      %1727 = vmatpush1.bf16.msra.mxu0 %v1581
      %1728 = vmatprep.subr.bf16.mxu0 0
      %1729 = vmatpush1.bf16.msra.mxu0 %v1582
      %1730 = vmatprep.subr.bf16.mxu0 0
      %1731 = vmatpush1.bf16.msra.mxu0 %v1583
      %1732 = vmatprep.subr.bf16.mxu0 0
      %1733 = vmatpush1.bf16.msra.mxu0 %v1584
      %1734 = vmatprep.subr.bf16.mxu0 0
      %1735 = vmatpush1.bf16.msra.mxu0 %v1585
      %1736 = vmatprep.subr.bf16.mxu0 0
      %1737 = vmatpush1.bf16.msra.mxu0 %v1586
      %1738 = vmatprep.subr.bf16.mxu0 0
      %1739 = vmatpush1.bf16.msra.mxu0 %v1587
      %1740 = vmatprep.subr.bf16.mxu0 0
      %1741 = vmatpush1.bf16.msra.mxu0 %v1588
      %1742 = vmatprep.subr.bf16.mxu0 0
      %1743 = vmatpush1.bf16.msra.mxu0 %v1589
      %1744 = vmatprep.subr.bf16.mxu0 0
      %1745 = vmatpush1.bf16.msra.mxu0 %v1590
      %1746 = vmatprep.subr.bf16.mxu0 0
      %1747 = vmatpush1.bf16.msra.mxu0 %v1591
      %1748 = vmatprep.subr.bf16.mxu0 0
      %1749 = vmatpush1.bf16.msra.mxu0 %v1592
      %1750 = vmatprep.subr.bf16.mxu0 0
      %1751 = vmatpush1.bf16.msra.mxu0 %v1593
      %1752 = vmatprep.subr.bf16.mxu0 0
      %1753 = vmatpush1.bf16.msra.mxu0 %v1594
      %1754 = vmatprep.subr.bf16.mxu0 0
      %1755 = vmatpush1.bf16.msra.mxu0 %v1595
      %1756 = vmatprep.mubr.bf16.mxu0 %v1005
      %1757 = vmatmul.mubr.bf16.gmra.mrb[0].mxu0 %v1004
      %v1758 = vpop.f32.mrb[0].mxu0
      %v1759 = vadd.f32 0.0, %v1758
      %v1760 = vpop.f32.mrb[0].mxu0
      %v1761 = vpop.f32.mrb[0].mxu0
      %v1762 = vadd.f32 0.0, %v1761
      %v1763 = vpop.f32.mrb[0].mxu0
      %1764 = vmatprep.mubr.bf16.mxu0 %v1014
      %1765 = vmatmul.mubr.bf16.gmra.mrb[0].mxu0 %v1013
      %v1766 = vpop.f32.mrb[0].mxu0
      %v1767 = vadd.f32 0.0, %v1766
      %v1768 = vpop.f32.mrb[0].mxu0
      %v1769 = vpop.f32.mrb[0].mxu0
      %v1770 = vadd.f32 0.0, %v1769
      %v1771 = vpop.f32.mrb[0].mxu0
      %1772 = vmatprep.mubr.bf16.mxu0 %v1023
      %1773 = vmatmul.mubr.bf16.gmra.mrb[0].mxu0 %v1022
      %v1774 = vpop.f32.mrb[0].mxu0
      %v1775 = vadd.f32 0.0, %v1774
      %v1776 = vpop.f32.mrb[0].mxu0
      %v1777 = vpop.f32.mrb[0].mxu0
      %v1778 = vadd.f32 0.0, %v1777
      %v1779 = vpop.f32.mrb[0].mxu0
      %1780 = vmatprep.mubr.bf16.mxu0 %v1032
      %1781 = vmatmul.mubr.bf16.gmra.mrb[0].mxu0 %v1031
      %v1782 = vpop.f32.mrb[0].mxu0
      %v1783 = vadd.f32 0.0, %v1782
      %v1784 = vpop.f32.mrb[0].mxu0
      %v1785 = vpop.f32.mrb[0].mxu0
      %v1786 = vadd.f32 0.0, %v1785
      %v1787 = vpop.f32.mrb[0].mxu0
      %1788 = vmatprep.mubr.bf16.mxu0 %v1041
      %1789 = vmatmul.mubr.bf16.gmra.mrb[0].mxu0 %v1040
      %v1790 = vpop.f32.mrb[0].mxu0
      %v1791 = vadd.f32 0.0, %v1790
      %v1792 = vpop.f32.mrb[0].mxu0
      %v1793 = vpop.f32.mrb[0].mxu0
      %v1794 = vadd.f32 0.0, %v1793
      %v1795 = vpop.f32.mrb[0].mxu0
      %1796 = vmatprep.mubr.bf16.mxu0 %v1050
      %1797 = vmatmul.mubr.bf16.gmra.mrb[0].mxu0 %v1049
      %v1798 = vpop.f32.mrb[0].mxu0
      %v1799 = vadd.f32 0.0, %v1798
      %v1800 = vpop.f32.mrb[0].mxu0
      %v1801 = vpop.f32.mrb[0].mxu0
      %v1802 = vadd.f32 0.0, %v1801
      %v1803 = vpop.f32.mrb[0].mxu0
      %1804 = vmatprep.mubr.bf16.mxu0 %v1059
      %1805 = vmatmul.mubr.bf16.gmra.mrb[0].mxu0 %v1058
      %v1806 = vpop.f32.mrb[0].mxu0
      %v1807 = vadd.f32 0.0, %v1806
      %v1808 = vpop.f32.mrb[0].mxu0
      %v1809 = vpop.f32.mrb[0].mxu0
      %v1810 = vadd.f32 0.0, %v1809
      %v1811 = vpop.f32.mrb[0].mxu0
      %1812 = vmatprep.mubr.bf16.mxu0 %v1068
      %1813 = vmatmul.mubr.bf16.gmra.mrb[0].mxu0 %v1067
      %v1814 = vpop.f32.mrb[0].mxu0
      %v1815 = vadd.f32 0.0, %v1814
      %v1816 = vpop.f32.mrb[0].mxu0
      %v1817 = vpop.f32.mrb[0].mxu0
      %v1818 = vadd.f32 0.0, %v1817
      %v1819 = vpop.f32.mrb[0].mxu0
      %1820 = vmatprep.mubr.bf16.mxu0 %v1077
      %1821 = vmatmul.mubr.bf16.gmra.mrb[0].mxu0 %v1076
      %v1822 = vpop.f32.mrb[0].mxu0
      %v1823 = vadd.f32 0.0, %v1822
      %v1824 = vpop.f32.mrb[0].mxu0
      %v1825 = vpop.f32.mrb[0].mxu0
      %v1826 = vadd.f32 0.0, %v1825
      %v1827 = vpop.f32.mrb[0].mxu0
      %1828 = vmatprep.mubr.bf16.mxu0 %v1086
      %1829 = vmatmul.mubr.bf16.gmra.mrb[0].mxu0 %v1085
      %v1830 = vpop.f32.mrb[0].mxu0
      %v1831 = vadd.f32 0.0, %v1830
      %v1832 = vpop.f32.mrb[0].mxu0
      %v1833 = vpop.f32.mrb[0].mxu0
      %v1834 = vadd.f32 0.0, %v1833
      %v1835 = vpop.f32.mrb[0].mxu0
      %1836 = vmatprep.mubr.bf16.mxu0 %v1095
      %1837 = vmatmul.mubr.bf16.gmra.mrb[0].mxu0 %v1094
      %v1838 = vpop.f32.mrb[0].mxu0
      %v1839 = vadd.f32 0.0, %v1838
      %v1840 = vpop.f32.mrb[0].mxu0
      %v1841 = vpop.f32.mrb[0].mxu0
      %v1842 = vadd.f32 0.0, %v1841
      %v1843 = vpop.f32.mrb[0].mxu0
      %1844 = vmatprep.mubr.bf16.mxu0 %v1104
      %1845 = vmatmul.mubr.bf16.gmra.mrb[0].mxu0 %v1103
      %v1846 = vpop.f32.mrb[0].mxu0
      %v1847 = vadd.f32 0.0, %v1846
      %v1848 = vpop.f32.mrb[0].mxu0
      %v1849 = vpop.f32.mrb[0].mxu0
      %v1850 = vadd.f32 0.0, %v1849
      %v1851 = vpop.f32.mrb[0].mxu0
      %1852 = vmatprep.mubr.bf16.mxu0 %v1113
      %1853 = vmatmul.mubr.bf16.gmra.mrb[0].mxu0 %v1112
      %v1854 = vpop.f32.mrb[0].mxu0
      %v1855 = vadd.f32 0.0, %v1854
      %v1856 = vpop.f32.mrb[0].mxu0
      %v1857 = vpop.f32.mrb[0].mxu0
      %v1858 = vadd.f32 0.0, %v1857
      %v1859 = vpop.f32.mrb[0].mxu0
      %1860 = vmatprep.mubr.bf16.mxu0 %v1122
      %1861 = vmatmul.mubr.bf16.gmra.mrb[0].mxu0 %v1121
      %v1862 = vpop.f32.mrb[0].mxu0
      %v1863 = vadd.f32 0.0, %v1862
      %v1864 = vpop.f32.mrb[0].mxu0
      %v1865 = vpop.f32.mrb[0].mxu0
      %v1866 = vadd.f32 0.0, %v1865
      %v1867 = vpop.f32.mrb[0].mxu0
      %1868 = vmatprep.mubr.bf16.mxu0 %v1131
      %1869 = vmatmul.mubr.bf16.gmra.mrb[0].mxu0 %v1130
      %v1870 = vpop.f32.mrb[0].mxu0
      %v1871 = vadd.f32 0.0, %v1870
      %v1872 = vpop.f32.mrb[0].mxu0
      %v1873 = vpop.f32.mrb[0].mxu0
      %v1874 = vadd.f32 0.0, %v1873
      %v1875 = vpop.f32.mrb[0].mxu0
      %1876 = vmatprep.mubr.bf16.mxu0 %v1140
      %1877 = vmatmul.mubr.bf16.gmra.mrb[0].mxu0 %v1139
      %v1878 = vpop.f32.mrb[0].mxu0
      %v1879 = vadd.f32 0.0, %v1878
      %v1880 = vpop.f32.mrb[0].mxu0
      %v1881 = vpop.f32.mrb[0].mxu0
      %v1882 = vadd.f32 0.0, %v1881
      %v1883 = vpop.f32.mrb[0].mxu0
      %1884 = vdwg.mxu0
      %1885 = vmatprep.subr.bf16.mxu0 0
      %1886 = vmatpush1.bf16.msra.mxu0 %v1596
      %1887 = vmatprep.subr.bf16.mxu0 0
      %1888 = vmatpush1.bf16.msra.mxu0 %v1597
      %1889 = vmatprep.subr.bf16.mxu0 0
      %1890 = vmatpush1.bf16.msra.mxu0 %v1598
      %1891 = vmatprep.subr.bf16.mxu0 0
      %1892 = vmatpush1.bf16.msra.mxu0 %v1599
      %1893 = vmatprep.subr.bf16.mxu0 0
      %1894 = vmatpush1.bf16.msra.mxu0 %v1600
      %1895 = vmatprep.subr.bf16.mxu0 0
      %1896 = vmatpush1.bf16.msra.mxu0 %v1601
      %1897 = vmatprep.subr.bf16.mxu0 0
      %1898 = vmatpush1.bf16.msra.mxu0 %v1602
      %1899 = vmatprep.subr.bf16.mxu0 0
      %1900 = vmatpush1.bf16.msra.mxu0 %v1603
      %1901 = vmatprep.subr.bf16.mxu0 0
      %1902 = vmatpush1.bf16.msra.mxu0 %v1604
      %1903 = vmatprep.subr.bf16.mxu0 0
      %1904 = vmatpush1.bf16.msra.mxu0 %v1605
      %1905 = vmatprep.subr.bf16.mxu0 0
      %1906 = vmatpush1.bf16.msra.mxu0 %v1606
      %1907 = vmatprep.subr.bf16.mxu0 0
      %1908 = vmatpush1.bf16.msra.mxu0 %v1607
      %1909 = vmatprep.subr.bf16.mxu0 0
      %1910 = vmatpush1.bf16.msra.mxu0 %v1608
      %1911 = vmatprep.subr.bf16.mxu0 0
      %1912 = vmatpush1.bf16.msra.mxu0 %v1609
      %1913 = vmatprep.subr.bf16.mxu0 0
      %1914 = vmatpush1.bf16.msra.mxu0 %v1610
      %1915 = vmatprep.subr.bf16.mxu0 0
      %1916 = vmatpush1.bf16.msra.mxu0 %v1611
      %1917 = vmatprep.mubr.bf16.mxu0 %v1007
      %1918 = vmatmul.mubr.bf16.gmra.mrb[0].mxu0 %v1006
      %v1919 = vpop.f32.mrb[0].mxu0
      %v1920 = vadd.f32 %v1759, %v1919
      %v1921 = vpop.f32.mrb[0].mxu0
      %v1922 = vpop.f32.mrb[0].mxu0
      %v1923 = vadd.f32 %v1762, %v1922
      %v1924 = vpop.f32.mrb[0].mxu0
      %1925 = vmatprep.mubr.bf16.mxu0 %v1016
      %1926 = vmatmul.mubr.bf16.gmra.mrb[0].mxu0 %v1015
      %v1927 = vpop.f32.mrb[0].mxu0
      %v1928 = vadd.f32 %v1767, %v1927
      %v1929 = vpop.f32.mrb[0].mxu0
      %v1930 = vpop.f32.mrb[0].mxu0
      %v1931 = vadd.f32 %v1770, %v1930
      %v1932 = vpop.f32.mrb[0].mxu0
      %1933 = vmatprep.mubr.bf16.mxu0 %v1025
      %1934 = vmatmul.mubr.bf16.gmra.mrb[0].mxu0 %v1024
      %v1935 = vpop.f32.mrb[0].mxu0
      %v1936 = vadd.f32 %v1775, %v1935
      %v1937 = vpop.f32.mrb[0].mxu0
      %v1938 = vpop.f32.mrb[0].mxu0
      %v1939 = vadd.f32 %v1778, %v1938
      %v1940 = vpop.f32.mrb[0].mxu0
      %1941 = vmatprep.mubr.bf16.mxu0 %v1034
      %1942 = vmatmul.mubr.bf16.gmra.mrb[0].mxu0 %v1033
      %v1943 = vpop.f32.mrb[0].mxu0
      %v1944 = vadd.f32 %v1783, %v1943
      %v1945 = vpop.f32.mrb[0].mxu0
      %v1946 = vpop.f32.mrb[0].mxu0
      %v1947 = vadd.f32 %v1786, %v1946
      %v1948 = vpop.f32.mrb[0].mxu0
      %1949 = vmatprep.mubr.bf16.mxu0 %v1043
      %1950 = vmatmul.mubr.bf16.gmra.mrb[0].mxu0 %v1042
      %v1951 = vpop.f32.mrb[0].mxu0
      %v1952 = vadd.f32 %v1791, %v1951
      %v1953 = vpop.f32.mrb[0].mxu0
      %v1954 = vpop.f32.mrb[0].mxu0
      %v1955 = vadd.f32 %v1794, %v1954
      %v1956 = vpop.f32.mrb[0].mxu0
      %1957 = vmatprep.mubr.bf16.mxu0 %v1052
      %1958 = vmatmul.mubr.bf16.gmra.mrb[0].mxu0 %v1051
      %v1959 = vpop.f32.mrb[0].mxu0
      %v1960 = vadd.f32 %v1799, %v1959
      %v1961 = vpop.f32.mrb[0].mxu0
      %v1962 = vpop.f32.mrb[0].mxu0
      %v1963 = vadd.f32 %v1802, %v1962
      %v1964 = vpop.f32.mrb[0].mxu0
      %1965 = vmatprep.mubr.bf16.mxu0 %v1061
      %1966 = vmatmul.mubr.bf16.gmra.mrb[0].mxu0 %v1060
      %v1967 = vpop.f32.mrb[0].mxu0
      %v1968 = vadd.f32 %v1807, %v1967
      %v1969 = vpop.f32.mrb[0].mxu0
      %v1970 = vpop.f32.mrb[0].mxu0
      %v1971 = vadd.f32 %v1810, %v1970
      %v1972 = vpop.f32.mrb[0].mxu0
      %1973 = vmatprep.mubr.bf16.mxu0 %v1070
      %1974 = vmatmul.mubr.bf16.gmra.mrb[0].mxu0 %v1069
      %v1975 = vpop.f32.mrb[0].mxu0
      %v1976 = vadd.f32 %v1815, %v1975
      %v1977 = vpop.f32.mrb[0].mxu0
      %v1978 = vpop.f32.mrb[0].mxu0
      %v1979 = vadd.f32 %v1818, %v1978
      %v1980 = vpop.f32.mrb[0].mxu0
      %1981 = vmatprep.mubr.bf16.mxu0 %v1079
      %1982 = vmatmul.mubr.bf16.gmra.mrb[0].mxu0 %v1078
      %v1983 = vpop.f32.mrb[0].mxu0
      %v1984 = vadd.f32 %v1823, %v1983
      %v1985 = vpop.f32.mrb[0].mxu0
      %v1986 = vpop.f32.mrb[0].mxu0
      %v1987 = vadd.f32 %v1826, %v1986
      %v1988 = vpop.f32.mrb[0].mxu0
      %1989 = vmatprep.mubr.bf16.mxu0 %v1088
      %1990 = vmatmul.mubr.bf16.gmra.mrb[0].mxu0 %v1087
      %v1991 = vpop.f32.mrb[0].mxu0
      %v1992 = vadd.f32 %v1831, %v1991
      %v1993 = vpop.f32.mrb[0].mxu0
      %v1994 = vpop.f32.mrb[0].mxu0
      %v1995 = vadd.f32 %v1834, %v1994
      %v1996 = vpop.f32.mrb[0].mxu0
      %1997 = vmatprep.mubr.bf16.mxu0 %v1097
      %1998 = vmatmul.mubr.bf16.gmra.mrb[0].mxu0 %v1096
      %v1999 = vpop.f32.mrb[0].mxu0
      %v2000 = vadd.f32 %v1839, %v1999
      %v2001 = vpop.f32.mrb[0].mxu0
      %v2002 = vpop.f32.mrb[0].mxu0
      %v2003 = vadd.f32 %v1842, %v2002
      %v2004 = vpop.f32.mrb[0].mxu0
      %2005 = vmatprep.mubr.bf16.mxu0 %v1106
      %2006 = vmatmul.mubr.bf16.gmra.mrb[0].mxu0 %v1105
      %v2007 = vpop.f32.mrb[0].mxu0
      %v2008 = vadd.f32 %v1847, %v2007
      %v2009 = vpop.f32.mrb[0].mxu0
      %v2010 = vpop.f32.mrb[0].mxu0
      %v2011 = vadd.f32 %v1850, %v2010
      %v2012 = vpop.f32.mrb[0].mxu0
      %2013 = vmatprep.mubr.bf16.mxu0 %v1115
      %2014 = vmatmul.mubr.bf16.gmra.mrb[0].mxu0 %v1114
      %v2015 = vpop.f32.mrb[0].mxu0
      %v2016 = vadd.f32 %v1855, %v2015
      %v2017 = vpop.f32.mrb[0].mxu0
      %v2018 = vpop.f32.mrb[0].mxu0
      %v2019 = vadd.f32 %v1858, %v2018
      %v2020 = vpop.f32.mrb[0].mxu0
      %2021 = vmatprep.mubr.bf16.mxu0 %v1124
      %2022 = vmatmul.mubr.bf16.gmra.mrb[0].mxu0 %v1123
      %v2023 = vpop.f32.mrb[0].mxu0
      %v2024 = vadd.f32 %v1863, %v2023
      %v2025 = vpop.f32.mrb[0].mxu0
      %v2026 = vpop.f32.mrb[0].mxu0
      %v2027 = vadd.f32 %v1866, %v2026
      %v2028 = vpop.f32.mrb[0].mxu0
      %2029 = vmatprep.mubr.bf16.mxu0 %v1133
      %2030 = vmatmul.mubr.bf16.gmra.mrb[0].mxu0 %v1132
      %v2031 = vpop.f32.mrb[0].mxu0
      %v2032 = vadd.f32 %v1871, %v2031
      %v2033 = vpop.f32.mrb[0].mxu0
      %v2034 = vpop.f32.mrb[0].mxu0
      %v2035 = vadd.f32 %v1874, %v2034
      %v2036 = vpop.f32.mrb[0].mxu0
      %2037 = vmatprep.mubr.bf16.mxu0 %v1142
      %2038 = vmatmul.mubr.bf16.gmra.mrb[0].mxu0 %v1141
      %v2039 = vpop.f32.mrb[0].mxu0
      %v2040 = vadd.f32 %v1879, %v2039
      %v2041 = vpop.f32.mrb[0].mxu0
      %v2042 = vpop.f32.mrb[0].mxu0
      %v2043 = vadd.f32 %v1882, %v2042
      %v2044 = vpop.f32.mrb[0].mxu0
      %2045 = vdwg.mxu0
      %2046 = vmatprep.subr.bf16.mxu0 0
      %2047 = vmatpush1.bf16.msra.mxu0 %v1612
      %2048 = vmatprep.subr.bf16.mxu0 0
      %2049 = vmatpush1.bf16.msra.mxu0 %v1613
      %2050 = vmatprep.subr.bf16.mxu0 0
      %2051 = vmatpush1.bf16.msra.mxu0 %v1614
      %2052 = vmatprep.subr.bf16.mxu0 0
      %2053 = vmatpush1.bf16.msra.mxu0 %v1615
      %2054 = vmatprep.subr.bf16.mxu0 0
      %2055 = vmatpush1.bf16.msra.mxu0 %v1616
      %2056 = vmatprep.subr.bf16.mxu0 0
      %2057 = vmatpush1.bf16.msra.mxu0 %v1617
      %2058 = vmatprep.subr.bf16.mxu0 0
      %2059 = vmatpush1.bf16.msra.mxu0 %v1618
      %2060 = vmatprep.subr.bf16.mxu0 0
      %2061 = vmatpush1.bf16.msra.mxu0 %v1619
      %2062 = vmatprep.subr.bf16.mxu0 0
      %2063 = vmatpush1.bf16.msra.mxu0 %v1620
      %2064 = vmatprep.subr.bf16.mxu0 0
      %2065 = vmatpush1.bf16.msra.mxu0 %v1621
      %2066 = vmatprep.subr.bf16.mxu0 0
      %2067 = vmatpush1.bf16.msra.mxu0 %v1622
      %2068 = vmatprep.subr.bf16.mxu0 0
      %2069 = vmatpush1.bf16.msra.mxu0 %v1623
      %2070 = vmatprep.subr.bf16.mxu0 0
      %2071 = vmatpush1.bf16.msra.mxu0 %v1624
      %2072 = vmatprep.subr.bf16.mxu0 0
      %2073 = vmatpush1.bf16.msra.mxu0 %v1625
      %2074 = vmatprep.subr.bf16.mxu0 0
      %2075 = vmatpush1.bf16.msra.mxu0 %v1626
      %2076 = vmatprep.subr.bf16.mxu0 0
      %2077 = vmatpush1.bf16.msra.mxu0 %v1627
      %2078 = vmatprep.mubr.bf16.mxu0 %v1009
      %2079 = vmatmul.mubr.bf16.gmra.mrb[0].mxu0 %v1008
      %v2080 = vpop.f32.mrb[0].mxu0
      %v2081 = vadd.f32 %v1920, %v2080
      %v2082 = vpop.f32.mrb[0].mxu0
      %v2083 = vpop.f32.mrb[0].mxu0
      %v2084 = vadd.f32 %v1923, %v2083
      %v2085 = vpop.f32.mrb[0].mxu0
      %2086 = vmatprep.mubr.bf16.mxu0 %v1018
      %2087 = vmatmul.mubr.bf16.gmra.mrb[0].mxu0 %v1017
      %v2088 = vpop.f32.mrb[0].mxu0
      %v2089 = vadd.f32 %v1928, %v2088
      %v2090 = vpop.f32.mrb[0].mxu0
      %v2091 = vpop.f32.mrb[0].mxu0
      %v2092 = vadd.f32 %v1931, %v2091
      %v2093 = vpop.f32.mrb[0].mxu0
      %2094 = vmatprep.mubr.bf16.mxu0 %v1027
      %2095 = vmatmul.mubr.bf16.gmra.mrb[0].mxu0 %v1026
      %v2096 = vpop.f32.mrb[0].mxu0
      %v2097 = vadd.f32 %v1936, %v2096
      %v2098 = vpop.f32.mrb[0].mxu0
      %v2099 = vpop.f32.mrb[0].mxu0
      %v2100 = vadd.f32 %v1939, %v2099
      %v2101 = vpop.f32.mrb[0].mxu0
      %2102 = vmatprep.mubr.bf16.mxu0 %v1036
      %2103 = vmatmul.mubr.bf16.gmra.mrb[0].mxu0 %v1035
      %v2104 = vpop.f32.mrb[0].mxu0
      %v2105 = vadd.f32 %v1944, %v2104
      %v2106 = vpop.f32.mrb[0].mxu0
      %v2107 = vpop.f32.mrb[0].mxu0
      %v2108 = vadd.f32 %v1947, %v2107
      %v2109 = vpop.f32.mrb[0].mxu0
      %2110 = vmatprep.mubr.bf16.mxu0 %v1045
      %2111 = vmatmul.mubr.bf16.gmra.mrb[0].mxu0 %v1044
      %v2112 = vpop.f32.mrb[0].mxu0
      %v2113 = vadd.f32 %v1952, %v2112
      %v2114 = vpop.f32.mrb[0].mxu0
      %v2115 = vpop.f32.mrb[0].mxu0
      %v2116 = vadd.f32 %v1955, %v2115
      %v2117 = vpop.f32.mrb[0].mxu0
      %2118 = vmatprep.mubr.bf16.mxu0 %v1054
      %2119 = vmatmul.mubr.bf16.gmra.mrb[0].mxu0 %v1053
      %v2120 = vpop.f32.mrb[0].mxu0
      %v2121 = vadd.f32 %v1960, %v2120
      %v2122 = vpop.f32.mrb[0].mxu0
      %v2123 = vpop.f32.mrb[0].mxu0
      %v2124 = vadd.f32 %v1963, %v2123
      %v2125 = vpop.f32.mrb[0].mxu0
      %2126 = vmatprep.mubr.bf16.mxu0 %v1063
      %2127 = vmatmul.mubr.bf16.gmra.mrb[0].mxu0 %v1062
      %v2128 = vpop.f32.mrb[0].mxu0
      %v2129 = vadd.f32 %v1968, %v2128
      %v2130 = vpop.f32.mrb[0].mxu0
      %v2131 = vpop.f32.mrb[0].mxu0
      %v2132 = vadd.f32 %v1971, %v2131
      %v2133 = vpop.f32.mrb[0].mxu0
      %2134 = vmatprep.mubr.bf16.mxu0 %v1072
      %2135 = vmatmul.mubr.bf16.gmra.mrb[0].mxu0 %v1071
      %v2136 = vpop.f32.mrb[0].mxu0
      %v2137 = vadd.f32 %v1976, %v2136
      %v2138 = vpop.f32.mrb[0].mxu0
      %v2139 = vpop.f32.mrb[0].mxu0
      %v2140 = vadd.f32 %v1979, %v2139
      %v2141 = vpop.f32.mrb[0].mxu0
      %2142 = vmatprep.mubr.bf16.mxu0 %v1081
      %2143 = vmatmul.mubr.bf16.gmra.mrb[0].mxu0 %v1080
      %v2144 = vpop.f32.mrb[0].mxu0
      %v2145 = vadd.f32 %v1984, %v2144
      %v2146 = vpop.f32.mrb[0].mxu0
      %v2147 = vpop.f32.mrb[0].mxu0
      %v2148 = vadd.f32 %v1987, %v2147
      %v2149 = vpop.f32.mrb[0].mxu0
      %2150 = vmatprep.mubr.bf16.mxu0 %v1090
      %2151 = vmatmul.mubr.bf16.gmra.mrb[0].mxu0 %v1089
      %v2152 = vpop.f32.mrb[0].mxu0
      %v2153 = vadd.f32 %v1992, %v2152
      %v2154 = vpop.f32.mrb[0].mxu0
      %v2155 = vpop.f32.mrb[0].mxu0
      %v2156 = vadd.f32 %v1995, %v2155
      %v2157 = vpop.f32.mrb[0].mxu0
      %2158 = vmatprep.mubr.bf16.mxu0 %v1099
      %2159 = vmatmul.mubr.bf16.gmra.mrb[0].mxu0 %v1098
      %v2160 = vpop.f32.mrb[0].mxu0
      %v2161 = vadd.f32 %v2000, %v2160
      %v2162 = vpop.f32.mrb[0].mxu0
      %v2163 = vpop.f32.mrb[0].mxu0
      %v2164 = vadd.f32 %v2003, %v2163
      %v2165 = vpop.f32.mrb[0].mxu0
      %2166 = vmatprep.mubr.bf16.mxu0 %v1108
      %2167 = vmatmul.mubr.bf16.gmra.mrb[0].mxu0 %v1107
      %v2168 = vpop.f32.mrb[0].mxu0
      %v2169 = vadd.f32 %v2008, %v2168
      %v2170 = vpop.f32.mrb[0].mxu0
      %v2171 = vpop.f32.mrb[0].mxu0
      %v2172 = vadd.f32 %v2011, %v2171
      %v2173 = vpop.f32.mrb[0].mxu0
      %2174 = vmatprep.mubr.bf16.mxu0 %v1117
      %2175 = vmatmul.mubr.bf16.gmra.mrb[0].mxu0 %v1116
      %v2176 = vpop.f32.mrb[0].mxu0
      %v2177 = vadd.f32 %v2016, %v2176
      %v2178 = vpop.f32.mrb[0].mxu0
      %v2179 = vpop.f32.mrb[0].mxu0
      %v2180 = vadd.f32 %v2019, %v2179
      %v2181 = vpop.f32.mrb[0].mxu0
      %2182 = vmatprep.mubr.bf16.mxu0 %v1126
      %2183 = vmatmul.mubr.bf16.gmra.mrb[0].mxu0 %v1125
      %v2184 = vpop.f32.mrb[0].mxu0
      %v2185 = vadd.f32 %v2024, %v2184
      %v2186 = vpop.f32.mrb[0].mxu0
      %v2187 = vpop.f32.mrb[0].mxu0
      %v2188 = vadd.f32 %v2027, %v2187
      %v2189 = vpop.f32.mrb[0].mxu0
      %2190 = vmatprep.mubr.bf16.mxu0 %v1135
      %2191 = vmatmul.mubr.bf16.gmra.mrb[0].mxu0 %v1134
      %v2192 = vpop.f32.mrb[0].mxu0
      %v2193 = vadd.f32 %v2032, %v2192
      %v2194 = vpop.f32.mrb[0].mxu0
      %v2195 = vpop.f32.mrb[0].mxu0
      %v2196 = vadd.f32 %v2035, %v2195
      %v2197 = vpop.f32.mrb[0].mxu0
      %2198 = vmatprep.mubr.bf16.mxu0 %v1144
      %2199 = vmatmul.mubr.bf16.gmra.mrb[0].mxu0 %v1143
      %v2200 = vpop.f32.mrb[0].mxu0
      %v2201 = vadd.f32 %v2040, %v2200
      %v2202 = vpop.f32.mrb[0].mxu0
      %v2203 = vpop.f32.mrb[0].mxu0
      %v2204 = vadd.f32 %v2043, %v2203
      %v2205 = vpop.f32.mrb[0].mxu0
      %2206 = vdwg.mxu0
      %2207 = vmatprep.subr.bf16.mxu0 0
      %2208 = vmatpush1.bf16.msra.mxu0 %v1628
      %2209 = vmatprep.subr.bf16.mxu0 0
      %2210 = vmatpush1.bf16.msra.mxu0 %v1629
      %2211 = vmatprep.subr.bf16.mxu0 0
      %2212 = vmatpush1.bf16.msra.mxu0 %v1630
      %2213 = vmatprep.subr.bf16.mxu0 0
      %2214 = vmatpush1.bf16.msra.mxu0 %v1631
      %2215 = vmatprep.subr.bf16.mxu0 0
      %2216 = vmatpush1.bf16.msra.mxu0 %v1632
      %2217 = vmatprep.subr.bf16.mxu0 0
      %2218 = vmatpush1.bf16.msra.mxu0 %v1633
      %2219 = vmatprep.subr.bf16.mxu0 0
      %2220 = vmatpush1.bf16.msra.mxu0 %v1634
      %2221 = vmatprep.subr.bf16.mxu0 0
      %2222 = vmatpush1.bf16.msra.mxu0 %v1635
      %2223 = vmatprep.subr.bf16.mxu0 0
      %2224 = vmatpush1.bf16.msra.mxu0 %v1636
      %2225 = vmatprep.subr.bf16.mxu0 0
      %2226 = vmatpush1.bf16.msra.mxu0 %v1637
      %2227 = vmatprep.subr.bf16.mxu0 0
      %2228 = vmatpush1.bf16.msra.mxu0 %v1638
      %2229 = vmatprep.subr.bf16.mxu0 0
      %2230 = vmatpush1.bf16.msra.mxu0 %v1639
      %2231 = vmatprep.subr.bf16.mxu0 0
      %2232 = vmatpush1.bf16.msra.mxu0 %v1640
      %2233 = vmatprep.subr.bf16.mxu0 0
      %2234 = vmatpush1.bf16.msra.mxu0 %v1641
      %2235 = vmatprep.subr.bf16.mxu0 0
      %2236 = vmatpush1.bf16.msra.mxu0 %v1642
      %2237 = vmatprep.subr.bf16.mxu0 0
      %2238 = vmatpush1.bf16.msra.mxu0 %v1643
      %2239 = vmatprep.mubr.bf16.mxu0 %v1011
      %2240 = vmatmul.mubr.bf16.gmra.mrb[0].mxu0 %v1010
      %v2241 = vpop.f32.mrb[0].mxu0
      %v2242 = vadd.f32 %v2081, %v2241
      %v2243 = vpop.f32.mrb[0].mxu0
      %v2244 = vpop.f32.mrb[0].mxu0
      %v2245 = vadd.f32 %v2084, %v2244
      %v2246 = vpop.f32.mrb[0].mxu0
      %2247 = vmatprep.mubr.bf16.mxu0 %v1020
      %2248 = vmatmul.mubr.bf16.gmra.mrb[0].mxu0 %v1019
      %v2249 = vpop.f32.mrb[0].mxu0
      %v2250 = vadd.f32 %v2089, %v2249
      %v2251 = vpop.f32.mrb[0].mxu0
      %v2252 = vpop.f32.mrb[0].mxu0
      %v2253 = vadd.f32 %v2092, %v2252
      %v2254 = vpop.f32.mrb[0].mxu0
      %2255 = vmatprep.mubr.bf16.mxu0 %v1029
      %2256 = vmatmul.mubr.bf16.gmra.mrb[0].mxu0 %v1028
      %v2257 = vpop.f32.mrb[0].mxu0
      %v2258 = vadd.f32 %v2097, %v2257
      %v2259 = vpop.f32.mrb[0].mxu0
      %v2260 = vpop.f32.mrb[0].mxu0
      %v2261 = vadd.f32 %v2100, %v2260
      %v2262 = vpop.f32.mrb[0].mxu0
      %2263 = vmatprep.mubr.bf16.mxu0 %v1038
      %2264 = vmatmul.mubr.bf16.gmra.mrb[0].mxu0 %v1037
      %v2265 = vpop.f32.mrb[0].mxu0
      %v2266 = vadd.f32 %v2105, %v2265
      %v2267 = vpop.f32.mrb[0].mxu0
      %v2268 = vpop.f32.mrb[0].mxu0
      %v2269 = vadd.f32 %v2108, %v2268
      %v2270 = vpop.f32.mrb[0].mxu0
      %2271 = vmatprep.mubr.bf16.mxu0 %v1047
      %2272 = vmatmul.mubr.bf16.gmra.mrb[0].mxu0 %v1046
      %v2273 = vpop.f32.mrb[0].mxu0
      %v2274 = vadd.f32 %v2113, %v2273
      %v2275 = vpop.f32.mrb[0].mxu0
      %v2276 = vpop.f32.mrb[0].mxu0
      %v2277 = vadd.f32 %v2116, %v2276
      %v2278 = vpop.f32.mrb[0].mxu0
      %2279 = vmatprep.mubr.bf16.mxu0 %v1056
      %2280 = vmatmul.mubr.bf16.gmra.mrb[0].mxu0 %v1055
      %v2281 = vpop.f32.mrb[0].mxu0
      %v2282 = vadd.f32 %v2121, %v2281
      %v2283 = vpop.f32.mrb[0].mxu0
      %v2284 = vpop.f32.mrb[0].mxu0
      %v2285 = vadd.f32 %v2124, %v2284
      %v2286 = vpop.f32.mrb[0].mxu0
      %2287 = vmatprep.mubr.bf16.mxu0 %v1065
      %2288 = vmatmul.mubr.bf16.gmra.mrb[0].mxu0 %v1064
      %v2289 = vpop.f32.mrb[0].mxu0
      %v2290 = vadd.f32 %v2129, %v2289
      %v2291 = vpop.f32.mrb[0].mxu0
      %v2292 = vpop.f32.mrb[0].mxu0
      %v2293 = vadd.f32 %v2132, %v2292
      %v2294 = vpop.f32.mrb[0].mxu0
      %2295 = vmatprep.mubr.bf16.mxu0 %v1074
      %2296 = vmatmul.mubr.bf16.gmra.mrb[0].mxu0 %v1073
      %v2297 = vpop.f32.mrb[0].mxu0
      %v2298 = vadd.f32 %v2137, %v2297
      %v2299 = vpop.f32.mrb[0].mxu0
      %v2300 = vpop.f32.mrb[0].mxu0
      %v2301 = vadd.f32 %v2140, %v2300
      %v2302 = vpop.f32.mrb[0].mxu0
      %2303 = vmatprep.mubr.bf16.mxu0 %v1083
      %2304 = vmatmul.mubr.bf16.gmra.mrb[0].mxu0 %v1082
      %v2305 = vpop.f32.mrb[0].mxu0
      %v2306 = vadd.f32 %v2145, %v2305
      %v2307 = vpop.f32.mrb[0].mxu0
      %v2308 = vpop.f32.mrb[0].mxu0
      %v2309 = vadd.f32 %v2148, %v2308
      %v2310 = vpop.f32.mrb[0].mxu0
      %2311 = vmatprep.mubr.bf16.mxu0 %v1092
      %2312 = vmatmul.mubr.bf16.gmra.mrb[0].mxu0 %v1091
      %v2313 = vpop.f32.mrb[0].mxu0
      %v2314 = vadd.f32 %v2153, %v2313
      %v2315 = vpop.f32.mrb[0].mxu0
      %v2316 = vpop.f32.mrb[0].mxu0
      %v2317 = vadd.f32 %v2156, %v2316
      %v2318 = vpop.f32.mrb[0].mxu0
      %2319 = vmatprep.mubr.bf16.mxu0 %v1101
      %2320 = vmatmul.mubr.bf16.gmra.mrb[0].mxu0 %v1100
      %v2321 = vpop.f32.mrb[0].mxu0
      %v2322 = vadd.f32 %v2161, %v2321
      %v2323 = vpop.f32.mrb[0].mxu0
      %v2324 = vpop.f32.mrb[0].mxu0
      %v2325 = vadd.f32 %v2164, %v2324
      %v2326 = vpop.f32.mrb[0].mxu0
      %2327 = vmatprep.mubr.bf16.mxu0 %v1110
      %2328 = vmatmul.mubr.bf16.gmra.mrb[0].mxu0 %v1109
      %v2329 = vpop.f32.mrb[0].mxu0
      %v2330 = vadd.f32 %v2169, %v2329
      %v2331 = vpop.f32.mrb[0].mxu0
      %v2332 = vpop.f32.mrb[0].mxu0
      %v2333 = vadd.f32 %v2172, %v2332
      %v2334 = vpop.f32.mrb[0].mxu0
      %2335 = vmatprep.mubr.bf16.mxu0 %v1119
      %2336 = vmatmul.mubr.bf16.gmra.mrb[0].mxu0 %v1118
      %v2337 = vpop.f32.mrb[0].mxu0
      %v2338 = vadd.f32 %v2177, %v2337
      %v2339 = vpop.f32.mrb[0].mxu0
      %v2340 = vpop.f32.mrb[0].mxu0
      %v2341 = vadd.f32 %v2180, %v2340
      %v2342 = vpop.f32.mrb[0].mxu0
      %2343 = vmatprep.mubr.bf16.mxu0 %v1128
      %2344 = vmatmul.mubr.bf16.gmra.mrb[0].mxu0 %v1127
      %v2345 = vpop.f32.mrb[0].mxu0
      %v2346 = vadd.f32 %v2185, %v2345
      %v2347 = vpop.f32.mrb[0].mxu0
      %v2348 = vpop.f32.mrb[0].mxu0
      %v2349 = vadd.f32 %v2188, %v2348
      %v2350 = vpop.f32.mrb[0].mxu0
      %2351 = vmatprep.mubr.bf16.mxu0 %v1137
      %2352 = vmatmul.mubr.bf16.gmra.mrb[0].mxu0 %v1136
      %v2353 = vpop.f32.mrb[0].mxu0
      %v2354 = vadd.f32 %v2193, %v2353
      %v2355 = vpop.f32.mrb[0].mxu0
      %v2356 = vpop.f32.mrb[0].mxu0
      %v2357 = vadd.f32 %v2196, %v2356
      %v2358 = vpop.f32.mrb[0].mxu0
      %2359 = vmatprep.mubr.bf16.mxu0 %v1146
      %2360 = vmatmul.mubr.bf16.gmra.mrb[0].mxu0 %v1145
      %v2361 = vpop.f32.mrb[0].mxu0
      %v2362 = vadd.f32 %v2201, %v2361
      %v2363 = vpop.f32.mrb[0].mxu0
      %v2364 = vpop.f32.mrb[0].mxu0
      %v2365 = vadd.f32 %v2204, %v2364
      %v2366 = vpop.f32.mrb[0].mxu0
      %2367 = vdwg.mxu0
      %2368 = vmatprep.subr.bf16.mxu0 0
      %2369 = vmatpush1.bf16.msra.mxu0 %v1644
      %2370 = vmatprep.subr.bf16.mxu0 0
      %2371 = vmatpush1.bf16.msra.mxu0 %v1645
      %2372 = vmatprep.subr.bf16.mxu0 0
      %2373 = vmatpush1.bf16.msra.mxu0 %v1646
      %2374 = vmatprep.subr.bf16.mxu0 0
      %2375 = vmatpush1.bf16.msra.mxu0 %v1647
      %2376 = vmatprep.subr.bf16.mxu0 0
      %2377 = vmatpush1.bf16.msra.mxu0 %v1648
      %2378 = vmatprep.subr.bf16.mxu0 0
      %2379 = vmatpush1.bf16.msra.mxu0 %v1649
      %2380 = vmatprep.subr.bf16.mxu0 0
      %2381 = vmatpush1.bf16.msra.mxu0 %v1650
      %2382 = vmatprep.subr.bf16.mxu0 0
      %2383 = vmatpush1.bf16.msra.mxu0 %v1651
      %2384 = vmatprep.subr.bf16.mxu0 0
      %2385 = vmatpush1.bf16.msra.mxu0 0
      %2386 = vmatprep.subr.bf16.mxu0 0
      %2387 = vmatpush1.bf16.msra.mxu0 0
      %2388 = vmatprep.subr.bf16.mxu0 0
      %2389 = vmatpush1.bf16.msra.mxu0 0
      %2390 = vmatprep.subr.bf16.mxu0 0
      %2391 = vmatpush1.bf16.msra.mxu0 0
      %2392 = vmatprep.subr.bf16.mxu0 0
      %2393 = vmatpush1.bf16.msra.mxu0 0
      %2394 = vmatprep.subr.bf16.mxu0 0
      %2395 = vmatpush1.bf16.msra.mxu0 0
      %2396 = vmatprep.subr.bf16.mxu0 0
      %2397 = vmatpush1.bf16.msra.mxu0 0
      %2398 = vmatprep.subr.bf16.mxu0 0
      %2399 = vmatpush1.bf16.msra.mxu0 0
      %2400 = vmatprep.mubr.bf16.mxu0 0
      %2401 = vmatmul.mubr.bf16.gmra.mrb[0].mxu0 %v1012
      %v2402 = vpop.f32.mrb[0].mxu0
      %v2403 = vadd.f32 %v2242, %v2402
      %v2404 = vpop.f32.mrb[0].mxu0
      %v2405 = vpop.f32.mrb[0].mxu0
      %v2406 = vadd.f32 %v2245, %v2405
      %v2407 = vpop.f32.mrb[0].mxu0
      %2408 = vmatprep.mubr.bf16.mxu0 0
      %2409 = vmatmul.mubr.bf16.gmra.mrb[0].mxu0 %v1021
      %v2410 = vpop.f32.mrb[0].mxu0
      %v2411 = vadd.f32 %v2250, %v2410
      %v2412 = vpop.f32.mrb[0].mxu0
      %v2413 = vpop.f32.mrb[0].mxu0
      %v2414 = vadd.f32 %v2253, %v2413
      %v2415 = vpop.f32.mrb[0].mxu0
      %2416 = vmatprep.mubr.bf16.mxu0 0
      %2417 = vmatmul.mubr.bf16.gmra.mrb[0].mxu0 %v1030
      %v2418 = vpop.f32.mrb[0].mxu0
      %v2419 = vadd.f32 %v2258, %v2418
      %v2420 = vpop.f32.mrb[0].mxu0
      %v2421 = vpop.f32.mrb[0].mxu0
      %v2422 = vadd.f32 %v2261, %v2421
      %v2423 = vpop.f32.mrb[0].mxu0
      %2424 = vmatprep.mubr.bf16.mxu0 0
      %2425 = vmatmul.mubr.bf16.gmra.mrb[0].mxu0 %v1039
      %v2426 = vpop.f32.mrb[0].mxu0
      %v2427 = vadd.f32 %v2266, %v2426
      %v2428 = vpop.f32.mrb[0].mxu0
      %v2429 = vpop.f32.mrb[0].mxu0
      %v2430 = vadd.f32 %v2269, %v2429
      %v2431 = vpop.f32.mrb[0].mxu0
      %2432 = vmatprep.mubr.bf16.mxu0 0
      %2433 = vmatmul.mubr.bf16.gmra.mrb[0].mxu0 %v1048
      %v2434 = vpop.f32.mrb[0].mxu0
      %v2435 = vadd.f32 %v2274, %v2434
      %v2436 = vpop.f32.mrb[0].mxu0
      %v2437 = vpop.f32.mrb[0].mxu0
      %v2438 = vadd.f32 %v2277, %v2437
      %v2439 = vpop.f32.mrb[0].mxu0
      %2440 = vmatprep.mubr.bf16.mxu0 0
      %2441 = vmatmul.mubr.bf16.gmra.mrb[0].mxu0 %v1057
      %v2442 = vpop.f32.mrb[0].mxu0
      %v2443 = vadd.f32 %v2282, %v2442
      %v2444 = vpop.f32.mrb[0].mxu0
      %v2445 = vpop.f32.mrb[0].mxu0
      %v2446 = vadd.f32 %v2285, %v2445
      %v2447 = vpop.f32.mrb[0].mxu0
      %2448 = vmatprep.mubr.bf16.mxu0 0
      %2449 = vmatmul.mubr.bf16.gmra.mrb[0].mxu0 %v1066
      %v2450 = vpop.f32.mrb[0].mxu0
      %v2451 = vadd.f32 %v2290, %v2450
      %v2452 = vpop.f32.mrb[0].mxu0
      %v2453 = vpop.f32.mrb[0].mxu0
      %v2454 = vadd.f32 %v2293, %v2453
      %v2455 = vpop.f32.mrb[0].mxu0
      %2456 = vmatprep.mubr.bf16.mxu0 0
      %2457 = vmatmul.mubr.bf16.gmra.mrb[0].mxu0 %v1075
      %v2458 = vpop.f32.mrb[0].mxu0
      %v2459 = vadd.f32 %v2298, %v2458
      %v2460 = vpop.f32.mrb[0].mxu0
      %v2461 = vpop.f32.mrb[0].mxu0
      %v2462 = vadd.f32 %v2301, %v2461
      %v2463 = vpop.f32.mrb[0].mxu0
      %2464 = vmatprep.mubr.bf16.mxu0 0
      %2465 = vmatmul.mubr.bf16.gmra.mrb[0].mxu0 %v1084
      %v2466 = vpop.f32.mrb[0].mxu0
      %v2467 = vadd.f32 %v2306, %v2466
      %v2468 = vpop.f32.mrb[0].mxu0
      %v2469 = vpop.f32.mrb[0].mxu0
      %v2470 = vadd.f32 %v2309, %v2469
      %v2471 = vpop.f32.mrb[0].mxu0
      %2472 = vmatprep.mubr.bf16.mxu0 0
      %2473 = vmatmul.mubr.bf16.gmra.mrb[0].mxu0 %v1093
      %v2474 = vpop.f32.mrb[0].mxu0
      %v2475 = vadd.f32 %v2314, %v2474
      %v2476 = vpop.f32.mrb[0].mxu0
      %v2477 = vpop.f32.mrb[0].mxu0
      %v2478 = vadd.f32 %v2317, %v2477
      %v2479 = vpop.f32.mrb[0].mxu0
      %2480 = vmatprep.mubr.bf16.mxu0 0
      %2481 = vmatmul.mubr.bf16.gmra.mrb[0].mxu0 %v1102
      %v2482 = vpop.f32.mrb[0].mxu0
      %v2483 = vadd.f32 %v2322, %v2482
      %v2484 = vpop.f32.mrb[0].mxu0
      %v2485 = vpop.f32.mrb[0].mxu0
      %v2486 = vadd.f32 %v2325, %v2485
      %v2487 = vpop.f32.mrb[0].mxu0
      %2488 = vmatprep.mubr.bf16.mxu0 0
      %2489 = vmatmul.mubr.bf16.gmra.mrb[0].mxu0 %v1111
      %v2490 = vpop.f32.mrb[0].mxu0
      %v2491 = vadd.f32 %v2330, %v2490
      %v2492 = vpop.f32.mrb[0].mxu0
      %v2493 = vpop.f32.mrb[0].mxu0
      %v2494 = vadd.f32 %v2333, %v2493
      %v2495 = vpop.f32.mrb[0].mxu0
      %2496 = vmatprep.mubr.bf16.mxu0 0
      %2497 = vmatmul.mubr.bf16.gmra.mrb[0].mxu0 %v1120
      %v2498 = vpop.f32.mrb[0].mxu0
      %v2499 = vadd.f32 %v2338, %v2498
      %v2500 = vpop.f32.mrb[0].mxu0
      %v2501 = vpop.f32.mrb[0].mxu0
      %v2502 = vadd.f32 %v2341, %v2501
      %v2503 = vpop.f32.mrb[0].mxu0
      %2504 = vmatprep.mubr.bf16.mxu0 0
      %2505 = vmatmul.mubr.bf16.gmra.mrb[0].mxu0 %v1129
      %v2506 = vpop.f32.mrb[0].mxu0
      %v2507 = vadd.f32 %v2346, %v2506
      %v2508 = vpop.f32.mrb[0].mxu0
      %v2509 = vpop.f32.mrb[0].mxu0
      %v2510 = vadd.f32 %v2349, %v2509
      %v2511 = vpop.f32.mrb[0].mxu0
      %2512 = vmatprep.mubr.bf16.mxu0 0
      %2513 = vmatmul.mubr.bf16.gmra.mrb[0].mxu0 %v1138
      %v2514 = vpop.f32.mrb[0].mxu0
      %v2515 = vadd.f32 %v2354, %v2514
      %v2516 = vpop.f32.mrb[0].mxu0
      %v2517 = vpop.f32.mrb[0].mxu0
      %v2518 = vadd.f32 %v2357, %v2517
      %v2519 = vpop.f32.mrb[0].mxu0
      %2520 = vmatprep.mubr.bf16.mxu0 0
      %2521 = vmatmul.mubr.bf16.gmra.mrb[0].mxu0 %v1147
      %v2522 = vpop.f32.mrb[0].mxu0
      %v2523 = vadd.f32 %v2362, %v2522
      %v2524 = vpop.f32.mrb[0].mxu0
      %v2525 = vpop.f32.mrb[0].mxu0
      %v2526 = vadd.f32 %v2365, %v2525
      %v2527 = vpop.f32.mrb[0].mxu0
      %2528 = vdwg.mxu0
      %2529 = vst [vmem:[%s361 + $0x1] sm:$0xff] %v2403
      %2530 = vst [vmem:[%s361 + $0x9] sm:$0xff] %v2406
      %2531 = vst [vmem:[%s361 + $0x19] sm:$0xff] %v2411
      %2532 = vst [vmem:[%s361 + $0x21] sm:$0xff] %v2414
      %2533 = vst [vmem:[%s361 + $0x31] sm:$0xff] %v2419
      %2534 = vst [vmem:[%s361 + $0x39] sm:$0xff] %v2422
      %2535 = vst [vmem:[%s361 + $0x49] sm:$0xff] %v2427
      %2536 = vst [vmem:[%s361 + $0x51] sm:$0xff] %v2430
      %2537 = vst [vmem:[%s361 + $0x61] sm:$0xff] %v2435
      %2538 = vst [vmem:[%s361 + $0x69] sm:$0xff] %v2438
      %2539 = vst [vmem:[%s361 + $0x79] sm:$0xff] %v2443
      %2540 = vst [vmem:[%s361 + $0x81] sm:$0xff] %v2446
      %2541 = vst [vmem:[%s361 + $0x91] sm:$0xff] %v2451
      %2542 = vst [vmem:[%s361 + $0x99] sm:$0xff] %v2454
      %2543 = vst [vmem:[%s361 + $0xa9] sm:$0xff] %v2459
      %2544 = vst [vmem:[%s361 + $0xb1] sm:$0xff] %v2462
      %2545 = vst [vmem:[%s361 + $0xc1] sm:$0xff] %v2467
      %2546 = vst [vmem:[%s361 + $0xc9] sm:$0xff] %v2470
      %2547 = vst [vmem:[%s361 + $0xd9] sm:$0xff] %v2475
      %2548 = vst [vmem:[%s361 + $0xe1] sm:$0xff] %v2478
      %2549 = vst [vmem:[%s361 + $0xf1] sm:$0xff] %v2483
      %2550 = vst [vmem:[%s361 + $0xf9] sm:$0xff] %v2486
      %2551 = vst [vmem:[%s361 + $0x109] sm:$0xff] %v2491
      %2552 = vst [vmem:[%s361 + $0x111] sm:$0xff] %v2494
      %2553 = vst [vmem:[%s361 + $0x121] sm:$0xff] %v2499
      %2554 = vst [vmem:[%s361 + $0x129] sm:$0xff] %v2502
      %2555 = vst [vmem:[%s361 + $0x139] sm:$0xff] %v2507
      %2556 = vst [vmem:[%s361 + $0x141] sm:$0xff] %v2510
      %2557 = vst [vmem:[%s361 + $0x151] sm:$0xff] %v2515
      %2558 = vst [vmem:[%s361 + $0x159] sm:$0xff] %v2518
      %2559 = vst [vmem:[%s361 + $0x169] sm:$0xff] %v2523
      %2560 = vst [vmem:[%s361 + $0x171] sm:$0xff] %v2526
      %v2561 = vld [vmem:[%s361 + $0x1] sm:$0xff]
      %v2562 = vld [vmem:[%s361 + $0x9] sm:$0xff]
      %v2563 = vld [vmem:[%s361 + $0x19] sm:$0xff]
      %v2564 = vld [vmem:[%s361 + $0x21] sm:$0xff]
      %v2565 = vld [vmem:[%s361 + $0x31] sm:$0xff]
      %v2566 = vld [vmem:[%s361 + $0x39] sm:$0xff]
      %v2567 = vld [vmem:[%s361 + $0x49] sm:$0xff]
      %v2568 = vld [vmem:[%s361 + $0x51] sm:$0xff]
      %v2569 = vld [vmem:[%s361 + $0x61] sm:$0xff]
      %v2570 = vld [vmem:[%s361 + $0x69] sm:$0xff]
      %v2571 = vld [vmem:[%s361 + $0x79] sm:$0xff]
      %v2572 = vld [vmem:[%s361 + $0x81] sm:$0xff]
      %v2573 = vld [vmem:[%s361 + $0x91] sm:$0xff]
      %v2574 = vld [vmem:[%s361 + $0x99] sm:$0xff]
      %v2575 = vld [vmem:[%s361 + $0xa9] sm:$0xff]
      %v2576 = vld [vmem:[%s361 + $0xb1] sm:$0xff]
      %v2577 = vld [vmem:[%s361 + $0xc1] sm:$0xff]
      %v2578 = vld [vmem:[%s361 + $0xc9] sm:$0xff]
      %v2579 = vld [vmem:[%s361 + $0xd9] sm:$0xff]
      %v2580 = vld [vmem:[%s361 + $0xe1] sm:$0xff]
      %v2581 = vld [vmem:[%s361 + $0xf1] sm:$0xff]
      %v2582 = vld [vmem:[%s361 + $0xf9] sm:$0xff]
      %v2583 = vld [vmem:[%s361 + $0x109] sm:$0xff]
      %v2584 = vld [vmem:[%s361 + $0x111] sm:$0xff]
      %v2585 = vld [vmem:[%s361 + $0x121] sm:$0xff]
      %v2586 = vld [vmem:[%s361 + $0x129] sm:$0xff]
      %v2587 = vld [vmem:[%s361 + $0x139] sm:$0xff]
      %v2588 = vld [vmem:[%s361 + $0x141] sm:$0xff]
      %v2589 = vld [vmem:[%s361 + $0x151] sm:$0xff]
      %v2590 = vld [vmem:[%s361 + $0x159] sm:$0xff]
      %v2591 = vld [vmem:[%s361 + $0x169] sm:$0xff]
      %v2592 = vld [vmem:[%s361 + $0x171] sm:$0xff]
      %v2593 = vld [vmem:[%s1 + $0x1] sm:$0x1]
      %v2594 = vlaneseq
      %v2595 = vshrl.u32 %v2594, 7
      %v2596 = vsub.s32 0, %v2595
      %v2597 = vrot.slane %v2593, %v2596
      %v2598 = vmul.f32 %v2561, %v2597
      %v2599 = vmul.f32 %v2562, %v2597
      %v2600 = vmul.f32 %v2563, %v2597
      %v2601 = vmul.f32 %v2564, %v2597
      %v2602 = vmul.f32 %v2565, %v2597
      %v2603 = vmul.f32 %v2566, %v2597
      %v2604 = vmul.f32 %v2567, %v2597
      %v2605 = vmul.f32 %v2568, %v2597
      %v2606 = vmul.f32 %v2569, %v2597
      %v2607 = vmul.f32 %v2570, %v2597
      %v2608 = vmul.f32 %v2571, %v2597
      %v2609 = vmul.f32 %v2572, %v2597
      %v2610 = vmul.f32 %v2573, %v2597
      %v2611 = vmul.f32 %v2574, %v2597
      %v2612 = vmul.f32 %v2575, %v2597
      %v2613 = vmul.f32 %v2576, %v2597
      %v2614 = vmul.f32 %v2577, %v2597
      %v2615 = vmul.f32 %v2578, %v2597
      %v2616 = vmul.f32 %v2579, %v2597
      %v2617 = vmul.f32 %v2580, %v2597
      %v2618 = vmul.f32 %v2581, %v2597
      %v2619 = vmul.f32 %v2582, %v2597
      %v2620 = vmul.f32 %v2583, %v2597
      %v2621 = vmul.f32 %v2584, %v2597
      %v2622 = vmul.f32 %v2585, %v2597
      %v2623 = vmul.f32 %v2586, %v2597
      %v2624 = vmul.f32 %v2587, %v2597
      %v2625 = vmul.f32 %v2588, %v2597
      %v2626 = vmul.f32 %v2589, %v2597
      %v2627 = vmul.f32 %v2590, %v2597
      %v2628 = vmul.f32 %v2591, %v2597
      %v2629 = vmul.f32 %v2592, %v2597
      %v2630 = vld [vmem:[%s2 + $0x1] sm:$0x1]
      %v2631 = vlaneseq
      %v2632 = vshrl.u32 %v2631, 7
      %v2633 = vsub.s32 0, %v2632
      %v2634 = vrot.slane %v2630, %v2633
      %v2635 = vadd.f32 %v2598, %v2634
      %v2636 = vadd.f32 %v2599, %v2634
      %v2637 = vadd.f32 %v2600, %v2634
      %v2638 = vadd.f32 %v2601, %v2634
      %v2639 = vadd.f32 %v2602, %v2634
      %v2640 = vadd.f32 %v2603, %v2634
      %v2641 = vadd.f32 %v2604, %v2634
      %v2642 = vadd.f32 %v2605, %v2634
      %v2643 = vadd.f32 %v2606, %v2634
      %v2644 = vadd.f32 %v2607, %v2634
      %v2645 = vadd.f32 %v2608, %v2634
      %v2646 = vadd.f32 %v2609, %v2634
      %v2647 = vadd.f32 %v2610, %v2634
      %v2648 = vadd.f32 %v2611, %v2634
      %v2649 = vadd.f32 %v2612, %v2634
      %v2650 = vadd.f32 %v2613, %v2634
      %v2651 = vadd.f32 %v2614, %v2634
      %v2652 = vadd.f32 %v2615, %v2634
      %v2653 = vadd.f32 %v2616, %v2634
      %v2654 = vadd.f32 %v2617, %v2634
      %v2655 = vadd.f32 %v2618, %v2634
      %v2656 = vadd.f32 %v2619, %v2634
      %v2657 = vadd.f32 %v2620, %v2634
      %v2658 = vadd.f32 %v2621, %v2634
      %v2659 = vadd.f32 %v2622, %v2634
      %v2660 = vadd.f32 %v2623, %v2634
      %v2661 = vadd.f32 %v2624, %v2634
      %v2662 = vadd.f32 %v2625, %v2634
      %v2663 = vadd.f32 %v2626, %v2634
      %v2664 = vadd.f32 %v2627, %v2634
      %v2665 = vadd.f32 %v2628, %v2634
      %v2666 = vadd.f32 %v2629, %v2634
      %v2667 = vmax.f32 %v2635, 0.0
      %v2668 = vmax.f32 %v2636, 0.0
      %v2669 = vmax.f32 %v2637, 0.0
      %v2670 = vmax.f32 %v2638, 0.0
      %v2671 = vmax.f32 %v2639, 0.0
      %v2672 = vmax.f32 %v2640, 0.0
      %v2673 = vmax.f32 %v2641, 0.0
      %v2674 = vmax.f32 %v2642, 0.0
      %v2675 = vmax.f32 %v2643, 0.0
      %v2676 = vmax.f32 %v2644, 0.0
      %v2677 = vmax.f32 %v2645, 0.0
      %v2678 = vmax.f32 %v2646, 0.0
      %v2679 = vmax.f32 %v2647, 0.0
      %v2680 = vmax.f32 %v2648, 0.0
      %v2681 = vmax.f32 %v2649, 0.0
      %v2682 = vmax.f32 %v2650, 0.0
      %v2683 = vmax.f32 %v2651, 0.0
      %v2684 = vmax.f32 %v2652, 0.0
      %v2685 = vmax.f32 %v2653, 0.0
      %v2686 = vmax.f32 %v2654, 0.0
      %v2687 = vmax.f32 %v2655, 0.0
      %v2688 = vmax.f32 %v2656, 0.0
      %v2689 = vmax.f32 %v2657, 0.0
      %v2690 = vmax.f32 %v2658, 0.0
      %v2691 = vmax.f32 %v2659, 0.0
      %v2692 = vmax.f32 %v2660, 0.0
      %v2693 = vmax.f32 %v2661, 0.0
      %v2694 = vmax.f32 %v2662, 0.0
      %v2695 = vmax.f32 %v2663, 0.0
      %v2696 = vmax.f32 %v2664, 0.0
      %v2697 = vmax.f32 %v2665, 0.0
      %v2698 = vmax.f32 %v2666, 0.0
      %2699 = vst [vmem:[%s394 + $0x1] sm:$0xff] %v2667
      %2700 = vst [vmem:[%s394 + $0x9] sm:$0xff] %v2668
      %2701 = vst [vmem:[%s394 + $0x19] sm:$0xff] %v2669
      %2702 = vst [vmem:[%s394 + $0x21] sm:$0xff] %v2670
      %2703 = vst [vmem:[%s394 + $0x31] sm:$0xff] %v2671
      %2704 = vst [vmem:[%s394 + $0x39] sm:$0xff] %v2672
      %2705 = vst [vmem:[%s394 + $0x49] sm:$0xff] %v2673
      %2706 = vst [vmem:[%s394 + $0x51] sm:$0xff] %v2674
      %2707 = vst [vmem:[%s394 + $0x61] sm:$0xff] %v2675
      %2708 = vst [vmem:[%s394 + $0x69] sm:$0xff] %v2676
      %2709 = vst [vmem:[%s394 + $0x79] sm:$0xff] %v2677
      %2710 = vst [vmem:[%s394 + $0x81] sm:$0xff] %v2678
      %2711 = vst [vmem:[%s394 + $0x91] sm:$0xff] %v2679
      %2712 = vst [vmem:[%s394 + $0x99] sm:$0xff] %v2680
      %2713 = vst [vmem:[%s394 + $0xa9] sm:$0xff] %v2681
      %2714 = vst [vmem:[%s394 + $0xb1] sm:$0xff] %v2682
      %2715 = vst [vmem:[%s394 + $0xc1] sm:$0xff] %v2683
      %2716 = vst [vmem:[%s394 + $0xc9] sm:$0xff] %v2684
      %2717 = vst [vmem:[%s394 + $0xd9] sm:$0xff] %v2685
      %2718 = vst [vmem:[%s394 + $0xe1] sm:$0xff] %v2686
      %2719 = vst [vmem:[%s394 + $0xf1] sm:$0xff] %v2687
      %2720 = vst [vmem:[%s394 + $0xf9] sm:$0xff] %v2688
      %2721 = vst [vmem:[%s394 + $0x109] sm:$0xff] %v2689
      %2722 = vst [vmem:[%s394 + $0x111] sm:$0xff] %v2690
      %2723 = vst [vmem:[%s394 + $0x121] sm:$0xff] %v2691
      %2724 = vst [vmem:[%s394 + $0x129] sm:$0xff] %v2692
      %2725 = vst [vmem:[%s394 + $0x139] sm:$0xff] %v2693
      %2726 = vst [vmem:[%s394 + $0x141] sm:$0xff] %v2694
      %2727 = vst [vmem:[%s394 + $0x151] sm:$0xff] %v2695
      %2728 = vst [vmem:[%s394 + $0x159] sm:$0xff] %v2696
      %2729 = vst [vmem:[%s394 + $0x169] sm:$0xff] %v2697
      %2730 = vst [vmem:[%s394 + $0x171] sm:$0xff] %v2698
      %v2731 = vld [vmem:[#allocation2] sm:$0xff]
      %v2732 = vld [vmem:[#allocation2 + $0x8] sm:$0xff]
      %v2733 = vld [vmem:[#allocation2 + $0x18] sm:$0xff]
      %v2734 = vld [vmem:[#allocation2 + $0x20] sm:$0xff]
      %v2735 = vld [vmem:[#allocation2 + $0x30] sm:$0xff]
      %v2736 = vld [vmem:[#allocation2 + $0x38] sm:$0xff]
      %v2737 = vld [vmem:[#allocation2 + $0x48] sm:$0xff]
      %v2738 = vld [vmem:[#allocation2 + $0x50] sm:$0xff]
      %v2739 = vld [vmem:[#allocation2 + $0x60] sm:$0xff]
      %v2740 = vld [vmem:[#allocation2 + $0x68] sm:$0xff]
      %v2741 = vld [vmem:[#allocation2 + $0x78] sm:$0xff]
      %v2742 = vld [vmem:[#allocation2 + $0x80] sm:$0xff]
      %v2743 = vld [vmem:[#allocation2 + $0x90] sm:$0xff]
      %v2744 = vld [vmem:[#allocation2 + $0x98] sm:$0xff]
      %v2745 = vld [vmem:[#allocation2 + $0xa8] sm:$0xff]
      %v2746 = vld [vmem:[#allocation2 + $0xb0] sm:$0xff]
      %v2747 = vld [vmem:[#allocation2 + $0xc0] sm:$0xff]
      %v2748 = vld [vmem:[#allocation2 + $0xc8] sm:$0xff]
      %v2749 = vld [vmem:[#allocation2 + $0xd8] sm:$0xff]
      %v2750 = vld [vmem:[#allocation2 + $0xe0] sm:$0xff]
      %v2751 = vld [vmem:[#allocation2 + $0xf0] sm:$0xff]
      %v2752 = vld [vmem:[#allocation2 + $0xf8] sm:$0xff]
      %v2753 = vld [vmem:[#allocation2 + $0x108] sm:$0xff]
      %v2754 = vld [vmem:[#allocation2 + $0x110] sm:$0xff]
      %v2755 = vld [vmem:[#allocation2 + $0x120] sm:$0xff]
      %v2756 = vld [vmem:[#allocation2 + $0x128] sm:$0xff]
      %v2757 = vld [vmem:[#allocation2 + $0x138] sm:$0xff]
      %v2758 = vld [vmem:[#allocation2 + $0x140] sm:$0xff]
      %v2759 = vld [vmem:[#allocation2 + $0x150] sm:$0xff]
      %v2760 = vld [vmem:[#allocation2 + $0x158] sm:$0xff]
      %v2761 = vld [vmem:[#allocation2 + $0x168] sm:$0xff]
      %v2762 = vld [vmem:[#allocation2 + $0x170] sm:$0xff]
      %v2763 = vpack.c.bf16 %v2732, %v2731
      %v2764 = vpack.c.bf16 %v2734, %v2733
      %v2765 = vpack.c.bf16 %v2736, %v2735
      %v2766 = vpack.c.bf16 %v2738, %v2737
      %v2767 = vpack.c.bf16 %v2740, %v2739
      %v2768 = vpack.c.bf16 %v2742, %v2741
      %v2769 = vpack.c.bf16 %v2744, %v2743
      %v2770 = vpack.c.bf16 %v2746, %v2745
      %v2771 = vpack.c.bf16 %v2748, %v2747
      %v2772 = vpack.c.bf16 %v2750, %v2749
      %v2773 = vpack.c.bf16 %v2752, %v2751
      %v2774 = vpack.c.bf16 %v2754, %v2753
      %v2775 = vpack.c.bf16 %v2756, %v2755
      %v2776 = vpack.c.bf16 %v2758, %v2757
      %v2777 = vpack.c.bf16 %v2760, %v2759
      %v2778 = vpack.c.bf16 %v2762, %v2761
      %2779 = vst [vmem:[#allocation3] sm:$0xff] %v2763
      %2780 = vst [vmem:[#allocation3 + $0x48] sm:$0xff] %v2764
      %2781 = vst [vmem:[#allocation3 + $0x90] sm:$0xff] %v2765
      %2782 = vst [vmem:[#allocation3 + $0xd8] sm:$0xff] %v2766
      %2783 = vst [vmem:[#allocation3 + $0x120] sm:$0xff] %v2767
      %2784 = vst [vmem:[#allocation3 + $0x168] sm:$0xff] %v2768
      %2785 = vst [vmem:[#allocation3 + $0x1b0] sm:$0xff] %v2769
      %2786 = vst [vmem:[#allocation3 + $0x1f8] sm:$0xff] %v2770
      %2787 = vst [vmem:[#allocation3 + $0x240] sm:$0xff] %v2771
      %2788 = vst [vmem:[#allocation3 + $0x288] sm:$0xff] %v2772
      %2789 = vst [vmem:[#allocation3 + $0x2d0] sm:$0xff] %v2773
      %2790 = vst [vmem:[#allocation3 + $0x318] sm:$0xff] %v2774
      %2791 = vst [vmem:[#allocation3 + $0x360] sm:$0xff] %v2775
      %2792 = vst [vmem:[#allocation3 + $0x3a8] sm:$0xff] %v2776
      %2793 = vst [vmem:[#allocation3 + $0x3f0] sm:$0xff] %v2777
      %2794 = vst [vmem:[#allocation3 + $0x438] sm:$0xff] %v2778
      %v2795 = vld [vmem:[#allocation2 + $0x1] sm:$0xff]
      %v2796 = vld [vmem:[#allocation2 + $0x9] sm:$0xff]
      %v2797 = vld [vmem:[#allocation2 + $0x19] sm:$0xff]
      %v2798 = vld [vmem:[#allocation2 + $0x21] sm:$0xff]
      %v2799 = vld [vmem:[#allocation2 + $0x31] sm:$0xff]
      %v2800 = vld [vmem:[#allocation2 + $0x39] sm:$0xff]
      %v2801 = vld [vmem:[#allocation2 + $0x49] sm:$0xff]
      %v2802 = vld [vmem:[#allocation2 + $0x51] sm:$0xff]
      %v2803 = vld [vmem:[#allocation2 + $0x61] sm:$0xff]
      %v2804 = vld [vmem:[#allocation2 + $0x69] sm:$0xff]
      %v2805 = vld [vmem:[#allocation2 + $0x79] sm:$0xff]
      %v2806 = vld [vmem:[#allocation2 + $0x81] sm:$0xff]
      %v2807 = vld [vmem:[#allocation2 + $0x91] sm:$0xff]
      %v2808 = vld [vmem:[#allocation2 + $0x99] sm:$0xff]
      %v2809 = vld [vmem:[#allocation2 + $0xa9] sm:$0xff]
      %v2810 = vld [vmem:[#allocation2 + $0xb1] sm:$0xff]
      %v2811 = vld [vmem:[#allocation2 + $0xc1] sm:$0xff]
      %v2812 = vld [vmem:[#allocation2 + $0xc9] sm:$0xff]
      %v2813 = vld [vmem:[#allocation2 + $0xd9] sm:$0xff]
      %v2814 = vld [vmem:[#allocation2 + $0xe1] sm:$0xff]
      %v2815 = vld [vmem:[#allocation2 + $0xf1] sm:$0xff]
      %v2816 = vld [vmem:[#allocation2 + $0xf9] sm:$0xff]
      %v2817 = vld [vmem:[#allocation2 + $0x109] sm:$0xff]
      %v2818 = vld [vmem:[#allocation2 + $0x111] sm:$0xff]
      %v2819 = vld [vmem:[#allocation2 + $0x121] sm:$0xff]
      %v2820 = vld [vmem:[#allocation2 + $0x129] sm:$0xff]
      %v2821 = vld [vmem:[#allocation2 + $0x139] sm:$0xff]
      %v2822 = vld [vmem:[#allocation2 + $0x141] sm:$0xff]
      %v2823 = vld [vmem:[#allocation2 + $0x151] sm:$0xff]
      %v2824 = vld [vmem:[#allocation2 + $0x159] sm:$0xff]
      %v2825 = vld [vmem:[#allocation2 + $0x169] sm:$0xff]
      %v2826 = vld [vmem:[#allocation2 + $0x171] sm:$0xff]
      %v2827 = vpack.c.bf16 %v2796, %v2795
      %v2828 = vpack.c.bf16 %v2798, %v2797
      %v2829 = vpack.c.bf16 %v2800, %v2799
      %v2830 = vpack.c.bf16 %v2802, %v2801
      %v2831 = vpack.c.bf16 %v2804, %v2803
      %v2832 = vpack.c.bf16 %v2806, %v2805
      %v2833 = vpack.c.bf16 %v2808, %v2807
      %v2834 = vpack.c.bf16 %v2810, %v2809
      %v2835 = vpack.c.bf16 %v2812, %v2811
      %v2836 = vpack.c.bf16 %v2814, %v2813
      %v2837 = vpack.c.bf16 %v2816, %v2815
      %v2838 = vpack.c.bf16 %v2818, %v2817
      %v2839 = vpack.c.bf16 %v2820, %v2819
      %v2840 = vpack.c.bf16 %v2822, %v2821
      %v2841 = vpack.c.bf16 %v2824, %v2823
      %v2842 = vpack.c.bf16 %v2826, %v2825
      %2843 = vst [vmem:[#allocation3 + $0x8] sm:$0xff] %v2827
      %2844 = vst [vmem:[#allocation3 + $0x50] sm:$0xff] %v2828
      %2845 = vst [vmem:[#allocation3 + $0x98] sm:$0xff] %v2829
      %2846 = vst [vmem:[#allocation3 + $0xe0] sm:$0xff] %v2830
      %2847 = vst [vmem:[#allocation3 + $0x128] sm:$0xff] %v2831
      %2848 = vst [vmem:[#allocation3 + $0x170] sm:$0xff] %v2832
      %2849 = vst [vmem:[#allocation3 + $0x1b8] sm:$0xff] %v2833
      %2850 = vst [vmem:[#allocation3 + $0x200] sm:$0xff] %v2834
      %2851 = vst [vmem:[#allocation3 + $0x248] sm:$0xff] %v2835
      %2852 = vst [vmem:[#allocation3 + $0x290] sm:$0xff] %v2836
      %2853 = vst [vmem:[#allocation3 + $0x2d8] sm:$0xff] %v2837
      %2854 = vst [vmem:[#allocation3 + $0x320] sm:$0xff] %v2838
      %2855 = vst [vmem:[#allocation3 + $0x368] sm:$0xff] %v2839
      %2856 = vst [vmem:[#allocation3 + $0x3b0] sm:$0xff] %v2840
      %2857 = vst [vmem:[#allocation3 + $0x3f8] sm:$0xff] %v2841
      %2858 = vst [vmem:[#allocation3 + $0x440] sm:$0xff] %v2842
      %v2859 = vld [vmem:[#allocation2 + $0x2] sm:$0xff]
      %v2860 = vld [vmem:[#allocation2 + $0xa] sm:$0xff]
      %v2861 = vld [vmem:[#allocation2 + $0x1a] sm:$0xff]
      %v2862 = vld [vmem:[#allocation2 + $0x22] sm:$0xff]
      %v2863 = vld [vmem:[#allocation2 + $0x32] sm:$0xff]
      %v2864 = vld [vmem:[#allocation2 + $0x3a] sm:$0xff]
      %v2865 = vld [vmem:[#allocation2 + $0x4a] sm:$0xff]
      %v2866 = vld [vmem:[#allocation2 + $0x52] sm:$0xff]
      %v2867 = vld [vmem:[#allocation2 + $0x62] sm:$0xff]
      %v2868 = vld [vmem:[#allocation2 + $0x6a] sm:$0xff]
      %v2869 = vld [vmem:[#allocation2 + $0x7a] sm:$0xff]
      %v2870 = vld [vmem:[#allocation2 + $0x82] sm:$0xff]
      %v2871 = vld [vmem:[#allocation2 + $0x92] sm:$0xff]
      %v2872 = vld [vmem:[#allocation2 + $0x9a] sm:$0xff]
      %v2873 = vld [vmem:[#allocation2 + $0xaa] sm:$0xff]
      %v2874 = vld [vmem:[#allocation2 + $0xb2] sm:$0xff]
      %v2875 = vld [vmem:[#allocation2 + $0xc2] sm:$0xff]
      %v2876 = vld [vmem:[#allocation2 + $0xca] sm:$0xff]
      %v2877 = vld [vmem:[#allocation2 + $0xda] sm:$0xff]
      %v2878 = vld [vmem:[#allocation2 + $0xe2] sm:$0xff]
      %v2879 = vld [vmem:[#allocation2 + $0xf2] sm:$0xff]
      %v2880 = vld [vmem:[#allocation2 + $0xfa] sm:$0xff]
      %v2881 = vld [vmem:[#allocation2 + $0x10a] sm:$0xff]
      %v2882 = vld [vmem:[#allocation2 + $0x112] sm:$0xff]
      %v2883 = vld [vmem:[#allocation2 + $0x122] sm:$0xff]
      %v2884 = vld [vmem:[#allocation2 + $0x12a] sm:$0xff]
      %v2885 = vld [vmem:[#allocation2 + $0x13a] sm:$0xff]
      %v2886 = vld [vmem:[#allocation2 + $0x142] sm:$0xff]
      %v2887 = vld [vmem:[#allocation2 + $0x152] sm:$0xff]
      %v2888 = vld [vmem:[#allocation2 + $0x15a] sm:$0xff]
      %v2889 = vld [vmem:[#allocation2 + $0x16a] sm:$0xff]
      %v2890 = vld [vmem:[#allocation2 + $0x172] sm:$0xff]
      %v2891 = vpack.c.bf16 %v2860, %v2859
      %v2892 = vpack.c.bf16 %v2862, %v2861
      %v2893 = vpack.c.bf16 %v2864, %v2863
      %v2894 = vpack.c.bf16 %v2866, %v2865
      %v2895 = vpack.c.bf16 %v2868, %v2867
      %v2896 = vpack.c.bf16 %v2870, %v2869
      %v2897 = vpack.c.bf16 %v2872, %v2871
      %v2898 = vpack.c.bf16 %v2874, %v2873
      %v2899 = vpack.c.bf16 %v2876, %v2875
      %v2900 = vpack.c.bf16 %v2878, %v2877
      %v2901 = vpack.c.bf16 %v2880, %v2879
      %v2902 = vpack.c.bf16 %v2882, %v2881
      %v2903 = vpack.c.bf16 %v2884, %v2883
      %v2904 = vpack.c.bf16 %v2886, %v2885
      %v2905 = vpack.c.bf16 %v2888, %v2887
      %v2906 = vpack.c.bf16 %v2890, %v2889
      %2907 = vst [vmem:[#allocation3 + $0x10] sm:$0xff] %v2891
      %2908 = vst [vmem:[#allocation3 + $0x58] sm:$0xff] %v2892
      %2909 = vst [vmem:[#allocation3 + $0xa0] sm:$0xff] %v2893
      %2910 = vst [vmem:[#allocation3 + $0xe8] sm:$0xff] %v2894
      %2911 = vst [vmem:[#allocation3 + $0x130] sm:$0xff] %v2895
      %2912 = vst [vmem:[#allocation3 + $0x178] sm:$0xff] %v2896
      %2913 = vst [vmem:[#allocation3 + $0x1c0] sm:$0xff] %v2897
      %2914 = vst [vmem:[#allocation3 + $0x208] sm:$0xff] %v2898
      %2915 = vst [vmem:[#allocation3 + $0x250] sm:$0xff] %v2899
      %2916 = vst [vmem:[#allocation3 + $0x298] sm:$0xff] %v2900
      %2917 = vst [vmem:[#allocation3 + $0x2e0] sm:$0xff] %v2901
      %2918 = vst [vmem:[#allocation3 + $0x328] sm:$0xff] %v2902
      %2919 = vst [vmem:[#allocation3 + $0x370] sm:$0xff] %v2903
      %2920 = vst [vmem:[#allocation3 + $0x3b8] sm:$0xff] %v2904
      %2921 = vst [vmem:[#allocation3 + $0x400] sm:$0xff] %v2905
      %2922 = vst [vmem:[#allocation3 + $0x448] sm:$0xff] %v2906
      %v2923 = vld [vmem:[%s394] sm:$0xff]
      %v2924 = vld [vmem:[%s394 + $0x8] sm:$0xff]
      %v2925 = vld [vmem:[%s394 + $0x18] sm:$0xff]
      %v2926 = vld [vmem:[%s394 + $0x20] sm:$0xff]
      %v2927 = vld [vmem:[%s394 + $0x30] sm:$0xff]
      %v2928 = vld [vmem:[%s394 + $0x38] sm:$0xff]
      %v2929 = vld [vmem:[%s394 + $0x48] sm:$0xff]
      %v2930 = vld [vmem:[%s394 + $0x50] sm:$0xff]
      %v2931 = vld [vmem:[%s394 + $0x60] sm:$0xff]
      %v2932 = vld [vmem:[%s394 + $0x68] sm:$0xff]
      %v2933 = vld [vmem:[%s394 + $0x78] sm:$0xff]
      %v2934 = vld [vmem:[%s394 + $0x80] sm:$0xff]
      %v2935 = vld [vmem:[%s394 + $0x90] sm:$0xff]
      %v2936 = vld [vmem:[%s394 + $0x98] sm:$0xff]
      %v2937 = vld [vmem:[%s394 + $0xa8] sm:$0xff]
      %v2938 = vld [vmem:[%s394 + $0xb0] sm:$0xff]
      %v2939 = vld [vmem:[%s394 + $0xc0] sm:$0xff]
      %v2940 = vld [vmem:[%s394 + $0xc8] sm:$0xff]
      %v2941 = vld [vmem:[%s394 + $0xd8] sm:$0xff]
      %v2942 = vld [vmem:[%s394 + $0xe0] sm:$0xff]
      %v2943 = vld [vmem:[%s394 + $0xf0] sm:$0xff]
      %v2944 = vld [vmem:[%s394 + $0xf8] sm:$0xff]
      %v2945 = vld [vmem:[%s394 + $0x108] sm:$0xff]
      %v2946 = vld [vmem:[%s394 + $0x110] sm:$0xff]
      %v2947 = vld [vmem:[%s394 + $0x120] sm:$0xff]
      %v2948 = vld [vmem:[%s394 + $0x128] sm:$0xff]
      %v2949 = vld [vmem:[%s394 + $0x138] sm:$0xff]
      %v2950 = vld [vmem:[%s394 + $0x140] sm:$0xff]
      %v2951 = vld [vmem:[%s394 + $0x150] sm:$0xff]
      %v2952 = vld [vmem:[%s394 + $0x158] sm:$0xff]
      %v2953 = vld [vmem:[%s394 + $0x168] sm:$0xff]
      %v2954 = vld [vmem:[%s394 + $0x170] sm:$0xff]
      %v2955 = vpack.c.bf16 %v2924, %v2923
      %v2956 = vpack.c.bf16 %v2926, %v2925
      %v2957 = vpack.c.bf16 %v2928, %v2927
      %v2958 = vpack.c.bf16 %v2930, %v2929
      %v2959 = vpack.c.bf16 %v2932, %v2931
      %v2960 = vpack.c.bf16 %v2934, %v2933
      %v2961 = vpack.c.bf16 %v2936, %v2935
      %v2962 = vpack.c.bf16 %v2938, %v2937
      %v2963 = vpack.c.bf16 %v2940, %v2939
      %v2964 = vpack.c.bf16 %v2942, %v2941
      %v2965 = vpack.c.bf16 %v2944, %v2943
      %v2966 = vpack.c.bf16 %v2946, %v2945
      %v2967 = vpack.c.bf16 %v2948, %v2947
      %v2968 = vpack.c.bf16 %v2950, %v2949
      %v2969 = vpack.c.bf16 %v2952, %v2951
      %v2970 = vpack.c.bf16 %v2954, %v2953
      %2971 = vst [vmem:[#allocation3 + $0x18] sm:$0xff] %v2955
      %2972 = vst [vmem:[#allocation3 + $0x60] sm:$0xff] %v2956
      %2973 = vst [vmem:[#allocation3 + $0xa8] sm:$0xff] %v2957
      %2974 = vst [vmem:[#allocation3 + $0xf0] sm:$0xff] %v2958
      %2975 = vst [vmem:[#allocation3 + $0x138] sm:$0xff] %v2959
      %2976 = vst [vmem:[#allocation3 + $0x180] sm:$0xff] %v2960
      %2977 = vst [vmem:[#allocation3 + $0x1c8] sm:$0xff] %v2961
      %2978 = vst [vmem:[#allocation3 + $0x210] sm:$0xff] %v2962
      %2979 = vst [vmem:[#allocation3 + $0x258] sm:$0xff] %v2963
      %2980 = vst [vmem:[#allocation3 + $0x2a0] sm:$0xff] %v2964
      %2981 = vst [vmem:[#allocation3 + $0x2e8] sm:$0xff] %v2965
      %2982 = vst [vmem:[#allocation3 + $0x330] sm:$0xff] %v2966
      %2983 = vst [vmem:[#allocation3 + $0x378] sm:$0xff] %v2967
      %2984 = vst [vmem:[#allocation3 + $0x3c0] sm:$0xff] %v2968
      %2985 = vst [vmem:[#allocation3 + $0x408] sm:$0xff] %v2969
      %2986 = vst [vmem:[#allocation3 + $0x450] sm:$0xff] %v2970
      %v2987 = vld [vmem:[%s394 + $0x1] sm:$0xff]
      %v2988 = vld [vmem:[%s394 + $0x9] sm:$0xff]
      %v2989 = vld [vmem:[%s394 + $0x19] sm:$0xff]
      %v2990 = vld [vmem:[%s394 + $0x21] sm:$0xff]
      %v2991 = vld [vmem:[%s394 + $0x31] sm:$0xff]
      %v2992 = vld [vmem:[%s394 + $0x39] sm:$0xff]
      %v2993 = vld [vmem:[%s394 + $0x49] sm:$0xff]
      %v2994 = vld [vmem:[%s394 + $0x51] sm:$0xff]
      %v2995 = vld [vmem:[%s394 + $0x61] sm:$0xff]
      %v2996 = vld [vmem:[%s394 + $0x69] sm:$0xff]
      %v2997 = vld [vmem:[%s394 + $0x79] sm:$0xff]
      %v2998 = vld [vmem:[%s394 + $0x81] sm:$0xff]
      %v2999 = vld [vmem:[%s394 + $0x91] sm:$0xff]
      %v3000 = vld [vmem:[%s394 + $0x99] sm:$0xff]
      %v3001 = vld [vmem:[%s394 + $0xa9] sm:$0xff]
      %v3002 = vld [vmem:[%s394 + $0xb1] sm:$0xff]
      %v3003 = vld [vmem:[%s394 + $0xc1] sm:$0xff]
      %v3004 = vld [vmem:[%s394 + $0xc9] sm:$0xff]
      %v3005 = vld [vmem:[%s394 + $0xd9] sm:$0xff]
      %v3006 = vld [vmem:[%s394 + $0xe1] sm:$0xff]
      %v3007 = vld [vmem:[%s394 + $0xf1] sm:$0xff]
      %v3008 = vld [vmem:[%s394 + $0xf9] sm:$0xff]
      %v3009 = vld [vmem:[%s394 + $0x109] sm:$0xff]
      %v3010 = vld [vmem:[%s394 + $0x111] sm:$0xff]
      %v3011 = vld [vmem:[%s394 + $0x121] sm:$0xff]
      %v3012 = vld [vmem:[%s394 + $0x129] sm:$0xff]
      %v3013 = vld [vmem:[%s394 + $0x139] sm:$0xff]
      %v3014 = vld [vmem:[%s394 + $0x141] sm:$0xff]
      %v3015 = vld [vmem:[%s394 + $0x151] sm:$0xff]
      %v3016 = vld [vmem:[%s394 + $0x159] sm:$0xff]
      %v3017 = vld [vmem:[%s394 + $0x169] sm:$0xff]
      %v3018 = vld [vmem:[%s394 + $0x171] sm:$0xff]
      %v3019 = vpack.c.bf16 %v2988, %v2987
      %v3020 = vpack.c.bf16 %v2990, %v2989
      %v3021 = vpack.c.bf16 %v2992, %v2991
      %v3022 = vpack.c.bf16 %v2994, %v2993
      %v3023 = vpack.c.bf16 %v2996, %v2995
      %v3024 = vpack.c.bf16 %v2998, %v2997
      %v3025 = vpack.c.bf16 %v3000, %v2999
      %v3026 = vpack.c.bf16 %v3002, %v3001
      %v3027 = vpack.c.bf16 %v3004, %v3003
      %v3028 = vpack.c.bf16 %v3006, %v3005
      %v3029 = vpack.c.bf16 %v3008, %v3007
      %v3030 = vpack.c.bf16 %v3010, %v3009
      %v3031 = vpack.c.bf16 %v3012, %v3011
      %v3032 = vpack.c.bf16 %v3014, %v3013
      %v3033 = vpack.c.bf16 %v3016, %v3015
      %v3034 = vpack.c.bf16 %v3018, %v3017
      %3035 = vst [vmem:[#allocation3 + $0x20] sm:$0xff] %v3019
      %3036 = vst [vmem:[#allocation3 + $0x68] sm:$0xff] %v3020
      %3037 = vst [vmem:[#allocation3 + $0xb0] sm:$0xff] %v3021
      %3038 = vst [vmem:[#allocation3 + $0xf8] sm:$0xff] %v3022
      %3039 = vst [vmem:[#allocation3 + $0x140] sm:$0xff] %v3023
      %3040 = vst [vmem:[#allocation3 + $0x188] sm:$0xff] %v3024
      %3041 = vst [vmem:[#allocation3 + $0x1d0] sm:$0xff] %v3025
      %3042 = vst [vmem:[#allocation3 + $0x218] sm:$0xff] %v3026
      %3043 = vst [vmem:[#allocation3 + $0x260] sm:$0xff] %v3027
      %3044 = vst [vmem:[#allocation3 + $0x2a8] sm:$0xff] %v3028
      %3045 = vst [vmem:[#allocation3 + $0x2f0] sm:$0xff] %v3029
      %3046 = vst [vmem:[#allocation3 + $0x338] sm:$0xff] %v3030
      %3047 = vst [vmem:[#allocation3 + $0x380] sm:$0xff] %v3031
      %3048 = vst [vmem:[#allocation3 + $0x3c8] sm:$0xff] %v3032
      %3049 = vst [vmem:[#allocation3 + $0x410] sm:$0xff] %v3033
      %3050 = vst [vmem:[#allocation3 + $0x458] sm:$0xff] %v3034
      %v3051 = vld [vmem:[%s394 + $0x2] sm:$0xff]
      %v3052 = vld [vmem:[%s394 + $0xa] sm:$0xff]
      %v3053 = vld [vmem:[%s394 + $0x1a] sm:$0xff]
      %v3054 = vld [vmem:[%s394 + $0x22] sm:$0xff]
      %v3055 = vld [vmem:[%s394 + $0x32] sm:$0xff]
      %v3056 = vld [vmem:[%s394 + $0x3a] sm:$0xff]
      %v3057 = vld [vmem:[%s394 + $0x4a] sm:$0xff]
      %v3058 = vld [vmem:[%s394 + $0x52] sm:$0xff]
      %v3059 = vld [vmem:[%s394 + $0x62] sm:$0xff]
      %v3060 = vld [vmem:[%s394 + $0x6a] sm:$0xff]
      %v3061 = vld [vmem:[%s394 + $0x7a] sm:$0xff]
      %v3062 = vld [vmem:[%s394 + $0x82] sm:$0xff]
      %v3063 = vld [vmem:[%s394 + $0x92] sm:$0xff]
      %v3064 = vld [vmem:[%s394 + $0x9a] sm:$0xff]
      %v3065 = vld [vmem:[%s394 + $0xaa] sm:$0xff]
      %v3066 = vld [vmem:[%s394 + $0xb2] sm:$0xff]
      %v3067 = vld [vmem:[%s394 + $0xc2] sm:$0xff]
      %v3068 = vld [vmem:[%s394 + $0xca] sm:$0xff]
      %v3069 = vld [vmem:[%s394 + $0xda] sm:$0xff]
      %v3070 = vld [vmem:[%s394 + $0xe2] sm:$0xff]
      %v3071 = vld [vmem:[%s394 + $0xf2] sm:$0xff]
      %v3072 = vld [vmem:[%s394 + $0xfa] sm:$0xff]
      %v3073 = vld [vmem:[%s394 + $0x10a] sm:$0xff]
      %v3074 = vld [vmem:[%s394 + $0x112] sm:$0xff]
      %v3075 = vld [vmem:[%s394 + $0x122] sm:$0xff]
      %v3076 = vld [vmem:[%s394 + $0x12a] sm:$0xff]
      %v3077 = vld [vmem:[%s394 + $0x13a] sm:$0xff]
      %v3078 = vld [vmem:[%s394 + $0x142] sm:$0xff]
      %v3079 = vld [vmem:[%s394 + $0x152] sm:$0xff]
      %v3080 = vld [vmem:[%s394 + $0x15a] sm:$0xff]
      %v3081 = vld [vmem:[%s394 + $0x16a] sm:$0xff]
      %v3082 = vld [vmem:[%s394 + $0x172] sm:$0xff]
      %v3083 = vpack.c.bf16 %v3052, %v3051
      %v3084 = vpack.c.bf16 %v3054, %v3053
      %v3085 = vpack.c.bf16 %v3056, %v3055
      %v3086 = vpack.c.bf16 %v3058, %v3057
      %v3087 = vpack.c.bf16 %v3060, %v3059
      %v3088 = vpack.c.bf16 %v3062, %v3061
      %v3089 = vpack.c.bf16 %v3064, %v3063
      %v3090 = vpack.c.bf16 %v3066, %v3065
      %v3091 = vpack.c.bf16 %v3068, %v3067
      %v3092 = vpack.c.bf16 %v3070, %v3069
      %v3093 = vpack.c.bf16 %v3072, %v3071
      %v3094 = vpack.c.bf16 %v3074, %v3073
      %v3095 = vpack.c.bf16 %v3076, %v3075
      %v3096 = vpack.c.bf16 %v3078, %v3077
      %v3097 = vpack.c.bf16 %v3080, %v3079
      %v3098 = vpack.c.bf16 %v3082, %v3081
      %3099 = vst [vmem:[#allocation3 + $0x28] sm:$0xff] %v3083
      %3100 = vst [vmem:[#allocation3 + $0x70] sm:$0xff] %v3084
      %3101 = vst [vmem:[#allocation3 + $0xb8] sm:$0xff] %v3085
      %3102 = vst [vmem:[#allocation3 + $0x100] sm:$0xff] %v3086
      %3103 = vst [vmem:[#allocation3 + $0x148] sm:$0xff] %v3087
      %3104 = vst [vmem:[#allocation3 + $0x190] sm:$0xff] %v3088
      %3105 = vst [vmem:[#allocation3 + $0x1d8] sm:$0xff] %v3089
      %3106 = vst [vmem:[#allocation3 + $0x220] sm:$0xff] %v3090
      %3107 = vst [vmem:[#allocation3 + $0x268] sm:$0xff] %v3091
      %3108 = vst [vmem:[#allocation3 + $0x2b0] sm:$0xff] %v3092
      %3109 = vst [vmem:[#allocation3 + $0x2f8] sm:$0xff] %v3093
      %3110 = vst [vmem:[#allocation3 + $0x340] sm:$0xff] %v3094
      %3111 = vst [vmem:[#allocation3 + $0x388] sm:$0xff] %v3095
      %3112 = vst [vmem:[#allocation3 + $0x3d0] sm:$0xff] %v3096
      %3113 = vst [vmem:[#allocation3 + $0x418] sm:$0xff] %v3097
      %3114 = vst [vmem:[#allocation3 + $0x460] sm:$0xff] %v3098
      %v3115 = vld [vmem:[%s811] sm:$0xff]
      %v3116 = vld [vmem:[%s811 + $0x8] sm:$0xff]
      %v3117 = vld [vmem:[%s811 + $0x18] sm:$0xff]
      %v3118 = vld [vmem:[%s811 + $0x20] sm:$0xff]
      %v3119 = vld [vmem:[%s811 + $0x30] sm:$0xff]
      %v3120 = vld [vmem:[%s811 + $0x38] sm:$0xff]
      %v3121 = vld [vmem:[%s811 + $0x48] sm:$0xff]
      %v3122 = vld [vmem:[%s811 + $0x50] sm:$0xff]
      %v3123 = vld [vmem:[%s811 + $0x60] sm:$0xff]
      %v3124 = vld [vmem:[%s811 + $0x68] sm:$0xff]
      %v3125 = vld [vmem:[%s811 + $0x78] sm:$0xff]
      %v3126 = vld [vmem:[%s811 + $0x80] sm:$0xff]
      %v3127 = vld [vmem:[%s811 + $0x90] sm:$0xff]
      %v3128 = vld [vmem:[%s811 + $0x98] sm:$0xff]
      %v3129 = vld [vmem:[%s811 + $0xa8] sm:$0xff]
      %v3130 = vld [vmem:[%s811 + $0xb0] sm:$0xff]
      %v3131 = vld [vmem:[%s811 + $0xc0] sm:$0xff]
      %v3132 = vld [vmem:[%s811 + $0xc8] sm:$0xff]
      %v3133 = vld [vmem:[%s811 + $0xd8] sm:$0xff]
      %v3134 = vld [vmem:[%s811 + $0xe0] sm:$0xff]
      %v3135 = vld [vmem:[%s811 + $0xf0] sm:$0xff]
      %v3136 = vld [vmem:[%s811 + $0xf8] sm:$0xff]
      %v3137 = vld [vmem:[%s811 + $0x108] sm:$0xff]
      %v3138 = vld [vmem:[%s811 + $0x110] sm:$0xff]
      %v3139 = vld [vmem:[%s811 + $0x120] sm:$0xff]
      %v3140 = vld [vmem:[%s811 + $0x128] sm:$0xff]
      %v3141 = vld [vmem:[%s811 + $0x138] sm:$0xff]
      %v3142 = vld [vmem:[%s811 + $0x140] sm:$0xff]
      %v3143 = vld [vmem:[%s811 + $0x150] sm:$0xff]
      %v3144 = vld [vmem:[%s811 + $0x158] sm:$0xff]
      %v3145 = vld [vmem:[%s811 + $0x168] sm:$0xff]
      %v3146 = vld [vmem:[%s811 + $0x170] sm:$0xff]
      %v3147 = vpack.c.bf16 %v3116, %v3115
      %v3148 = vpack.c.bf16 %v3118, %v3117
      %v3149 = vpack.c.bf16 %v3120, %v3119
      %v3150 = vpack.c.bf16 %v3122, %v3121
      %v3151 = vpack.c.bf16 %v3124, %v3123
      %v3152 = vpack.c.bf16 %v3126, %v3125
      %v3153 = vpack.c.bf16 %v3128, %v3127
      %v3154 = vpack.c.bf16 %v3130, %v3129
      %v3155 = vpack.c.bf16 %v3132, %v3131
      %v3156 = vpack.c.bf16 %v3134, %v3133
      %v3157 = vpack.c.bf16 %v3136, %v3135
      %v3158 = vpack.c.bf16 %v3138, %v3137
      %v3159 = vpack.c.bf16 %v3140, %v3139
      %v3160 = vpack.c.bf16 %v3142, %v3141
      %v3161 = vpack.c.bf16 %v3144, %v3143
      %v3162 = vpack.c.bf16 %v3146, %v3145
      %3163 = vst [vmem:[#allocation3 + $0x30] sm:$0xff] %v3147
      %3164 = vst [vmem:[#allocation3 + $0x78] sm:$0xff] %v3148
      %3165 = vst [vmem:[#allocation3 + $0xc0] sm:$0xff] %v3149
      %3166 = vst [vmem:[#allocation3 + $0x108] sm:$0xff] %v3150
      %3167 = vst [vmem:[#allocation3 + $0x150] sm:$0xff] %v3151
      %3168 = vst [vmem:[#allocation3 + $0x198] sm:$0xff] %v3152
      %3169 = vst [vmem:[#allocation3 + $0x1e0] sm:$0xff] %v3153
      %3170 = vst [vmem:[#allocation3 + $0x228] sm:$0xff] %v3154
      %3171 = vst [vmem:[#allocation3 + $0x270] sm:$0xff] %v3155
      %3172 = vst [vmem:[#allocation3 + $0x2b8] sm:$0xff] %v3156
      %3173 = vst [vmem:[#allocation3 + $0x300] sm:$0xff] %v3157
      %3174 = vst [vmem:[#allocation3 + $0x348] sm:$0xff] %v3158
      %3175 = vst [vmem:[#allocation3 + $0x390] sm:$0xff] %v3159
      %3176 = vst [vmem:[#allocation3 + $0x3d8] sm:$0xff] %v3160
      %3177 = vst [vmem:[#allocation3 + $0x420] sm:$0xff] %v3161
      %3178 = vst [vmem:[#allocation3 + $0x468] sm:$0xff] %v3162
      %v3179 = vld [vmem:[%s811 + $0x1] sm:$0xff]
      %v3180 = vld [vmem:[%s811 + $0x9] sm:$0xff]
      %v3181 = vld [vmem:[%s811 + $0x19] sm:$0xff]
      %v3182 = vld [vmem:[%s811 + $0x21] sm:$0xff]
      %v3183 = vld [vmem:[%s811 + $0x31] sm:$0xff]
      %v3184 = vld [vmem:[%s811 + $0x39] sm:$0xff]
      %v3185 = vld [vmem:[%s811 + $0x49] sm:$0xff]
      %v3186 = vld [vmem:[%s811 + $0x51] sm:$0xff]
      %v3187 = vld [vmem:[%s811 + $0x61] sm:$0xff]
      %v3188 = vld [vmem:[%s811 + $0x69] sm:$0xff]
      %v3189 = vld [vmem:[%s811 + $0x79] sm:$0xff]
      %v3190 = vld [vmem:[%s811 + $0x81] sm:$0xff]
      %v3191 = vld [vmem:[%s811 + $0x91] sm:$0xff]
      %v3192 = vld [vmem:[%s811 + $0x99] sm:$0xff]
      %v3193 = vld [vmem:[%s811 + $0xa9] sm:$0xff]
      %v3194 = vld [vmem:[%s811 + $0xb1] sm:$0xff]
      %v3195 = vld [vmem:[%s811 + $0xc1] sm:$0xff]
      %v3196 = vld [vmem:[%s811 + $0xc9] sm:$0xff]
      %v3197 = vld [vmem:[%s811 + $0xd9] sm:$0xff]
      %v3198 = vld [vmem:[%s811 + $0xe1] sm:$0xff]
      %v3199 = vld [vmem:[%s811 + $0xf1] sm:$0xff]
      %v3200 = vld [vmem:[%s811 + $0xf9] sm:$0xff]
      %v3201 = vld [vmem:[%s811 + $0x109] sm:$0xff]
      %v3202 = vld [vmem:[%s811 + $0x111] sm:$0xff]
      %v3203 = vld [vmem:[%s811 + $0x121] sm:$0xff]
      %v3204 = vld [vmem:[%s811 + $0x129] sm:$0xff]
      %v3205 = vld [vmem:[%s811 + $0x139] sm:$0xff]
      %v3206 = vld [vmem:[%s811 + $0x141] sm:$0xff]
      %v3207 = vld [vmem:[%s811 + $0x151] sm:$0xff]
      %v3208 = vld [vmem:[%s811 + $0x159] sm:$0xff]
      %v3209 = vld [vmem:[%s811 + $0x169] sm:$0xff]
      %v3210 = vld [vmem:[%s811 + $0x171] sm:$0xff]
      %v3211 = vpack.c.bf16 %v3180, %v3179
      %v3212 = vpack.c.bf16 %v3182, %v3181
      %v3213 = vpack.c.bf16 %v3184, %v3183
      %v3214 = vpack.c.bf16 %v3186, %v3185
      %v3215 = vpack.c.bf16 %v3188, %v3187
      %v3216 = vpack.c.bf16 %v3190, %v3189
      %v3217 = vpack.c.bf16 %v3192, %v3191
      %v3218 = vpack.c.bf16 %v3194, %v3193
      %v3219 = vpack.c.bf16 %v3196, %v3195
      %v3220 = vpack.c.bf16 %v3198, %v3197
      %v3221 = vpack.c.bf16 %v3200, %v3199
      %v3222 = vpack.c.bf16 %v3202, %v3201
      %v3223 = vpack.c.bf16 %v3204, %v3203
      %v3224 = vpack.c.bf16 %v3206, %v3205
      %v3225 = vpack.c.bf16 %v3208, %v3207
      %v3226 = vpack.c.bf16 %v3210, %v3209
      %3227 = vst [vmem:[#allocation3 + $0x38] sm:$0xff] %v3211
      %3228 = vst [vmem:[#allocation3 + $0x80] sm:$0xff] %v3212
      %3229 = vst [vmem:[#allocation3 + $0xc8] sm:$0xff] %v3213
      %3230 = vst [vmem:[#allocation3 + $0x110] sm:$0xff] %v3214
      %3231 = vst [vmem:[#allocation3 + $0x158] sm:$0xff] %v3215
      %3232 = vst [vmem:[#allocation3 + $0x1a0] sm:$0xff] %v3216
      %3233 = vst [vmem:[#allocation3 + $0x1e8] sm:$0xff] %v3217
      %3234 = vst [vmem:[#allocation3 + $0x230] sm:$0xff] %v3218
      %3235 = vst [vmem:[#allocation3 + $0x278] sm:$0xff] %v3219
      %3236 = vst [vmem:[#allocation3 + $0x2c0] sm:$0xff] %v3220
      %3237 = vst [vmem:[#allocation3 + $0x308] sm:$0xff] %v3221
      %3238 = vst [vmem:[#allocation3 + $0x350] sm:$0xff] %v3222
      %3239 = vst [vmem:[#allocation3 + $0x398] sm:$0xff] %v3223
      %3240 = vst [vmem:[#allocation3 + $0x3e0] sm:$0xff] %v3224
      %3241 = vst [vmem:[#allocation3 + $0x428] sm:$0xff] %v3225
      %3242 = vst [vmem:[#allocation3 + $0x470] sm:$0xff] %v3226
      %v3243 = vld [vmem:[%s811 + $0x2] sm:$0xff]
      %v3244 = vld [vmem:[%s811 + $0xa] sm:$0xff]
      %v3245 = vld [vmem:[%s811 + $0x1a] sm:$0xff]
      %v3246 = vld [vmem:[%s811 + $0x22] sm:$0xff]
      %v3247 = vld [vmem:[%s811 + $0x32] sm:$0xff]
      %v3248 = vld [vmem:[%s811 + $0x3a] sm:$0xff]
      %v3249 = vld [vmem:[%s811 + $0x4a] sm:$0xff]
      %v3250 = vld [vmem:[%s811 + $0x52] sm:$0xff]
      %v3251 = vld [vmem:[%s811 + $0x62] sm:$0xff]
      %v3252 = vld [vmem:[%s811 + $0x6a] sm:$0xff]
      %v3253 = vld [vmem:[%s811 + $0x7a] sm:$0xff]
      %v3254 = vld [vmem:[%s811 + $0x82] sm:$0xff]
      %v3255 = vld [vmem:[%s811 + $0x92] sm:$0xff]
      %v3256 = vld [vmem:[%s811 + $0x9a] sm:$0xff]
      %v3257 = vld [vmem:[%s811 + $0xaa] sm:$0xff]
      %v3258 = vld [vmem:[%s811 + $0xb2] sm:$0xff]
      %v3259 = vld [vmem:[%s811 + $0xc2] sm:$0xff]
      %v3260 = vld [vmem:[%s811 + $0xca] sm:$0xff]
      %v3261 = vld [vmem:[%s811 + $0xda] sm:$0xff]
      %v3262 = vld [vmem:[%s811 + $0xe2] sm:$0xff]
      %v3263 = vld [vmem:[%s811 + $0xf2] sm:$0xff]
      %v3264 = vld [vmem:[%s811 + $0xfa] sm:$0xff]
      %v3265 = vld [vmem:[%s811 + $0x10a] sm:$0xff]
      %v3266 = vld [vmem:[%s811 + $0x112] sm:$0xff]
      %v3267 = vld [vmem:[%s811 + $0x122] sm:$0xff]
      %v3268 = vld [vmem:[%s811 + $0x12a] sm:$0xff]
      %v3269 = vld [vmem:[%s811 + $0x13a] sm:$0xff]
      %v3270 = vld [vmem:[%s811 + $0x142] sm:$0xff]
      %v3271 = vld [vmem:[%s811 + $0x152] sm:$0xff]
      %v3272 = vld [vmem:[%s811 + $0x15a] sm:$0xff]
      %v3273 = vld [vmem:[%s811 + $0x16a] sm:$0xff]
      %v3274 = vld [vmem:[%s811 + $0x172] sm:$0xff]
      %v3275 = vpack.c.bf16 %v3244, %v3243
      %v3276 = vpack.c.bf16 %v3246, %v3245
      %v3277 = vpack.c.bf16 %v3248, %v3247
      %v3278 = vpack.c.bf16 %v3250, %v3249
      %v3279 = vpack.c.bf16 %v3252, %v3251
      %v3280 = vpack.c.bf16 %v3254, %v3253
      %v3281 = vpack.c.bf16 %v3256, %v3255
      %v3282 = vpack.c.bf16 %v3258, %v3257
      %v3283 = vpack.c.bf16 %v3260, %v3259
      %v3284 = vpack.c.bf16 %v3262, %v3261
      %v3285 = vpack.c.bf16 %v3264, %v3263
      %v3286 = vpack.c.bf16 %v3266, %v3265
      %v3287 = vpack.c.bf16 %v3268, %v3267
      %v3288 = vpack.c.bf16 %v3270, %v3269
      %v3289 = vpack.c.bf16 %v3272, %v3271
      %v3290 = vpack.c.bf16 %v3274, %v3273
      %3291 = vst [vmem:[#allocation3 + $0x40] sm:$0xff] %v3275
      %3292 = vst [vmem:[#allocation3 + $0x88] sm:$0xff] %v3276
      %3293 = vst [vmem:[#allocation3 + $0xd0] sm:$0xff] %v3277
      %3294 = vst [vmem:[#allocation3 + $0x118] sm:$0xff] %v3278
      %3295 = vst [vmem:[#allocation3 + $0x160] sm:$0xff] %v3279
      %3296 = vst [vmem:[#allocation3 + $0x1a8] sm:$0xff] %v3280
      %3297 = vst [vmem:[#allocation3 + $0x1f0] sm:$0xff] %v3281
      %3298 = vst [vmem:[#allocation3 + $0x238] sm:$0xff] %v3282
      %3299 = vst [vmem:[#allocation3 + $0x280] sm:$0xff] %v3283
      %3300 = vst [vmem:[#allocation3 + $0x2c8] sm:$0xff] %v3284
      %3301 = vst [vmem:[#allocation3 + $0x310] sm:$0xff] %v3285
      %3302 = vst [vmem:[#allocation3 + $0x358] sm:$0xff] %v3286
      %3303 = vst [vmem:[#allocation3 + $0x3a0] sm:$0xff] %v3287
      %3304 = vst [vmem:[#allocation3 + $0x3e8] sm:$0xff] %v3288
      %3305 = vst [vmem:[#allocation3 + $0x430] sm:$0xff] %v3289
      %3306 = vst [vmem:[#allocation3 + $0x478] sm:$0xff] %v3290
      %v3307 = vld [vmem:[#allocation3] sm:$0xff]
      %v3308 = vld [vmem:[#allocation3 + $0x8] sm:$0xff]
      %v3309 = vld [vmem:[#allocation3 + $0x10] sm:$0xff]
      %v3310 = vld [vmem:[#allocation3 + $0x18] sm:$0xff]
      %v3311 = vld [vmem:[#allocation3 + $0x20] sm:$0xff]
      %v3312 = vld [vmem:[#allocation3 + $0x28] sm:$0xff]
      %v3313 = vld [vmem:[#allocation3 + $0x30] sm:$0xff]
      %v3314 = vld [vmem:[#allocation3 + $0x38] sm:$0xff]
      %v3315 = vld [vmem:[#allocation3 + $0x40] sm:$0xff]
      %v3316 = vld [vmem:[#allocation3 + $0x48] sm:$0xff]
      %v3317 = vld [vmem:[#allocation3 + $0x50] sm:$0xff]
      %v3318 = vld [vmem:[#allocation3 + $0x58] sm:$0xff]
      %v3319 = vld [vmem:[#allocation3 + $0x60] sm:$0xff]
      %v3320 = vld [vmem:[#allocation3 + $0x68] sm:$0xff]
      %v3321 = vld [vmem:[#allocation3 + $0x70] sm:$0xff]
      %v3322 = vld [vmem:[#allocation3 + $0x78] sm:$0xff]
      %v3323 = vld [vmem:[#allocation3 + $0x80] sm:$0xff]
      %v3324 = vld [vmem:[#allocation3 + $0x88] sm:$0xff]
      %v3325 = vld [vmem:[#allocation3 + $0x90] sm:$0xff]
      %v3326 = vld [vmem:[#allocation3 + $0x98] sm:$0xff]
      %v3327 = vld [vmem:[#allocation3 + $0xa0] sm:$0xff]
      %v3328 = vld [vmem:[#allocation3 + $0xa8] sm:$0xff]
      %v3329 = vld [vmem:[#allocation3 + $0xb0] sm:$0xff]
      %v3330 = vld [vmem:[#allocation3 + $0xb8] sm:$0xff]
      %v3331 = vld [vmem:[#allocation3 + $0xc0] sm:$0xff]
      %v3332 = vld [vmem:[#allocation3 + $0xc8] sm:$0xff]
      %v3333 = vld [vmem:[#allocation3 + $0xd0] sm:$0xff]
      %v3334 = vld [vmem:[#allocation3 + $0xd8] sm:$0xff]
      %v3335 = vld [vmem:[#allocation3 + $0xe0] sm:$0xff]
      %v3336 = vld [vmem:[#allocation3 + $0xe8] sm:$0xff]
      %v3337 = vld [vmem:[#allocation3 + $0xf0] sm:$0xff]
      %v3338 = vld [vmem:[#allocation3 + $0xf8] sm:$0xff]
      %v3339 = vld [vmem:[#allocation3 + $0x100] sm:$0xff]
      %v3340 = vld [vmem:[#allocation3 + $0x108] sm:$0xff]
      %v3341 = vld [vmem:[#allocation3 + $0x110] sm:$0xff]
      %v3342 = vld [vmem:[#allocation3 + $0x118] sm:$0xff]
      %v3343 = vld [vmem:[#allocation3 + $0x120] sm:$0xff]
      %v3344 = vld [vmem:[#allocation3 + $0x128] sm:$0xff]
      %v3345 = vld [vmem:[#allocation3 + $0x130] sm:$0xff]
      %v3346 = vld [vmem:[#allocation3 + $0x138] sm:$0xff]
      %v3347 = vld [vmem:[#allocation3 + $0x140] sm:$0xff]
      %v3348 = vld [vmem:[#allocation3 + $0x148] sm:$0xff]
      %v3349 = vld [vmem:[#allocation3 + $0x150] sm:$0xff]
      %v3350 = vld [vmem:[#allocation3 + $0x158] sm:$0xff]
      %v3351 = vld [vmem:[#allocation3 + $0x160] sm:$0xff]
      %v3352 = vld [vmem:[#allocation3 + $0x168] sm:$0xff]
      %v3353 = vld [vmem:[#allocation3 + $0x170] sm:$0xff]
      %v3354 = vld [vmem:[#allocation3 + $0x178] sm:$0xff]
      %v3355 = vld [vmem:[#allocation3 + $0x180] sm:$0xff]
      %v3356 = vld [vmem:[#allocation3 + $0x188] sm:$0xff]
      %v3357 = vld [vmem:[#allocation3 + $0x190] sm:$0xff]
      %v3358 = vld [vmem:[#allocation3 + $0x198] sm:$0xff]
      %v3359 = vld [vmem:[#allocation3 + $0x1a0] sm:$0xff]
      %v3360 = vld [vmem:[#allocation3 + $0x1a8] sm:$0xff]
      %v3361 = vld [vmem:[#allocation3 + $0x1b0] sm:$0xff]
      %v3362 = vld [vmem:[#allocation3 + $0x1b8] sm:$0xff]
      %v3363 = vld [vmem:[#allocation3 + $0x1c0] sm:$0xff]
      %v3364 = vld [vmem:[#allocation3 + $0x1c8] sm:$0xff]
      %v3365 = vld [vmem:[#allocation3 + $0x1d0] sm:$0xff]
      %v3366 = vld [vmem:[#allocation3 + $0x1d8] sm:$0xff]
      %v3367 = vld [vmem:[#allocation3 + $0x1e0] sm:$0xff]
      %v3368 = vld [vmem:[#allocation3 + $0x1e8] sm:$0xff]
      %v3369 = vld [vmem:[#allocation3 + $0x1f0] sm:$0xff]
      %v3370 = vld [vmem:[#allocation3 + $0x1f8] sm:$0xff]
      %v3371 = vld [vmem:[#allocation3 + $0x200] sm:$0xff]
      %v3372 = vld [vmem:[#allocation3 + $0x208] sm:$0xff]
      %v3373 = vld [vmem:[#allocation3 + $0x210] sm:$0xff]
      %v3374 = vld [vmem:[#allocation3 + $0x218] sm:$0xff]
      %v3375 = vld [vmem:[#allocation3 + $0x220] sm:$0xff]
      %v3376 = vld [vmem:[#allocation3 + $0x228] sm:$0xff]
      %v3377 = vld [vmem:[#allocation3 + $0x230] sm:$0xff]
      %v3378 = vld [vmem:[#allocation3 + $0x238] sm:$0xff]
      %v3379 = vld [vmem:[#allocation3 + $0x240] sm:$0xff]
      %v3380 = vld [vmem:[#allocation3 + $0x248] sm:$0xff]
      %v3381 = vld [vmem:[#allocation3 + $0x250] sm:$0xff]
      %v3382 = vld [vmem:[#allocation3 + $0x258] sm:$0xff]
      %v3383 = vld [vmem:[#allocation3 + $0x260] sm:$0xff]
      %v3384 = vld [vmem:[#allocation3 + $0x268] sm:$0xff]
      %v3385 = vld [vmem:[#allocation3 + $0x270] sm:$0xff]
      %v3386 = vld [vmem:[#allocation3 + $0x278] sm:$0xff]
      %v3387 = vld [vmem:[#allocation3 + $0x280] sm:$0xff]
      %v3388 = vld [vmem:[#allocation3 + $0x288] sm:$0xff]
      %v3389 = vld [vmem:[#allocation3 + $0x290] sm:$0xff]
      %v3390 = vld [vmem:[#allocation3 + $0x298] sm:$0xff]
      %v3391 = vld [vmem:[#allocation3 + $0x2a0] sm:$0xff]
      %v3392 = vld [vmem:[#allocation3 + $0x2a8] sm:$0xff]
      %v3393 = vld [vmem:[#allocation3 + $0x2b0] sm:$0xff]
      %v3394 = vld [vmem:[#allocation3 + $0x2b8] sm:$0xff]
      %v3395 = vld [vmem:[#allocation3 + $0x2c0] sm:$0xff]
      %v3396 = vld [vmem:[#allocation3 + $0x2c8] sm:$0xff]
      %v3397 = vld [vmem:[#allocation3 + $0x2d0] sm:$0xff]
      %v3398 = vld [vmem:[#allocation3 + $0x2d8] sm:$0xff]
      %v3399 = vld [vmem:[#allocation3 + $0x2e0] sm:$0xff]
      %v3400 = vld [vmem:[#allocation3 + $0x2e8] sm:$0xff]
      %v3401 = vld [vmem:[#allocation3 + $0x2f0] sm:$0xff]
      %v3402 = vld [vmem:[#allocation3 + $0x2f8] sm:$0xff]
      %v3403 = vld [vmem:[#allocation3 + $0x300] sm:$0xff]
      %v3404 = vld [vmem:[#allocation3 + $0x308] sm:$0xff]
      %v3405 = vld [vmem:[#allocation3 + $0x310] sm:$0xff]
      %v3406 = vld [vmem:[#allocation3 + $0x318] sm:$0xff]
      %v3407 = vld [vmem:[#allocation3 + $0x320] sm:$0xff]
      %v3408 = vld [vmem:[#allocation3 + $0x328] sm:$0xff]
      %v3409 = vld [vmem:[#allocation3 + $0x330] sm:$0xff]
      %v3410 = vld [vmem:[#allocation3 + $0x338] sm:$0xff]
      %v3411 = vld [vmem:[#allocation3 + $0x340] sm:$0xff]
      %v3412 = vld [vmem:[#allocation3 + $0x348] sm:$0xff]
      %v3413 = vld [vmem:[#allocation3 + $0x350] sm:$0xff]
      %v3414 = vld [vmem:[#allocation3 + $0x358] sm:$0xff]
      %v3415 = vld [vmem:[#allocation3 + $0x360] sm:$0xff]
      %v3416 = vld [vmem:[#allocation3 + $0x368] sm:$0xff]
      %v3417 = vld [vmem:[#allocation3 + $0x370] sm:$0xff]
      %v3418 = vld [vmem:[#allocation3 + $0x378] sm:$0xff]
      %v3419 = vld [vmem:[#allocation3 + $0x380] sm:$0xff]
      %v3420 = vld [vmem:[#allocation3 + $0x388] sm:$0xff]
      %v3421 = vld [vmem:[#allocation3 + $0x390] sm:$0xff]
      %v3422 = vld [vmem:[#allocation3 + $0x398] sm:$0xff]
      %v3423 = vld [vmem:[#allocation3 + $0x3a0] sm:$0xff]
      %v3424 = vld [vmem:[#allocation3 + $0x3a8] sm:$0xff]
      %v3425 = vld [vmem:[#allocation3 + $0x3b0] sm:$0xff]
      %v3426 = vld [vmem:[#allocation3 + $0x3b8] sm:$0xff]
      %v3427 = vld [vmem:[#allocation3 + $0x3c0] sm:$0xff]
      %v3428 = vld [vmem:[#allocation3 + $0x3c8] sm:$0xff]
      %v3429 = vld [vmem:[#allocation3 + $0x3d0] sm:$0xff]
      %v3430 = vld [vmem:[#allocation3 + $0x3d8] sm:$0xff]
      %v3431 = vld [vmem:[#allocation3 + $0x3e0] sm:$0xff]
      %v3432 = vld [vmem:[#allocation3 + $0x3e8] sm:$0xff]
      %v3433 = vld [vmem:[#allocation3 + $0x3f0] sm:$0xff]
      %v3434 = vld [vmem:[#allocation3 + $0x3f8] sm:$0xff]
      %v3435 = vld [vmem:[#allocation3 + $0x400] sm:$0xff]
      %v3436 = vld [vmem:[#allocation3 + $0x408] sm:$0xff]
      %v3437 = vld [vmem:[#allocation3 + $0x410] sm:$0xff]
      %v3438 = vld [vmem:[#allocation3 + $0x418] sm:$0xff]
      %v3439 = vld [vmem:[#allocation3 + $0x420] sm:$0xff]
      %v3440 = vld [vmem:[#allocation3 + $0x428] sm:$0xff]
      %v3441 = vld [vmem:[#allocation3 + $0x430] sm:$0xff]
      %v3442 = vld [vmem:[#allocation3 + $0x438] sm:$0xff]
      %v3443 = vld [vmem:[#allocation3 + $0x440] sm:$0xff]
      %v3444 = vld [vmem:[#allocation3 + $0x448] sm:$0xff]
      %v3445 = vld [vmem:[#allocation3 + $0x450] sm:$0xff]
      %v3446 = vld [vmem:[#allocation3 + $0x458] sm:$0xff]
      %v3447 = vld [vmem:[#allocation3 + $0x460] sm:$0xff]
      %v3448 = vld [vmem:[#allocation3 + $0x468] sm:$0xff]
      %v3449 = vld [vmem:[#allocation3 + $0x470] sm:$0xff]
      %v3450 = vld [vmem:[#allocation3 + $0x478] sm:$0xff]
      %s3451 = scalar_lea.vmem %s3, 576
      %v3452 = vld [vmem:[%s3451] sm:$0xf]
      %v3453 = vld [vmem:[%s3451 + $0x4] sm:$0xf]
      %v3454 = vld [vmem:[%s3451 + $0x8] sm:$0xf]
      %v3455 = vld [vmem:[%s3451 + $0xc] sm:$0xf]
      %v3456 = vld [vmem:[%s3451 + $0x10] sm:$0xf]
      %v3457 = vld [vmem:[%s3451 + $0x14] sm:$0xf]
      %v3458 = vld [vmem:[%s3451 + $0x18] sm:$0xf]
      %v3459 = vld [vmem:[%s3451 + $0x1c] sm:$0xf]
      %v3460 = vld [vmem:[%s3451 + $0x20] sm:$0xf]
      %v3461 = vld [vmem:[%s3451 + $0x24] sm:$0xf]
      %v3462 = vld [vmem:[%s3451 + $0x28] sm:$0xf]
      %v3463 = vld [vmem:[%s3451 + $0x2c] sm:$0xf]
      %v3464 = vld [vmem:[%s3451 + $0x30] sm:$0xf]
      %v3465 = vld [vmem:[%s3451 + $0x34] sm:$0xf]
      %v3466 = vld [vmem:[%s3451 + $0x38] sm:$0xf]
      %v3467 = vld [vmem:[%s3451 + $0x3c] sm:$0xf]
      %v3468 = vld [vmem:[%s3451 + $0x40] sm:$0xf]
      %v3469 = vld [vmem:[%s3451 + $0x44] sm:$0xf]
      %v3470 = vld [vmem:[%s3451 + $0x48] sm:$0xf]
      %v3471 = vld [vmem:[%s3451 + $0x4c] sm:$0xf]
      %v3472 = vld [vmem:[%s3451 + $0x50] sm:$0xf]
      %v3473 = vld [vmem:[%s3451 + $0x54] sm:$0xf]
      %v3474 = vld [vmem:[%s3451 + $0x58] sm:$0xf]
      %v3475 = vld [vmem:[%s3451 + $0x5c] sm:$0xf]
      %v3476 = vld [vmem:[%s3451 + $0x60] sm:$0xf]
      %v3477 = vld [vmem:[%s3451 + $0x64] sm:$0xf]
      %v3478 = vld [vmem:[%s3451 + $0x68] sm:$0xf]
      %v3479 = vld [vmem:[%s3451 + $0x6c] sm:$0xf]
      %v3480 = vld [vmem:[%s3451 + $0x70] sm:$0xf]
      %v3481 = vld [vmem:[%s3451 + $0x74] sm:$0xf]
      %v3482 = vld [vmem:[%s3451 + $0x78] sm:$0xf]
      %v3483 = vld [vmem:[%s3451 + $0x7c] sm:$0xf]
      %v3484 = vld [vmem:[%s3451 + $0x80] sm:$0xf]
      %v3485 = vld [vmem:[%s3451 + $0x84] sm:$0xf]
      %v3486 = vld [vmem:[%s3451 + $0x88] sm:$0xf]
      %v3487 = vld [vmem:[%s3451 + $0x8c] sm:$0xf]
      %v3488 = vld [vmem:[%s3451 + $0x90] sm:$0xf]
      %v3489 = vld [vmem:[%s3451 + $0x94] sm:$0xf]
      %v3490 = vld [vmem:[%s3451 + $0x98] sm:$0xf]
      %v3491 = vld [vmem:[%s3451 + $0x9c] sm:$0xf]
      %v3492 = vld [vmem:[%s3451 + $0xa0] sm:$0xf]
      %v3493 = vld [vmem:[%s3451 + $0xa4] sm:$0xf]
      %v3494 = vld [vmem:[%s3451 + $0xa8] sm:$0xf]
      %v3495 = vld [vmem:[%s3451 + $0xac] sm:$0xf]
      %v3496 = vld [vmem:[%s3451 + $0xb0] sm:$0xf]
      %v3497 = vld [vmem:[%s3451 + $0xb4] sm:$0xf]
      %v3498 = vld [vmem:[%s3451 + $0xb8] sm:$0xf]
      %v3499 = vld [vmem:[%s3451 + $0xbc] sm:$0xf]
      %v3500 = vld [vmem:[%s3451 + $0xc0] sm:$0xf]
      %v3501 = vld [vmem:[%s3451 + $0xc4] sm:$0xf]
      %v3502 = vld [vmem:[%s3451 + $0xc8] sm:$0xf]
      %v3503 = vld [vmem:[%s3451 + $0xcc] sm:$0xf]
      %v3504 = vld [vmem:[%s3451 + $0xd0] sm:$0xf]
      %v3505 = vld [vmem:[%s3451 + $0xd4] sm:$0xf]
      %v3506 = vld [vmem:[%s3451 + $0xd8] sm:$0xf]
      %v3507 = vld [vmem:[%s3451 + $0xdc] sm:$0xf]
      %v3508 = vld [vmem:[%s3451 + $0xe0] sm:$0xf]
      %v3509 = vld [vmem:[%s3451 + $0xe4] sm:$0xf]
      %v3510 = vld [vmem:[%s3451 + $0xe8] sm:$0xf]
      %v3511 = vld [vmem:[%s3451 + $0xec] sm:$0xf]
      %v3512 = vld [vmem:[%s3451 + $0xf0] sm:$0xf]
      %v3513 = vld [vmem:[%s3451 + $0xf4] sm:$0xf]
      %v3514 = vld [vmem:[%s3451 + $0xf8] sm:$0xf]
      %v3515 = vld [vmem:[%s3451 + $0xfc] sm:$0xf]
      %v3516 = vld [vmem:[%s3451 + $0x100] sm:$0xf]
      %v3517 = vld [vmem:[%s3451 + $0x104] sm:$0xf]
      %v3518 = vld [vmem:[%s3451 + $0x108] sm:$0xf]
      %v3519 = vld [vmem:[%s3451 + $0x10c] sm:$0xf]
      %v3520 = vld [vmem:[%s3451 + $0x110] sm:$0xf]
      %v3521 = vld [vmem:[%s3451 + $0x114] sm:$0xf]
      %v3522 = vld [vmem:[%s3451 + $0x118] sm:$0xf]
      %v3523 = vld [vmem:[%s3451 + $0x11c] sm:$0xf]
      %v3524 = vld [vmem:[%s3451 + $0x120] sm:$0xf]
      %v3525 = vld [vmem:[%s3451 + $0x124] sm:$0xf]
      %v3526 = vld [vmem:[%s3451 + $0x128] sm:$0xf]
      %v3527 = vld [vmem:[%s3451 + $0x12c] sm:$0xf]
      %v3528 = vld [vmem:[%s3451 + $0x130] sm:$0xf]
      %v3529 = vld [vmem:[%s3451 + $0x134] sm:$0xf]
      %v3530 = vld [vmem:[%s3451 + $0x138] sm:$0xf]
      %v3531 = vld [vmem:[%s3451 + $0x13c] sm:$0xf]
      %v3532 = vld [vmem:[%s3451 + $0x140] sm:$0xf]
      %v3533 = vld [vmem:[%s3451 + $0x144] sm:$0xf]
      %v3534 = vld [vmem:[%s3451 + $0x148] sm:$0xf]
      %v3535 = vld [vmem:[%s3451 + $0x14c] sm:$0xf]
      %v3536 = vld [vmem:[%s3451 + $0x150] sm:$0xf]
      %v3537 = vld [vmem:[%s3451 + $0x154] sm:$0xf]
      %v3538 = vld [vmem:[%s3451 + $0x158] sm:$0xf]
      %v3539 = vld [vmem:[%s3451 + $0x15c] sm:$0xf]
      %v3540 = vld [vmem:[%s3451 + $0x160] sm:$0xf]
      %v3541 = vld [vmem:[%s3451 + $0x164] sm:$0xf]
      %v3542 = vld [vmem:[%s3451 + $0x168] sm:$0xf]
      %v3543 = vld [vmem:[%s3451 + $0x16c] sm:$0xf]
      %v3544 = vld [vmem:[%s3451 + $0x170] sm:$0xf]
      %v3545 = vld [vmem:[%s3451 + $0x174] sm:$0xf]
      %v3546 = vld [vmem:[%s3451 + $0x178] sm:$0xf]
      %v3547 = vld [vmem:[%s3451 + $0x17c] sm:$0xf]
      %v3548 = vld [vmem:[%s3451 + $0x180] sm:$0xf]
      %v3549 = vld [vmem:[%s3451 + $0x184] sm:$0xf]
      %v3550 = vld [vmem:[%s3451 + $0x188] sm:$0xf]
      %v3551 = vld [vmem:[%s3451 + $0x18c] sm:$0xf]
      %v3552 = vld [vmem:[%s3451 + $0x190] sm:$0xf]
      %v3553 = vld [vmem:[%s3451 + $0x194] sm:$0xf]
      %v3554 = vld [vmem:[%s3451 + $0x198] sm:$0xf]
      %v3555 = vld [vmem:[%s3451 + $0x19c] sm:$0xf]
      %v3556 = vld [vmem:[%s3451 + $0x1a0] sm:$0xf]
      %v3557 = vld [vmem:[%s3451 + $0x1a4] sm:$0xf]
      %v3558 = vld [vmem:[%s3451 + $0x1a8] sm:$0xf]
      %v3559 = vld [vmem:[%s3451 + $0x1ac] sm:$0xf]
      %v3560 = vld [vmem:[%s3451 + $0x1b0] sm:$0xf]
      %v3561 = vld [vmem:[%s3451 + $0x1b4] sm:$0xf]
      %v3562 = vld [vmem:[%s3451 + $0x1b8] sm:$0xf]
      %v3563 = vld [vmem:[%s3451 + $0x1bc] sm:$0xf]
      %v3564 = vld [vmem:[%s3451 + $0x1c0] sm:$0xf]
      %v3565 = vld [vmem:[%s3451 + $0x1c4] sm:$0xf]
      %v3566 = vld [vmem:[%s3451 + $0x1c8] sm:$0xf]
      %v3567 = vld [vmem:[%s3451 + $0x1cc] sm:$0xf]
      %v3568 = vld [vmem:[%s3451 + $0x1d0] sm:$0xf]
      %v3569 = vld [vmem:[%s3451 + $0x1d4] sm:$0xf]
      %v3570 = vld [vmem:[%s3451 + $0x1d8] sm:$0xf]
      %v3571 = vld [vmem:[%s3451 + $0x1dc] sm:$0xf]
      %v3572 = vld [vmem:[%s3451 + $0x1e0] sm:$0xf]
      %v3573 = vld [vmem:[%s3451 + $0x1e4] sm:$0xf]
      %v3574 = vld [vmem:[%s3451 + $0x1e8] sm:$0xf]
      %v3575 = vld [vmem:[%s3451 + $0x1ec] sm:$0xf]
      %v3576 = vld [vmem:[%s3451 + $0x1f0] sm:$0xf]
      %v3577 = vld [vmem:[%s3451 + $0x1f4] sm:$0xf]
      %v3578 = vld [vmem:[%s3451 + $0x1f8] sm:$0xf]
      %v3579 = vld [vmem:[%s3451 + $0x1fc] sm:$0xf]
      %v3580 = vld [vmem:[%s3451 + $0x200] sm:$0xf]
      %v3581 = vld [vmem:[%s3451 + $0x204] sm:$0xf]
      %v3582 = vld [vmem:[%s3451 + $0x208] sm:$0xf]
      %v3583 = vld [vmem:[%s3451 + $0x20c] sm:$0xf]
      %v3584 = vld [vmem:[%s3451 + $0x210] sm:$0xf]
      %v3585 = vld [vmem:[%s3451 + $0x214] sm:$0xf]
      %v3586 = vld [vmem:[%s3451 + $0x218] sm:$0xf]
      %v3587 = vld [vmem:[%s3451 + $0x21c] sm:$0xf]
      %v3588 = vld [vmem:[%s3451 + $0x220] sm:$0xf]
      %v3589 = vld [vmem:[%s3451 + $0x224] sm:$0xf]
      %v3590 = vld [vmem:[%s3451 + $0x228] sm:$0xf]
      %v3591 = vld [vmem:[%s3451 + $0x22c] sm:$0xf]
      %v3592 = vld [vmem:[%s3451 + $0x230] sm:$0xf]
      %v3593 = vld [vmem:[%s3451 + $0x234] sm:$0xf]
      %v3594 = vld [vmem:[%s3451 + $0x238] sm:$0xf]
      %v3595 = vld [vmem:[%s3451 + $0x23c] sm:$0xf]
      %v3740 = vunpack.c.l.b16 %v3452
      %v3741 = vunpack.c.l.b16 %v3453
      %v3742 = vunpack.c.l.b16 %v3454
      %v3743 = vunpack.c.l.b16 %v3455
      %v3744 = vunpack.c.l.b16 %v3456
      %v3745 = vunpack.c.l.b16 %v3457
      %v3746 = vunpack.c.l.b16 %v3458
      %v3747 = vunpack.c.l.b16 %v3459
      %v3748 = vunpack.c.l.b16 %v3460
      %v3749 = vunpack.c.l.b16 %v3461
      %v3750 = vunpack.c.l.b16 %v3462
      %v3751 = vunpack.c.l.b16 %v3463
      %v3752 = vunpack.c.l.b16 %v3464
      %v3753 = vunpack.c.l.b16 %v3465
      %v3754 = vunpack.c.l.b16 %v3466
      %v3755 = vunpack.c.l.b16 %v3467
      %v3756 = vunpack.c.l.b16 %v3468
      %v3757 = vunpack.c.l.b16 %v3469
      %v3758 = vunpack.c.l.b16 %v3470
      %v3759 = vunpack.c.l.b16 %v3471
      %v3760 = vunpack.c.l.b16 %v3472
      %v3761 = vunpack.c.l.b16 %v3473
      %v3762 = vunpack.c.l.b16 %v3474
      %v3763 = vunpack.c.l.b16 %v3475
      %v3764 = vunpack.c.l.b16 %v3476
      %v3765 = vunpack.c.l.b16 %v3477
      %v3766 = vunpack.c.l.b16 %v3478
      %v3767 = vunpack.c.l.b16 %v3479
      %v3768 = vunpack.c.l.b16 %v3480
      %v3769 = vunpack.c.l.b16 %v3481
      %v3770 = vunpack.c.l.b16 %v3482
      %v3771 = vunpack.c.l.b16 %v3483
      %v3772 = vunpack.c.l.b16 %v3484
      %v3773 = vunpack.c.l.b16 %v3485
      %v3774 = vunpack.c.l.b16 %v3486
      %v3775 = vunpack.c.l.b16 %v3487
      %v3776 = vunpack.c.l.b16 %v3488
      %v3777 = vunpack.c.l.b16 %v3489
      %v3778 = vunpack.c.l.b16 %v3490
      %v3779 = vunpack.c.l.b16 %v3491
      %v3780 = vunpack.c.l.b16 %v3492
      %v3781 = vunpack.c.l.b16 %v3493
      %v3782 = vunpack.c.l.b16 %v3494
      %v3783 = vunpack.c.l.b16 %v3495
      %v3784 = vunpack.c.l.b16 %v3496
      %v3785 = vunpack.c.l.b16 %v3497
      %v3786 = vunpack.c.l.b16 %v3498
      %v3787 = vunpack.c.l.b16 %v3499
      %v3788 = vunpack.c.l.b16 %v3500
      %v3789 = vunpack.c.l.b16 %v3501
      %v3790 = vunpack.c.l.b16 %v3502
      %v3791 = vunpack.c.l.b16 %v3503
      %v3792 = vunpack.c.l.b16 %v3504
      %v3793 = vunpack.c.l.b16 %v3505
      %v3794 = vunpack.c.l.b16 %v3506
      %v3795 = vunpack.c.l.b16 %v3507
      %v3796 = vunpack.c.l.b16 %v3508
      %v3797 = vunpack.c.l.b16 %v3509
      %v3798 = vunpack.c.l.b16 %v3510
      %v3799 = vunpack.c.l.b16 %v3511
      %v3800 = vunpack.c.l.b16 %v3512
      %v3801 = vunpack.c.l.b16 %v3513
      %v3802 = vunpack.c.l.b16 %v3514
      %v3803 = vunpack.c.l.b16 %v3515
      %v3804 = vunpack.c.l.b16 %v3516
      %v3805 = vunpack.c.l.b16 %v3517
      %v3806 = vunpack.c.l.b16 %v3518
      %v3807 = vunpack.c.l.b16 %v3519
      %v3808 = vunpack.c.l.b16 %v3520
      %v3809 = vunpack.c.l.b16 %v3521
      %v3810 = vunpack.c.l.b16 %v3522
      %v3811 = vunpack.c.l.b16 %v3523
      %v3812 = vunpack.c.l.b16 %v3524
      %v3813 = vunpack.c.l.b16 %v3525
      %v3814 = vunpack.c.l.b16 %v3526
      %v3815 = vunpack.c.l.b16 %v3527
      %v3816 = vunpack.c.l.b16 %v3528
      %v3817 = vunpack.c.l.b16 %v3529
      %v3818 = vunpack.c.l.b16 %v3530
      %v3819 = vunpack.c.l.b16 %v3531
      %v3820 = vunpack.c.l.b16 %v3532
      %v3821 = vunpack.c.l.b16 %v3533
      %v3822 = vunpack.c.l.b16 %v3534
      %v3823 = vunpack.c.l.b16 %v3535
      %v3824 = vunpack.c.l.b16 %v3536
      %v3825 = vunpack.c.l.b16 %v3537
      %v3826 = vunpack.c.l.b16 %v3538
      %v3827 = vunpack.c.l.b16 %v3539
      %v3828 = vunpack.c.l.b16 %v3540
      %v3829 = vunpack.c.l.b16 %v3541
      %v3830 = vunpack.c.l.b16 %v3542
      %v3831 = vunpack.c.l.b16 %v3543
      %v3832 = vunpack.c.l.b16 %v3544
      %v3833 = vunpack.c.l.b16 %v3545
      %v3834 = vunpack.c.l.b16 %v3546
      %v3835 = vunpack.c.l.b16 %v3547
      %v3836 = vunpack.c.l.b16 %v3548
      %v3837 = vunpack.c.l.b16 %v3549
      %v3838 = vunpack.c.l.b16 %v3550
      %v3839 = vunpack.c.l.b16 %v3551
      %v3840 = vunpack.c.l.b16 %v3552
      %v3841 = vunpack.c.l.b16 %v3553
      %v3842 = vunpack.c.l.b16 %v3554
      %v3843 = vunpack.c.l.b16 %v3555
      %v3844 = vunpack.c.l.b16 %v3556
      %v3845 = vunpack.c.l.b16 %v3557
      %v3846 = vunpack.c.l.b16 %v3558
      %v3847 = vunpack.c.l.b16 %v3559
      %v3848 = vunpack.c.l.b16 %v3560
      %v3849 = vunpack.c.l.b16 %v3561
      %v3850 = vunpack.c.l.b16 %v3562
      %v3851 = vunpack.c.l.b16 %v3563
      %v3852 = vunpack.c.l.b16 %v3564
      %v3853 = vunpack.c.l.b16 %v3565
      %v3854 = vunpack.c.l.b16 %v3566
      %v3855 = vunpack.c.l.b16 %v3567
      %v3856 = vunpack.c.l.b16 %v3568
      %v3857 = vunpack.c.l.b16 %v3569
      %v3858 = vunpack.c.l.b16 %v3570
      %v3859 = vunpack.c.l.b16 %v3571
      %v3860 = vunpack.c.l.b16 %v3572
      %v3861 = vunpack.c.l.b16 %v3573
      %v3862 = vunpack.c.l.b16 %v3574
      %v3863 = vunpack.c.l.b16 %v3575
      %v3864 = vunpack.c.l.b16 %v3576
      %v3865 = vunpack.c.l.b16 %v3577
      %v3866 = vunpack.c.l.b16 %v3578
      %v3867 = vunpack.c.l.b16 %v3579
      %v3868 = vunpack.c.l.b16 %v3580
      %v3869 = vunpack.c.l.b16 %v3581
      %v3870 = vunpack.c.l.b16 %v3582
      %v3871 = vunpack.c.l.b16 %v3583
      %v3872 = vunpack.c.l.b16 %v3584
      %v3873 = vunpack.c.l.b16 %v3585
      %v3874 = vunpack.c.l.b16 %v3586
      %v3875 = vunpack.c.l.b16 %v3587
      %v3876 = vunpack.c.l.b16 %v3588
      %v3877 = vunpack.c.l.b16 %v3589
      %v3878 = vunpack.c.l.b16 %v3590
      %v3879 = vunpack.c.l.b16 %v3591
      %v3880 = vunpack.c.l.b16 %v3592
      %v3881 = vunpack.c.l.b16 %v3593
      %v3882 = vunpack.c.l.b16 %v3594
      %v3883 = vunpack.c.l.b16 %v3595
      %v3884 = vpack.c.b16 %v3741, %v3740
      %v3885 = vpack.c.b16 %v3743, %v3742
      %v3886 = vpack.c.b16 %v3745, %v3744
      %v3887 = vpack.c.b16 %v3747, %v3746
      %v3888 = vpack.c.b16 %v3749, %v3748
      %v3889 = vpack.c.b16 %v3751, %v3750
      %v3890 = vpack.c.b16 %v3753, %v3752
      %v3891 = vpack.c.b16 %v3755, %v3754
      %v3892 = vpack.c.b16 %v3757, %v3756
      %v3893 = vpack.c.b16 %v3759, %v3758
      %v3894 = vpack.c.b16 %v3761, %v3760
      %v3895 = vpack.c.b16 %v3763, %v3762
      %v3896 = vpack.c.b16 %v3765, %v3764
      %v3897 = vpack.c.b16 %v3767, %v3766
      %v3898 = vpack.c.b16 %v3769, %v3768
      %v3899 = vpack.c.b16 %v3771, %v3770
      %v3900 = vpack.c.b16 %v3773, %v3772
      %v3901 = vpack.c.b16 %v3775, %v3774
      %v3902 = vpack.c.b16 %v3777, %v3776
      %v3903 = vpack.c.b16 %v3779, %v3778
      %v3904 = vpack.c.b16 %v3781, %v3780
      %v3905 = vpack.c.b16 %v3783, %v3782
      %v3906 = vpack.c.b16 %v3785, %v3784
      %v3907 = vpack.c.b16 %v3787, %v3786
      %v3908 = vpack.c.b16 %v3789, %v3788
      %v3909 = vpack.c.b16 %v3791, %v3790
      %v3910 = vpack.c.b16 %v3793, %v3792
      %v3911 = vpack.c.b16 %v3795, %v3794
      %v3912 = vpack.c.b16 %v3797, %v3796
      %v3913 = vpack.c.b16 %v3799, %v3798
      %v3914 = vpack.c.b16 %v3801, %v3800
      %v3915 = vpack.c.b16 %v3803, %v3802
      %v3916 = vpack.c.b16 %v3805, %v3804
      %v3917 = vpack.c.b16 %v3807, %v3806
      %v3918 = vpack.c.b16 %v3809, %v3808
      %v3919 = vpack.c.b16 %v3811, %v3810
      %v3920 = vpack.c.b16 %v3813, %v3812
      %v3921 = vpack.c.b16 %v3815, %v3814
      %v3922 = vpack.c.b16 %v3817, %v3816
      %v3923 = vpack.c.b16 %v3819, %v3818
      %v3924 = vpack.c.b16 %v3821, %v3820
      %v3925 = vpack.c.b16 %v3823, %v3822
      %v3926 = vpack.c.b16 %v3825, %v3824
      %v3927 = vpack.c.b16 %v3827, %v3826
      %v3928 = vpack.c.b16 %v3829, %v3828
      %v3929 = vpack.c.b16 %v3831, %v3830
      %v3930 = vpack.c.b16 %v3833, %v3832
      %v3931 = vpack.c.b16 %v3835, %v3834
      %v3932 = vpack.c.b16 %v3837, %v3836
      %v3933 = vpack.c.b16 %v3839, %v3838
      %v3934 = vpack.c.b16 %v3841, %v3840
      %v3935 = vpack.c.b16 %v3843, %v3842
      %v3936 = vpack.c.b16 %v3845, %v3844
      %v3937 = vpack.c.b16 %v3847, %v3846
      %v3938 = vpack.c.b16 %v3849, %v3848
      %v3939 = vpack.c.b16 %v3851, %v3850
      %v3940 = vpack.c.b16 %v3853, %v3852
      %v3941 = vpack.c.b16 %v3855, %v3854
      %v3942 = vpack.c.b16 %v3857, %v3856
      %v3943 = vpack.c.b16 %v3859, %v3858
      %v3944 = vpack.c.b16 %v3861, %v3860
      %v3945 = vpack.c.b16 %v3863, %v3862
      %v3946 = vpack.c.b16 %v3865, %v3864
      %v3947 = vpack.c.b16 %v3867, %v3866
      %v3948 = vpack.c.b16 %v3869, %v3868
      %v3949 = vpack.c.b16 %v3871, %v3870
      %v3950 = vpack.c.b16 %v3873, %v3872
      %v3951 = vpack.c.b16 %v3875, %v3874
      %v3952 = vpack.c.b16 %v3877, %v3876
      %v3953 = vpack.c.b16 %v3879, %v3878
      %v3954 = vpack.c.b16 %v3881, %v3880
      %v3955 = vpack.c.b16 %v3883, %v3882
      %4028 = vmatprep.subr.bf16.mxu0 0
      %4029 = vmatpush1.bf16.msra.mxu0 %v3884
      %4030 = vmatprep.subr.bf16.mxu0 0
      %4031 = vmatpush1.bf16.msra.mxu0 %v3885
      %4032 = vmatprep.subr.bf16.mxu0 0
      %4033 = vmatpush1.bf16.msra.mxu0 %v3886
      %4034 = vmatprep.subr.bf16.mxu0 0
      %4035 = vmatpush1.bf16.msra.mxu0 %v3887
      %4036 = vmatprep.subr.bf16.mxu0 0
      %4037 = vmatpush1.bf16.msra.mxu0 %v3888
      %4038 = vmatprep.subr.bf16.mxu0 0
      %4039 = vmatpush1.bf16.msra.mxu0 %v3889
      %4040 = vmatprep.subr.bf16.mxu0 0
      %4041 = vmatpush1.bf16.msra.mxu0 %v3890
      %4042 = vmatprep.subr.bf16.mxu0 0
      %4043 = vmatpush1.bf16.msra.mxu0 %v3891
      %4044 = vmatprep.subr.bf16.mxu0 0
      %4045 = vmatpush1.bf16.msra.mxu0 %v3892
      %4046 = vmatprep.subr.bf16.mxu0 0
      %4047 = vmatpush1.bf16.msra.mxu0 %v3893
      %4048 = vmatprep.subr.bf16.mxu0 0
      %4049 = vmatpush1.bf16.msra.mxu0 %v3894
      %4050 = vmatprep.subr.bf16.mxu0 0
      %4051 = vmatpush1.bf16.msra.mxu0 %v3895
      %4052 = vmatprep.subr.bf16.mxu0 0
      %4053 = vmatpush1.bf16.msra.mxu0 %v3896
      %4054 = vmatprep.subr.bf16.mxu0 0
      %4055 = vmatpush1.bf16.msra.mxu0 %v3897
      %4056 = vmatprep.subr.bf16.mxu0 0
      %4057 = vmatpush1.bf16.msra.mxu0 %v3898
      %4058 = vmatprep.subr.bf16.mxu0 0
      %4059 = vmatpush1.bf16.msra.mxu0 %v3899
      %4060 = vmatprep.mubr.bf16.mxu0 %v3308
      %4061 = vmatmul.mubr.bf16.gmra.mrb[0].mxu0 %v3307
      %v4062 = vpop.f32.mrb[0].mxu0
      %v4063 = vadd.f32 0.0, %v4062
      %v4064 = vpop.f32.mrb[0].mxu0
      %v4065 = vpop.f32.mrb[0].mxu0
      %v4066 = vadd.f32 0.0, %v4065
      %v4067 = vpop.f32.mrb[0].mxu0
      %4068 = vmatprep.mubr.bf16.mxu0 %v3317
      %4069 = vmatmul.mubr.bf16.gmra.mrb[0].mxu0 %v3316
      %v4070 = vpop.f32.mrb[0].mxu0
      %v4071 = vadd.f32 0.0, %v4070
      %v4072 = vpop.f32.mrb[0].mxu0
      %v4073 = vpop.f32.mrb[0].mxu0
      %v4074 = vadd.f32 0.0, %v4073
      %v4075 = vpop.f32.mrb[0].mxu0
      %4076 = vmatprep.mubr.bf16.mxu0 %v3326
      %4077 = vmatmul.mubr.bf16.gmra.mrb[0].mxu0 %v3325
      %v4078 = vpop.f32.mrb[0].mxu0
      %v4079 = vadd.f32 0.0, %v4078
      %v4080 = vpop.f32.mrb[0].mxu0
      %v4081 = vpop.f32.mrb[0].mxu0
      %v4082 = vadd.f32 0.0, %v4081
      %v4083 = vpop.f32.mrb[0].mxu0
      %4084 = vmatprep.mubr.bf16.mxu0 %v3335
      %4085 = vmatmul.mubr.bf16.gmra.mrb[0].mxu0 %v3334
      %v4086 = vpop.f32.mrb[0].mxu0
      %v4087 = vadd.f32 0.0, %v4086
      %v4088 = vpop.f32.mrb[0].mxu0
      %v4089 = vpop.f32.mrb[0].mxu0
      %v4090 = vadd.f32 0.0, %v4089
      %v4091 = vpop.f32.mrb[0].mxu0
      %4092 = vmatprep.mubr.bf16.mxu0 %v3344
      %4093 = vmatmul.mubr.bf16.gmra.mrb[0].mxu0 %v3343
      %v4094 = vpop.f32.mrb[0].mxu0
      %v4095 = vadd.f32 0.0, %v4094
      %v4096 = vpop.f32.mrb[0].mxu0
      %v4097 = vpop.f32.mrb[0].mxu0
      %v4098 = vadd.f32 0.0, %v4097
      %v4099 = vpop.f32.mrb[0].mxu0
      %4100 = vmatprep.mubr.bf16.mxu0 %v3353
      %4101 = vmatmul.mubr.bf16.gmra.mrb[0].mxu0 %v3352
      %v4102 = vpop.f32.mrb[0].mxu0
      %v4103 = vadd.f32 0.0, %v4102
      %v4104 = vpop.f32.mrb[0].mxu0
      %v4105 = vpop.f32.mrb[0].mxu0
      %v4106 = vadd.f32 0.0, %v4105
      %v4107 = vpop.f32.mrb[0].mxu0
      %4108 = vmatprep.mubr.bf16.mxu0 %v3362
      %4109 = vmatmul.mubr.bf16.gmra.mrb[0].mxu0 %v3361
      %v4110 = vpop.f32.mrb[0].mxu0
      %v4111 = vadd.f32 0.0, %v4110
      %v4112 = vpop.f32.mrb[0].mxu0
      %v4113 = vpop.f32.mrb[0].mxu0
      %v4114 = vadd.f32 0.0, %v4113
      %v4115 = vpop.f32.mrb[0].mxu0
      %4116 = vmatprep.mubr.bf16.mxu0 %v3371
      %4117 = vmatmul.mubr.bf16.gmra.mrb[0].mxu0 %v3370
      %v4118 = vpop.f32.mrb[0].mxu0
      %v4119 = vadd.f32 0.0, %v4118
      %v4120 = vpop.f32.mrb[0].mxu0
      %v4121 = vpop.f32.mrb[0].mxu0
      %v4122 = vadd.f32 0.0, %v4121
      %v4123 = vpop.f32.mrb[0].mxu0
      %4124 = vmatprep.mubr.bf16.mxu0 %v3380
      %4125 = vmatmul.mubr.bf16.gmra.mrb[0].mxu0 %v3379
      %v4126 = vpop.f32.mrb[0].mxu0
      %v4127 = vadd.f32 0.0, %v4126
      %v4128 = vpop.f32.mrb[0].mxu0
      %v4129 = vpop.f32.mrb[0].mxu0
      %v4130 = vadd.f32 0.0, %v4129
      %v4131 = vpop.f32.mrb[0].mxu0
      %4132 = vmatprep.mubr.bf16.mxu0 %v3389
      %4133 = vmatmul.mubr.bf16.gmra.mrb[0].mxu0 %v3388
      %v4134 = vpop.f32.mrb[0].mxu0
      %v4135 = vadd.f32 0.0, %v4134
      %v4136 = vpop.f32.mrb[0].mxu0
      %v4137 = vpop.f32.mrb[0].mxu0
      %v4138 = vadd.f32 0.0, %v4137
      %v4139 = vpop.f32.mrb[0].mxu0
      %4140 = vmatprep.mubr.bf16.mxu0 %v3398
      %4141 = vmatmul.mubr.bf16.gmra.mrb[0].mxu0 %v3397
      %v4142 = vpop.f32.mrb[0].mxu0
      %v4143 = vadd.f32 0.0, %v4142
      %v4144 = vpop.f32.mrb[0].mxu0
      %v4145 = vpop.f32.mrb[0].mxu0
      %v4146 = vadd.f32 0.0, %v4145
      %v4147 = vpop.f32.mrb[0].mxu0
      %4148 = vmatprep.mubr.bf16.mxu0 %v3407
      %4149 = vmatmul.mubr.bf16.gmra.mrb[0].mxu0 %v3406
      %v4150 = vpop.f32.mrb[0].mxu0
      %v4151 = vadd.f32 0.0, %v4150
      %v4152 = vpop.f32.mrb[0].mxu0
      %v4153 = vpop.f32.mrb[0].mxu0
      %v4154 = vadd.f32 0.0, %v4153
      %v4155 = vpop.f32.mrb[0].mxu0
      %4156 = vmatprep.mubr.bf16.mxu0 %v3416
      %4157 = vmatmul.mubr.bf16.gmra.mrb[0].mxu0 %v3415
      %v4158 = vpop.f32.mrb[0].mxu0
      %v4159 = vadd.f32 0.0, %v4158
      %v4160 = vpop.f32.mrb[0].mxu0
      %v4161 = vpop.f32.mrb[0].mxu0
      %v4162 = vadd.f32 0.0, %v4161
      %v4163 = vpop.f32.mrb[0].mxu0
      %4164 = vmatprep.mubr.bf16.mxu0 %v3425
      %4165 = vmatmul.mubr.bf16.gmra.mrb[0].mxu0 %v3424
      %v4166 = vpop.f32.mrb[0].mxu0
      %v4167 = vadd.f32 0.0, %v4166
      %v4168 = vpop.f32.mrb[0].mxu0
      %v4169 = vpop.f32.mrb[0].mxu0
      %v4170 = vadd.f32 0.0, %v4169
      %v4171 = vpop.f32.mrb[0].mxu0
      %4172 = vmatprep.mubr.bf16.mxu0 %v3434
      %4173 = vmatmul.mubr.bf16.gmra.mrb[0].mxu0 %v3433
      %v4174 = vpop.f32.mrb[0].mxu0
      %v4175 = vadd.f32 0.0, %v4174
      %v4176 = vpop.f32.mrb[0].mxu0
      %v4177 = vpop.f32.mrb[0].mxu0
      %v4178 = vadd.f32 0.0, %v4177
      %v4179 = vpop.f32.mrb[0].mxu0
      %4180 = vmatprep.mubr.bf16.mxu0 %v3443
      %4181 = vmatmul.mubr.bf16.gmra.mrb[0].mxu0 %v3442
      %v4182 = vpop.f32.mrb[0].mxu0
      %v4183 = vadd.f32 0.0, %v4182
      %v4184 = vpop.f32.mrb[0].mxu0
      %v4185 = vpop.f32.mrb[0].mxu0
      %v4186 = vadd.f32 0.0, %v4185
      %v4187 = vpop.f32.mrb[0].mxu0
      %4188 = vdwg.mxu0
      %4189 = vmatprep.subr.bf16.mxu0 0
      %4190 = vmatpush1.bf16.msra.mxu0 %v3900
      %4191 = vmatprep.subr.bf16.mxu0 0
      %4192 = vmatpush1.bf16.msra.mxu0 %v3901
      %4193 = vmatprep.subr.bf16.mxu0 0
      %4194 = vmatpush1.bf16.msra.mxu0 %v3902
      %4195 = vmatprep.subr.bf16.mxu0 0
      %4196 = vmatpush1.bf16.msra.mxu0 %v3903
      %4197 = vmatprep.subr.bf16.mxu0 0
      %4198 = vmatpush1.bf16.msra.mxu0 %v3904
      %4199 = vmatprep.subr.bf16.mxu0 0
      %4200 = vmatpush1.bf16.msra.mxu0 %v3905
      %4201 = vmatprep.subr.bf16.mxu0 0
      %4202 = vmatpush1.bf16.msra.mxu0 %v3906
      %4203 = vmatprep.subr.bf16.mxu0 0
      %4204 = vmatpush1.bf16.msra.mxu0 %v3907
      %4205 = vmatprep.subr.bf16.mxu0 0
      %4206 = vmatpush1.bf16.msra.mxu0 %v3908
      %4207 = vmatprep.subr.bf16.mxu0 0
      %4208 = vmatpush1.bf16.msra.mxu0 %v3909
      %4209 = vmatprep.subr.bf16.mxu0 0
      %4210 = vmatpush1.bf16.msra.mxu0 %v3910
      %4211 = vmatprep.subr.bf16.mxu0 0
      %4212 = vmatpush1.bf16.msra.mxu0 %v3911
      %4213 = vmatprep.subr.bf16.mxu0 0
      %4214 = vmatpush1.bf16.msra.mxu0 %v3912
      %4215 = vmatprep.subr.bf16.mxu0 0
      %4216 = vmatpush1.bf16.msra.mxu0 %v3913
      %4217 = vmatprep.subr.bf16.mxu0 0
      %4218 = vmatpush1.bf16.msra.mxu0 %v3914
      %4219 = vmatprep.subr.bf16.mxu0 0
      %4220 = vmatpush1.bf16.msra.mxu0 %v3915
      %4221 = vmatprep.mubr.bf16.mxu0 %v3310
      %4222 = vmatmul.mubr.bf16.gmra.mrb[0].mxu0 %v3309
      %v4223 = vpop.f32.mrb[0].mxu0
      %v4224 = vadd.f32 %v4063, %v4223
      %v4225 = vpop.f32.mrb[0].mxu0
      %v4226 = vpop.f32.mrb[0].mxu0
      %v4227 = vadd.f32 %v4066, %v4226
      %v4228 = vpop.f32.mrb[0].mxu0
      %4229 = vmatprep.mubr.bf16.mxu0 %v3319
      %4230 = vmatmul.mubr.bf16.gmra.mrb[0].mxu0 %v3318
      %v4231 = vpop.f32.mrb[0].mxu0
      %v4232 = vadd.f32 %v4071, %v4231
      %v4233 = vpop.f32.mrb[0].mxu0
      %v4234 = vpop.f32.mrb[0].mxu0
      %v4235 = vadd.f32 %v4074, %v4234
      %v4236 = vpop.f32.mrb[0].mxu0
      %4237 = vmatprep.mubr.bf16.mxu0 %v3328
      %4238 = vmatmul.mubr.bf16.gmra.mrb[0].mxu0 %v3327
      %v4239 = vpop.f32.mrb[0].mxu0
      %v4240 = vadd.f32 %v4079, %v4239
      %v4241 = vpop.f32.mrb[0].mxu0
      %v4242 = vpop.f32.mrb[0].mxu0
      %v4243 = vadd.f32 %v4082, %v4242
      %v4244 = vpop.f32.mrb[0].mxu0
      %4245 = vmatprep.mubr.bf16.mxu0 %v3337
      %4246 = vmatmul.mubr.bf16.gmra.mrb[0].mxu0 %v3336
      %v4247 = vpop.f32.mrb[0].mxu0
      %v4248 = vadd.f32 %v4087, %v4247
      %v4249 = vpop.f32.mrb[0].mxu0
      %v4250 = vpop.f32.mrb[0].mxu0
      %v4251 = vadd.f32 %v4090, %v4250
      %v4252 = vpop.f32.mrb[0].mxu0
      %4253 = vmatprep.mubr.bf16.mxu0 %v3346
      %4254 = vmatmul.mubr.bf16.gmra.mrb[0].mxu0 %v3345
      %v4255 = vpop.f32.mrb[0].mxu0
      %v4256 = vadd.f32 %v4095, %v4255
      %v4257 = vpop.f32.mrb[0].mxu0
      %v4258 = vpop.f32.mrb[0].mxu0
      %v4259 = vadd.f32 %v4098, %v4258
      %v4260 = vpop.f32.mrb[0].mxu0
      %4261 = vmatprep.mubr.bf16.mxu0 %v3355
      %4262 = vmatmul.mubr.bf16.gmra.mrb[0].mxu0 %v3354
      %v4263 = vpop.f32.mrb[0].mxu0
      %v4264 = vadd.f32 %v4103, %v4263
      %v4265 = vpop.f32.mrb[0].mxu0
      %v4266 = vpop.f32.mrb[0].mxu0
      %v4267 = vadd.f32 %v4106, %v4266
      %v4268 = vpop.f32.mrb[0].mxu0
      %4269 = vmatprep.mubr.bf16.mxu0 %v3364
      %4270 = vmatmul.mubr.bf16.gmra.mrb[0].mxu0 %v3363
      %v4271 = vpop.f32.mrb[0].mxu0
      %v4272 = vadd.f32 %v4111, %v4271
      %v4273 = vpop.f32.mrb[0].mxu0
      %v4274 = vpop.f32.mrb[0].mxu0
      %v4275 = vadd.f32 %v4114, %v4274
      %v4276 = vpop.f32.mrb[0].mxu0
      %4277 = vmatprep.mubr.bf16.mxu0 %v3373
      %4278 = vmatmul.mubr.bf16.gmra.mrb[0].mxu0 %v3372
      %v4279 = vpop.f32.mrb[0].mxu0
      %v4280 = vadd.f32 %v4119, %v4279
      %v4281 = vpop.f32.mrb[0].mxu0
      %v4282 = vpop.f32.mrb[0].mxu0
      %v4283 = vadd.f32 %v4122, %v4282
      %v4284 = vpop.f32.mrb[0].mxu0
      %4285 = vmatprep.mubr.bf16.mxu0 %v3382
      %4286 = vmatmul.mubr.bf16.gmra.mrb[0].mxu0 %v3381
      %v4287 = vpop.f32.mrb[0].mxu0
      %v4288 = vadd.f32 %v4127, %v4287
      %v4289 = vpop.f32.mrb[0].mxu0
      %v4290 = vpop.f32.mrb[0].mxu0
      %v4291 = vadd.f32 %v4130, %v4290
      %v4292 = vpop.f32.mrb[0].mxu0
      %4293 = vmatprep.mubr.bf16.mxu0 %v3391
      %4294 = vmatmul.mubr.bf16.gmra.mrb[0].mxu0 %v3390
      %v4295 = vpop.f32.mrb[0].mxu0
      %v4296 = vadd.f32 %v4135, %v4295
      %v4297 = vpop.f32.mrb[0].mxu0
      %v4298 = vpop.f32.mrb[0].mxu0
      %v4299 = vadd.f32 %v4138, %v4298
      %v4300 = vpop.f32.mrb[0].mxu0
      %4301 = vmatprep.mubr.bf16.mxu0 %v3400
      %4302 = vmatmul.mubr.bf16.gmra.mrb[0].mxu0 %v3399
      %v4303 = vpop.f32.mrb[0].mxu0
      %v4304 = vadd.f32 %v4143, %v4303
      %v4305 = vpop.f32.mrb[0].mxu0
      %v4306 = vpop.f32.mrb[0].mxu0
      %v4307 = vadd.f32 %v4146, %v4306
      %v4308 = vpop.f32.mrb[0].mxu0
      %4309 = vmatprep.mubr.bf16.mxu0 %v3409
      %4310 = vmatmul.mubr.bf16.gmra.mrb[0].mxu0 %v3408
      %v4311 = vpop.f32.mrb[0].mxu0
      %v4312 = vadd.f32 %v4151, %v4311
      %v4313 = vpop.f32.mrb[0].mxu0
      %v4314 = vpop.f32.mrb[0].mxu0
      %v4315 = vadd.f32 %v4154, %v4314
      %v4316 = vpop.f32.mrb[0].mxu0
      %4317 = vmatprep.mubr.bf16.mxu0 %v3418
      %4318 = vmatmul.mubr.bf16.gmra.mrb[0].mxu0 %v3417
      %v4319 = vpop.f32.mrb[0].mxu0
      %v4320 = vadd.f32 %v4159, %v4319
      %v4321 = vpop.f32.mrb[0].mxu0
      %v4322 = vpop.f32.mrb[0].mxu0
      %v4323 = vadd.f32 %v4162, %v4322
      %v4324 = vpop.f32.mrb[0].mxu0
      %4325 = vmatprep.mubr.bf16.mxu0 %v3427
      %4326 = vmatmul.mubr.bf16.gmra.mrb[0].mxu0 %v3426
      %v4327 = vpop.f32.mrb[0].mxu0
      %v4328 = vadd.f32 %v4167, %v4327
      %v4329 = vpop.f32.mrb[0].mxu0
      %v4330 = vpop.f32.mrb[0].mxu0
      %v4331 = vadd.f32 %v4170, %v4330
      %v4332 = vpop.f32.mrb[0].mxu0
      %4333 = vmatprep.mubr.bf16.mxu0 %v3436
      %4334 = vmatmul.mubr.bf16.gmra.mrb[0].mxu0 %v3435
      %v4335 = vpop.f32.mrb[0].mxu0
      %v4336 = vadd.f32 %v4175, %v4335
      %v4337 = vpop.f32.mrb[0].mxu0
      %v4338 = vpop.f32.mrb[0].mxu0
      %v4339 = vadd.f32 %v4178, %v4338
      %v4340 = vpop.f32.mrb[0].mxu0
      %4341 = vmatprep.mubr.bf16.mxu0 %v3445
      %4342 = vmatmul.mubr.bf16.gmra.mrb[0].mxu0 %v3444
      %v4343 = vpop.f32.mrb[0].mxu0
      %v4344 = vadd.f32 %v4183, %v4343
      %v4345 = vpop.f32.mrb[0].mxu0
      %v4346 = vpop.f32.mrb[0].mxu0
      %v4347 = vadd.f32 %v4186, %v4346
      %v4348 = vpop.f32.mrb[0].mxu0
      %4349 = vdwg.mxu0
      %4350 = vmatprep.subr.bf16.mxu0 0
      %4351 = vmatpush1.bf16.msra.mxu0 %v3916
      %4352 = vmatprep.subr.bf16.mxu0 0
      %4353 = vmatpush1.bf16.msra.mxu0 %v3917
      %4354 = vmatprep.subr.bf16.mxu0 0
      %4355 = vmatpush1.bf16.msra.mxu0 %v3918
      %4356 = vmatprep.subr.bf16.mxu0 0
      %4357 = vmatpush1.bf16.msra.mxu0 %v3919
      %4358 = vmatprep.subr.bf16.mxu0 0
      %4359 = vmatpush1.bf16.msra.mxu0 %v3920
      %4360 = vmatprep.subr.bf16.mxu0 0
      %4361 = vmatpush1.bf16.msra.mxu0 %v3921
      %4362 = vmatprep.subr.bf16.mxu0 0
      %4363 = vmatpush1.bf16.msra.mxu0 %v3922
      %4364 = vmatprep.subr.bf16.mxu0 0
      %4365 = vmatpush1.bf16.msra.mxu0 %v3923
      %4366 = vmatprep.subr.bf16.mxu0 0
      %4367 = vmatpush1.bf16.msra.mxu0 %v3924
      %4368 = vmatprep.subr.bf16.mxu0 0
      %4369 = vmatpush1.bf16.msra.mxu0 %v3925
      %4370 = vmatprep.subr.bf16.mxu0 0
      %4371 = vmatpush1.bf16.msra.mxu0 %v3926
      %4372 = vmatprep.subr.bf16.mxu0 0
      %4373 = vmatpush1.bf16.msra.mxu0 %v3927
      %4374 = vmatprep.subr.bf16.mxu0 0
      %4375 = vmatpush1.bf16.msra.mxu0 %v3928
      %4376 = vmatprep.subr.bf16.mxu0 0
      %4377 = vmatpush1.bf16.msra.mxu0 %v3929
      %4378 = vmatprep.subr.bf16.mxu0 0
      %4379 = vmatpush1.bf16.msra.mxu0 %v3930
      %4380 = vmatprep.subr.bf16.mxu0 0
      %4381 = vmatpush1.bf16.msra.mxu0 %v3931
      %4382 = vmatprep.mubr.bf16.mxu0 %v3312
      %4383 = vmatmul.mubr.bf16.gmra.mrb[0].mxu0 %v3311
      %v4384 = vpop.f32.mrb[0].mxu0
      %v4385 = vadd.f32 %v4224, %v4384
      %v4386 = vpop.f32.mrb[0].mxu0
      %v4387 = vpop.f32.mrb[0].mxu0
      %v4388 = vadd.f32 %v4227, %v4387
      %v4389 = vpop.f32.mrb[0].mxu0
      %4390 = vmatprep.mubr.bf16.mxu0 %v3321
      %4391 = vmatmul.mubr.bf16.gmra.mrb[0].mxu0 %v3320
      %v4392 = vpop.f32.mrb[0].mxu0
      %v4393 = vadd.f32 %v4232, %v4392
      %v4394 = vpop.f32.mrb[0].mxu0
      %v4395 = vpop.f32.mrb[0].mxu0
      %v4396 = vadd.f32 %v4235, %v4395
      %v4397 = vpop.f32.mrb[0].mxu0
      %4398 = vmatprep.mubr.bf16.mxu0 %v3330
      %4399 = vmatmul.mubr.bf16.gmra.mrb[0].mxu0 %v3329
      %v4400 = vpop.f32.mrb[0].mxu0
      %v4401 = vadd.f32 %v4240, %v4400
      %v4402 = vpop.f32.mrb[0].mxu0
      %v4403 = vpop.f32.mrb[0].mxu0
      %v4404 = vadd.f32 %v4243, %v4403
      %v4405 = vpop.f32.mrb[0].mxu0
      %4406 = vmatprep.mubr.bf16.mxu0 %v3339
      %4407 = vmatmul.mubr.bf16.gmra.mrb[0].mxu0 %v3338
      %v4408 = vpop.f32.mrb[0].mxu0
      %v4409 = vadd.f32 %v4248, %v4408
      %v4410 = vpop.f32.mrb[0].mxu0
      %v4411 = vpop.f32.mrb[0].mxu0
      %v4412 = vadd.f32 %v4251, %v4411
      %v4413 = vpop.f32.mrb[0].mxu0
      %4414 = vmatprep.mubr.bf16.mxu0 %v3348
      %4415 = vmatmul.mubr.bf16.gmra.mrb[0].mxu0 %v3347
      %v4416 = vpop.f32.mrb[0].mxu0
      %v4417 = vadd.f32 %v4256, %v4416
      %v4418 = vpop.f32.mrb[0].mxu0
      %v4419 = vpop.f32.mrb[0].mxu0
      %v4420 = vadd.f32 %v4259, %v4419
      %v4421 = vpop.f32.mrb[0].mxu0
      %4422 = vmatprep.mubr.bf16.mxu0 %v3357
      %4423 = vmatmul.mubr.bf16.gmra.mrb[0].mxu0 %v3356
      %v4424 = vpop.f32.mrb[0].mxu0
      %v4425 = vadd.f32 %v4264, %v4424
      %v4426 = vpop.f32.mrb[0].mxu0
      %v4427 = vpop.f32.mrb[0].mxu0
      %v4428 = vadd.f32 %v4267, %v4427
      %v4429 = vpop.f32.mrb[0].mxu0
      %4430 = vmatprep.mubr.bf16.mxu0 %v3366
      %4431 = vmatmul.mubr.bf16.gmra.mrb[0].mxu0 %v3365
      %v4432 = vpop.f32.mrb[0].mxu0
      %v4433 = vadd.f32 %v4272, %v4432
      %v4434 = vpop.f32.mrb[0].mxu0
      %v4435 = vpop.f32.mrb[0].mxu0
      %v4436 = vadd.f32 %v4275, %v4435
      %v4437 = vpop.f32.mrb[0].mxu0
      %4438 = vmatprep.mubr.bf16.mxu0 %v3375
      %4439 = vmatmul.mubr.bf16.gmra.mrb[0].mxu0 %v3374
      %v4440 = vpop.f32.mrb[0].mxu0
      %v4441 = vadd.f32 %v4280, %v4440
      %v4442 = vpop.f32.mrb[0].mxu0
      %v4443 = vpop.f32.mrb[0].mxu0
      %v4444 = vadd.f32 %v4283, %v4443
      %v4445 = vpop.f32.mrb[0].mxu0
      %4446 = vmatprep.mubr.bf16.mxu0 %v3384
      %4447 = vmatmul.mubr.bf16.gmra.mrb[0].mxu0 %v3383
      %v4448 = vpop.f32.mrb[0].mxu0
      %v4449 = vadd.f32 %v4288, %v4448
      %v4450 = vpop.f32.mrb[0].mxu0
      %v4451 = vpop.f32.mrb[0].mxu0
      %v4452 = vadd.f32 %v4291, %v4451
      %v4453 = vpop.f32.mrb[0].mxu0
      %4454 = vmatprep.mubr.bf16.mxu0 %v3393
      %4455 = vmatmul.mubr.bf16.gmra.mrb[0].mxu0 %v3392
      %v4456 = vpop.f32.mrb[0].mxu0
      %v4457 = vadd.f32 %v4296, %v4456
      %v4458 = vpop.f32.mrb[0].mxu0
      %v4459 = vpop.f32.mrb[0].mxu0
      %v4460 = vadd.f32 %v4299, %v4459
      %v4461 = vpop.f32.mrb[0].mxu0
      %4462 = vmatprep.mubr.bf16.mxu0 %v3402
      %4463 = vmatmul.mubr.bf16.gmra.mrb[0].mxu0 %v3401
      %v4464 = vpop.f32.mrb[0].mxu0
      %v4465 = vadd.f32 %v4304, %v4464
      %v4466 = vpop.f32.mrb[0].mxu0
      %v4467 = vpop.f32.mrb[0].mxu0
      %v4468 = vadd.f32 %v4307, %v4467
      %v4469 = vpop.f32.mrb[0].mxu0
      %4470 = vmatprep.mubr.bf16.mxu0 %v3411
      %4471 = vmatmul.mubr.bf16.gmra.mrb[0].mxu0 %v3410
      %v4472 = vpop.f32.mrb[0].mxu0
      %v4473 = vadd.f32 %v4312, %v4472
      %v4474 = vpop.f32.mrb[0].mxu0
      %v4475 = vpop.f32.mrb[0].mxu0
      %v4476 = vadd.f32 %v4315, %v4475
      %v4477 = vpop.f32.mrb[0].mxu0
      %4478 = vmatprep.mubr.bf16.mxu0 %v3420
      %4479 = vmatmul.mubr.bf16.gmra.mrb[0].mxu0 %v3419
      %v4480 = vpop.f32.mrb[0].mxu0
      %v4481 = vadd.f32 %v4320, %v4480
      %v4482 = vpop.f32.mrb[0].mxu0
      %v4483 = vpop.f32.mrb[0].mxu0
      %v4484 = vadd.f32 %v4323, %v4483
      %v4485 = vpop.f32.mrb[0].mxu0
      %4486 = vmatprep.mubr.bf16.mxu0 %v3429
      %4487 = vmatmul.mubr.bf16.gmra.mrb[0].mxu0 %v3428
      %v4488 = vpop.f32.mrb[0].mxu0
      %v4489 = vadd.f32 %v4328, %v4488
      %v4490 = vpop.f32.mrb[0].mxu0
      %v4491 = vpop.f32.mrb[0].mxu0
      %v4492 = vadd.f32 %v4331, %v4491
      %v4493 = vpop.f32.mrb[0].mxu0
      %4494 = vmatprep.mubr.bf16.mxu0 %v3438
      %4495 = vmatmul.mubr.bf16.gmra.mrb[0].mxu0 %v3437
      %v4496 = vpop.f32.mrb[0].mxu0
      %v4497 = vadd.f32 %v4336, %v4496
      %v4498 = vpop.f32.mrb[0].mxu0
      %v4499 = vpop.f32.mrb[0].mxu0
      %v4500 = vadd.f32 %v4339, %v4499
      %v4501 = vpop.f32.mrb[0].mxu0
      %4502 = vmatprep.mubr.bf16.mxu0 %v3447
      %4503 = vmatmul.mubr.bf16.gmra.mrb[0].mxu0 %v3446
      %v4504 = vpop.f32.mrb[0].mxu0
      %v4505 = vadd.f32 %v4344, %v4504
      %v4506 = vpop.f32.mrb[0].mxu0
      %v4507 = vpop.f32.mrb[0].mxu0
      %v4508 = vadd.f32 %v4347, %v4507
      %v4509 = vpop.f32.mrb[0].mxu0
      %4510 = vdwg.mxu0
      %4511 = vmatprep.subr.bf16.mxu0 0
      %4512 = vmatpush1.bf16.msra.mxu0 %v3932
      %4513 = vmatprep.subr.bf16.mxu0 0
      %4514 = vmatpush1.bf16.msra.mxu0 %v3933
      %4515 = vmatprep.subr.bf16.mxu0 0
      %4516 = vmatpush1.bf16.msra.mxu0 %v3934
      %4517 = vmatprep.subr.bf16.mxu0 0
      %4518 = vmatpush1.bf16.msra.mxu0 %v3935
      %4519 = vmatprep.subr.bf16.mxu0 0
      %4520 = vmatpush1.bf16.msra.mxu0 %v3936
      %4521 = vmatprep.subr.bf16.mxu0 0
      %4522 = vmatpush1.bf16.msra.mxu0 %v3937
      %4523 = vmatprep.subr.bf16.mxu0 0
      %4524 = vmatpush1.bf16.msra.mxu0 %v3938
      %4525 = vmatprep.subr.bf16.mxu0 0
      %4526 = vmatpush1.bf16.msra.mxu0 %v3939
      %4527 = vmatprep.subr.bf16.mxu0 0
      %4528 = vmatpush1.bf16.msra.mxu0 %v3940
      %4529 = vmatprep.subr.bf16.mxu0 0
      %4530 = vmatpush1.bf16.msra.mxu0 %v3941
      %4531 = vmatprep.subr.bf16.mxu0 0
      %4532 = vmatpush1.bf16.msra.mxu0 %v3942
      %4533 = vmatprep.subr.bf16.mxu0 0
      %4534 = vmatpush1.bf16.msra.mxu0 %v3943
      %4535 = vmatprep.subr.bf16.mxu0 0
      %4536 = vmatpush1.bf16.msra.mxu0 %v3944
      %4537 = vmatprep.subr.bf16.mxu0 0
      %4538 = vmatpush1.bf16.msra.mxu0 %v3945
      %4539 = vmatprep.subr.bf16.mxu0 0
      %4540 = vmatpush1.bf16.msra.mxu0 %v3946
      %4541 = vmatprep.subr.bf16.mxu0 0
      %4542 = vmatpush1.bf16.msra.mxu0 %v3947
      %4543 = vmatprep.mubr.bf16.mxu0 %v3314
      %4544 = vmatmul.mubr.bf16.gmra.mrb[0].mxu0 %v3313
      %v4545 = vpop.f32.mrb[0].mxu0
      %v4546 = vadd.f32 %v4385, %v4545
      %v4547 = vpop.f32.mrb[0].mxu0
      %v4548 = vpop.f32.mrb[0].mxu0
      %v4549 = vadd.f32 %v4388, %v4548
      %v4550 = vpop.f32.mrb[0].mxu0
      %4551 = vmatprep.mubr.bf16.mxu0 %v3323
      %4552 = vmatmul.mubr.bf16.gmra.mrb[0].mxu0 %v3322
      %v4553 = vpop.f32.mrb[0].mxu0
      %v4554 = vadd.f32 %v4393, %v4553
      %v4555 = vpop.f32.mrb[0].mxu0
      %v4556 = vpop.f32.mrb[0].mxu0
      %v4557 = vadd.f32 %v4396, %v4556
      %v4558 = vpop.f32.mrb[0].mxu0
      %4559 = vmatprep.mubr.bf16.mxu0 %v3332
      %4560 = vmatmul.mubr.bf16.gmra.mrb[0].mxu0 %v3331
      %v4561 = vpop.f32.mrb[0].mxu0
      %v4562 = vadd.f32 %v4401, %v4561
      %v4563 = vpop.f32.mrb[0].mxu0
      %v4564 = vpop.f32.mrb[0].mxu0
      %v4565 = vadd.f32 %v4404, %v4564
      %v4566 = vpop.f32.mrb[0].mxu0
      %4567 = vmatprep.mubr.bf16.mxu0 %v3341
      %4568 = vmatmul.mubr.bf16.gmra.mrb[0].mxu0 %v3340
      %v4569 = vpop.f32.mrb[0].mxu0
      %v4570 = vadd.f32 %v4409, %v4569
      %v4571 = vpop.f32.mrb[0].mxu0
      %v4572 = vpop.f32.mrb[0].mxu0
      %v4573 = vadd.f32 %v4412, %v4572
      %v4574 = vpop.f32.mrb[0].mxu0
      %4575 = vmatprep.mubr.bf16.mxu0 %v3350
      %4576 = vmatmul.mubr.bf16.gmra.mrb[0].mxu0 %v3349
      %v4577 = vpop.f32.mrb[0].mxu0
      %v4578 = vadd.f32 %v4417, %v4577
      %v4579 = vpop.f32.mrb[0].mxu0
      %v4580 = vpop.f32.mrb[0].mxu0
      %v4581 = vadd.f32 %v4420, %v4580
      %v4582 = vpop.f32.mrb[0].mxu0
      %4583 = vmatprep.mubr.bf16.mxu0 %v3359
      %4584 = vmatmul.mubr.bf16.gmra.mrb[0].mxu0 %v3358
      %v4585 = vpop.f32.mrb[0].mxu0
      %v4586 = vadd.f32 %v4425, %v4585
      %v4587 = vpop.f32.mrb[0].mxu0
      %v4588 = vpop.f32.mrb[0].mxu0
      %v4589 = vadd.f32 %v4428, %v4588
      %v4590 = vpop.f32.mrb[0].mxu0
      %4591 = vmatprep.mubr.bf16.mxu0 %v3368
      %4592 = vmatmul.mubr.bf16.gmra.mrb[0].mxu0 %v3367
      %v4593 = vpop.f32.mrb[0].mxu0
      %v4594 = vadd.f32 %v4433, %v4593
      %v4595 = vpop.f32.mrb[0].mxu0
      %v4596 = vpop.f32.mrb[0].mxu0
      %v4597 = vadd.f32 %v4436, %v4596
      %v4598 = vpop.f32.mrb[0].mxu0
      %4599 = vmatprep.mubr.bf16.mxu0 %v3377
      %4600 = vmatmul.mubr.bf16.gmra.mrb[0].mxu0 %v3376
      %v4601 = vpop.f32.mrb[0].mxu0
      %v4602 = vadd.f32 %v4441, %v4601
      %v4603 = vpop.f32.mrb[0].mxu0
      %v4604 = vpop.f32.mrb[0].mxu0
      %v4605 = vadd.f32 %v4444, %v4604
      %v4606 = vpop.f32.mrb[0].mxu0
      %4607 = vmatprep.mubr.bf16.mxu0 %v3386
      %4608 = vmatmul.mubr.bf16.gmra.mrb[0].mxu0 %v3385
      %v4609 = vpop.f32.mrb[0].mxu0
      %v4610 = vadd.f32 %v4449, %v4609
      %v4611 = vpop.f32.mrb[0].mxu0
      %v4612 = vpop.f32.mrb[0].mxu0
      %v4613 = vadd.f32 %v4452, %v4612
      %v4614 = vpop.f32.mrb[0].mxu0
      %4615 = vmatprep.mubr.bf16.mxu0 %v3395
      %4616 = vmatmul.mubr.bf16.gmra.mrb[0].mxu0 %v3394
      %v4617 = vpop.f32.mrb[0].mxu0
      %v4618 = vadd.f32 %v4457, %v4617
      %v4619 = vpop.f32.mrb[0].mxu0
      %v4620 = vpop.f32.mrb[0].mxu0
      %v4621 = vadd.f32 %v4460, %v4620
      %v4622 = vpop.f32.mrb[0].mxu0
      %4623 = vmatprep.mubr.bf16.mxu0 %v3404
      %4624 = vmatmul.mubr.bf16.gmra.mrb[0].mxu0 %v3403
      %v4625 = vpop.f32.mrb[0].mxu0
      %v4626 = vadd.f32 %v4465, %v4625
      %v4627 = vpop.f32.mrb[0].mxu0
      %v4628 = vpop.f32.mrb[0].mxu0
      %v4629 = vadd.f32 %v4468, %v4628
      %v4630 = vpop.f32.mrb[0].mxu0
      %4631 = vmatprep.mubr.bf16.mxu0 %v3413
      %4632 = vmatmul.mubr.bf16.gmra.mrb[0].mxu0 %v3412
      %v4633 = vpop.f32.mrb[0].mxu0
      %v4634 = vadd.f32 %v4473, %v4633
      %v4635 = vpop.f32.mrb[0].mxu0
      %v4636 = vpop.f32.mrb[0].mxu0
      %v4637 = vadd.f32 %v4476, %v4636
      %v4638 = vpop.f32.mrb[0].mxu0
      %4639 = vmatprep.mubr.bf16.mxu0 %v3422
      %4640 = vmatmul.mubr.bf16.gmra.mrb[0].mxu0 %v3421
      %v4641 = vpop.f32.mrb[0].mxu0
      %v4642 = vadd.f32 %v4481, %v4641
      %v4643 = vpop.f32.mrb[0].mxu0
      %v4644 = vpop.f32.mrb[0].mxu0
      %v4645 = vadd.f32 %v4484, %v4644
      %v4646 = vpop.f32.mrb[0].mxu0
      %4647 = vmatprep.mubr.bf16.mxu0 %v3431
      %4648 = vmatmul.mubr.bf16.gmra.mrb[0].mxu0 %v3430
      %v4649 = vpop.f32.mrb[0].mxu0
      %v4650 = vadd.f32 %v4489, %v4649
      %v4651 = vpop.f32.mrb[0].mxu0
      %v4652 = vpop.f32.mrb[0].mxu0
      %v4653 = vadd.f32 %v4492, %v4652
      %v4654 = vpop.f32.mrb[0].mxu0
      %4655 = vmatprep.mubr.bf16.mxu0 %v3440
      %4656 = vmatmul.mubr.bf16.gmra.mrb[0].mxu0 %v3439
      %v4657 = vpop.f32.mrb[0].mxu0
      %v4658 = vadd.f32 %v4497, %v4657
      %v4659 = vpop.f32.mrb[0].mxu0
      %v4660 = vpop.f32.mrb[0].mxu0
      %v4661 = vadd.f32 %v4500, %v4660
      %v4662 = vpop.f32.mrb[0].mxu0
      %4663 = vmatprep.mubr.bf16.mxu0 %v3449
      %4664 = vmatmul.mubr.bf16.gmra.mrb[0].mxu0 %v3448
      %v4665 = vpop.f32.mrb[0].mxu0
      %v4666 = vadd.f32 %v4505, %v4665
      %v4667 = vpop.f32.mrb[0].mxu0
      %v4668 = vpop.f32.mrb[0].mxu0
      %v4669 = vadd.f32 %v4508, %v4668
      %v4670 = vpop.f32.mrb[0].mxu0
      %4671 = vdwg.mxu0
      %4672 = vmatprep.subr.bf16.mxu0 0
      %4673 = vmatpush1.bf16.msra.mxu0 %v3948
      %4674 = vmatprep.subr.bf16.mxu0 0
      %4675 = vmatpush1.bf16.msra.mxu0 %v3949
      %4676 = vmatprep.subr.bf16.mxu0 0
      %4677 = vmatpush1.bf16.msra.mxu0 %v3950
      %4678 = vmatprep.subr.bf16.mxu0 0
      %4679 = vmatpush1.bf16.msra.mxu0 %v3951
      %4680 = vmatprep.subr.bf16.mxu0 0
      %4681 = vmatpush1.bf16.msra.mxu0 %v3952
      %4682 = vmatprep.subr.bf16.mxu0 0
      %4683 = vmatpush1.bf16.msra.mxu0 %v3953
      %4684 = vmatprep.subr.bf16.mxu0 0
      %4685 = vmatpush1.bf16.msra.mxu0 %v3954
      %4686 = vmatprep.subr.bf16.mxu0 0
      %4687 = vmatpush1.bf16.msra.mxu0 %v3955
      %4688 = vmatprep.subr.bf16.mxu0 0
      %4689 = vmatpush1.bf16.msra.mxu0 0
      %4690 = vmatprep.subr.bf16.mxu0 0
      %4691 = vmatpush1.bf16.msra.mxu0 0
      %4692 = vmatprep.subr.bf16.mxu0 0
      %4693 = vmatpush1.bf16.msra.mxu0 0
      %4694 = vmatprep.subr.bf16.mxu0 0
      %4695 = vmatpush1.bf16.msra.mxu0 0
      %4696 = vmatprep.subr.bf16.mxu0 0
      %4697 = vmatpush1.bf16.msra.mxu0 0
      %4698 = vmatprep.subr.bf16.mxu0 0
      %4699 = vmatpush1.bf16.msra.mxu0 0
      %4700 = vmatprep.subr.bf16.mxu0 0
      %4701 = vmatpush1.bf16.msra.mxu0 0
      %4702 = vmatprep.subr.bf16.mxu0 0
      %4703 = vmatpush1.bf16.msra.mxu0 0
      %4704 = vmatprep.mubr.bf16.mxu0 0
      %4705 = vmatmul.mubr.bf16.gmra.mrb[0].mxu0 %v3315
      %v4706 = vpop.f32.mrb[0].mxu0
      %v4707 = vadd.f32 %v4546, %v4706
      %v4708 = vpop.f32.mrb[0].mxu0
      %v4709 = vpop.f32.mrb[0].mxu0
      %v4710 = vadd.f32 %v4549, %v4709
      %v4711 = vpop.f32.mrb[0].mxu0
      %4712 = vmatprep.mubr.bf16.mxu0 0
      %4713 = vmatmul.mubr.bf16.gmra.mrb[0].mxu0 %v3324
      %v4714 = vpop.f32.mrb[0].mxu0
      %v4715 = vadd.f32 %v4554, %v4714
      %v4716 = vpop.f32.mrb[0].mxu0
      %v4717 = vpop.f32.mrb[0].mxu0
      %v4718 = vadd.f32 %v4557, %v4717
      %v4719 = vpop.f32.mrb[0].mxu0
      %4720 = vmatprep.mubr.bf16.mxu0 0
      %4721 = vmatmul.mubr.bf16.gmra.mrb[0].mxu0 %v3333
      %v4722 = vpop.f32.mrb[0].mxu0
      %v4723 = vadd.f32 %v4562, %v4722
      %v4724 = vpop.f32.mrb[0].mxu0
      %v4725 = vpop.f32.mrb[0].mxu0
      %v4726 = vadd.f32 %v4565, %v4725
      %v4727 = vpop.f32.mrb[0].mxu0
      %4728 = vmatprep.mubr.bf16.mxu0 0
      %4729 = vmatmul.mubr.bf16.gmra.mrb[0].mxu0 %v3342
      %v4730 = vpop.f32.mrb[0].mxu0
      %v4731 = vadd.f32 %v4570, %v4730
      %v4732 = vpop.f32.mrb[0].mxu0
      %v4733 = vpop.f32.mrb[0].mxu0
      %v4734 = vadd.f32 %v4573, %v4733
      %v4735 = vpop.f32.mrb[0].mxu0
      %4736 = vmatprep.mubr.bf16.mxu0 0
      %4737 = vmatmul.mubr.bf16.gmra.mrb[0].mxu0 %v3351
      %v4738 = vpop.f32.mrb[0].mxu0
      %v4739 = vadd.f32 %v4578, %v4738
      %v4740 = vpop.f32.mrb[0].mxu0
      %v4741 = vpop.f32.mrb[0].mxu0
      %v4742 = vadd.f32 %v4581, %v4741
      %v4743 = vpop.f32.mrb[0].mxu0
      %4744 = vmatprep.mubr.bf16.mxu0 0
      %4745 = vmatmul.mubr.bf16.gmra.mrb[0].mxu0 %v3360
      %v4746 = vpop.f32.mrb[0].mxu0
      %v4747 = vadd.f32 %v4586, %v4746
      %v4748 = vpop.f32.mrb[0].mxu0
      %v4749 = vpop.f32.mrb[0].mxu0
      %v4750 = vadd.f32 %v4589, %v4749
      %v4751 = vpop.f32.mrb[0].mxu0
      %4752 = vmatprep.mubr.bf16.mxu0 0
      %4753 = vmatmul.mubr.bf16.gmra.mrb[0].mxu0 %v3369
      %v4754 = vpop.f32.mrb[0].mxu0
      %v4755 = vadd.f32 %v4594, %v4754
      %v4756 = vpop.f32.mrb[0].mxu0
      %v4757 = vpop.f32.mrb[0].mxu0
      %v4758 = vadd.f32 %v4597, %v4757
      %v4759 = vpop.f32.mrb[0].mxu0
      %4760 = vmatprep.mubr.bf16.mxu0 0
      %4761 = vmatmul.mubr.bf16.gmra.mrb[0].mxu0 %v3378
      %v4762 = vpop.f32.mrb[0].mxu0
      %v4763 = vadd.f32 %v4602, %v4762
      %v4764 = vpop.f32.mrb[0].mxu0
      %v4765 = vpop.f32.mrb[0].mxu0
      %v4766 = vadd.f32 %v4605, %v4765
      %v4767 = vpop.f32.mrb[0].mxu0
      %4768 = vmatprep.mubr.bf16.mxu0 0
      %4769 = vmatmul.mubr.bf16.gmra.mrb[0].mxu0 %v3387
      %v4770 = vpop.f32.mrb[0].mxu0
      %v4771 = vadd.f32 %v4610, %v4770
      %v4772 = vpop.f32.mrb[0].mxu0
      %v4773 = vpop.f32.mrb[0].mxu0
      %v4774 = vadd.f32 %v4613, %v4773
      %v4775 = vpop.f32.mrb[0].mxu0
      %4776 = vmatprep.mubr.bf16.mxu0 0
      %4777 = vmatmul.mubr.bf16.gmra.mrb[0].mxu0 %v3396
      %v4778 = vpop.f32.mrb[0].mxu0
      %v4779 = vadd.f32 %v4618, %v4778
      %v4780 = vpop.f32.mrb[0].mxu0
      %v4781 = vpop.f32.mrb[0].mxu0
      %v4782 = vadd.f32 %v4621, %v4781
      %v4783 = vpop.f32.mrb[0].mxu0
      %4784 = vmatprep.mubr.bf16.mxu0 0
      %4785 = vmatmul.mubr.bf16.gmra.mrb[0].mxu0 %v3405
      %v4786 = vpop.f32.mrb[0].mxu0
      %v4787 = vadd.f32 %v4626, %v4786
      %v4788 = vpop.f32.mrb[0].mxu0
      %v4789 = vpop.f32.mrb[0].mxu0
      %v4790 = vadd.f32 %v4629, %v4789
      %v4791 = vpop.f32.mrb[0].mxu0
      %4792 = vmatprep.mubr.bf16.mxu0 0
      %4793 = vmatmul.mubr.bf16.gmra.mrb[0].mxu0 %v3414
      %v4794 = vpop.f32.mrb[0].mxu0
      %v4795 = vadd.f32 %v4634, %v4794
      %v4796 = vpop.f32.mrb[0].mxu0
      %v4797 = vpop.f32.mrb[0].mxu0
      %v4798 = vadd.f32 %v4637, %v4797
      %v4799 = vpop.f32.mrb[0].mxu0
      %4800 = vmatprep.mubr.bf16.mxu0 0
      %4801 = vmatmul.mubr.bf16.gmra.mrb[0].mxu0 %v3423
      %v4802 = vpop.f32.mrb[0].mxu0
      %v4803 = vadd.f32 %v4642, %v4802
      %v4804 = vpop.f32.mrb[0].mxu0
      %v4805 = vpop.f32.mrb[0].mxu0
      %v4806 = vadd.f32 %v4645, %v4805
      %v4807 = vpop.f32.mrb[0].mxu0
      %4808 = vmatprep.mubr.bf16.mxu0 0
      %4809 = vmatmul.mubr.bf16.gmra.mrb[0].mxu0 %v3432
      %v4810 = vpop.f32.mrb[0].mxu0
      %v4811 = vadd.f32 %v4650, %v4810
      %v4812 = vpop.f32.mrb[0].mxu0
      %v4813 = vpop.f32.mrb[0].mxu0
      %v4814 = vadd.f32 %v4653, %v4813
      %v4815 = vpop.f32.mrb[0].mxu0
      %4816 = vmatprep.mubr.bf16.mxu0 0
      %4817 = vmatmul.mubr.bf16.gmra.mrb[0].mxu0 %v3441
      %v4818 = vpop.f32.mrb[0].mxu0
      %v4819 = vadd.f32 %v4658, %v4818
      %v4820 = vpop.f32.mrb[0].mxu0
      %v4821 = vpop.f32.mrb[0].mxu0
      %v4822 = vadd.f32 %v4661, %v4821
      %v4823 = vpop.f32.mrb[0].mxu0
      %4824 = vmatprep.mubr.bf16.mxu0 0
      %4825 = vmatmul.mubr.bf16.gmra.mrb[0].mxu0 %v3450
      %v4826 = vpop.f32.mrb[0].mxu0
      %v4827 = vadd.f32 %v4666, %v4826
      %v4828 = vpop.f32.mrb[0].mxu0
      %v4829 = vpop.f32.mrb[0].mxu0
      %v4830 = vadd.f32 %v4669, %v4829
      %v4831 = vpop.f32.mrb[0].mxu0
      %4832 = vdwg.mxu0
      %v4833 = vadd.f32 %v2561, %v4707
      %v4834 = vadd.f32 %v2562, %v4710
      %v4835 = vadd.f32 %v2563, %v4715
      %v4836 = vadd.f32 %v2564, %v4718
      %v4837 = vadd.f32 %v2565, %v4723
      %v4838 = vadd.f32 %v2566, %v4726
      %v4839 = vadd.f32 %v2567, %v4731
      %v4840 = vadd.f32 %v2568, %v4734
      %v4841 = vadd.f32 %v2569, %v4739
      %v4842 = vadd.f32 %v2570, %v4742
      %v4843 = vadd.f32 %v2571, %v4747
      %v4844 = vadd.f32 %v2572, %v4750
      %v4845 = vadd.f32 %v2573, %v4755
      %v4846 = vadd.f32 %v2574, %v4758
      %v4847 = vadd.f32 %v2575, %v4763
      %v4848 = vadd.f32 %v2576, %v4766
      %v4849 = vadd.f32 %v2577, %v4771
      %v4850 = vadd.f32 %v2578, %v4774
      %v4851 = vadd.f32 %v2579, %v4779
      %v4852 = vadd.f32 %v2580, %v4782
      %v4853 = vadd.f32 %v2581, %v4787
      %v4854 = vadd.f32 %v2582, %v4790
      %v4855 = vadd.f32 %v2583, %v4795
      %v4856 = vadd.f32 %v2584, %v4798
      %v4857 = vadd.f32 %v2585, %v4803
      %v4858 = vadd.f32 %v2586, %v4806
      %v4859 = vadd.f32 %v2587, %v4811
      %v4860 = vadd.f32 %v2588, %v4814
      %v4861 = vadd.f32 %v2589, %v4819
      %v4862 = vadd.f32 %v2590, %v4822
      %v4863 = vadd.f32 %v2591, %v4827
      %v4864 = vadd.f32 %v2592, %v4830
      %4865 = vst [vmem:[%s361 + $0x1] sm:$0xff] %v4833
      %4866 = vst [vmem:[%s361 + $0x9] sm:$0xff] %v4834
      %4867 = vst [vmem:[%s361 + $0x19] sm:$0xff] %v4835
      %4868 = vst [vmem:[%s361 + $0x21] sm:$0xff] %v4836
      %4869 = vst [vmem:[%s361 + $0x31] sm:$0xff] %v4837
      %4870 = vst [vmem:[%s361 + $0x39] sm:$0xff] %v4838
      %4871 = vst [vmem:[%s361 + $0x49] sm:$0xff] %v4839
      %4872 = vst [vmem:[%s361 + $0x51] sm:$0xff] %v4840
      %4873 = vst [vmem:[%s361 + $0x61] sm:$0xff] %v4841
      %4874 = vst [vmem:[%s361 + $0x69] sm:$0xff] %v4842
      %4875 = vst [vmem:[%s361 + $0x79] sm:$0xff] %v4843
      %4876 = vst [vmem:[%s361 + $0x81] sm:$0xff] %v4844
      %4877 = vst [vmem:[%s361 + $0x91] sm:$0xff] %v4845
      %4878 = vst [vmem:[%s361 + $0x99] sm:$0xff] %v4846
      %4879 = vst [vmem:[%s361 + $0xa9] sm:$0xff] %v4847
      %4880 = vst [vmem:[%s361 + $0xb1] sm:$0xff] %v4848
      %4881 = vst [vmem:[%s361 + $0xc1] sm:$0xff] %v4849
      %4882 = vst [vmem:[%s361 + $0xc9] sm:$0xff] %v4850
      %4883 = vst [vmem:[%s361 + $0xd9] sm:$0xff] %v4851
      %4884 = vst [vmem:[%s361 + $0xe1] sm:$0xff] %v4852
      %4885 = vst [vmem:[%s361 + $0xf1] sm:$0xff] %v4853
      %4886 = vst [vmem:[%s361 + $0xf9] sm:$0xff] %v4854
      %4887 = vst [vmem:[%s361 + $0x109] sm:$0xff] %v4855
      %4888 = vst [vmem:[%s361 + $0x111] sm:$0xff] %v4856
      %4889 = vst [vmem:[%s361 + $0x121] sm:$0xff] %v4857
      %4890 = vst [vmem:[%s361 + $0x129] sm:$0xff] %v4858
      %4891 = vst [vmem:[%s361 + $0x139] sm:$0xff] %v4859
      %4892 = vst [vmem:[%s361 + $0x141] sm:$0xff] %v4860
      %4893 = vst [vmem:[%s361 + $0x151] sm:$0xff] %v4861
      %4894 = vst [vmem:[%s361 + $0x159] sm:$0xff] %v4862
      %4895 = vst [vmem:[%s361 + $0x169] sm:$0xff] %v4863
      %4896 = vst [vmem:[%s361 + $0x171] sm:$0xff] %v4864
      %p4897 = scmp.lt.s32.totalorder %s15, 1
      %s4898 = scalar_select %p4897, %s15, 1
      %s4899 = smul.addr %s4898, 54
      %s4900 = smul.addr %s4899, 8
      %s4901 = scalar_lea.vmem %s4, %s4900
      // Predicated region
      $region37: #{densenet_forward.6} parent=35 // pred_check
        %p4902 = pneg %p122
      $region38: #{densenet_forward.6} parent=35 // pred_check_branch
        %4904 = sbr.rel (%p4902) target = $region40
      $region39: #{densenet_forward.6} parent=35 // pred_region
        _
      $region40: #{densenet_forward.6} parent=35 // pred_fallthru
        _
    $region36: #{densenet_forward.6} parent=5 // pred_fallthru
      _
    %p4905 = scmp.le.s32.totalorder 2, %s10
    // Predicated region
    $region41: #{densenet_forward.6} parent=5 // pred_check
      %p4906 = pneg %p4905
    $region42: #{densenet_forward.6} parent=5 // pred_check_branch
      %4908 = sbr.rel (%p4906) target = $region44
    $region43: #{densenet_forward.6} parent=5 // pred_region
      %s4909 = ssub.s32 %s10, 2
      // Predicated region
      $region45: #{densenet_forward.6} parent=43 // pred_check
        %p4910 = pneg %p128
      $region46: #{densenet_forward.6} parent=43 // pred_check_branch
        %4912 = sbr.rel (%p4910) target = $region48
      $region47: #{densenet_forward.6} parent=43 // pred_region
        %p4913 = scmp.lt.s32.totalorder %s16, 1
        %s4914 = scalar_select %p4913, %s16, 1
        %s4915 = smul.addr %s4914, 54
        %s4916 = smul.addr %s4915, 8
        %s4917 = scalar_lea.vmem %s4, %s4916
      $region48: #{densenet_forward.6} parent=43 // pred_fallthru
        _
    $region44: #{densenet_forward.6} parent=5 // pred_fallthru
      _
  $region6: #{densenet_forward.6} parent=0 // loop_footer
    %s14 = sadd.s32 1, %s10
  $region7: #{densenet_forward.6} parent=0 // loop_footer_branch
    %9 = sbr.rel target = $region3
  $region8: #{densenet_forward.6} parent=0 // loop_exit
    _

</llo_original>
